<compile_context>
chip_gen: v5e
topology: v5e:2x2
jax: 0.10.0
libtpu: 0.0.40
codegen_flags: <defaults>
</compile_context>

<pallas_src>
import functools
import math

import jax
import jax.numpy as jnp
from jax import lax
from jax.experimental import pallas as pl
from jax.experimental.pallas import tpu as pltpu

# MXU operand dtype (bf16 fast path on v5e/v6e/v7x); all accumulation stays f32.
MM_DTYPE = jnp.bfloat16
PAIR_VMEM_LIMIT = 48 * 1024 * 1024


def _pick_tile_m(m, tm_max=256):
    """Row-tile size: large tiles at real sizes, >=2 grid steps when possible."""
    if m >= 2 * tm_max:
        return tm_max
    if m % 16 == 0 and m >= 16:
        return min(tm_max, m // 2)
    return m


def _pick_seq_tile(n, pref=128):
    """Tile along a sequence-like axis; only tiles when it divides evenly."""
    if n > pref and n % pref == 0:
        return pref
    return n


def _sigmoid(x):
    # exp on the EUP, divide replaced by approx reciprocal (free slot).
    return pl.reciprocal(1.0 + jnp.exp(-x), approx=True)


# ---------------------------------------------------------------------------
# Generic tiled linear (optional fused pre-LayerNorm).  K-reduction accumulator
# only when the K grid actually has >1 step.
# ---------------------------------------------------------------------------

def _linear_kernel_direct(*refs, has_ln, eps):
    if has_ln:
        x_ref, w_ref, b_ref, g_ref, bb_ref, o_ref = refs
    else:
        x_ref, w_ref, b_ref, o_ref = refs
    x = x_ref[...]
    if has_ln:
        xf = x.astype(jnp.float32)
        mu = jnp.mean(xf, axis=-1, keepdims=True)
        xc = xf - mu
        var = jnp.mean(xc * xc, axis=-1, keepdims=True)
        x = xc * lax.rsqrt(var + eps) * g_ref[...] + bb_ref[...]
    y = jnp.dot(x.astype(MM_DTYPE), w_ref[...],
                preferred_element_type=jnp.float32) + b_ref[...]
    o_ref[...] = y.astype(o_ref.dtype)


def _linear_kernel_acc(x_ref, w_ref, b_ref, o_ref, acc_ref, *, nk):
    kk = pl.program_id(1)

    @pl.when(kk == 0)
    def _():
        acc_ref[...] = jnp.zeros_like(acc_ref)

    acc_ref[...] += jnp.dot(x_ref[...].astype(MM_DTYPE), w_ref[...],
                            preferred_element_type=jnp.float32)

    @pl.when(kk == nk - 1)
    def _():
        o_ref[...] = (acc_ref[...] + b_ref[...]).astype(o_ref.dtype)


def linear_fused(x2d, w, b=None, ln=None, ln_eps=1e-5, tm_max=256, tk_max=512,
                 out_dtype=jnp.float32):
    """y = (LayerNorm?(x)) @ w + b.  x2d: (M, K), w: (K, N).  M tiled; K tiled only
    when large and LN-free (LN needs the full row for its statistics)."""
    M, K = x2d.shape
    N = w.shape[1]
    has_ln = ln is not None
    tm = _pick_tile_m(M, tm_max)
    tk = tk_max if ((not has_ln) and K > tk_max and K % tk_max == 0) else K
    nm = pl.cdiv(M, tm)
    nk = K // tk
    if b is None:
        b = jnp.zeros((N,), jnp.float32)
    b2d = b.reshape(1, N).astype(jnp.float32)
    w_mm = w.astype(MM_DTYPE)

    if nk == 1:
        args = [x2d, w_mm, b2d]
        in_specs = [pl.BlockSpec((tm, K), lambda i: (i, 0)),
                    pl.BlockSpec((K, N), lambda i: (0, 0)),
                    pl.BlockSpec((1, N), lambda i: (0, 0))]
        if has_ln:
            args += [ln["g"].reshape(1, K).astype(jnp.float32),
                     ln["b"].reshape(1, K).astype(jnp.float32)]
            in_specs += [pl.BlockSpec((1, K), lambda i: (0, 0)),
                         pl.BlockSpec((1, K), lambda i: (0, 0))]
        return pl.pallas_call(
            functools.partial(_linear_kernel_direct, has_ln=has_ln, eps=ln_eps),
            out_shape=jax.ShapeDtypeStruct((M, N), out_dtype),
            grid=(nm,),
            in_specs=in_specs,
            out_specs=pl.BlockSpec((tm, N), lambda i: (i, 0)),
            compiler_params=pltpu.CompilerParams(dimension_semantics=("parallel",)),
        )(*args)

    # K-tiled path (no LN), f32 accumulator in VMEM.
    return pl.pallas_call(
        functools.partial(_linear_kernel_acc, nk=nk),
        out_shape=jax.ShapeDtypeStruct((M, N), out_dtype),
        grid=(nm, nk),
        in_specs=[pl.BlockSpec((tm, tk), lambda i, kk: (i, kk)),
                  pl.BlockSpec((tk, N), lambda i, kk: (kk, 0)),
                  pl.BlockSpec((1, N), lambda i, kk: (0, 0))],
        out_specs=pl.BlockSpec((tm, N), lambda i, kk: (i, 0)),
        scratch_shapes=[pltpu.VMEM((tm, N), jnp.float32)],
        compiler_params=pltpu.CompilerParams(
            dimension_semantics=("parallel", "arbitrary")),
    )(x2d, w_mm, b2d)


# ---------------------------------------------------------------------------
# Stand-alone tiled LayerNorm (sequence path)
# ---------------------------------------------------------------------------

def _layernorm_kernel(x_ref, g_ref, b_ref, o_ref, *, eps):
    x = x_ref[...].astype(jnp.float32)
    mu = jnp.mean(x, axis=-1, keepdims=True)
    xc = x - mu
    var = jnp.mean(xc * xc, axis=-1, keepdims=True)
    o_ref[...] = xc * lax.rsqrt(var + eps) * g_ref[...] + b_ref[...]


def layernorm_pallas(x2d, gamma, beta, eps=1e-5):
    M, D = x2d.shape
    tm = _pick_tile_m(M)
    nm = pl.cdiv(M, tm)
    return pl.pallas_call(
        functools.partial(_layernorm_kernel, eps=eps),
        out_shape=jax.ShapeDtypeStruct((M, D), jnp.float32),
        grid=(nm,),
        in_specs=[pl.BlockSpec((tm, D), lambda i: (i, 0)),
                  pl.BlockSpec((1, D), lambda i: (0, 0)),
                  pl.BlockSpec((1, D), lambda i: (0, 0))],
        out_specs=pl.BlockSpec((tm, D), lambda i: (i, 0)),
        compiler_params=pltpu.CompilerParams(dimension_semantics=("parallel",)),
    )(x2d.astype(jnp.float32), gamma.reshape(1, D).astype(jnp.float32),
      beta.reshape(1, D).astype(jnp.float32))


# ---------------------------------------------------------------------------
# Conv1d (k shifted matmuls) + residual + LayerNorm(norm3), fused
# ---------------------------------------------------------------------------

def _conv_res_ln_kernel(x_ref, w_ref, b_ref, g_ref, bb_ref, o_ref, *, k, L, pad, eps):
    acc = jnp.dot(x_ref[0, 0:L, :].astype(MM_DTYPE), w_ref[0],
                  preferred_element_type=jnp.float32)
    for t in range(1, k):
        acc += jnp.dot(x_ref[0, t:t + L, :].astype(MM_DTYPE), w_ref[t],
                       preferred_element_type=jnp.float32)
    acc = acc + b_ref[...]
    res = x_ref[0, pad:pad + L, :].astype(jnp.float32)     # un-padded input rows
    y = res + acc
    mu = jnp.mean(y, axis=-1, keepdims=True)
    yc = y - mu
    var = jnp.mean(yc * yc, axis=-1, keepdims=True)
    o_ref[0] = yc * lax.rsqrt(var + eps) * g_ref[...] + bb_ref[...]


def conv_res_ln_pallas(x_masked, w, b, ln, k, eps=1e-5):
    """LayerNorm(x + Conv1d_k(x)) on channels-last (B, L, C); weights stored (k, C_in, C_out).
    NOTE: a real PyTorch Conv1d checkpoint (C_out, C_in, k) needs a transpose before use."""
    B, L, C = x_masked.shape
    pad = k // 2
    xp = jnp.pad(x_masked, ((0, 0), (pad, pad), (0, 0))) if pad else x_masked
    Lp = L + 2 * pad
    # TODO(synk): replace the shifted slices with pltpu.roll taps and tile L with
    # halo rows for very long sequences (sequence path is tiny vs. the pair path).
    return pl.pallas_call(
        functools.partial(_conv_res_ln_kernel, k=k, L=L, pad=pad, eps=eps),
        out_shape=jax.ShapeDtypeStruct((B, L, C), jnp.float32),
        grid=(B,),
        in_specs=[pl.BlockSpec((1, Lp, C), lambda bb: (bb, 0, 0)),
                  pl.BlockSpec((k, C, C), lambda bb: (0, 0, 0)),
                  pl.BlockSpec((1, C), lambda bb: (0, 0)),
                  pl.BlockSpec((1, C), lambda bb: (0, 0)),
                  pl.BlockSpec((1, C), lambda bb: (0, 0))],
        out_specs=pl.BlockSpec((1, L, C), lambda bb: (bb, 0, 0)),
        compiler_params=pltpu.CompilerParams(dimension_semantics=("parallel",)),
    )(xp.astype(jnp.float32), w.astype(MM_DTYPE), b.reshape(1, C).astype(jnp.float32),
      ln["g"].reshape(1, C).astype(jnp.float32), ln["b"].reshape(1, C).astype(jnp.float32))


# ---------------------------------------------------------------------------
# Multi-head attention: grid (B, nQ); per-head results stored straight into the
# lane-dense (tq, H*Dh) output slice.  bf16 in / bf16 out.
# ---------------------------------------------------------------------------

def _mha_kernel(q_ref, k_ref, v_ref, bias_ref, mask_ref, o_ref, *, nhead, dh, inv_temp):
    bad = mask_ref[0] == -1.0                       # (tq, L)
    neg = jnp.float32(-1e-9)                        # sic: matches reference masked_fill value
    for h in range(nhead):
        q = q_ref[0, h]                             # (tq, Dh) bf16
        k = k_ref[0, h]                             # (L, Dh)  bf16
        v = v_ref[0, h]
        logits = lax.dot_general(q, k, (((1,), (1,)), ((), ())),
                                 preferred_element_type=jnp.float32) * inv_temp
        logits = logits + bias_ref[0, h].astype(jnp.float32)
        logits = jnp.where(bad, neg, logits)
        m = jnp.max(logits, axis=-1, keepdims=True)
        e = jnp.exp(logits - m)
        p = e * pl.reciprocal(jnp.sum(e, axis=-1, keepdims=True), approx=True)
        o = jnp.dot(p.astype(v.dtype), v, preferred_element_type=jnp.float32)
        o_ref[0, :, h * dh:(h + 1) * dh] = o.astype(o_ref.dtype)


def mha_pallas(q, k, v, bias, attn_mask, inv_temp):
    """q,k,v: (B,H,L,Dh) bf16; bias: (B,H,L,L) bf16; attn_mask: (B,L,L) ±1 f32.
    Out: (B, L, H*Dh) bf16 (MXU-only consumer)."""
    B, H, L, Dh = q.shape
    tq = _pick_seq_tile(L, 128)
    nQ = L // tq
    # TODO(synk): flash-style KV tiling with online-softmax scratch for very long L.
    return pl.pallas_call(
        functools.partial(_mha_kernel, nhead=H, dh=Dh, inv_temp=float(inv_temp)),
        out_shape=jax.ShapeDtypeStruct((B, L, H * Dh), MM_DTYPE),
        grid=(B, nQ),
        in_specs=[pl.BlockSpec((1, H, tq, Dh), lambda b, i: (b, 0, i, 0)),
                  pl.BlockSpec((1, H, L, Dh), lambda b, i: (b, 0, 0, 0)),
                  pl.BlockSpec((1, H, L, Dh), lambda b, i: (b, 0, 0, 0)),
                  pl.BlockSpec((1, H, tq, L), lambda b, i: (b, 0, i, 0)),
                  pl.BlockSpec((1, tq, L), lambda b, i: (b, i, 0))],
        out_specs=pl.BlockSpec((1, tq, H * Dh), lambda b, i: (b, i, 0)),
        compiler_params=pltpu.CompilerParams(
            dimension_semantics=("parallel", "parallel")),
    )(q.astype(MM_DTYPE), k.astype(MM_DTYPE), v.astype(MM_DTYPE),
      bias.astype(MM_DTYPE), attn_mask.astype(jnp.float32))


# ---------------------------------------------------------------------------
# Outer product mean, step 2: seq(b,i,:) @ N(b,:,(j,p)) + bias + residual
# (row + column tiled, bf16 MXU operands)
# ---------------------------------------------------------------------------

def _opm_pair_kernel(seq_ref, n_ref, b_ref, res_ref, o_ref):
    acc = jnp.dot(seq_ref[0].astype(MM_DTYPE), n_ref[0].astype(MM_DTYPE),
                  preferred_element_type=jnp.float32)
    o_ref[0] = acc + b_ref[...] + res_ref[0]


def opm_pair_pallas(seq, n_cm, bias_row, residual):
    """seq: (B,L,dm) bf16; n_cm: (B,dm,L*P) bf16; bias_row: (1,L*P); residual: (B,L,L*P)."""
    B, L, dm = seq.shape
    LP = n_cm.shape[-1]
    ti = _pick_seq_tile(L, 128)
    tj = _pick_seq_tile(LP, 512)
    nI, nJ = L // ti, LP // tj
    return pl.pallas_call(
        _opm_pair_kernel,
        out_shape=jax.ShapeDtypeStruct((B, L, LP), jnp.float32),
        grid=(B, nI, nJ),
        in_specs=[pl.BlockSpec((1, ti, dm), lambda b, i, j: (b, i, 0)),
                  pl.BlockSpec((1, dm, tj), lambda b, i, j: (b, 0, j)),
                  pl.BlockSpec((1, tj), lambda b, i, j: (0, j)),
                  pl.BlockSpec((1, ti, tj), lambda b, i, j: (b, i, j))],
        out_specs=pl.BlockSpec((1, ti, tj), lambda b, i, j: (b, i, j)),
        compiler_params=pltpu.CompilerParams(
            dimension_semantics=("parallel", "parallel", "parallel"),
            vmem_limit_bytes=PAIR_VMEM_LIMIT),
    )(seq, n_cm, bias_row.astype(jnp.float32), residual)


def outer_product_mean_p(src, p, residual):
    """Outer_Product_Mean with the residual add fused; output written in final layout."""
    B, L, D = src.shape
    dm = p["proj_down1"]["w"].shape[1]
    W2 = p["proj_down2"]["w"]                      # (dm*dm, P), row index = c*dm + d
    b2 = p["proj_down2"]["b"]
    P = W2.shape[1]
    seq = linear_fused(src.reshape(B * L, D), p["proj_down1"]["w"],
                       p["proj_down1"]["b"], out_dtype=MM_DTYPE).reshape(B, L, dm)
    # N[b, j, d, p] = sum_c seq[b, j, c] * W2[c*dm + d, p]
    n_rows = linear_fused(seq.reshape(B * L, dm), W2.reshape(dm, dm * P), None,
                          out_dtype=MM_DTYPE)
    # small (B, L, dm, P) bf16 transpose in glue (dm/L times smaller than the pair tensor)
    n_cm = jnp.transpose(n_rows.reshape(B, L, dm, P), (0, 2, 1, 3)).reshape(B, dm, L * P)
    out = opm_pair_pallas(seq, n_cm, jnp.tile(b2, L).reshape(1, L * P),
                          residual.reshape(B, L, L * P))
    return out.reshape(B, L, L, P)


# ---------------------------------------------------------------------------
# Triangle multiplicative module, stage 1: fused LN + 4-way projection
# (left, right), gating + masking applied in-kernel, bf16 outputs
# ---------------------------------------------------------------------------

def _tri_proj_kernel(x_ref, m_ref, w_ref, b_ref, g_ref, bb_ref, l_ref, r_ref, *, P, eps):
    x = x_ref[...].astype(jnp.float32)
    mu = jnp.mean(x, axis=-1, keepdims=True)
    xc = x - mu
    var = jnp.mean(xc * xc, axis=-1, keepdims=True)
    xn = xc * lax.rsqrt(var + eps) * g_ref[...] + bb_ref[...]
    acc = jnp.dot(xn.astype(MM_DTYPE), w_ref[...],
                  preferred_element_type=jnp.float32) + b_ref[...]
    m = m_ref[...]                                   # per pair-row mask value (can be ±1)
    lp = acc[:, 0 * P:1 * P] * m
    rp = acc[:, 1 * P:2 * P] * m
    lg = _sigmoid(acc[:, 2 * P:3 * P])
    rg = _sigmoid(acc[:, 3 * P:4 * P])
    l_ref[...] = (lp * lg).astype(l_ref.dtype)
    r_ref[...] = (rp * rg).astype(r_ref.dtype)


def tri_proj_pallas(x2d, mask_col, w4, b4, ln, eps=1e-5):
    M, P = x2d.shape
    N = w4.shape[1]
    tm = _pick_tile_m(M, 512)
    nm = pl.cdiv(M, tm)
    return pl.pallas_call(
        functools.partial(_tri_proj_kernel, P=P, eps=eps),
        out_shape=(jax.ShapeDtypeStruct((M, P), MM_DTYPE),
                   jax.ShapeDtypeStruct((M, P), MM_DTYPE)),
        grid=(nm,),
        in_specs=[pl.BlockSpec((tm, P), lambda i: (i, 0)),
                  pl.BlockSpec((tm, 1), lambda i: (i, 0)),
                  pl.BlockSpec((P, N), lambda i: (0, 0)),
                  pl.BlockSpec((1, N), lambda i: (0, 0)),
                  pl.BlockSpec((1, P), lambda i: (0, 0)),
                  pl.BlockSpec((1, P), lambda i: (0, 0))],
        out_specs=(pl.BlockSpec((tm, P), lambda i: (i, 0)),
                   pl.BlockSpec((tm, P), lambda i: (i, 0))),
        compiler_params=pltpu.CompilerParams(dimension_semantics=("parallel",)),
    )(x2d, mask_col.astype(jnp.float32), w4.astype(MM_DTYPE),
      b4.reshape(1, N).astype(jnp.float32), ln["g"].reshape(1, P).astype(jnp.float32),
      ln["b"].reshape(1, P).astype(jnp.float32))


# ---------------------------------------------------------------------------
# Triangle multiplicative module, stage 2: channels-major batched mix.
# a_cm/b_cm: (B, P, L, L) bf16 already oriented so out[d,i,j] = sum_k a[d,i,k]*b[d,j,k].
# ---------------------------------------------------------------------------

def _tri_mix_kernel_direct(a_ref, b_ref, o_ref):
    o_ref[0] = lax.dot_general(
        a_ref[0], b_ref[0], (((2,), (2,)), ((0,), (0,))),
        preferred_element_type=jnp.float32).astype(o_ref.dtype)


def _tri_mix_kernel_acc(a_ref, b_ref, o_ref, acc_ref, *, nk):
    kk = pl.program_id(2)

    @pl.when(kk == 0)
    def _():
        acc_ref[...] = jnp.zeros_like(acc_ref)

    acc_ref[...] += lax.dot_general(
        a_ref[0], b_ref[0], (((2,), (2,)), ((0,), (0,))),
        preferred_element_type=jnp.float32)

    @pl.when(kk == nk - 1)
    def _():
        o_ref[0] = acc_ref[...].astype(o_ref.dtype)


def tri_mix_pallas(a_cm, b_cm):
    B, P, L, _ = a_cm.shape
    ti = _pick_seq_tile(L, 128)
    tk = _pick_seq_tile(L, 128)
    nI, nK = L // ti, L // tk
    if nK == 1:
        return pl.pallas_call(
            _tri_mix_kernel_direct,
            out_shape=jax.ShapeDtypeStruct((B, P, L, L), MM_DTYPE),
            grid=(B, nI),
            in_specs=[pl.BlockSpec((1, P, ti, L), lambda b, i: (b, 0, i, 0)),
                      pl.BlockSpec((1, P, L, L), lambda b, i: (b, 0, 0, 0))],
            out_specs=pl.BlockSpec((1, P, ti, L), lambda b, i: (b, 0, i, 0)),
            compiler_params=pltpu.CompilerParams(
                dimension_semantics=("parallel", "parallel"),
                vmem_limit_bytes=PAIR_VMEM_LIMIT),
        )(a_cm, b_cm)
    return pl.pallas_call(
        functools.partial(_tri_mix_kernel_acc, nk=nK),
        out_shape=jax.ShapeDtypeStruct((B, P, L, L), MM_DTYPE),
        grid=(B, nI, nK),
        in_specs=[pl.BlockSpec((1, P, ti, tk), lambda b, i, k: (b, 0, i, k)),
                  pl.BlockSpec((1, P, L, tk), lambda b, i, k: (b, 0, 0, k))],
        out_specs=pl.BlockSpec((1, P, ti, L), lambda b, i, k: (b, 0, i, 0)),
        scratch_shapes=[pltpu.VMEM((P, ti, L), jnp.float32)],
        compiler_params=pltpu.CompilerParams(
            dimension_semantics=("parallel", "parallel", "arbitrary"),
            vmem_limit_bytes=PAIR_VMEM_LIMIT),
    )(a_cm, b_cm)


# ---------------------------------------------------------------------------
# Triangle multiplicative module, stage 3 (epilogue):
#   out_gate (recomputed from pair) * to_out_norm(mix) @ to_out + residual
# ---------------------------------------------------------------------------

def _tri_epilogue_kernel(mix_ref, pair_ref, ng_ref, nb_ref, wog_ref, bog_ref,
                         tg_ref, tb_ref, wo_ref, bo_ref, o_ref, *, eps):
    pair = pair_ref[...]
    pmu = jnp.mean(pair, axis=-1, keepdims=True)
    pc = pair - pmu
    pvar = jnp.mean(pc * pc, axis=-1, keepdims=True)
    pn = pc * lax.rsqrt(pvar + eps) * ng_ref[...] + nb_ref[...]
    og = _sigmoid(jnp.dot(pn.astype(MM_DTYPE), wog_ref[...],
                          preferred_element_type=jnp.float32) + bog_ref[...])
    mx = mix_ref[...].astype(jnp.float32)
    mmu = jnp.mean(mx, axis=-1, keepdims=True)
    mc = mx - mmu
    mvar = jnp.mean(mc * mc, axis=-1, keepdims=True)
    mn = mc * lax.rsqrt(mvar + eps) * tg_ref[...] + tb_ref[...]
    y = jnp.dot((mn * og).astype(MM_DTYPE), wo_ref[...],
                preferred_element_type=jnp.float32) + bo_ref[...]
    o_ref[...] = pair + y                            # residual add fused


def tri_epilogue_pallas(mix_cl, pair, norm_ln, out_gate, to_out_norm, to_out, eps=1e-5):
    B, L, _, P = pair.shape
    M = B * L * L
    tm = _pick_tile_m(M, 512)
    nm = pl.cdiv(M, tm)
    out = pl.pallas_call(
        functools.partial(_tri_epilogue_kernel, eps=eps),
        out_shape=jax.ShapeDtypeStruct((M, P), jnp.float32),
        grid=(nm,),
        in_specs=[pl.BlockSpec((tm, P), lambda i: (i, 0)),
                  pl.BlockSpec((tm, P), lambda i: (i, 0)),
                  pl.BlockSpec((1, P), lambda i: (0, 0)),
                  pl.BlockSpec((1, P), lambda i: (0, 0)),
                  pl.BlockSpec((P, P), lambda i: (0, 0)),
                  pl.BlockSpec((1, P), lambda i: (0, 0)),
                  pl.BlockSpec((1, P), lambda i: (0, 0)),
                  pl.BlockSpec((1, P), lambda i: (0, 0)),
                  pl.BlockSpec((P, P), lambda i: (0, 0)),
                  pl.BlockSpec((1, P), lambda i: (0, 0))],
        out_specs=pl.BlockSpec((tm, P), lambda i: (i, 0)),
        compiler_params=pltpu.CompilerParams(dimension_semantics=("parallel",)),
    )(mix_cl.reshape(M, P), pair.reshape(M, P),
      norm_ln["g"].reshape(1, P).astype(jnp.float32),
      norm_ln["b"].reshape(1, P).astype(jnp.float32),
      out_gate["w"].astype(MM_DTYPE),
      out_gate["b"].reshape(1, P).astype(jnp.float32),
      to_out_norm["g"].reshape(1, P).astype(jnp.float32),
      to_out_norm["b"].reshape(1, P).astype(jnp.float32),
      to_out["w"].astype(MM_DTYPE),
      to_out["b"].reshape(1, P).astype(jnp.float32))
    return out.reshape(B, L, L, P)


def triangle_multiplicative_p(pair, mask_pm1, p, mix):
    """Returns pair + TriangleMultiplicativeModule(pair) (residual add fused)."""
    B, L, _, P = pair.shape
    sm = mask_pm1.astype(jnp.float32)
    mask_col = (sm[:, :, None] * sm[:, None, :]).reshape(B * L * L, 1)
    w4 = jnp.concatenate([p["left_proj"]["w"], p["right_proj"]["w"],
                          p["left_gate"]["w"], p["right_gate"]["w"]], axis=1)
    b4 = jnp.concatenate([p["left_proj"]["b"], p["right_proj"]["b"],
                          p["left_gate"]["b"], p["right_gate"]["b"]])
    left, right = tri_proj_pallas(pair.reshape(B * L * L, P), mask_col, w4, b4, p["norm"])
    left = left.reshape(B, L, L, P)
    right = right.reshape(B, L, L, P)
    # channels-major bf16 glue transposes; orientation chosen so the mix kernel
    # always computes out[d,i,j] = sum_k a[d,i,k] * b[d,j,k]
    if mix == "ingoing":      # reference: '... i k d, ... j k d -> ... i j d'
        a_cm = jnp.transpose(left, (0, 3, 1, 2))
        b_cm = jnp.transpose(right, (0, 3, 1, 2))
    else:                     # "outgoing": '... k j d, ... k i d -> ... i j d'
        a_cm = jnp.transpose(right, (0, 3, 2, 1))
        b_cm = jnp.transpose(left, (0, 3, 2, 1))
    mix_cm = tri_mix_pallas(a_cm, b_cm)                     # (B, P, L, L) bf16
    mix_cl = jnp.transpose(mix_cm, (0, 2, 3, 1))            # (B, L, L, P) bf16 glue
    return tri_epilogue_pallas(mix_cl, pair, p["norm"], p["out_gate"],
                               p["to_out_norm"], p["to_out"], mix=None) if False else \
        tri_epilogue_pallas(mix_cl, pair, p["norm"], p["out_gate"],
                            p["to_out_norm"], p["to_out"])


# ---------------------------------------------------------------------------
# Pair transition: LN + lin1 + ReLU + lin2 + residual, fused
# ---------------------------------------------------------------------------

def _pair_transition_kernel(x_ref, g_ref, bb_ref, w1_ref, b1_ref, w2_ref, b2_ref,
                            o_ref, *, eps):
    x = x_ref[...].astype(jnp.float32)
    mu = jnp.mean(x, axis=-1, keepdims=True)
    xc = x - mu
    var = jnp.mean(xc * xc, axis=-1, keepdims=True)
    xn = xc * lax.rsqrt(var + eps) * g_ref[...] + bb_ref[...]
    h = jnp.dot(xn.astype(MM_DTYPE), w1_ref[...],
                preferred_element_type=jnp.float32) + b1_ref[...]
    h = jnp.maximum(h, 0.0)
    y = jnp.dot(h.astype(MM_DTYPE), w2_ref[...],
                preferred_element_type=jnp.float32) + b2_ref[...]
    o_ref[...] = x + y                               # residual add fused


def pair_transition_pallas(pair, ln, lin1, lin2, eps=1e-5):
    B, L, _, P = pair.shape
    M = B * L * L
    Nh = lin1["w"].shape[1]
    tm = _pick_tile_m(M, 512)
    nm = pl.cdiv(M, tm)
    out = pl.pallas_call(
        functools.partial(_pair_transition_kernel, eps=eps),
        out_shape=jax.ShapeDtypeStruct((M, P), jnp.float32),
        grid=(nm,),
        in_specs=[pl.BlockSpec((tm, P), lambda i: (i, 0)),
                  pl.BlockSpec((1, P), lambda i: (0, 0)),
                  pl.BlockSpec((1, P), lambda i: (0, 0)),
                  pl.BlockSpec((P, Nh), lambda i: (0, 0)),
                  pl.BlockSpec((1, Nh), lambda i: (0, 0)),
                  pl.BlockSpec((Nh, P), lambda i: (0, 0)),
                  pl.BlockSpec((1, P), lambda i: (0, 0))],
        out_specs=pl.BlockSpec((tm, P), lambda i: (i, 0)),
        compiler_params=pltpu.CompilerParams(dimension_semantics=("parallel",)),
    )(pair.reshape(M, P),
      ln["g"].reshape(1, P).astype(jnp.float32), ln["b"].reshape(1, P).astype(jnp.float32),
      lin1["w"].astype(MM_DTYPE), lin1["b"].reshape(1, Nh).astype(jnp.float32),
      lin2["w"].astype(MM_DTYPE), lin2["b"].reshape(1, P).astype(jnp.float32))
    return out.reshape(B, L, L, P)


# ---------------------------------------------------------------------------
# Model composition (functional, eval-mode)
# ---------------------------------------------------------------------------

def _gelu_exact(x):
    # nn.GELU() default: exact erf formulation.
    # TODO(synk): erf kept in glue JAX; Mosaic erf lowering not assumed.
    return 0.5 * x * (1.0 + lax.erf(x / math.sqrt(2.0)))


def relative_position_encoding_p(L, p):
    res = jnp.arange(L)
    d = jnp.clip(res[:, None] - res[None, :], -8, 8)
    onehot = (d[..., None] == jnp.arange(-8, 9)).astype(jnp.float32)     # (L, L, 17)
    out = linear_fused(onehot.reshape(L * L, 17), p["w"], p["b"])
    return out.reshape(L, L, p["w"].shape[1])


def conv_transformer_layer_p(src, pair, mask_cur, p, cfg, k):
    B, L, D = src.shape
    H = cfg.nhead
    dk = D // H
    P = cfg.pairwise_dimension

    # --- conv + residual + norm3 (fused); src masking stays in glue -------------
    src = conv_res_ln_pallas(src * mask_cur[..., None], p["conv_w"], p["conv_b"],
                             p["norm3"], k)

    # --- pairwise bias: fused LayerNorm + linear over pair rows, bf16 ----------
    # TODO(synk): emit lane-dense (B, H, ti, L) bias blocks directly instead of the
    # narrow (., H) store + glue transpose.
    pb = linear_fused(pair.reshape(B * L * L, P), p["pairwise2heads"]["w"], None,
                      ln=p["pairwise_norm"], out_dtype=MM_DTYPE)
    pb = jnp.transpose(pb.reshape(B, L, L, H), (0, 3, 1, 2))             # (B, H, L, L) bf16

    # --- multi-head self-attention with fused Q/K/V projection ------------------
    # src_mask[src_mask == 0] = -1  (in-place in the reference; carried functionally)
    mask_pm1 = jnp.where(mask_cur == 0.0, -1.0, mask_cur)
    attn_mask = mask_pm1[:, :, None] * mask_pm1[:, None, :]              # (B, L, L), ±1
    sa = p["self_attn"]
    wqkv = jnp.concatenate([sa["w_q"]["w"], sa["w_k"]["w"], sa["w_v"]["w"]], axis=1)
    qkv = linear_fused(src.reshape(B * L, D), wqkv, None, out_dtype=MM_DTYPE)
    qkv = jnp.transpose(qkv.reshape(B, L, 3, H, dk), (2, 0, 3, 1, 4))    # (3, B, H, L, dk)
    attn = mha_pallas(qkv[0], qkv[1], qkv[2], pb, attn_mask, 1.0 / math.sqrt(dk))
    s2 = linear_fused(attn.reshape(B * L, D), sa["fc"]["w"], sa["fc"]["b"])
    s2 = layernorm_pallas(s2 + src.reshape(B * L, D),
                          sa["layer_norm"]["g"], sa["layer_norm"]["b"], eps=1e-6)
    srcf = layernorm_pallas(src.reshape(B * L, D) + s2, p["norm1"]["g"], p["norm1"]["b"])

    # --- feed-forward ------------------------------------------------------------
    h1 = linear_fused(srcf, p["linear1"]["w"], p["linear1"]["b"])
    h1 = _gelu_exact(h1)
    ff = linear_fused(h1, p["linear2"]["w"], p["linear2"]["b"])
    srcf = layernorm_pallas(srcf + ff, p["norm2"]["g"], p["norm2"]["b"])
    src = srcf.reshape(B, L, D)

    # --- pairwise updates (residual adds fused into the kernels) -----------------
    pair = outer_product_mean_p(src, p["outer_product_mean"], residual=pair)
    pair = triangle_multiplicative_p(pair, mask_pm1, p["tri_out"], "outgoing")
    pair = triangle_multiplicative_p(pair, mask_pm1, p["tri_in"], "ingoing")
    # cfg.use_triangular_attention == False -> TriangleAttention branch skipped.
    pair = pair_transition_pallas(pair, p["pt_norm"], p["pt_lin1"], p["pt_lin2"])
    return src, pair, mask_pm1


def ribonanzanet_forward(params, tokens, src_mask, cfg):
    B, L = tokens.shape
    P = cfg.pairwise_dimension
    src = params["embedding"][tokens]                                    # (B, L, ninp)
    pos = relative_position_encoding_p(L, params["pos_linear"])          # (L, L, P)
    pair = outer_product_mean_p(src, params["opm"],
                                residual=jnp.broadcast_to(pos[None], (B, L, L, P)))
    mask_cur = src_mask.astype(jnp.float32)
    for i in range(cfg.nlayers):
        k = cfg.k if i != cfg.nlayers - 1 else 1
        src, pair, mask_cur = conv_transformer_layer_p(
            src, pair, mask_cur, params["layers"][i], cfg, k)
    out = linear_fused(src.reshape(B * L, cfg.ninp),
                       params["decoder"]["w"], params["decoder"]["b"])
    out = out.reshape(B, L, -1)
    if out.shape[-1] == 1:
        out = jnp.squeeze(out, axis=-1)
    # NOTE: reference adds `pairwise_features.mean() * 0` (value-identical); dropped.
    return out


# ---------------------------------------------------------------------------
# Deterministic parameter construction (synthetic; mirrors __init__ shapes)
# ---------------------------------------------------------------------------

class Config:
    ntoken = 5
    ninp = 32
    nhead = 4
    nlayers = 2
    nclass = 2
    dim_msa = 32                      # Outer_Product_Mean default
    pairwise_dimension = 16
    use_triangular_attention = False
    dropout = 0.1                     # eval: identity
    k = 3


def linear_params(key, d_in, d_out, bias=True):
    kw, kb = jax.random.split(key)
    bound = 1.0 / math.sqrt(d_in)
    p = {"w": jax.random.uniform(kw, (d_in, d_out), jnp.float32, -bound, bound)}
    p["b"] = (jax.random.uniform(kb, (d_out,), jnp.float32, -bound, bound)
              if bias else None)
    return p


def ln_params(dim):
    return {"g": jnp.ones((dim,), jnp.float32), "b": jnp.zeros((dim,), jnp.float32)}


def gate_params(d_in, d_out):
    # TriangleMultiplicativeModule gates: weight = 0, bias = 1 (per reference __init__)
    return {"w": jnp.zeros((d_in, d_out), jnp.float32),
            "b": jnp.ones((d_out,), jnp.float32)}


def make_layer_params(key, cfg, k):
    d, P, H, hid, dm = cfg.ninp, cfg.pairwise_dimension, cfg.nhead, cfg.ninp * 4, cfg.dim_msa
    keys = iter(jax.random.split(key, 32))
    nk = lambda: next(keys)

    def tri(kk):
        ks = jax.random.split(kk, 3)
        return {"norm": ln_params(P),
                "left_proj": linear_params(ks[0], P, P),
                "right_proj": linear_params(ks[1], P, P),
                "left_gate": gate_params(P, P),
                "right_gate": gate_params(P, P),
                "out_gate": gate_params(P, P),
                "to_out_norm": ln_params(P),
                "to_out": linear_params(ks[2], P, P)}

    kc1, kc2 = jax.random.split(nk())
    cbound = 1.0 / math.sqrt(d * k)
    return {
        "self_attn": {"w_q": linear_params(nk(), d, d, bias=False),
                      "w_k": linear_params(nk(), d, d, bias=False),
                      "w_v": linear_params(nk(), d, d, bias=False),
                      "fc": linear_params(nk(), d, d),
                      "layer_norm": ln_params(d)},
        "linear1": linear_params(nk(), d, hid),
        "linear2": linear_params(nk(), hid, d),
        "norm1": ln_params(d), "norm2": ln_params(d), "norm3": ln_params(d),
        "pairwise2heads": linear_params(nk(), P, H, bias=False),
        "pairwise_norm": ln_params(P),
        # conv weights stored as (k, C_in, C_out); PyTorch checkpoints are (C_out, C_in, k)
        "conv_w": jax.random.uniform(kc1, (k, d, d), jnp.float32, -cbound, cbound),
        "conv_b": jax.random.uniform(kc2, (d,), jnp.float32, -cbound, cbound),
        "tri_out": tri(nk()), "tri_in": tri(nk()),
        "outer_product_mean": {"proj_down1": linear_params(nk(), d, dm),
                               "proj_down2": linear_params(nk(), dm * dm, P)},
        "pt_norm": ln_params(P),
        "pt_lin1": linear_params(nk(), P, 4 * P),
        "pt_lin2": linear_params(nk(), 4 * P, P),
    }


def make_params(key, cfg):
    keys = jax.random.split(key, cfg.nlayers + 5)
    emb = jax.random.normal(keys[0], (cfg.ntoken, cfg.ninp), jnp.float32)
    emb = emb.at[4].set(0.0)  # padding_idx = 4
    return {
        "embedding": emb,
        "decoder": linear_params(keys[1], cfg.ninp, cfg.nclass),
        "opm": {"proj_down1": linear_params(keys[2], cfg.ninp, cfg.dim_msa),
                "proj_down2": linear_params(keys[3], cfg.dim_msa * cfg.dim_msa,
                                            cfg.pairwise_dimension)},
        "pos_linear": linear_params(keys[4], 17, cfg.pairwise_dimension),
        "layers": [make_layer_params(keys[5 + i], cfg,
                                     cfg.k if i != cfg.nlayers - 1 else 1)
                   for i in range(cfg.nlayers)],
    }


# ---------------------------------------------------------------------------
# Main
# ---------------------------------------------------------------------------

if __name__ == "__main__":
    cfg = Config()
    key = jax.random.PRNGKey(0)
    pkey, tkey = jax.random.split(key)
    params = make_params(pkey, cfg)

    B, L = 2, 8
    tokens = jax.random.randint(tkey, (B, L), 0, 4)
    src_mask = jnp.ones((B, L), jnp.float32).at[1, 6:].set(0.0)   # pad tail of 2nd seq
    tokens = jnp.where(src_mask > 0, tokens, 4)                    # padded tokens -> pad idx

    fwd = jax.jit(functools.partial(ribonanzanet_forward, cfg=cfg))
    out = jax.block_until_ready(fwd(params, tokens, src_mask))

    assert out.shape == (B, L, cfg.nclass), out.shape
    assert bool(jnp.all(jnp.isfinite(out)))
    print("KERNEL_OK")
</pallas_src>

<mosaic_0001>
module attributes {stable_mosaic.version = 11 : i64} {
  func.func @_linear_kernel_direct(%arg0: i32, %arg1: memref<8x32xf32, #tpu.memory_space<vmem>>, %arg2: memref<32x32xbf16, #tpu.memory_space<vmem>>, %arg3: memref<1x32xf32, #tpu.memory_space<vmem>>, %arg4: memref<8x32xbf16, #tpu.memory_space<vmem>>) attributes {dimension_semantics = [#tpu.dimension_semantics<parallel>], iteration_bounds = array<i64: 2>, scalar_prefetch = 0 : i64, scratch_operands = 0 : i64, tpu.core_type = #tpu.core_type<tc>, window_params = [{transform_indices = @transform_0, window_bounds = array<i64: 8, 32>}, {pipeline_mode = #tpu.pipeline_mode<synchronous>, transform_indices = @transform_1, window_bounds = array<i64: 32, 32>}, {pipeline_mode = #tpu.pipeline_mode<synchronous>, transform_indices = @transform_2, window_bounds = array<i64: 1, 32>}, {transform_indices = @transform_3, window_bounds = array<i64: 8, 32>}]} {
    %c0 = arith.constant 0 : index
    %c0_0 = arith.constant 0 : index
    %0 = vector.load %arg1[%c0, %c0_0] : memref<8x32xf32, #tpu.memory_space<vmem>>, vector<8x32xf32>
    %1 = arith.truncf %0 : vector<8x32xf32> to vector<8x32xbf16>
    %c0_1 = arith.constant 0 : index
    %c0_2 = arith.constant 0 : index
    %2 = vector.load %arg2[%c0_1, %c0_2] : memref<32x32xbf16, #tpu.memory_space<vmem>>, vector<32x32xbf16>
    %cst = arith.constant dense<0.000000e+00> : vector<8x32xf32>
    %3 = tpu.matmul %1, %2, %cst {dimension_numbers = #tpu.dot_dimension_numbers<[1], [0], [0], [1], [0, 0, 1, 1], [], []>} : vector<8x32xbf16>, vector<32x32xbf16>, vector<8x32xf32> -> vector<8x32xf32>
    %c0_3 = arith.constant 0 : index
    %c0_4 = arith.constant 0 : index
    %4 = vector.load %arg3[%c0_3, %c0_4] : memref<1x32xf32, #tpu.memory_space<vmem>>, vector<1x32xf32>
    %5 = vector.broadcast %4 : vector<1x32xf32> to vector<8x32xf32>
    %6 = arith.addf %3, %5 : vector<8x32xf32>
    %7 = arith.truncf %6 : vector<8x32xf32> to vector<8x32xbf16>
    %c0_5 = arith.constant 0 : index
    %c0_6 = arith.constant 0 : index
    %8 = vector.load %arg4[%c0_5, %c0_6] : memref<8x32xbf16, #tpu.memory_space<vmem>>, vector<8x32xbf16>
    tpu.vector_store %arg4[%c0_5, %c0_6], %7 {strides = array<i32>} : memref<8x32xbf16, #tpu.memory_space<vmem>>, vector<8x32xbf16>,
    return
  }
  func.func @transform_0(%arg0: i32) -> (i32, i32) {
    %c0_i32 = arith.constant 0 : i32
    %c0_i32_0 = arith.constant 0 : i32
    return %arg0, %c0_i32 : i32, i32
  }
  func.func @transform_1(%arg0: i32) -> (i32, i32) {
    %c0_i32 = arith.constant 0 : i32
    %c0_i32_0 = arith.constant 0 : i32
    %c0_i32_1 = arith.constant 0 : i32
    return %c0_i32, %c0_i32_0 : i32, i32
  }
  func.func @transform_2(%arg0: i32) -> (i32, i32) {
    %c0_i32 = arith.constant 0 : i32
    %c0_i32_0 = arith.constant 0 : i32
    %c0_i32_1 = arith.constant 0 : i32
    return %c0_i32, %c0_i32_0 : i32, i32
  }
  func.func @transform_3(%arg0: i32) -> (i32, i32) {
    %c0_i32 = arith.constant 0 : i32
    %c0_i32_0 = arith.constant 0 : i32
    return %arg0, %c0_i32 : i32, i32
  }
}

module attributes {stable_mosaic.version = 11 : i64} {
  func.func @_linear_kernel_direct(%arg0: i32, %arg1: memref<8x32xbf16, #tpu.memory_space<vmem>>, %arg2: memref<32x512xbf16, #tpu.memory_space<vmem>>, %arg3: memref<1x512xf32, #tpu.memory_space<vmem>>, %arg4: memref<8x512xbf16, #tpu.memory_space<vmem>>) attributes {dimension_semantics = [#tpu.dimension_semantics<parallel>], iteration_bounds = array<i64: 2>, scalar_prefetch = 0 : i64, scratch_operands = 0 : i64, tpu.core_type = #tpu.core_type<tc>, window_params = [{transform_indices = @transform_0, window_bounds = array<i64: 8, 32>}, {pipeline_mode = #tpu.pipeline_mode<synchronous>, transform_indices = @transform_1, window_bounds = array<i64: 32, 512>}, {pipeline_mode = #tpu.pipeline_mode<synchronous>, transform_indices = @transform_2, window_bounds = array<i64: 1, 512>}, {transform_indices = @transform_3, window_bounds = array<i64: 8, 512>}]} {
    %c0 = arith.constant 0 : index
    %c0_0 = arith.constant 0 : index
    %0 = vector.load %arg1[%c0, %c0_0] : memref<8x32xbf16, #tpu.memory_space<vmem>>, vector<8x32xbf16>
    %c0_1 = arith.constant 0 : index
    %c0_2 = arith.constant 0 : index
    %1 = vector.load %arg2[%c0_1, %c0_2] : memref<32x512xbf16, #tpu.memory_space<vmem>>, vector<32x512xbf16>
    %cst = arith.constant dense<0.000000e+00> : vector<8x512xf32>
    %2 = tpu.matmul %0, %1, %cst {dimension_numbers = #tpu.dot_dimension_numbers<[1], [0], [0], [1], [0, 0, 1, 1], [], []>} : vector<8x32xbf16>, vector<32x512xbf16>, vector<8x512xf32> -> vector<8x512xf32>
    %c0_3 = arith.constant 0 : index
    %c0_4 = arith.constant 0 : index
    %3 = vector.load %arg3[%c0_3, %c0_4] : memref<1x512xf32, #tpu.memory_space<vmem>>, vector<1x512xf32>
    %4 = vector.broadcast %3 : vector<1x512xf32> to vector<8x512xf32>
    %5 = arith.addf %2, %4 : vector<8x512xf32>
    %6 = arith.truncf %5 : vector<8x512xf32> to vector<8x512xbf16>
    %c0_5 = arith.constant 0 : index
    %c0_6 = arith.constant 0 : index
    %7 = vector.load %arg4[%c0_5, %c0_6] : memref<8x512xbf16, #tpu.memory_space<vmem>>, vector<8x512xbf16>
    tpu.vector_store %arg4[%c0_5, %c0_6], %6 {strides = array<i32>} : memref<8x512xbf16, #tpu.memory_space<vmem>>, vector<8x512xbf16>,
    return
  }
  func.func @transform_0(%arg0: i32) -> (i32, i32) {
    %c0_i32 = arith.constant 0 : i32
    %c0_i32_0 = arith.constant 0 : i32
    return %arg0, %c0_i32 : i32, i32
  }
  func.func @transform_1(%arg0: i32) -> (i32, i32) {
    %c0_i32 = arith.constant 0 : i32
    %c0_i32_0 = arith.constant 0 : i32
    %c0_i32_1 = arith.constant 0 : i32
    return %c0_i32, %c0_i32_0 : i32, i32
  }
  func.func @transform_2(%arg0: i32) -> (i32, i32) {
    %c0_i32 = arith.constant 0 : i32
    %c0_i32_0 = arith.constant 0 : i32
    %c0_i32_1 = arith.constant 0 : i32
    return %c0_i32, %c0_i32_0 : i32, i32
  }
  func.func @transform_3(%arg0: i32) -> (i32, i32) {
    %c0_i32 = arith.constant 0 : i32
    %c0_i32_0 = arith.constant 0 : i32
    return %arg0, %c0_i32 : i32, i32
  }
}

module attributes {stable_mosaic.version = 11 : i64} {
  func.func @_linear_kernel_direct(%arg0: i32, %arg1: memref<32x17xf32, #tpu.memory_space<vmem>>, %arg2: memref<17x16xbf16, #tpu.memory_space<vmem>>, %arg3: memref<1x16xf32, #tpu.memory_space<vmem>>, %arg4: memref<32x16xf32, #tpu.memory_space<vmem>>) attributes {dimension_semantics = [#tpu.dimension_semantics<parallel>], iteration_bounds = array<i64: 2>, scalar_prefetch = 0 : i64, scratch_operands = 0 : i64, tpu.core_type = #tpu.core_type<tc>, window_params = [{transform_indices = @transform_0, window_bounds = array<i64: 32, 17>}, {pipeline_mode = #tpu.pipeline_mode<synchronous>, transform_indices = @transform_1, window_bounds = array<i64: 17, 16>}, {pipeline_mode = #tpu.pipeline_mode<synchronous>, transform_indices = @transform_2, window_bounds = array<i64: 1, 16>}, {transform_indices = @transform_3, window_bounds = array<i64: 32, 16>}]} {
    %c0 = arith.constant 0 : index
    %c0_0 = arith.constant 0 : index
    %0 = vector.load %arg1[%c0, %c0_0] : memref<32x17xf32, #tpu.memory_space<vmem>>, vector<32x17xf32>
    %1 = arith.truncf %0 : vector<32x17xf32> to vector<32x17xbf16>
    %c0_1 = arith.constant 0 : index
    %c0_2 = arith.constant 0 : index
    %2 = vector.load %arg2[%c0_1, %c0_2] : memref<17x16xbf16, #tpu.memory_space<vmem>>, vector<17x16xbf16>
    %cst = arith.constant dense<0.000000e+00> : vector<32x16xf32>
    %3 = tpu.matmul %1, %2, %cst {dimension_numbers = #tpu.dot_dimension_numbers<[1], [0], [0], [1], [0, 0, 1, 1], [], []>} : vector<32x17xbf16>, vector<17x16xbf16>, vector<32x16xf32> -> vector<32x16xf32>
    %c0_3 = arith.constant 0 : index
    %c0_4 = arith.constant 0 : index
    %4 = vector.load %arg3[%c0_3, %c0_4] : memref<1x16xf32, #tpu.memory_space<vmem>>, vector<1x16xf32>
    %5 = vector.broadcast %4 : vector<1x16xf32> to vector<32x16xf32>
    %6 = arith.addf %3, %5 : vector<32x16xf32>
    %c0_5 = arith.constant 0 : index
    %c0_6 = arith.constant 0 : index
    %7 = vector.load %arg4[%c0_5, %c0_6] : memref<32x16xf32, #tpu.memory_space<vmem>>, vector<32x16xf32>
    tpu.vector_store %arg4[%c0_5, %c0_6], %6 {strides = array<i32>} : memref<32x16xf32, #tpu.memory_space<vmem>>, vector<32x16xf32>,
    return
  }
  func.func @transform_0(%arg0: i32) -> (i32, i32) {
    %c0_i32 = arith.constant 0 : i32
    %c0_i32_0 = arith.constant 0 : i32
    return %arg0, %c0_i32 : i32, i32
  }
  func.func @transform_1(%arg0: i32) -> (i32, i32) {
    %c0_i32 = arith.constant 0 : i32
    %c0_i32_0 = arith.constant 0 : i32
    %c0_i32_1 = arith.constant 0 : i32
    return %c0_i32, %c0_i32_0 : i32, i32
  }
  func.func @transform_2(%arg0: i32) -> (i32, i32) {
    %c0_i32 = arith.constant 0 : i32
    %c0_i32_0 = arith.constant 0 : i32
    %c0_i32_1 = arith.constant 0 : i32
    return %c0_i32, %c0_i32_0 : i32, i32
  }
  func.func @transform_3(%arg0: i32) -> (i32, i32) {
    %c0_i32 = arith.constant 0 : i32
    %c0_i32_0 = arith.constant 0 : i32
    return %arg0, %c0_i32 : i32, i32
  }
}

module attributes {stable_mosaic.version = 11 : i64} {
  func.func @_opm_pair_kernel(%arg0: i32, %arg1: i32, %arg2: i32, %arg3: memref<1x8x32xbf16, #tpu.memory_space<vmem>>, %arg4: memref<1x32x128xbf16, #tpu.memory_space<vmem>>, %arg5: memref<1x128xf32, #tpu.memory_space<vmem>>, %arg6: memref<1x8x128xf32, #tpu.memory_space<vmem>>, %arg7: memref<1x8x128xf32, #tpu.memory_space<vmem>>) attributes {dimension_semantics = [#tpu.dimension_semantics<parallel>, #tpu.dimension_semantics<parallel>, #tpu.dimension_semantics<parallel>], iteration_bounds = array<i64: 2, 1, 1>, scalar_prefetch = 0 : i64, scratch_operands = 0 : i64, tpu.core_type = #tpu.core_type<tc>, window_params = [{transform_indices = @transform_0, window_bounds = array<i64: 1, 8, 32>}, {transform_indices = @transform_1, window_bounds = array<i64: 1, 32, 128>}, {transform_indices = @transform_2, window_bounds = array<i64: 1, 128>}, {transform_indices = @transform_3, window_bounds = array<i64: 1, 8, 128>}, {transform_indices = @transform_4, window_bounds = array<i64: 1, 8, 128>}]} {
    %c0 = arith.constant 0 : index
    %c0_0 = arith.constant 0 : index
    %c0_1 = arith.constant 0 : index
    %0 = vector.load %arg3[%c0, %c0_0, %c0_1] : memref<1x8x32xbf16, #tpu.memory_space<vmem>>, vector<1x8x32xbf16>
    %1 = vector.shape_cast %0 : vector<1x8x32xbf16> to vector<8x32xbf16>
    %c0_2 = arith.constant 0 : index
    %c0_3 = arith.constant 0 : index
    %c0_4 = arith.constant 0 : index
    %2 = vector.load %arg4[%c0_2, %c0_3, %c0_4] : memref<1x32x128xbf16, #tpu.memory_space<vmem>>, vector<1x32x128xbf16>
    %3 = vector.shape_cast %2 : vector<1x32x128xbf16> to vector<32x128xbf16>
    %cst = arith.constant dense<0.000000e+00> : vector<8x128xf32>
    %4 = tpu.matmul %1, %3, %cst {dimension_numbers = #tpu.dot_dimension_numbers<[1], [0], [0], [1], [0, 0, 1, 1], [], []>} : vector<8x32xbf16>, vector<32x128xbf16>, vector<8x128xf32> -> vector<8x128xf32>
    %c0_5 = arith.constant 0 : index
    %c0_6 = arith.constant 0 : index
    %5 = vector.load %arg5[%c0_5, %c0_6] : memref<1x128xf32, #tpu.memory_space<vmem>>, vector<1x128xf32>
    %6 = vector.broadcast %5 : vector<1x128xf32> to vector<8x128xf32>
    %7 = arith.addf %4, %6 : vector<8x128xf32>
    %c0_7 = arith.constant 0 : index
    %c0_8 = arith.constant 0 : index
    %c0_9 = arith.constant 0 : index
    %8 = vector.load %arg6[%c0_7, %c0_8, %c0_9] : memref<1x8x128xf32, #tpu.memory_space<vmem>>, vector<1x8x128xf32>
    %9 = vector.shape_cast %8 : vector<1x8x128xf32> to vector<8x128xf32>
    %10 = arith.addf %7, %9 : vector<8x128xf32>
    %c0_10 = arith.constant 0 : index
    %c0_11 = arith.constant 0 : index
    %c0_12 = arith.constant 0 : index
    %11 = vector.load %arg7[%c0_10, %c0_11, %c0_12] : memref<1x8x128xf32, #tpu.memory_space<vmem>>, vector<1x8x128xf32>
    %12 = vector.shape_cast %11 : vector<1x8x128xf32> to vector<8x128xf32>
    %13 = vector.shape_cast %10 : vector<8x128xf32> to vector<1x8x128xf32>
    tpu.vector_store %arg7[%c0_10, %c0_11, %c0_12], %13 {strides = array<i32>} : memref<1x8x128xf32, #tpu.memory_space<vmem>>, vector<1x8x128xf32>,
    return
  }
  func.func @transform_0(%arg0: i32, %arg1: i32, %arg2: i32) -> (i32, i32, i32) {
    %c0_i32 = arith.constant 0 : i32
    %c0_i32_0 = arith.constant 0 : i32
    return %arg0, %arg1, %c0_i32 : i32, i32, i32
  }
  func.func @transform_1(%arg0: i32, %arg1: i32, %arg2: i32) -> (i32, i32, i32) {
    %c0_i32 = arith.constant 0 : i32
    %c0_i32_0 = arith.constant 0 : i32
    return %arg0, %c0_i32, %arg2 : i32, i32, i32
  }
  func.func @transform_2(%arg0: i32, %arg1: i32, %arg2: i32) -> (i32, i32) {
    %c0_i32 = arith.constant 0 : i32
    %c0_i32_0 = arith.constant 0 : i32
    return %c0_i32, %arg2 : i32, i32
  }
  func.func @transform_3(%arg0: i32, %arg1: i32, %arg2: i32) -> (i32, i32, i32) {
    %c0_i32 = arith.constant 0 : i32
    return %arg0, %arg1, %arg2 : i32, i32, i32
  }
  func.func @transform_4(%arg0: i32, %arg1: i32, %arg2: i32) -> (i32, i32, i32) {
    %c0_i32 = arith.constant 0 : i32
    return %arg0, %arg1, %arg2 : i32, i32, i32
  }
}

module attributes {stable_mosaic.version = 11 : i64} {
  func.func @_linear_kernel_direct(%arg0: i32, %arg1: memref<64x16xf32, #tpu.memory_space<vmem>>, %arg2: memref<16x4xbf16, #tpu.memory_space<vmem>>, %arg3: memref<1x4xf32, #tpu.memory_space<vmem>>, %arg4: memref<1x16xf32, #tpu.memory_space<vmem>>, %arg5: memref<1x16xf32, #tpu.memory_space<vmem>>, %arg6: memref<64x4xbf16, #tpu.memory_space<vmem>>) attributes {dimension_semantics = [#tpu.dimension_semantics<parallel>], iteration_bounds = array<i64: 2>, scalar_prefetch = 0 : i64, scratch_operands = 0 : i64, tpu.core_type = #tpu.core_type<tc>, window_params = [{transform_indices = @transform_0, window_bounds = array<i64: 64, 16>}, {pipeline_mode = #tpu.pipeline_mode<synchronous>, transform_indices = @transform_1, window_bounds = array<i64: 16, 4>}, {pipeline_mode = #tpu.pipeline_mode<synchronous>, transform_indices = @transform_2, window_bounds = array<i64: 1, 4>}, {pipeline_mode = #tpu.pipeline_mode<synchronous>, transform_indices = @transform_3, window_bounds = array<i64: 1, 16>}, {pipeline_mode = #tpu.pipeline_mode<synchronous>, transform_indices = @transform_4, window_bounds = array<i64: 1, 16>}, {transform_indices = @transform_5, window_bounds = array<i64: 64, 4>}]} {
    %c0 = arith.constant 0 : index
    %c0_0 = arith.constant 0 : index
    %0 = vector.load %arg1[%c0, %c0_0] : memref<64x16xf32, #tpu.memory_space<vmem>>, vector<64x16xf32>
    %cst = arith.constant dense<0.000000e+00> : vector<64xf32>
    %1 = vector.multi_reduction <add>, %0, %cst [1] : vector<64x16xf32> to vector<64xf32>
    %2 = vector.shape_cast %1 : vector<64xf32> to vector<64x1xf32>
    %cst_1 = arith.constant 1.600000e+01 : f32
    %3 = vector.broadcast %cst_1 : f32 to vector<64x1xf32>
    %4 = arith.divf %2, %3 : vector<64x1xf32>
    %5 = vector.broadcast %4 : vector<64x1xf32> to vector<64x16xf32>
    %6 = arith.subf %0, %5 : vector<64x16xf32>
    %7 = arith.mulf %6, %6 : vector<64x16xf32>
    %cst_2 = arith.constant dense<0.000000e+00> : vector<64xf32>
    %8 = vector.multi_reduction <add>, %7, %cst_2 [1] : vector<64x16xf32> to vector<64xf32>
    %9 = vector.shape_cast %8 : vector<64xf32> to vector<64x1xf32>
    %cst_3 = arith.constant 1.600000e+01 : f32
    %10 = vector.broadcast %cst_3 : f32 to vector<64x1xf32>
    %11 = arith.divf %9, %10 : vector<64x1xf32>
    %cst_4 = arith.constant 9.99999974E-6 : f32
    %12 = vector.broadcast %cst_4 : f32 to vector<64x1xf32>
    %13 = arith.addf %11, %12 : vector<64x1xf32>
    %14 = math.rsqrt %13 : vector<64x1xf32>
    %15 = vector.broadcast %14 : vector<64x1xf32> to vector<64x16xf32>
    %16 = arith.mulf %6, %15 : vector<64x16xf32>
    %c0_5 = arith.constant 0 : index
    %c0_6 = arith.constant 0 : index
    %17 = vector.load %arg4[%c0_5, %c0_6] : memref<1x16xf32, #tpu.memory_space<vmem>>, vector<1x16xf32>
    %18 = vector.broadcast %17 : vector<1x16xf32> to vector<64x16xf32>
    %19 = arith.mulf %16, %18 : vector<64x16xf32>
    %c0_7 = arith.constant 0 : index
    %c0_8 = arith.constant 0 : index
    %20 = vector.load %arg5[%c0_7, %c0_8] : memref<1x16xf32, #tpu.memory_space<vmem>>, vector<1x16xf32>
    %21 = vector.broadcast %20 : vector<1x16xf32> to vector<64x16xf32>
    %22 = arith.addf %19, %21 : vector<64x16xf32>
    %23 = arith.truncf %22 : vector<64x16xf32> to vector<64x16xbf16>
    %c0_9 = arith.constant 0 : index
    %c0_10 = arith.constant 0 : index
    %24 = vector.load %arg2[%c0_9, %c0_10] : memref<16x4xbf16, #tpu.memory_space<vmem>>, vector<16x4xbf16>
    %cst_11 = arith.constant dense<0.000000e+00> : vector<64x4xf32>
    %25 = tpu.matmul %23, %24, %cst_11 {dimension_numbers = #tpu.dot_dimension_numbers<[1], [0], [0], [1], [0, 0, 1, 1], [], []>} : vector<64x16xbf16>, vector<16x4xbf16>, vector<64x4xf32> -> vector<64x4xf32>
    %c0_12 = arith.constant 0 : index
    %c0_13 = arith.constant 0 : index
    %26 = vector.load %arg3[%c0_12, %c0_13] : memref<1x4xf32, #tpu.memory_space<vmem>>, vector<1x4xf32>
    %27 = vector.broadcast %26 : vector<1x4xf32> to vector<64x4xf32>
    %28 = arith.addf %25, %27 : vector<64x4xf32>
    %29 = arith.truncf %28 : vector<64x4xf32> to vector<64x4xbf16>
    %c0_14 = arith.constant 0 : index
    %c0_15 = arith.constant 0 : index
    %30 = vector.load %arg6[%c0_14, %c0_15] : memref<64x4xbf16, #tpu.memory_space<vmem>>, vector<64x4xbf16>
    tpu.vector_store %arg6[%c0_14, %c0_15], %29 {strides = array<i32>} : memref<64x4xbf16, #tpu.memory_space<vmem>>, vector<64x4xbf16>,
    return
  }
  func.func @transform_0(%arg0: i32) -> (i32, i32) {
    %c0_i32 = arith.constant 0 : i32
    %c0_i32_0 = arith.constant 0 : i32
    return %arg0, %c0_i32 : i32, i32
  }
  func.func @transform_1(%arg0: i32) -> (i32, i32) {
    %c0_i32 = arith.constant 0 : i32
    %c0_i32_0 = arith.constant 0 : i32
    %c0_i32_1 = arith.constant 0 : i32
    return %c0_i32, %c0_i32_0 : i32, i32
  }
  func.func @transform_2(%arg0: i32) -> (i32, i32) {
    %c0_i32 = arith.constant 0 : i32
    %c0_i32_0 = arith.constant 0 : i32
    %c0_i32_1 = arith.constant 0 : i32
    return %c0_i32, %c0_i32_0 : i32, i32
  }
  func.func @transform_3(%arg0: i32) -> (i32, i32) {
    %c0_i32 = arith.constant 0 : i32
    %c0_i32_0 = arith.constant 0 : i32
    %c0_i32_1 = arith.constant 0 : i32
    return %c0_i32, %c0_i32_0 : i32, i32
  }
  func.func @transform_4(%arg0: i32) -> (i32, i32) {
    %c0_i32 = arith.constant 0 : i32
    %c0_i32_0 = arith.constant 0 : i32
    %c0_i32_1 = arith.constant 0 : i32
    return %c0_i32, %c0_i32_0 : i32, i32
  }
  func.func @transform_5(%arg0: i32) -> (i32, i32) {
    %c0_i32 = arith.constant 0 : i32
    %c0_i32_0 = arith.constant 0 : i32
    return %arg0, %c0_i32 : i32, i32
  }
}

module attributes {stable_mosaic.version = 11 : i64} {
  func.func @_conv_res_ln_kernel(%arg0: i32, %arg1: memref<1x10x32xf32, #tpu.memory_space<vmem>>, %arg2: memref<3x32x32xbf16, #tpu.memory_space<vmem>>, %arg3: memref<1x32xf32, #tpu.memory_space<vmem>>, %arg4: memref<1x32xf32, #tpu.memory_space<vmem>>, %arg5: memref<1x32xf32, #tpu.memory_space<vmem>>, %arg6: memref<1x8x32xf32, #tpu.memory_space<vmem>>) attributes {dimension_semantics = [#tpu.dimension_semantics<parallel>], iteration_bounds = array<i64: 2>, scalar_prefetch = 0 : i64, scratch_operands = 0 : i64, tpu.core_type = #tpu.core_type<tc>, window_params = [{transform_indices = @transform_0, window_bounds = array<i64: 1, 10, 32>}, {pipeline_mode = #tpu.pipeline_mode<synchronous>, transform_indices = @transform_1, window_bounds = array<i64: 3, 32, 32>}, {pipeline_mode = #tpu.pipeline_mode<synchronous>, transform_indices = @transform_2, window_bounds = array<i64: 1, 32>}, {pipeline_mode = #tpu.pipeline_mode<synchronous>, transform_indices = @transform_3, window_bounds = array<i64: 1, 32>}, {pipeline_mode = #tpu.pipeline_mode<synchronous>, transform_indices = @transform_4, window_bounds = array<i64: 1, 32>}, {transform_indices = @transform_5, window_bounds = array<i64: 1, 8, 32>}]} {
    %c0 = arith.constant 0 : index
    %c0_0 = arith.constant 0 : index
    %c0_1 = arith.constant 0 : index
    %0 = vector.load %arg1[%c0, %c0_0, %c0_1] : memref<1x10x32xf32, #tpu.memory_space<vmem>>, vector<1x8x32xf32>
    %1 = vector.shape_cast %0 : vector<1x8x32xf32> to vector<8x32xf32>
    %2 = arith.truncf %1 : vector<8x32xf32> to vector<8x32xbf16>
    %c0_2 = arith.constant 0 : index
    %c0_3 = arith.constant 0 : index
    %c0_4 = arith.constant 0 : index
    %3 = vector.load %arg2[%c0_2, %c0_3, %c0_4] : memref<3x32x32xbf16, #tpu.memory_space<vmem>>, vector<1x32x32xbf16>
    %4 = vector.shape_cast %3 : vector<1x32x32xbf16> to vector<32x32xbf16>
    %cst = arith.constant dense<0.000000e+00> : vector<8x32xf32>
    %5 = tpu.matmul %2, %4, %cst {dimension_numbers = #tpu.dot_dimension_numbers<[1], [0], [0], [1], [0, 0, 1, 1], [], []>} : vector<8x32xbf16>, vector<32x32xbf16>, vector<8x32xf32> -> vector<8x32xf32>
    %c0_5 = arith.constant 0 : index
    %c1 = arith.constant 1 : index
    %c0_6 = arith.constant 0 : index
    %6 = vector.load %arg1[%c0_5, %c1, %c0_6] : memref<1x10x32xf32, #tpu.memory_space<vmem>>, vector<1x8x32xf32>
    %7 = vector.shape_cast %6 : vector<1x8x32xf32> to vector<8x32xf32>
    %8 = arith.truncf %7 : vector<8x32xf32> to vector<8x32xbf16>
    %c1_7 = arith.constant 1 : index
    %c0_8 = arith.constant 0 : index
    %c0_9 = arith.constant 0 : index
    %9 = vector.load %arg2[%c1_7, %c0_8, %c0_9] : memref<3x32x32xbf16, #tpu.memory_space<vmem>>, vector<1x32x32xbf16>
    %10 = vector.shape_cast %9 : vector<1x32x32xbf16> to vector<32x32xbf16>
    %cst_10 = arith.constant dense<0.000000e+00> : vector<8x32xf32>
    %11 = tpu.matmul %8, %10, %cst_10 {dimension_numbers = #tpu.dot_dimension_numbers<[1], [0], [0], [1], [0, 0, 1, 1], [], []>} : vector<8x32xbf16>, vector<32x32xbf16>, vector<8x32xf32> -> vector<8x32xf32>
    %12 = arith.addf %5, %11 : vector<8x32xf32>
    %c0_11 = arith.constant 0 : index
    %c2 = arith.constant 2 : index
    %c0_12 = arith.constant 0 : index
    %13 = vector.load %arg1[%c0_11, %c2, %c0_12] : memref<1x10x32xf32, #tpu.memory_space<vmem>>, vector<1x8x32xf32>
    %14 = vector.shape_cast %13 : vector<1x8x32xf32> to vector<8x32xf32>
    %15 = arith.truncf %14 : vector<8x32xf32> to vector<8x32xbf16>
    %c2_13 = arith.constant 2 : index
    %c0_14 = arith.constant 0 : index
    %c0_15 = arith.constant 0 : index
    %16 = vector.load %arg2[%c2_13, %c0_14, %c0_15] : memref<3x32x32xbf16, #tpu.memory_space<vmem>>, vector<1x32x32xbf16>
    %17 = vector.shape_cast %16 : vector<1x32x32xbf16> to vector<32x32xbf16>
    %cst_16 = arith.constant dense<0.000000e+00> : vector<8x32xf32>
    %18 = tpu.matmul %15, %17, %cst_16 {dimension_numbers = #tpu.dot_dimension_numbers<[1], [0], [0], [1], [0, 0, 1, 1], [], []>} : vector<8x32xbf16>, vector<32x32xbf16>, vector<8x32xf32> -> vector<8x32xf32>
    %19 = arith.addf %12, %18 : vector<8x32xf32>
    %c0_17 = arith.constant 0 : index
    %c0_18 = arith.constant 0 : index
    %20 = vector.load %arg3[%c0_17, %c0_18] : memref<1x32xf32, #tpu.memory_space<vmem>>, vector<1x32xf32>
    %21 = vector.broadcast %20 : vector<1x32xf32> to vector<8x32xf32>
    %22 = arith.addf %19, %21 : vector<8x32xf32>
    %c0_19 = arith.constant 0 : index
    %c1_20 = arith.constant 1 : index
    %c0_21 = arith.constant 0 : index
    %23 = vector.load %arg1[%c0_19, %c1_20, %c0_21] : memref<1x10x32xf32, #tpu.memory_space<vmem>>, vector<1x8x32xf32>
    %24 = vector.shape_cast %23 : vector<1x8x32xf32> to vector<8x32xf32>
    %25 = arith.addf %24, %22 : vector<8x32xf32>
    %cst_22 = arith.constant dense<0.000000e+00> : vector<8xf32>
    %26 = vector.multi_reduction <add>, %25, %cst_22 [1] : vector<8x32xf32> to vector<8xf32>
    %27 = vector.shape_cast %26 : vector<8xf32> to vector<8x1xf32>
    %cst_23 = arith.constant 3.200000e+01 : f32
    %28 = vector.broadcast %cst_23 : f32 to vector<8x1xf32>
    %29 = arith.divf %27, %28 : vector<8x1xf32>
    %30 = vector.broadcast %29 : vector<8x1xf32> to vector<8x32xf32>
    %31 = arith.subf %25, %30 : vector<8x32xf32>
    %32 = arith.mulf %31, %31 : vector<8x32xf32>
    %cst_24 = arith.constant dense<0.000000e+00> : vector<8xf32>
    %33 = vector.multi_reduction <add>, %32, %cst_24 [1] : vector<8x32xf32> to vector<8xf32>
    %34 = vector.shape_cast %33 : vector<8xf32> to vector<8x1xf32>
    %cst_25 = arith.constant 3.200000e+01 : f32
    %35 = vector.broadcast %cst_25 : f32 to vector<8x1xf32>
    %36 = arith.divf %34, %35 : vector<8x1xf32>
    %cst_26 = arith.constant 9.99999974E-6 : f32
    %37 = vector.broadcast %cst_26 : f32 to vector<8x1xf32>
    %38 = arith.addf %36, %37 : vector<8x1xf32>
    %39 = math.rsqrt %38 : vector<8x1xf32>
    %40 = vector.broadcast %39 : vector<8x1xf32> to vector<8x32xf32>
    %41 = arith.mulf %31, %40 : vector<8x32xf32>
    %c0_27 = arith.constant 0 : index
    %c0_28 = arith.constant 0 : index
    %42 = vector.load %arg4[%c0_27, %c0_28] : memref<1x32xf32, #tpu.memory_space<vmem>>, vector<1x32xf32>
    %43 = vector.broadcast %42 : vector<1x32xf32> to vector<8x32xf32>
    %44 = arith.mulf %41, %43 : vector<8x32xf32>
    %c0_29 = arith.constant 0 : index
    %c0_30 = arith.constant 0 : index
    %45 = vector.load %arg5[%c0_29, %c0_30] : memref<1x32xf32, #tpu.memory_space<vmem>>, vector<1x32xf32>
    %46 = vector.broadcast %45 : vector<1x32xf32> to vector<8x32xf32>
    %47 = arith.addf %44, %46 : vector<8x32xf32>
    %c0_31 = arith.constant 0 : index
    %c0_32 = arith.constant 0 : index
    %c0_33 = arith.constant 0 : index
    %48 = vector.load %arg6[%c0_31, %c0_32, %c0_33] : memref<1x8x32xf32, #tpu.memory_space<vmem>>, vector<1x8x32xf32>
    %49 = vector.shape_cast %48 : vector<1x8x32xf32> to vector<8x32xf32>
    %50 = vector.shape_cast %47 : vector<8x32xf32> to vector<1x8x32xf32>
    tpu.vector_store %arg6[%c0_31, %c0_32, %c0_33], %50 {strides = array<i32>} : memref<1x8x32xf32, #tpu.memory_space<vmem>>, vector<1x8x32xf32>,
    return
  }
  func.func @transform_0(%arg0: i32) -> (i32, i32, i32) {
    %c0_i32 = arith.constant 0 : i32
    %c0_i32_0 = arith.constant 0 : i32
    %c0_i32_1 = arith.constant 0 : i32
    return %arg0, %c0_i32, %c0_i32_0 : i32, i32, i32
  }
  func.func @transform_1(%arg0: i32) -> (i32, i32, i32) {
    %c0_i32 = arith.constant 0 : i32
    %c0_i32_0 = arith.constant 0 : i32
    %c0_i32_1 = arith.constant 0 : i32
    %c0_i32_2 = arith.constant 0 : i32
    return %c0_i32, %c0_i32_0, %c0_i32_1 : i32, i32, i32
  }
  func.func @transform_2(%arg0: i32) -> (i32, i32) {
    %c0_i32 = arith.constant 0 : i32
    %c0_i32_0 = arith.constant 0 : i32
    %c0_i32_1 = arith.constant 0 : i32
    return %c0_i32, %c0_i32_0 : i32, i32
  }
  func.func @transform_3(%arg0: i32) -> (i32, i32) {
    %c0_i32 = arith.constant 0 : i32
    %c0_i32_0 = arith.constant 0 : i32
    %c0_i32_1 = arith.constant 0 : i32
    return %c0_i32, %c0_i32_0 : i32, i32
  }
  func.func @transform_4(%arg0: i32) -> (i32, i32) {
    %c0_i32 = arith.constant 0 : i32
    %c0_i32_0 = arith.constant 0 : i32
    %c0_i32_1 = arith.constant 0 : i32
    return %c0_i32, %c0_i32_0 : i32, i32
  }
  func.func @transform_5(%arg0: i32) -> (i32, i32, i32) {
    %c0_i32 = arith.constant 0 : i32
    %c0_i32_0 = arith.constant 0 : i32
    %c0_i32_1 = arith.constant 0 : i32
    return %arg0, %c0_i32, %c0_i32_0 : i32, i32, i32
  }
}

module attributes {stable_mosaic.version = 11 : i64} {
  func.func @_linear_kernel_direct(%arg0: i32, %arg1: memref<8x32xf32, #tpu.memory_space<vmem>>, %arg2: memref<32x96xbf16, #tpu.memory_space<vmem>>, %arg3: memref<1x96xf32, #tpu.memory_space<vmem>>, %arg4: memref<8x96xbf16, #tpu.memory_space<vmem>>) attributes {dimension_semantics = [#tpu.dimension_semantics<parallel>], iteration_bounds = array<i64: 2>, scalar_prefetch = 0 : i64, scratch_operands = 0 : i64, tpu.core_type = #tpu.core_type<tc>, window_params = [{transform_indices = @transform_0, window_bounds = array<i64: 8, 32>}, {pipeline_mode = #tpu.pipeline_mode<synchronous>, transform_indices = @transform_1, window_bounds = array<i64: 32, 96>}, {pipeline_mode = #tpu.pipeline_mode<synchronous>, transform_indices = @transform_2, window_bounds = array<i64: 1, 96>}, {transform_indices = @transform_3, window_bounds = array<i64: 8, 96>}]} {
    %c0 = arith.constant 0 : index
    %c0_0 = arith.constant 0 : index
    %0 = vector.load %arg1[%c0, %c0_0] : memref<8x32xf32, #tpu.memory_space<vmem>>, vector<8x32xf32>
    %1 = arith.truncf %0 : vector<8x32xf32> to vector<8x32xbf16>
    %c0_1 = arith.constant 0 : index
    %c0_2 = arith.constant 0 : index
    %2 = vector.load %arg2[%c0_1, %c0_2] : memref<32x96xbf16, #tpu.memory_space<vmem>>, vector<32x96xbf16>
    %cst = arith.constant dense<0.000000e+00> : vector<8x96xf32>
    %3 = tpu.matmul %1, %2, %cst {dimension_numbers = #tpu.dot_dimension_numbers<[1], [0], [0], [1], [0, 0, 1, 1], [], []>} : vector<8x32xbf16>, vector<32x96xbf16>, vector<8x96xf32> -> vector<8x96xf32>
    %c0_3 = arith.constant 0 : index
    %c0_4 = arith.constant 0 : index
    %4 = vector.load %arg3[%c0_3, %c0_4] : memref<1x96xf32, #tpu.memory_space<vmem>>, vector<1x96xf32>
    %5 = vector.broadcast %4 : vector<1x96xf32> to vector<8x96xf32>
    %6 = arith.addf %3, %5 : vector<8x96xf32>
    %7 = arith.truncf %6 : vector<8x96xf32> to vector<8x96xbf16>
    %c0_5 = arith.constant 0 : index
    %c0_6 = arith.constant 0 : index
    %8 = vector.load %arg4[%c0_5, %c0_6] : memref<8x96xbf16, #tpu.memory_space<vmem>>, vector<8x96xbf16>
    tpu.vector_store %arg4[%c0_5, %c0_6], %7 {strides = array<i32>} : memref<8x96xbf16, #tpu.memory_space<vmem>>, vector<8x96xbf16>,
    return
  }
  func.func @transform_0(%arg0: i32) -> (i32, i32) {
    %c0_i32 = arith.constant 0 : i32
    %c0_i32_0 = arith.constant 0 : i32
    return %arg0, %c0_i32 : i32, i32
  }
  func.func @transform_1(%arg0: i32) -> (i32, i32) {
    %c0_i32 = arith.constant 0 : i32
    %c0_i32_0 = arith.constant 0 : i32
    %c0_i32_1 = arith.constant 0 : i32
    return %c0_i32, %c0_i32_0 : i32, i32
  }
  func.func @transform_2(%arg0: i32) -> (i32, i32) {
    %c0_i32 = arith.constant 0 : i32
    %c0_i32_0 = arith.constant 0 : i32
    %c0_i32_1 = arith.constant 0 : i32
    return %c0_i32, %c0_i32_0 : i32, i32
  }
  func.func @transform_3(%arg0: i32) -> (i32, i32) {
    %c0_i32 = arith.constant 0 : i32
    %c0_i32_0 = arith.constant 0 : i32
    return %arg0, %c0_i32 : i32, i32
  }
}

module attributes {stable_mosaic.version = 11 : i64} {
  func.func @_layernorm_kernel(%arg0: i32, %arg1: memref<8x32xf32, #tpu.memory_space<vmem>>, %arg2: memref<1x32xf32, #tpu.memory_space<vmem>>, %arg3: memref<1x32xf32, #tpu.memory_space<vmem>>, %arg4: memref<8x32xf32, #tpu.memory_space<vmem>>) attributes {dimension_semantics = [#tpu.dimension_semantics<parallel>], iteration_bounds = array<i64: 2>, scalar_prefetch = 0 : i64, scratch_operands = 0 : i64, tpu.core_type = #tpu.core_type<tc>, window_params = [{transform_indices = @transform_0, window_bounds = array<i64: 8, 32>}, {pipeline_mode = #tpu.pipeline_mode<synchronous>, transform_indices = @transform_1, window_bounds = array<i64: 1, 32>}, {pipeline_mode = #tpu.pipeline_mode<synchronous>, transform_indices = @transform_2, window_bounds = array<i64: 1, 32>}, {transform_indices = @transform_3, window_bounds = array<i64: 8, 32>}]} {
    %c0 = arith.constant 0 : index
    %c0_0 = arith.constant 0 : index
    %0 = vector.load %arg1[%c0, %c0_0] : memref<8x32xf32, #tpu.memory_space<vmem>>, vector<8x32xf32>
    %cst = arith.constant dense<0.000000e+00> : vector<8xf32>
    %1 = vector.multi_reduction <add>, %0, %cst [1] : vector<8x32xf32> to vector<8xf32>
    %2 = vector.shape_cast %1 : vector<8xf32> to vector<8x1xf32>
    %cst_1 = arith.constant 3.200000e+01 : f32
    %3 = vector.broadcast %cst_1 : f32 to vector<8x1xf32>
    %4 = arith.divf %2, %3 : vector<8x1xf32>
    %5 = vector.broadcast %4 : vector<8x1xf32> to vector<8x32xf32>
    %6 = arith.subf %0, %5 : vector<8x32xf32>
    %7 = arith.mulf %6, %6 : vector<8x32xf32>
    %cst_2 = arith.constant dense<0.000000e+00> : vector<8xf32>
    %8 = vector.multi_reduction <add>, %7, %cst_2 [1] : vector<8x32xf32> to vector<8xf32>
    %9 = vector.shape_cast %8 : vector<8xf32> to vector<8x1xf32>
    %cst_3 = arith.constant 3.200000e+01 : f32
    %10 = vector.broadcast %cst_3 : f32 to vector<8x1xf32>
    %11 = arith.divf %9, %10 : vector<8x1xf32>
    %cst_4 = arith.constant 9.99999997E-7 : f32
    %12 = vector.broadcast %cst_4 : f32 to vector<8x1xf32>
    %13 = arith.addf %11, %12 : vector<8x1xf32>
    %14 = math.rsqrt %13 : vector<8x1xf32>
    %15 = vector.broadcast %14 : vector<8x1xf32> to vector<8x32xf32>
    %16 = arith.mulf %6, %15 : vector<8x32xf32>
    %c0_5 = arith.constant 0 : index
    %c0_6 = arith.constant 0 : index
    %17 = vector.load %arg2[%c0_5, %c0_6] : memref<1x32xf32, #tpu.memory_space<vmem>>, vector<1x32xf32>
    %18 = vector.broadcast %17 : vector<1x32xf32> to vector<8x32xf32>
    %19 = arith.mulf %16, %18 : vector<8x32xf32>
    %c0_7 = arith.constant 0 : index
    %c0_8 = arith.constant 0 : index
    %20 = vector.load %arg3[%c0_7, %c0_8] : memref<1x32xf32, #tpu.memory_space<vmem>>, vector<1x32xf32>
    %21 = vector.broadcast %20 : vector<1x32xf32> to vector<8x32xf32>
    %22 = arith.addf %19, %21 : vector<8x32xf32>
    %c0_9 = arith.constant 0 : index
    %c0_10 = arith.constant 0 : index
    %23 = vector.load %arg4[%c0_9, %c0_10] : memref<8x32xf32, #tpu.memory_space<vmem>>, vector<8x32xf32>
    tpu.vector_store %arg4[%c0_9, %c0_10], %22 {strides = array<i32>} : memref<8x32xf32, #tpu.memory_space<vmem>>, vector<8x32xf32>,
    return
  }
  func.func @transform_0(%arg0: i32) -> (i32, i32) {
    %c0_i32 = arith.constant 0 : i32
    %c0_i32_0 = arith.constant 0 : i32
    return %arg0, %c0_i32 : i32, i32
  }
  func.func @transform_1(%arg0: i32) -> (i32, i32) {
    %c0_i32 = arith.constant 0 : i32
    %c0_i32_0 = arith.constant 0 : i32
    %c0_i32_1 = arith.constant 0 : i32
    return %c0_i32, %c0_i32_0 : i32, i32
  }
  func.func @transform_2(%arg0: i32) -> (i32, i32) {
    %c0_i32 = arith.constant 0 : i32
    %c0_i32_0 = arith.constant 0 : i32
    %c0_i32_1 = arith.constant 0 : i32
    return %c0_i32, %c0_i32_0 : i32, i32
  }
  func.func @transform_3(%arg0: i32) -> (i32, i32) {
    %c0_i32 = arith.constant 0 : i32
    %c0_i32_0 = arith.constant 0 : i32
    return %arg0, %c0_i32 : i32, i32
  }
}

module attributes {stable_mosaic.version = 11 : i64} {
  func.func @_linear_kernel_direct(%arg0: i32, %arg1: memref<8x32xbf16, #tpu.memory_space<vmem>>, %arg2: memref<32x32xbf16, #tpu.memory_space<vmem>>, %arg3: memref<1x32xf32, #tpu.memory_space<vmem>>, %arg4: memref<8x32xf32, #tpu.memory_space<vmem>>) attributes {dimension_semantics = [#tpu.dimension_semantics<parallel>], iteration_bounds = array<i64: 2>, scalar_prefetch = 0 : i64, scratch_operands = 0 : i64, tpu.core_type = #tpu.core_type<tc>, window_params = [{transform_indices = @transform_0, window_bounds = array<i64: 8, 32>}, {pipeline_mode = #tpu.pipeline_mode<synchronous>, transform_indices = @transform_1, window_bounds = array<i64: 32, 32>}, {pipeline_mode = #tpu.pipeline_mode<synchronous>, transform_indices = @transform_2, window_bounds = array<i64: 1, 32>}, {transform_indices = @transform_3, window_bounds = array<i64: 8, 32>}]} {
    %c0 = arith.constant 0 : index
    %c0_0 = arith.constant 0 : index
    %0 = vector.load %arg1[%c0, %c0_0] : memref<8x32xbf16, #tpu.memory_space<vmem>>, vector<8x32xbf16>
    %c0_1 = arith.constant 0 : index
    %c0_2 = arith.constant 0 : index
    %1 = vector.load %arg2[%c0_1, %c0_2] : memref<32x32xbf16, #tpu.memory_space<vmem>>, vector<32x32xbf16>
    %cst = arith.constant dense<0.000000e+00> : vector<8x32xf32>
    %2 = tpu.matmul %0, %1, %cst {dimension_numbers = #tpu.dot_dimension_numbers<[1], [0], [0], [1], [0, 0, 1, 1], [], []>} : vector<8x32xbf16>, vector<32x32xbf16>, vector<8x32xf32> -> vector<8x32xf32>
    %c0_3 = arith.constant 0 : index
    %c0_4 = arith.constant 0 : index
    %3 = vector.load %arg3[%c0_3, %c0_4] : memref<1x32xf32, #tpu.memory_space<vmem>>, vector<1x32xf32>
    %4 = vector.broadcast %3 : vector<1x32xf32> to vector<8x32xf32>
    %5 = arith.addf %2, %4 : vector<8x32xf32>
    %c0_5 = arith.constant 0 : index
    %c0_6 = arith.constant 0 : index
    %6 = vector.load %arg4[%c0_5, %c0_6] : memref<8x32xf32, #tpu.memory_space<vmem>>, vector<8x32xf32>
    tpu.vector_store %arg4[%c0_5, %c0_6], %5 {strides = array<i32>} : memref<8x32xf32, #tpu.memory_space<vmem>>, vector<8x32xf32>,
    return
  }
  func.func @transform_0(%arg0: i32) -> (i32, i32) {
    %c0_i32 = arith.constant 0 : i32
    %c0_i32_0 = arith.constant 0 : i32
    return %arg0, %c0_i32 : i32, i32
  }
  func.func @transform_1(%arg0: i32) -> (i32, i32) {
    %c0_i32 = arith.constant 0 : i32
    %c0_i32_0 = arith.constant 0 : i32
    %c0_i32_1 = arith.constant 0 : i32
    return %c0_i32, %c0_i32_0 : i32, i32
  }
  func.func @transform_2(%arg0: i32) -> (i32, i32) {
    %c0_i32 = arith.constant 0 : i32
    %c0_i32_0 = arith.constant 0 : i32
    %c0_i32_1 = arith.constant 0 : i32
    return %c0_i32, %c0_i32_0 : i32, i32
  }
  func.func @transform_3(%arg0: i32) -> (i32, i32) {
    %c0_i32 = arith.constant 0 : i32
    %c0_i32_0 = arith.constant 0 : i32
    return %arg0, %c0_i32 : i32, i32
  }
}

module attributes {stable_mosaic.version = 11 : i64} {
  func.func @_mha_kernel(%arg0: i32, %arg1: i32, %arg2: memref<1x4x8x8xbf16, #tpu.memory_space<vmem>>, %arg3: memref<1x4x8x8xbf16, #tpu.memory_space<vmem>>, %arg4: memref<1x4x8x8xbf16, #tpu.memory_space<vmem>>, %arg5: memref<1x4x8x8xbf16, #tpu.memory_space<vmem>>, %arg6: memref<1x8x8xf32, #tpu.memory_space<vmem>>, %arg7: memref<1x8x32xbf16, #tpu.memory_space<vmem>>) attributes {dimension_semantics = [#tpu.dimension_semantics<parallel>, #tpu.dimension_semantics<parallel>], iteration_bounds = array<i64: 2, 1>, scalar_prefetch = 0 : i64, scratch_operands = 0 : i64, tpu.core_type = #tpu.core_type<tc>, window_params = [{transform_indices = @transform_0, window_bounds = array<i64: 1, 4, 8, 8>}, {transform_indices = @transform_1, window_bounds = array<i64: 1, 4, 8, 8>}, {transform_indices = @transform_2, window_bounds = array<i64: 1, 4, 8, 8>}, {transform_indices = @transform_3, window_bounds = array<i64: 1, 4, 8, 8>}, {transform_indices = @transform_4, window_bounds = array<i64: 1, 8, 8>}, {transform_indices = @transform_5, window_bounds = array<i64: 1, 8, 32>}]} {
    %c0 = arith.constant 0 : index
    %c0_0 = arith.constant 0 : index
    %c0_1 = arith.constant 0 : index
    %0 = vector.load %arg6[%c0, %c0_0, %c0_1] : memref<1x8x8xf32, #tpu.memory_space<vmem>>, vector<1x8x8xf32>
    %1 = vector.shape_cast %0 : vector<1x8x8xf32> to vector<8x8xf32>
    %cst = arith.constant -1.000000e+00 : f32
    %2 = vector.broadcast %cst : f32 to vector<8x8xf32>
    %3 = arith.cmpf oeq, %1, %2 : vector<8x8xf32>
    %c0_2 = arith.constant 0 : index
    %c0_3 = arith.constant 0 : index
    %c0_4 = arith.constant 0 : index
    %c0_5 = arith.constant 0 : index
    %4 = vector.load %arg2[%c0_2, %c0_3, %c0_4, %c0_5] : memref<1x4x8x8xbf16, #tpu.memory_space<vmem>>, vector<1x1x8x8xbf16>
    %5 = vector.shape_cast %4 : vector<1x1x8x8xbf16> to vector<8x8xbf16>
    %c0_6 = arith.constant 0 : index
    %c0_7 = arith.constant 0 : index
    %c0_8 = arith.constant 0 : index
    %c0_9 = arith.constant 0 : index
    %6 = vector.load %arg3[%c0_6, %c0_7, %c0_8, %c0_9] : memref<1x4x8x8xbf16, #tpu.memory_space<vmem>>, vector<1x1x8x8xbf16>
    %7 = vector.shape_cast %6 : vector<1x1x8x8xbf16> to vector<8x8xbf16>
    %c0_10 = arith.constant 0 : index
    %c0_11 = arith.constant 0 : index
    %c0_12 = arith.constant 0 : index
    %c0_13 = arith.constant 0 : index
    %8 = vector.load %arg4[%c0_10, %c0_11, %c0_12, %c0_13] : memref<1x4x8x8xbf16, #tpu.memory_space<vmem>>, vector<1x1x8x8xbf16>
    %9 = vector.shape_cast %8 : vector<1x1x8x8xbf16> to vector<8x8xbf16>
    %cst_14 = arith.constant dense<0.000000e+00> : vector<8x8xf32>
    %10 = tpu.matmul %5, %7, %cst_14 {dimension_numbers = #tpu.dot_dimension_numbers<[1], [1], [0], [0], [0, 0, 1, 0], [], []>} : vector<8x8xbf16>, vector<8x8xbf16>, vector<8x8xf32> -> vector<8x8xf32>
    %cst_15 = arith.constant 0.353553385 : f32
    %11 = vector.broadcast %cst_15 : f32 to vector<8x8xf32>
    %12 = arith.mulf %10, %11 : vector<8x8xf32>
    %c0_16 = arith.constant 0 : index
    %c0_17 = arith.constant 0 : index
    %c0_18 = arith.constant 0 : index
    %c0_19 = arith.constant 0 : index
    %13 = vector.load %arg5[%c0_16, %c0_17, %c0_18, %c0_19] : memref<1x4x8x8xbf16, #tpu.memory_space<vmem>>, vector<1x1x8x8xbf16>
    %14 = vector.shape_cast %13 : vector<1x1x8x8xbf16> to vector<8x8xbf16>
    %15 = arith.extf %14 : vector<8x8xbf16> to vector<8x8xf32>
    %16 = arith.addf %12, %15 : vector<8x8xf32>
    %cst_20 = arith.constant -9.99999971E-10 : f32
    %17 = vector.broadcast %cst_20 : f32 to vector<8x8xf32>
    %18 = arith.select %3, %17, %16 : vector<8x8xi1>, vector<8x8xf32>
    %cst_21 = arith.constant dense<0xFF800000> : vector<8xf32>
    %19 = vector.multi_reduction <maximumf>, %18, %cst_21 [1] : vector<8x8xf32> to vector<8xf32>
    %20 = vector.shape_cast %19 : vector<8xf32> to vector<8x1xf32>
    %21 = vector.broadcast %20 : vector<8x1xf32> to vector<8x8xf32>
    %22 = arith.subf %18, %21 : vector<8x8xf32>
    %23 = math.exp %22 : vector<8x8xf32>
    %cst_22 = arith.constant dense<0.000000e+00> : vector<8xf32>
    %24 = vector.multi_reduction <add>, %23, %cst_22 [1] : vector<8x8xf32> to vector<8xf32>
    %25 = vector.shape_cast %24 : vector<8xf32> to vector<8x1xf32>
    %26 = tpu.reciprocal %25 {approx = true} : vector<8x1xf32> -> vector<8x1xf32>
    %27 = vector.broadcast %26 : vector<8x1xf32> to vector<8x8xf32>
    %28 = arith.mulf %23, %27 : vector<8x8xf32>
    %29 = arith.truncf %28 : vector<8x8xf32> to vector<8x8xbf16>
    %cst_23 = arith.constant dense<0.000000e+00> : vector<8x8xf32>
    %30 = tpu.matmul %29, %9, %cst_23 {dimension_numbers = #tpu.dot_dimension_numbers<[1], [0], [0], [1], [0, 0, 1, 1], [], []>} : vector<8x8xbf16>, vector<8x8xbf16>, vector<8x8xf32> -> vector<8x8xf32>
    %31 = arith.truncf %30 : vector<8x8xf32> to vector<8x8xbf16>
    %c0_24 = arith.constant 0 : index
    %c0_25 = arith.constant 0 : index
    %c0_26 = arith.constant 0 : index
    %32 = vector.load %arg7[%c0_24, %c0_25, %c0_26] : memref<1x8x32xbf16, #tpu.memory_space<vmem>>, vector<1x8x8xbf16>
    %33 = vector.shape_cast %32 : vector<1x8x8xbf16> to vector<8x8xbf16>
    %34 = vector.shape_cast %31 : vector<8x8xbf16> to vector<1x8x8xbf16>
    tpu.vector_store %arg7[%c0_24, %c0_25, %c0_26], %34 {strides = array<i32>} : memref<1x8x32xbf16, #tpu.memory_space<vmem>>, vector<1x8x8xbf16>,
    %c0_27 = arith.constant 0 : index
    %c1 = arith.constant 1 : index
    %c0_28 = arith.constant 0 : index
    %c0_29 = arith.constant 0 : index
    %35 = vector.load %arg2[%c0_27, %c1, %c0_28, %c0_29] : memref<1x4x8x8xbf16, #tpu.memory_space<vmem>>, vector<1x1x8x8xbf16>
    %36 = vector.shape_cast %35 : vector<1x1x8x8xbf16> to vector<8x8xbf16>
    %c0_30 = arith.constant 0 : index
    %c1_31 = arith.constant 1 : index
    %c0_32 = arith.constant 0 : index
    %c0_33 = arith.constant 0 : index
    %37 = vector.load %arg3[%c0_30, %c1_31, %c0_32, %c0_33] : memref<1x4x8x8xbf16, #tpu.memory_space<vmem>>, vector<1x1x8x8xbf16>
    %38 = vector.shape_cast %37 : vector<1x1x8x8xbf16> to vector<8x8xbf16>
    %c0_34 = arith.constant 0 : index
    %c1_35 = arith.constant 1 : index
    %c0_36 = arith.constant 0 : index
    %c0_37 = arith.constant 0 : index
    %39 = vector.load %arg4[%c0_34, %c1_35, %c0_36, %c0_37] : memref<1x4x8x8xbf16, #tpu.memory_space<vmem>>, vector<1x1x8x8xbf16>
    %40 = vector.shape_cast %39 : vector<1x1x8x8xbf16> to vector<8x8xbf16>
    %cst_38 = arith.constant dense<0.000000e+00> : vector<8x8xf32>
    %41 = tpu.matmul %36, %38, %cst_38 {dimension_numbers = #tpu.dot_dimension_numbers<[1], [1], [0], [0], [0, 0, 1, 0], [], []>} : vector<8x8xbf16>, vector<8x8xbf16>, vector<8x8xf32> -> vector<8x8xf32>
    %cst_39 = arith.constant 0.353553385 : f32
    %42 = vector.broadcast %cst_39 : f32 to vector<8x8xf32>
    %43 = arith.mulf %41, %42 : vector<8x8xf32>
    %c0_40 = arith.constant 0 : index
    %c1_41 = arith.constant 1 : index
    %c0_42 = arith.constant 0 : index
    %c0_43 = arith.constant 0 : index
    %44 = vector.load %arg5[%c0_40, %c1_41, %c0_42, %c0_43] : memref<1x4x8x8xbf16, #tpu.memory_space<vmem>>, vector<1x1x8x8xbf16>
    %45 = vector.shape_cast %44 : vector<1x1x8x8xbf16> to vector<8x8xbf16>
    %46 = arith.extf %45 : vector<8x8xbf16> to vector<8x8xf32>
    %47 = arith.addf %43, %46 : vector<8x8xf32>
    %cst_44 = arith.constant -9.99999971E-10 : f32
    %48 = vector.broadcast %cst_44 : f32 to vector<8x8xf32>
    %49 = arith.select %3, %48, %47 : vector<8x8xi1>, vector<8x8xf32>
    %cst_45 = arith.constant dense<0xFF800000> : vector<8xf32>
    %50 = vector.multi_reduction <maximumf>, %49, %cst_45 [1] : vector<8x8xf32> to vector<8xf32>
    %51 = vector.shape_cast %50 : vector<8xf32> to vector<8x1xf32>
    %52 = vector.broadcast %51 : vector<8x1xf32> to vector<8x8xf32>
    %53 = arith.subf %49, %52 : vector<8x8xf32>
    %54 = math.exp %53 : vector<8x8xf32>
    %cst_46 = arith.constant dense<0.000000e+00> : vector<8xf32>
    %55 = vector.multi_reduction <add>, %54, %cst_46 [1] : vector<8x8xf32> to vector<8xf32>
    %56 = vector.shape_cast %55 : vector<8xf32> to vector<8x1xf32>
    %57 = tpu.reciprocal %56 {approx = true} : vector<8x1xf32> -> vector<8x1xf32>
    %58 = vector.broadcast %57 : vector<8x1xf32> to vector<8x8xf32>
    %59 = arith.mulf %54, %58 : vector<8x8xf32>
    %60 = arith.truncf %59 : vector<8x8xf32> to vector<8x8xbf16>
    %cst_47 = arith.constant dense<0.000000e+00> : vector<8x8xf32>
    %61 = tpu.matmul %60, %40, %cst_47 {dimension_numbers = #tpu.dot_dimension_numbers<[1], [0], [0], [1], [0, 0, 1, 1], [], []>} : vector<8x8xbf16>, vector<8x8xbf16>, vector<8x8xf32> -> vector<8x8xf32>
    %62 = arith.truncf %61 : vector<8x8xf32> to vector<8x8xbf16>
    %c0_48 = arith.constant 0 : index
    %c0_49 = arith.constant 0 : index
    %c8 = arith.constant 8 : index
    %63 = vector.load %arg7[%c0_48, %c0_49, %c8] : memref<1x8x32xbf16, #tpu.memory_space<vmem>>, vector<1x8x8xbf16>
    %64 = vector.shape_cast %63 : vector<1x8x8xbf16> to vector<8x8xbf16>
    %65 = vector.shape_cast %62 : vector<8x8xbf16> to vector<1x8x8xbf16>
    tpu.vector_store %arg7[%c0_48, %c0_49, %c8], %65 {strides = array<i32>} : memref<1x8x32xbf16, #tpu.memory_space<vmem>>, vector<1x8x8xbf16>,
    %c0_50 = arith.constant 0 : index
    %c2 = arith.constant 2 : index
    %c0_51 = arith.constant 0 : index
    %c0_52 = arith.constant 0 : index
    %66 = vector.load %arg2[%c0_50, %c2, %c0_51, %c0_52] : memref<1x4x8x8xbf16, #tpu.memory_space<vmem>>, vector<1x1x8x8xbf16>
    %67 = vector.shape_cast %66 : vector<1x1x8x8xbf16> to vector<8x8xbf16>
    %c0_53 = arith.constant 0 : index
    %c2_54 = arith.constant 2 : index
    %c0_55 = arith.constant 0 : index
    %c0_56 = arith.constant 0 : index
    %68 = vector.load %arg3[%c0_53, %c2_54, %c0_55, %c0_56] : memref<1x4x8x8xbf16, #tpu.memory_space<vmem>>, vector<1x1x8x8xbf16>
    %69 = vector.shape_cast %68 : vector<1x1x8x8xbf16> to vector<8x8xbf16>
    %c0_57 = arith.constant 0 : index
    %c2_58 = arith.constant 2 : index
    %c0_59 = arith.constant 0 : index
    %c0_60 = arith.constant 0 : index
    %70 = vector.load %arg4[%c0_57, %c2_58, %c0_59, %c0_60] : memref<1x4x8x8xbf16, #tpu.memory_space<vmem>>, vector<1x1x8x8xbf16>
    %71 = vector.shape_cast %70 : vector<1x1x8x8xbf16> to vector<8x8xbf16>
    %cst_61 = arith.constant dense<0.000000e+00> : vector<8x8xf32>
    %72 = tpu.matmul %67, %69, %cst_61 {dimension_numbers = #tpu.dot_dimension_numbers<[1], [1], [0], [0], [0, 0, 1, 0], [], []>} : vector<8x8xbf16>, vector<8x8xbf16>, vector<8x8xf32> -> vector<8x8xf32>
    %cst_62 = arith.constant 0.353553385 : f32
    %73 = vector.broadcast %cst_62 : f32 to vector<8x8xf32>
    %74 = arith.mulf %72, %73 : vector<8x8xf32>
    %c0_63 = arith.constant 0 : index
    %c2_64 = arith.constant 2 : index
    %c0_65 = arith.constant 0 : index
    %c0_66 = arith.constant 0 : index
    %75 = vector.load %arg5[%c0_63, %c2_64, %c0_65, %c0_66] : memref<1x4x8x8xbf16, #tpu.memory_space<vmem>>, vector<1x1x8x8xbf16>
    %76 = vector.shape_cast %75 : vector<1x1x8x8xbf16> to vector<8x8xbf16>
    %77 = arith.extf %76 : vector<8x8xbf16> to vector<8x8xf32>
    %78 = arith.addf %74, %77 : vector<8x8xf32>
    %cst_67 = arith.constant -9.99999971E-10 : f32
    %79 = vector.broadcast %cst_67 : f32 to vector<8x8xf32>
    %80 = arith.select %3, %79, %78 : vector<8x8xi1>, vector<8x8xf32>
    %cst_68 = arith.constant dense<0xFF800000> : vector<8xf32>
    %81 = vector.multi_reduction <maximumf>, %80, %cst_68 [1] : vector<8x8xf32> to vector<8xf32>
    %82 = vector.shape_cast %81 : vector<8xf32> to vector<8x1xf32>
    %83 = vector.broadcast %82 : vector<8x1xf32> to vector<8x8xf32>
    %84 = arith.subf %80, %83 : vector<8x8xf32>
    %85 = math.exp %84 : vector<8x8xf32>
    %cst_69 = arith.constant dense<0.000000e+00> : vector<8xf32>
    %86 = vector.multi_reduction <add>, %85, %cst_69 [1] : vector<8x8xf32> to vector<8xf32>
    %87 = vector.shape_cast %86 : vector<8xf32> to vector<8x1xf32>
    %88 = tpu.reciprocal %87 {approx = true} : vector<8x1xf32> -> vector<8x1xf32>
    %89 = vector.broadcast %88 : vector<8x1xf32> to vector<8x8xf32>
    %90 = arith.mulf %85, %89 : vector<8x8xf32>
    %91 = arith.truncf %90 : vector<8x8xf32> to vector<8x8xbf16>
    %cst_70 = arith.constant dense<0.000000e+00> : vector<8x8xf32>
    %92 = tpu.matmul %91, %71, %cst_70 {dimension_numbers = #tpu.dot_dimension_numbers<[1], [0], [0], [1], [0, 0, 1, 1], [], []>} : vector<8x8xbf16>, vector<8x8xbf16>, vector<8x8xf32> -> vector<8x8xf32>
    %93 = arith.truncf %92 : vector<8x8xf32> to vector<8x8xbf16>
    %c0_71 = arith.constant 0 : index
    %c0_72 = arith.constant 0 : index
    %c16 = arith.constant 16 : index
    %94 = vector.load %arg7[%c0_71, %c0_72, %c16] : memref<1x8x32xbf16, #tpu.memory_space<vmem>>, vector<1x8x8xbf16>
    %95 = vector.shape_cast %94 : vector<1x8x8xbf16> to vector<8x8xbf16>
    %96 = vector.shape_cast %93 : vector<8x8xbf16> to vector<1x8x8xbf16>
    tpu.vector_store %arg7[%c0_71, %c0_72, %c16], %96 {strides = array<i32>} : memref<1x8x32xbf16, #tpu.memory_space<vmem>>, vector<1x8x8xbf16>,
    %c0_73 = arith.constant 0 : index
    %c3 = arith.constant 3 : index
    %c0_74 = arith.constant 0 : index
    %c0_75 = arith.constant 0 : index
    %97 = vector.load %arg2[%c0_73, %c3, %c0_74, %c0_75] : memref<1x4x8x8xbf16, #tpu.memory_space<vmem>>, vector<1x1x8x8xbf16>
    %98 = vector.shape_cast %97 : vector<1x1x8x8xbf16> to vector<8x8xbf16>
    %c0_76 = arith.constant 0 : index
    %c3_77 = arith.constant 3 : index
    %c0_78 = arith.constant 0 : index
    %c0_79 = arith.constant 0 : index
    %99 = vector.load %arg3[%c0_76, %c3_77, %c0_78, %c0_79] : memref<1x4x8x8xbf16, #tpu.memory_space<vmem>>, vector<1x1x8x8xbf16>
    %100 = vector.shape_cast %99 : vector<1x1x8x8xbf16> to vector<8x8xbf16>
    %c0_80 = arith.constant 0 : index
    %c3_81 = arith.constant 3 : index
    %c0_82 = arith.constant 0 : index
    %c0_83 = arith.constant 0 : index
    %101 = vector.load %arg4[%c0_80, %c3_81, %c0_82, %c0_83] : memref<1x4x8x8xbf16, #tpu.memory_space<vmem>>, vector<1x1x8x8xbf16>
    %102 = vector.shape_cast %101 : vector<1x1x8x8xbf16> to vector<8x8xbf16>
    %cst_84 = arith.constant dense<0.000000e+00> : vector<8x8xf32>
    %103 = tpu.matmul %98, %100, %cst_84 {dimension_numbers = #tpu.dot_dimension_numbers<[1], [1], [0], [0], [0, 0, 1, 0], [], []>} : vector<8x8xbf16>, vector<8x8xbf16>, vector<8x8xf32> -> vector<8x8xf32>
    %cst_85 = arith.constant 0.353553385 : f32
    %104 = vector.broadcast %cst_85 : f32 to vector<8x8xf32>
    %105 = arith.mulf %103, %104 : vector<8x8xf32>
    %c0_86 = arith.constant 0 : index
    %c3_87 = arith.constant 3 : index
    %c0_88 = arith.constant 0 : index
    %c0_89 = arith.constant 0 : index
    %106 = vector.load %arg5[%c0_86, %c3_87, %c0_88, %c0_89] : memref<1x4x8x8xbf16, #tpu.memory_space<vmem>>, vector<1x1x8x8xbf16>
    %107 = vector.shape_cast %106 : vector<1x1x8x8xbf16> to vector<8x8xbf16>
    %108 = arith.extf %107 : vector<8x8xbf16> to vector<8x8xf32>
    %109 = arith.addf %105, %108 : vector<8x8xf32>
    %cst_90 = arith.constant -9.99999971E-10 : f32
    %110 = vector.broadcast %cst_90 : f32 to vector<8x8xf32>
    %111 = arith.select %3, %110, %109 : vector<8x8xi1>, vector<8x8xf32>
    %cst_91 = arith.constant dense<0xFF800000> : vector<8xf32>
    %112 = vector.multi_reduction <maximumf>, %111, %cst_91 [1] : vector<8x8xf32> to vector<8xf32>
    %113 = vector.shape_cast %112 : vector<8xf32> to vector<8x1xf32>
    %114 = vector.broadcast %113 : vector<8x1xf32> to vector<8x8xf32>
    %115 = arith.subf %111, %114 : vector<8x8xf32>
    %116 = math.exp %115 : vector<8x8xf32>
    %cst_92 = arith.constant dense<0.000000e+00> : vector<8xf32>
    %117 = vector.multi_reduction <add>, %116, %cst_92 [1] : vector<8x8xf32> to vector<8xf32>
    %118 = vector.shape_cast %117 : vector<8xf32> to vector<8x1xf32>
    %119 = tpu.reciprocal %118 {approx = true} : vector<8x1xf32> -> vector<8x1xf32>
    %120 = vector.broadcast %119 : vector<8x1xf32> to vector<8x8xf32>
    %121 = arith.mulf %116, %120 : vector<8x8xf32>
    %122 = arith.truncf %121 : vector<8x8xf32> to vector<8x8xbf16>
    %cst_93 = arith.constant dense<0.000000e+00> : vector<8x8xf32>
    %123 = tpu.matmul %122, %102, %cst_93 {dimension_numbers = #tpu.dot_dimension_numbers<[1], [0], [0], [1], [0, 0, 1, 1], [], []>} : vector<8x8xbf16>, vector<8x8xbf16>, vector<8x8xf32> -> vector<8x8xf32>
    %124 = arith.truncf %123 : vector<8x8xf32> to vector<8x8xbf16>
    %c0_94 = arith.constant 0 : index
    %c0_95 = arith.constant 0 : index
    %c24 = arith.constant 24 : index
    %125 = vector.load %arg7[%c0_94, %c0_95, %c24] : memref<1x8x32xbf16, #tpu.memory_space<vmem>>, vector<1x8x8xbf16>
    %126 = vector.shape_cast %125 : vector<1x8x8xbf16> to vector<8x8xbf16>
    %127 = vector.shape_cast %124 : vector<8x8xbf16> to vector<1x8x8xbf16>
    tpu.vector_store %arg7[%c0_94, %c0_95, %c24], %127 {strides = array<i32>} : memref<1x8x32xbf16, #tpu.memory_space<vmem>>, vector<1x8x8xbf16>,
    return
  }
  func.func @transform_0(%arg0: i32, %arg1: i32) -> (i32, i32, i32, i32) {
    %c0_i32 = arith.constant 0 : i32
    %c0_i32_0 = arith.constant 0 : i32
    %c0_i32_1 = arith.constant 0 : i32
    return %arg0, %c0_i32, %arg1, %c0_i32_0 : i32, i32, i32, i32
  }
  func.func @transform_1(%arg0: i32, %arg1: i32) -> (i32, i32, i32, i32) {
    %c0_i32 = arith.constant 0 : i32
    %c0_i32_0 = arith.constant 0 : i32
    %c0_i32_1 = arith.constant 0 : i32
    %c0_i32_2 = arith.constant 0 : i32
    return %arg0, %c0_i32, %c0_i32_0, %c0_i32_1 : i32, i32, i32, i32
  }
  func.func @transform_2(%arg0: i32, %arg1: i32) -> (i32, i32, i32, i32) {
    %c0_i32 = arith.constant 0 : i32
    %c0_i32_0 = arith.constant 0 : i32
    %c0_i32_1 = arith.constant 0 : i32
    %c0_i32_2 = arith.constant 0 : i32
    return %arg0, %c0_i32, %c0_i32_0, %c0_i32_1 : i32, i32, i32, i32
  }
  func.func @transform_3(%arg0: i32, %arg1: i32) -> (i32, i32, i32, i32) {
    %c0_i32 = arith.constant 0 : i32
    %c0_i32_0 = arith.constant 0 : i32
    %c0_i32_1 = arith.constant 0 : i32
    return %arg0, %c0_i32, %arg1, %c0_i32_0 : i32, i32, i32, i32
  }
  func.func @transform_4(%arg0: i32, %arg1: i32) -> (i32, i32, i32) {
    %c0_i32 = arith.constant 0 : i32
    %c0_i32_0 = arith.constant 0 : i32
    return %arg0, %arg1, %c0_i32 : i32, i32, i32
  }
  func.func @transform_5(%arg0: i32, %arg1: i32) -> (i32, i32, i32) {
    %c0_i32 = arith.constant 0 : i32
    %c0_i32_0 = arith.constant 0 : i32
    return %arg0, %arg1, %c0_i32 : i32, i32, i32
  }
}

module attributes {stable_mosaic.version = 11 : i64} {
  func.func @_layernorm_kernel(%arg0: i32, %arg1: memref<8x32xf32, #tpu.memory_space<vmem>>, %arg2: memref<1x32xf32, #tpu.memory_space<vmem>>, %arg3: memref<1x32xf32, #tpu.memory_space<vmem>>, %arg4: memref<8x32xf32, #tpu.memory_space<vmem>>) attributes {dimension_semantics = [#tpu.dimension_semantics<parallel>], iteration_bounds = array<i64: 2>, scalar_prefetch = 0 : i64, scratch_operands = 0 : i64, tpu.core_type = #tpu.core_type<tc>, window_params = [{transform_indices = @transform_0, window_bounds = array<i64: 8, 32>}, {pipeline_mode = #tpu.pipeline_mode<synchronous>, transform_indices = @transform_1, window_bounds = array<i64: 1, 32>}, {pipeline_mode = #tpu.pipeline_mode<synchronous>, transform_indices = @transform_2, window_bounds = array<i64: 1, 32>}, {transform_indices = @transform_3, window_bounds = array<i64: 8, 32>}]} {
    %c0 = arith.constant 0 : index
    %c0_0 = arith.constant 0 : index
    %0 = vector.load %arg1[%c0, %c0_0] : memref<8x32xf32, #tpu.memory_space<vmem>>, vector<8x32xf32>
    %cst = arith.constant dense<0.000000e+00> : vector<8xf32>
    %1 = vector.multi_reduction <add>, %0, %cst [1] : vector<8x32xf32> to vector<8xf32>
    %2 = vector.shape_cast %1 : vector<8xf32> to vector<8x1xf32>
    %cst_1 = arith.constant 3.200000e+01 : f32
    %3 = vector.broadcast %cst_1 : f32 to vector<8x1xf32>
    %4 = arith.divf %2, %3 : vector<8x1xf32>
    %5 = vector.broadcast %4 : vector<8x1xf32> to vector<8x32xf32>
    %6 = arith.subf %0, %5 : vector<8x32xf32>
    %7 = arith.mulf %6, %6 : vector<8x32xf32>
    %cst_2 = arith.constant dense<0.000000e+00> : vector<8xf32>
    %8 = vector.multi_reduction <add>, %7, %cst_2 [1] : vector<8x32xf32> to vector<8xf32>
    %9 = vector.shape_cast %8 : vector<8xf32> to vector<8x1xf32>
    %cst_3 = arith.constant 3.200000e+01 : f32
    %10 = vector.broadcast %cst_3 : f32 to vector<8x1xf32>
    %11 = arith.divf %9, %10 : vector<8x1xf32>
    %cst_4 = arith.constant 9.99999974E-6 : f32
    %12 = vector.broadcast %cst_4 : f32 to vector<8x1xf32>
    %13 = arith.addf %11, %12 : vector<8x1xf32>
    %14 = math.rsqrt %13 : vector<8x1xf32>
    %15 = vector.broadcast %14 : vector<8x1xf32> to vector<8x32xf32>
    %16 = arith.mulf %6, %15 : vector<8x32xf32>
    %c0_5 = arith.constant 0 : index
    %c0_6 = arith.constant 0 : index
    %17 = vector.load %arg2[%c0_5, %c0_6] : memref<1x32xf32, #tpu.memory_space<vmem>>, vector<1x32xf32>
    %18 = vector.broadcast %17 : vector<1x32xf32> to vector<8x32xf32>
    %19 = arith.mulf %16, %18 : vector<8x32xf32>
    %c0_7 = arith.constant 0 : index
    %c0_8 = arith.constant 0 : index
    %20 = vector.load %arg3[%c0_7, %c0_8] : memref<1x32xf32, #tpu.memory_space<vmem>>, vector<1x32xf32>
    %21 = vector.broadcast %20 : vector<1x32xf32> to vector<8x32xf32>
    %22 = arith.addf %19, %21 : vector<8x32xf32>
    %c0_9 = arith.constant 0 : index
    %c0_10 = arith.constant 0 : index
    %23 = vector.load %arg4[%c0_9, %c0_10] : memref<8x32xf32, #tpu.memory_space<vmem>>, vector<8x32xf32>
    tpu.vector_store %arg4[%c0_9, %c0_10], %22 {strides = array<i32>} : memref<8x32xf32, #tpu.memory_space<vmem>>, vector<8x32xf32>,
    return
  }
  func.func @transform_0(%arg0: i32) -> (i32, i32) {
    %c0_i32 = arith.constant 0 : i32
    %c0_i32_0 = arith.constant 0 : i32
    return %arg0, %c0_i32 : i32, i32
  }
  func.func @transform_1(%arg0: i32) -> (i32, i32) {
    %c0_i32 = arith.constant 0 : i32
    %c0_i32_0 = arith.constant 0 : i32
    %c0_i32_1 = arith.constant 0 : i32
    return %c0_i32, %c0_i32_0 : i32, i32
  }
  func.func @transform_2(%arg0: i32) -> (i32, i32) {
    %c0_i32 = arith.constant 0 : i32
    %c0_i32_0 = arith.constant 0 : i32
    %c0_i32_1 = arith.constant 0 : i32
    return %c0_i32, %c0_i32_0 : i32, i32
  }
  func.func @transform_3(%arg0: i32) -> (i32, i32) {
    %c0_i32 = arith.constant 0 : i32
    %c0_i32_0 = arith.constant 0 : i32
    return %arg0, %c0_i32 : i32, i32
  }
}

module attributes {stable_mosaic.version = 11 : i64} {
  func.func @_linear_kernel_direct(%arg0: i32, %arg1: memref<8x32xf32, #tpu.memory_space<vmem>>, %arg2: memref<32x128xbf16, #tpu.memory_space<vmem>>, %arg3: memref<1x128xf32, #tpu.memory_space<vmem>>, %arg4: memref<8x128xf32, #tpu.memory_space<vmem>>) attributes {dimension_semantics = [#tpu.dimension_semantics<parallel>], iteration_bounds = array<i64: 2>, scalar_prefetch = 0 : i64, scratch_operands = 0 : i64, tpu.core_type = #tpu.core_type<tc>, window_params = [{transform_indices = @transform_0, window_bounds = array<i64: 8, 32>}, {pipeline_mode = #tpu.pipeline_mode<synchronous>, transform_indices = @transform_1, window_bounds = array<i64: 32, 128>}, {pipeline_mode = #tpu.pipeline_mode<synchronous>, transform_indices = @transform_2, window_bounds = array<i64: 1, 128>}, {transform_indices = @transform_3, window_bounds = array<i64: 8, 128>}]} {
    %c0 = arith.constant 0 : index
    %c0_0 = arith.constant 0 : index
    %0 = vector.load %arg1[%c0, %c0_0] : memref<8x32xf32, #tpu.memory_space<vmem>>, vector<8x32xf32>
    %1 = arith.truncf %0 : vector<8x32xf32> to vector<8x32xbf16>
    %c0_1 = arith.constant 0 : index
    %c0_2 = arith.constant 0 : index
    %2 = vector.load %arg2[%c0_1, %c0_2] : memref<32x128xbf16, #tpu.memory_space<vmem>>, vector<32x128xbf16>
    %cst = arith.constant dense<0.000000e+00> : vector<8x128xf32>
    %3 = tpu.matmul %1, %2, %cst {dimension_numbers = #tpu.dot_dimension_numbers<[1], [0], [0], [1], [0, 0, 1, 1], [], []>} : vector<8x32xbf16>, vector<32x128xbf16>, vector<8x128xf32> -> vector<8x128xf32>
    %c0_3 = arith.constant 0 : index
    %c0_4 = arith.constant 0 : index
    %4 = vector.load %arg3[%c0_3, %c0_4] : memref<1x128xf32, #tpu.memory_space<vmem>>, vector<1x128xf32>
    %5 = vector.broadcast %4 : vector<1x128xf32> to vector<8x128xf32>
    %6 = arith.addf %3, %5 : vector<8x128xf32>
    %c0_5 = arith.constant 0 : index
    %c0_6 = arith.constant 0 : index
    %7 = vector.load %arg4[%c0_5, %c0_6] : memref<8x128xf32, #tpu.memory_space<vmem>>, vector<8x128xf32>
    tpu.vector_store %arg4[%c0_5, %c0_6], %6 {strides = array<i32>} : memref<8x128xf32, #tpu.memory_space<vmem>>, vector<8x128xf32>,
    return
  }
  func.func @transform_0(%arg0: i32) -> (i32, i32) {
    %c0_i32 = arith.constant 0 : i32
    %c0_i32_0 = arith.constant 0 : i32
    return %arg0, %c0_i32 : i32, i32
  }
  func.func @transform_1(%arg0: i32) -> (i32, i32) {
    %c0_i32 = arith.constant 0 : i32
    %c0_i32_0 = arith.constant 0 : i32
    %c0_i32_1 = arith.constant 0 : i32
    return %c0_i32, %c0_i32_0 : i32, i32
  }
  func.func @transform_2(%arg0: i32) -> (i32, i32) {
    %c0_i32 = arith.constant 0 : i32
    %c0_i32_0 = arith.constant 0 : i32
    %c0_i32_1 = arith.constant 0 : i32
    return %c0_i32, %c0_i32_0 : i32, i32
  }
  func.func @transform_3(%arg0: i32) -> (i32, i32) {
    %c0_i32 = arith.constant 0 : i32
    %c0_i32_0 = arith.constant 0 : i32
    return %arg0, %c0_i32 : i32, i32
  }
}

module attributes {stable_mosaic.version = 11 : i64} {
  func.func @_linear_kernel_direct(%arg0: i32, %arg1: memref<8x128xf32, #tpu.memory_space<vmem>>, %arg2: memref<128x32xbf16, #tpu.memory_space<vmem>>, %arg3: memref<1x32xf32, #tpu.memory_space<vmem>>, %arg4: memref<8x32xf32, #tpu.memory_space<vmem>>) attributes {dimension_semantics = [#tpu.dimension_semantics<parallel>], iteration_bounds = array<i64: 2>, scalar_prefetch = 0 : i64, scratch_operands = 0 : i64, tpu.core_type = #tpu.core_type<tc>, window_params = [{transform_indices = @transform_0, window_bounds = array<i64: 8, 128>}, {pipeline_mode = #tpu.pipeline_mode<synchronous>, transform_indices = @transform_1, window_bounds = array<i64: 128, 32>}, {pipeline_mode = #tpu.pipeline_mode<synchronous>, transform_indices = @transform_2, window_bounds = array<i64: 1, 32>}, {transform_indices = @transform_3, window_bounds = array<i64: 8, 32>}]} {
    %c0 = arith.constant 0 : index
    %c0_0 = arith.constant 0 : index
    %0 = vector.load %arg1[%c0, %c0_0] : memref<8x128xf32, #tpu.memory_space<vmem>>, vector<8x128xf32>
    %1 = arith.truncf %0 : vector<8x128xf32> to vector<8x128xbf16>
    %c0_1 = arith.constant 0 : index
    %c0_2 = arith.constant 0 : index
    %2 = vector.load %arg2[%c0_1, %c0_2] : memref<128x32xbf16, #tpu.memory_space<vmem>>, vector<128x32xbf16>
    %cst = arith.constant dense<0.000000e+00> : vector<8x32xf32>
    %3 = tpu.matmul %1, %2, %cst {dimension_numbers = #tpu.dot_dimension_numbers<[1], [0], [0], [1], [0, 0, 1, 1], [], []>} : vector<8x128xbf16>, vector<128x32xbf16>, vector<8x32xf32> -> vector<8x32xf32>
    %c0_3 = arith.constant 0 : index
    %c0_4 = arith.constant 0 : index
    %4 = vector.load %arg3[%c0_3, %c0_4] : memref<1x32xf32, #tpu.memory_space<vmem>>, vector<1x32xf32>
    %5 = vector.broadcast %4 : vector<1x32xf32> to vector<8x32xf32>
    %6 = arith.addf %3, %5 : vector<8x32xf32>
    %c0_5 = arith.constant 0 : index
    %c0_6 = arith.constant 0 : index
    %7 = vector.load %arg4[%c0_5, %c0_6] : memref<8x32xf32, #tpu.memory_space<vmem>>, vector<8x32xf32>
    tpu.vector_store %arg4[%c0_5, %c0_6], %6 {strides = array<i32>} : memref<8x32xf32, #tpu.memory_space<vmem>>, vector<8x32xf32>,
    return
  }
  func.func @transform_0(%arg0: i32) -> (i32, i32) {
    %c0_i32 = arith.constant 0 : i32
    %c0_i32_0 = arith.constant 0 : i32
    return %arg0, %c0_i32 : i32, i32
  }
  func.func @transform_1(%arg0: i32) -> (i32, i32) {
    %c0_i32 = arith.constant 0 : i32
    %c0_i32_0 = arith.constant 0 : i32
    %c0_i32_1 = arith.constant 0 : i32
    return %c0_i32, %c0_i32_0 : i32, i32
  }
  func.func @transform_2(%arg0: i32) -> (i32, i32) {
    %c0_i32 = arith.constant 0 : i32
    %c0_i32_0 = arith.constant 0 : i32
    %c0_i32_1 = arith.constant 0 : i32
    return %c0_i32, %c0_i32_0 : i32, i32
  }
  func.func @transform_3(%arg0: i32) -> (i32, i32) {
    %c0_i32 = arith.constant 0 : i32
    %c0_i32_0 = arith.constant 0 : i32
    return %arg0, %c0_i32 : i32, i32
  }
}

module attributes {stable_mosaic.version = 11 : i64} {
  func.func @_tri_proj_kernel(%arg0: i32, %arg1: memref<64x16xf32, #tpu.memory_space<vmem>>, %arg2: memref<64x1xf32, #tpu.memory_space<vmem>>, %arg3: memref<16x64xbf16, #tpu.memory_space<vmem>>, %arg4: memref<1x64xf32, #tpu.memory_space<vmem>>, %arg5: memref<1x16xf32, #tpu.memory_space<vmem>>, %arg6: memref<1x16xf32, #tpu.memory_space<vmem>>, %arg7: memref<64x16xbf16, #tpu.memory_space<vmem>>, %arg8: memref<64x16xbf16, #tpu.memory_space<vmem>>) attributes {dimension_semantics = [#tpu.dimension_semantics<parallel>], iteration_bounds = array<i64: 2>, scalar_prefetch = 0 : i64, scratch_operands = 0 : i64, tpu.core_type = #tpu.core_type<tc>, window_params = [{transform_indices = @transform_0, window_bounds = array<i64: 64, 16>}, {transform_indices = @transform_1, window_bounds = array<i64: 64, 1>}, {pipeline_mode = #tpu.pipeline_mode<synchronous>, transform_indices = @transform_2, window_bounds = array<i64: 16, 64>}, {pipeline_mode = #tpu.pipeline_mode<synchronous>, transform_indices = @transform_3, window_bounds = array<i64: 1, 64>}, {pipeline_mode = #tpu.pipeline_mode<synchronous>, transform_indices = @transform_4, window_bounds = array<i64: 1, 16>}, {pipeline_mode = #tpu.pipeline_mode<synchronous>, transform_indices = @transform_5, window_bounds = array<i64: 1, 16>}, {transform_indices = @transform_6, window_bounds = array<i64: 64, 16>}, {transform_indices = @transform_7, window_bounds = array<i64: 64, 16>}]} {
    %c0 = arith.constant 0 : index
    %c0_0 = arith.constant 0 : index
    %0 = vector.load %arg1[%c0, %c0_0] : memref<64x16xf32, #tpu.memory_space<vmem>>, vector<64x16xf32>
    %cst = arith.constant dense<0.000000e+00> : vector<64xf32>
    %1 = vector.multi_reduction <add>, %0, %cst [1] : vector<64x16xf32> to vector<64xf32>
    %2 = vector.shape_cast %1 : vector<64xf32> to vector<64x1xf32>
    %cst_1 = arith.constant 1.600000e+01 : f32
    %3 = vector.broadcast %cst_1 : f32 to vector<64x1xf32>
    %4 = arith.divf %2, %3 : vector<64x1xf32>
    %5 = vector.broadcast %4 : vector<64x1xf32> to vector<64x16xf32>
    %6 = arith.subf %0, %5 : vector<64x16xf32>
    %7 = arith.mulf %6, %6 : vector<64x16xf32>
    %cst_2 = arith.constant dense<0.000000e+00> : vector<64xf32>
    %8 = vector.multi_reduction <add>, %7, %cst_2 [1] : vector<64x16xf32> to vector<64xf32>
    %9 = vector.shape_cast %8 : vector<64xf32> to vector<64x1xf32>
    %cst_3 = arith.constant 1.600000e+01 : f32
    %10 = vector.broadcast %cst_3 : f32 to vector<64x1xf32>
    %11 = arith.divf %9, %10 : vector<64x1xf32>
    %cst_4 = arith.constant 9.99999974E-6 : f32
    %12 = vector.broadcast %cst_4 : f32 to vector<64x1xf32>
    %13 = arith.addf %11, %12 : vector<64x1xf32>
    %14 = math.rsqrt %13 : vector<64x1xf32>
    %15 = vector.broadcast %14 : vector<64x1xf32> to vector<64x16xf32>
    %16 = arith.mulf %6, %15 : vector<64x16xf32>
    %c0_5 = arith.constant 0 : index
    %c0_6 = arith.constant 0 : index
    %17 = vector.load %arg5[%c0_5, %c0_6] : memref<1x16xf32, #tpu.memory_space<vmem>>, vector<1x16xf32>
    %18 = vector.broadcast %17 : vector<1x16xf32> to vector<64x16xf32>
    %19 = arith.mulf %16, %18 : vector<64x16xf32>
    %c0_7 = arith.constant 0 : index
    %c0_8 = arith.constant 0 : index
    %20 = vector.load %arg6[%c0_7, %c0_8] : memref<1x16xf32, #tpu.memory_space<vmem>>, vector<1x16xf32>
    %21 = vector.broadcast %20 : vector<1x16xf32> to vector<64x16xf32>
    %22 = arith.addf %19, %21 : vector<64x16xf32>
    %23 = arith.truncf %22 : vector<64x16xf32> to vector<64x16xbf16>
    %c0_9 = arith.constant 0 : index
    %c0_10 = arith.constant 0 : index
    %24 = vector.load %arg3[%c0_9, %c0_10] : memref<16x64xbf16, #tpu.memory_space<vmem>>, vector<16x64xbf16>
    %cst_11 = arith.constant dense<0.000000e+00> : vector<64x64xf32>
    %25 = tpu.matmul %23, %24, %cst_11 {dimension_numbers = #tpu.dot_dimension_numbers<[1], [0], [0], [1], [0, 0, 1, 1], [], []>} : vector<64x16xbf16>, vector<16x64xbf16>, vector<64x64xf32> -> vector<64x64xf32>
    %c0_12 = arith.constant 0 : index
    %c0_13 = arith.constant 0 : index
    %26 = vector.load %arg4[%c0_12, %c0_13] : memref<1x64xf32, #tpu.memory_space<vmem>>, vector<1x64xf32>
    %27 = vector.broadcast %26 : vector<1x64xf32> to vector<64x64xf32>
    %28 = arith.addf %25, %27 : vector<64x64xf32>
    %c0_14 = arith.constant 0 : index
    %c0_15 = arith.constant 0 : index
    %29 = vector.load %arg2[%c0_14, %c0_15] : memref<64x1xf32, #tpu.memory_space<vmem>>, vector<64x1xf32>
    %30 = vector.extract_strided_slice %28 {offsets = [0, 0], sizes = [64, 16], strides = [1, 1]} : vector<64x64xf32> to vector<64x16xf32>
    %31 = vector.broadcast %29 : vector<64x1xf32> to vector<64x16xf32>
    %32 = arith.mulf %30, %31 : vector<64x16xf32>
    %33 = vector.extract_strided_slice %28 {offsets = [0, 16], sizes = [64, 16], strides = [1, 1]} : vector<64x64xf32> to vector<64x16xf32>
    %34 = vector.broadcast %29 : vector<64x1xf32> to vector<64x16xf32>
    %35 = arith.mulf %33, %34 : vector<64x16xf32>
    %36 = vector.extract_strided_slice %28 {offsets = [0, 32], sizes = [64, 16], strides = [1, 1]} : vector<64x64xf32> to vector<64x16xf32>
    %cst_16 = arith.constant 0.000000e+00 : f32
    %37 = vector.broadcast %cst_16 : f32 to vector<64x16xf32>
    %38 = arith.subf %37, %36 : vector<64x16xf32>
    %39 = math.exp %38 : vector<64x16xf32>
    %cst_17 = arith.constant 1.000000e+00 : f32
    %40 = vector.broadcast %cst_17 : f32 to vector<64x16xf32>
    %41 = arith.addf %40, %39 : vector<64x16xf32>
    %42 = tpu.reciprocal %41 {approx = true} : vector<64x16xf32> -> vector<64x16xf32>
    %43 = vector.extract_strided_slice %28 {offsets = [0, 48], sizes = [64, 16], strides = [1, 1]} : vector<64x64xf32> to vector<64x16xf32>
    %cst_18 = arith.constant 0.000000e+00 : f32
    %44 = vector.broadcast %cst_18 : f32 to vector<64x16xf32>
    %45 = arith.subf %44, %43 : vector<64x16xf32>
    %46 = math.exp %45 : vector<64x16xf32>
    %cst_19 = arith.constant 1.000000e+00 : f32
    %47 = vector.broadcast %cst_19 : f32 to vector<64x16xf32>
    %48 = arith.addf %47, %46 : vector<64x16xf32>
    %49 = tpu.reciprocal %48 {approx = true} : vector<64x16xf32> -> vector<64x16xf32>
    %50 = arith.mulf %32, %42 : vector<64x16xf32>
    %51 = arith.truncf %50 : vector<64x16xf32> to vector<64x16xbf16>
    %c0_20 = arith.constant 0 : index
    %c0_21 = arith.constant 0 : index
    %52 = vector.load %arg7[%c0_20, %c0_21] : memref<64x16xbf16, #tpu.memory_space<vmem>>, vector<64x16xbf16>
    tpu.vector_store %arg7[%c0_20, %c0_21], %51 {strides = array<i32>} : memref<64x16xbf16, #tpu.memory_space<vmem>>, vector<64x16xbf16>,
    %53 = arith.mulf %35, %49 : vector<64x16xf32>
    %54 = arith.truncf %53 : vector<64x16xf32> to vector<64x16xbf16>
    %c0_22 = arith.constant 0 : index
    %c0_23 = arith.constant 0 : index
    %55 = vector.load %arg8[%c0_22, %c0_23] : memref<64x16xbf16, #tpu.memory_space<vmem>>, vector<64x16xbf16>
    tpu.vector_store %arg8[%c0_22, %c0_23], %54 {strides = array<i32>} : memref<64x16xbf16, #tpu.memory_space<vmem>>, vector<64x16xbf16>,
    return
  }
  func.func @transform_0(%arg0: i32) -> (i32, i32) {
    %c0_i32 = arith.constant 0 : i32
    %c0_i32_0 = arith.constant 0 : i32
    return %arg0, %c0_i32 : i32, i32
  }
  func.func @transform_1(%arg0: i32) -> (i32, i32) {
    %c0_i32 = arith.constant 0 : i32
    %c0_i32_0 = arith.constant 0 : i32
    return %arg0, %c0_i32 : i32, i32
  }
  func.func @transform_2(%arg0: i32) -> (i32, i32) {
    %c0_i32 = arith.constant 0 : i32
    %c0_i32_0 = arith.constant 0 : i32
    %c0_i32_1 = arith.constant 0 : i32
    return %c0_i32, %c0_i32_0 : i32, i32
  }
  func.func @transform_3(%arg0: i32) -> (i32, i32) {
    %c0_i32 = arith.constant 0 : i32
    %c0_i32_0 = arith.constant 0 : i32
    %c0_i32_1 = arith.constant 0 : i32
    return %c0_i32, %c0_i32_0 : i32, i32
  }
  func.func @transform_4(%arg0: i32) -> (i32, i32) {
    %c0_i32 = arith.constant 0 : i32
    %c0_i32_0 = arith.constant 0 : i32
    %c0_i32_1 = arith.constant 0 : i32
    return %c0_i32, %c0_i32_0 : i32, i32
  }
  func.func @transform_5(%arg0: i32) -> (i32, i32) {
    %c0_i32 = arith.constant 0 : i32
    %c0_i32_0 = arith.constant 0 : i32
    %c0_i32_1 = arith.constant 0 : i32
    return %c0_i32, %c0_i32_0 : i32, i32
  }
  func.func @transform_6(%arg0: i32) -> (i32, i32) {
    %c0_i32 = arith.constant 0 : i32
    %c0_i32_0 = arith.constant 0 : i32
    return %arg0, %c0_i32 : i32, i32
  }
  func.func @transform_7(%arg0: i32) -> (i32, i32) {
    %c0_i32 = arith.constant 0 : i32
    %c0_i32_0 = arith.constant 0 : i32
    return %arg0, %c0_i32 : i32, i32
  }
}

module attributes {stable_mosaic.version = 11 : i64} {
  func.func @_tri_mix_kernel_direct(%arg0: i32, %arg1: i32, %arg2: memref<1x16x8x8xbf16, #tpu.memory_space<vmem>>, %arg3: memref<1x16x8x8xbf16, #tpu.memory_space<vmem>>, %arg4: memref<1x16x8x8xbf16, #tpu.memory_space<vmem>>) attributes {dimension_semantics = [#tpu.dimension_semantics<parallel>, #tpu.dimension_semantics<parallel>], iteration_bounds = array<i64: 2, 1>, scalar_prefetch = 0 : i64, scratch_operands = 0 : i64, tpu.core_type = #tpu.core_type<tc>, window_params = [{transform_indices = @transform_0, window_bounds = array<i64: 1, 16, 8, 8>}, {transform_indices = @transform_1, window_bounds = array<i64: 1, 16, 8, 8>}, {transform_indices = @transform_2, window_bounds = array<i64: 1, 16, 8, 8>}]} {
    %c0 = arith.constant 0 : index
    %c0_0 = arith.constant 0 : index
    %c0_1 = arith.constant 0 : index
    %c0_2 = arith.constant 0 : index
    %0 = vector.load %arg2[%c0, %c0_0, %c0_1, %c0_2] : memref<1x16x8x8xbf16, #tpu.memory_space<vmem>>, vector<1x16x8x8xbf16>
    %1 = vector.shape_cast %0 : vector<1x16x8x8xbf16> to vector<16x8x8xbf16>
    %c0_3 = arith.constant 0 : index
    %c0_4 = arith.constant 0 : index
    %c0_5 = arith.constant 0 : index
    %c0_6 = arith.constant 0 : index
    %2 = vector.load %arg3[%c0_3, %c0_4, %c0_5, %c0_6] : memref<1x16x8x8xbf16, #tpu.memory_space<vmem>>, vector<1x16x8x8xbf16>
    %3 = vector.shape_cast %2 : vector<1x16x8x8xbf16> to vector<16x8x8xbf16>
    %cst = arith.constant dense<0.000000e+00> : vector<16x8x8xf32>
    %4 = tpu.matmul %1, %3, %cst {dimension_numbers = #tpu.dot_dimension_numbers<[2], [2], [1], [1], [0, 0, 0, 1, 1, 1], [0], [0]>} : vector<16x8x8xbf16>, vector<16x8x8xbf16>, vector<16x8x8xf32> -> vector<16x8x8xf32>
    %5 = arith.truncf %4 : vector<16x8x8xf32> to vector<16x8x8xbf16>
    %c0_7 = arith.constant 0 : index
    %c0_8 = arith.constant 0 : index
    %c0_9 = arith.constant 0 : index
    %c0_10 = arith.constant 0 : index
    %6 = vector.load %arg4[%c0_7, %c0_8, %c0_9, %c0_10] : memref<1x16x8x8xbf16, #tpu.memory_space<vmem>>, vector<1x16x8x8xbf16>
    %7 = vector.shape_cast %6 : vector<1x16x8x8xbf16> to vector<16x8x8xbf16>
    %8 = vector.shape_cast %5 : vector<16x8x8xbf16> to vector<1x16x8x8xbf16>
    tpu.vector_store %arg4[%c0_7, %c0_8, %c0_9, %c0_10], %8 {strides = array<i32>} : memref<1x16x8x8xbf16, #tpu.memory_space<vmem>>, vector<1x16x8x8xbf16>,
    return
  }
  func.func @transform_0(%arg0: i32, %arg1: i32) -> (i32, i32, i32, i32) {
    %c0_i32 = arith.constant 0 : i32
    %c0_i32_0 = arith.constant 0 : i32
    %c0_i32_1 = arith.constant 0 : i32
    return %arg0, %c0_i32, %arg1, %c0_i32_0 : i32, i32, i32, i32
  }
  func.func @transform_1(%arg0: i32, %arg1: i32) -> (i32, i32, i32, i32) {
    %c0_i32 = arith.constant 0 : i32
    %c0_i32_0 = arith.constant 0 : i32
    %c0_i32_1 = arith.constant 0 : i32
    %c0_i32_2 = arith.constant 0 : i32
    return %arg0, %c0_i32, %c0_i32_0, %c0_i32_1 : i32, i32, i32, i32
  }
  func.func @transform_2(%arg0: i32, %arg1: i32) -> (i32, i32, i32, i32) {
    %c0_i32 = arith.constant 0 : i32
    %c0_i32_0 = arith.constant 0 : i32
    %c0_i32_1 = arith.constant 0 : i32
    return %arg0, %c0_i32, %arg1, %c0_i32_0 : i32, i32, i32, i32
  }
}

module attributes {stable_mosaic.version = 11 : i64} {
  func.func @_tri_epilogue_kernel(%arg0: i32, %arg1: memref<64x16xbf16, #tpu.memory_space<vmem>>, %arg2: memref<64x16xf32, #tpu.memory_space<vmem>>, %arg3: memref<1x16xf32, #tpu.memory_space<vmem>>, %arg4: memref<1x16xf32, #tpu.memory_space<vmem>>, %arg5: memref<16x16xbf16, #tpu.memory_space<vmem>>, %arg6: memref<1x16xf32, #tpu.memory_space<vmem>>, %arg7: memref<1x16xf32, #tpu.memory_space<vmem>>, %arg8: memref<1x16xf32, #tpu.memory_space<vmem>>, %arg9: memref<16x16xbf16, #tpu.memory_space<vmem>>, %arg10: memref<1x16xf32, #tpu.memory_space<vmem>>, %arg11: memref<64x16xf32, #tpu.memory_space<vmem>>) attributes {dimension_semantics = [#tpu.dimension_semantics<parallel>], iteration_bounds = array<i64: 2>, scalar_prefetch = 0 : i64, scratch_operands = 0 : i64, tpu.core_type = #tpu.core_type<tc>, window_params = [{transform_indices = @transform_0, window_bounds = array<i64: 64, 16>}, {transform_indices = @transform_1, window_bounds = array<i64: 64, 16>}, {pipeline_mode = #tpu.pipeline_mode<synchronous>, transform_indices = @transform_2, window_bounds = array<i64: 1, 16>}, {pipeline_mode = #tpu.pipeline_mode<synchronous>, transform_indices = @transform_3, window_bounds = array<i64: 1, 16>}, {pipeline_mode = #tpu.pipeline_mode<synchronous>, transform_indices = @transform_4, window_bounds = array<i64: 16, 16>}, {pipeline_mode = #tpu.pipeline_mode<synchronous>, transform_indices = @transform_5, window_bounds = array<i64: 1, 16>}, {pipeline_mode = #tpu.pipeline_mode<synchronous>, transform_indices = @transform_6, window_bounds = array<i64: 1, 16>}, {pipeline_mode = #tpu.pipeline_mode<synchronous>, transform_indices = @transform_7, window_bounds = array<i64: 1, 16>}, {pipeline_mode = #tpu.pipeline_mode<synchronous>, transform_indices = @transform_8, window_bounds = array<i64: 16, 16>}, {pipeline_mode = #tpu.pipeline_mode<synchronous>, transform_indices = @transform_9, window_bounds = array<i64: 1, 16>}, {transform_indices = @transform_10, window_bounds = array<i64: 64, 16>}]} {
    %c0 = arith.constant 0 : index
    %c0_0 = arith.constant 0 : index
    %0 = vector.load %arg2[%c0, %c0_0] : memref<64x16xf32, #tpu.memory_space<vmem>>, vector<64x16xf32>
    %cst = arith.constant dense<0.000000e+00> : vector<64xf32>
    %1 = vector.multi_reduction <add>, %0, %cst [1] : vector<64x16xf32> to vector<64xf32>
    %2 = vector.shape_cast %1 : vector<64xf32> to vector<64x1xf32>
    %cst_1 = arith.constant 1.600000e+01 : f32
    %3 = vector.broadcast %cst_1 : f32 to vector<64x1xf32>
    %4 = arith.divf %2, %3 : vector<64x1xf32>
    %5 = vector.broadcast %4 : vector<64x1xf32> to vector<64x16xf32>
    %6 = arith.subf %0, %5 : vector<64x16xf32>
    %7 = arith.mulf %6, %6 : vector<64x16xf32>
    %cst_2 = arith.constant dense<0.000000e+00> : vector<64xf32>
    %8 = vector.multi_reduction <add>, %7, %cst_2 [1] : vector<64x16xf32> to vector<64xf32>
    %9 = vector.shape_cast %8 : vector<64xf32> to vector<64x1xf32>
    %cst_3 = arith.constant 1.600000e+01 : f32
    %10 = vector.broadcast %cst_3 : f32 to vector<64x1xf32>
    %11 = arith.divf %9, %10 : vector<64x1xf32>
    %cst_4 = arith.constant 9.99999974E-6 : f32
    %12 = vector.broadcast %cst_4 : f32 to vector<64x1xf32>
    %13 = arith.addf %11, %12 : vector<64x1xf32>
    %14 = math.rsqrt %13 : vector<64x1xf32>
    %15 = vector.broadcast %14 : vector<64x1xf32> to vector<64x16xf32>
    %16 = arith.mulf %6, %15 : vector<64x16xf32>
    %c0_5 = arith.constant 0 : index
    %c0_6 = arith.constant 0 : index
    %17 = vector.load %arg3[%c0_5, %c0_6] : memref<1x16xf32, #tpu.memory_space<vmem>>, vector<1x16xf32>
    %18 = vector.broadcast %17 : vector<1x16xf32> to vector<64x16xf32>
    %19 = arith.mulf %16, %18 : vector<64x16xf32>
    %c0_7 = arith.constant 0 : index
    %c0_8 = arith.constant 0 : index
    %20 = vector.load %arg4[%c0_7, %c0_8] : memref<1x16xf32, #tpu.memory_space<vmem>>, vector<1x16xf32>
    %21 = vector.broadcast %20 : vector<1x16xf32> to vector<64x16xf32>
    %22 = arith.addf %19, %21 : vector<64x16xf32>
    %23 = arith.truncf %22 : vector<64x16xf32> to vector<64x16xbf16>
    %c0_9 = arith.constant 0 : index
    %c0_10 = arith.constant 0 : index
    %24 = vector.load %arg5[%c0_9, %c0_10] : memref<16x16xbf16, #tpu.memory_space<vmem>>, vector<16x16xbf16>
    %cst_11 = arith.constant dense<0.000000e+00> : vector<64x16xf32>
    %25 = tpu.matmul %23, %24, %cst_11 {dimension_numbers = #tpu.dot_dimension_numbers<[1], [0], [0], [1], [0, 0, 1, 1], [], []>} : vector<64x16xbf16>, vector<16x16xbf16>, vector<64x16xf32> -> vector<64x16xf32>
    %c0_12 = arith.constant 0 : index
    %c0_13 = arith.constant 0 : index
    %26 = vector.load %arg6[%c0_12, %c0_13] : memref<1x16xf32, #tpu.memory_space<vmem>>, vector<1x16xf32>
    %27 = vector.broadcast %26 : vector<1x16xf32> to vector<64x16xf32>
    %28 = arith.addf %25, %27 : vector<64x16xf32>
    %cst_14 = arith.constant 0.000000e+00 : f32
    %29 = vector.broadcast %cst_14 : f32 to vector<64x16xf32>
    %30 = arith.subf %29, %28 : vector<64x16xf32>
    %31 = math.exp %30 : vector<64x16xf32>
    %cst_15 = arith.constant 1.000000e+00 : f32
    %32 = vector.broadcast %cst_15 : f32 to vector<64x16xf32>
    %33 = arith.addf %32, %31 : vector<64x16xf32>
    %34 = tpu.reciprocal %33 {approx = true} : vector<64x16xf32> -> vector<64x16xf32>
    %c0_16 = arith.constant 0 : index
    %c0_17 = arith.constant 0 : index
    %35 = vector.load %arg1[%c0_16, %c0_17] : memref<64x16xbf16, #tpu.memory_space<vmem>>, vector<64x16xbf16>
    %36 = arith.extf %35 : vector<64x16xbf16> to vector<64x16xf32>
    %cst_18 = arith.constant dense<0.000000e+00> : vector<64xf32>
    %37 = vector.multi_reduction <add>, %36, %cst_18 [1] : vector<64x16xf32> to vector<64xf32>
    %38 = vector.shape_cast %37 : vector<64xf32> to vector<64x1xf32>
    %cst_19 = arith.constant 1.600000e+01 : f32
    %39 = vector.broadcast %cst_19 : f32 to vector<64x1xf32>
    %40 = arith.divf %38, %39 : vector<64x1xf32>
    %41 = vector.broadcast %40 : vector<64x1xf32> to vector<64x16xf32>
    %42 = arith.subf %36, %41 : vector<64x16xf32>
    %43 = arith.mulf %42, %42 : vector<64x16xf32>
    %cst_20 = arith.constant dense<0.000000e+00> : vector<64xf32>
    %44 = vector.multi_reduction <add>, %43, %cst_20 [1] : vector<64x16xf32> to vector<64xf32>
    %45 = vector.shape_cast %44 : vector<64xf32> to vector<64x1xf32>
    %cst_21 = arith.constant 1.600000e+01 : f32
    %46 = vector.broadcast %cst_21 : f32 to vector<64x1xf32>
    %47 = arith.divf %45, %46 : vector<64x1xf32>
    %cst_22 = arith.constant 9.99999974E-6 : f32
    %48 = vector.broadcast %cst_22 : f32 to vector<64x1xf32>
    %49 = arith.addf %47, %48 : vector<64x1xf32>
    %50 = math.rsqrt %49 : vector<64x1xf32>
    %51 = vector.broadcast %50 : vector<64x1xf32> to vector<64x16xf32>
    %52 = arith.mulf %42, %51 : vector<64x16xf32>
    %c0_23 = arith.constant 0 : index
    %c0_24 = arith.constant 0 : index
    %53 = vector.load %arg7[%c0_23, %c0_24] : memref<1x16xf32, #tpu.memory_space<vmem>>, vector<1x16xf32>
    %54 = vector.broadcast %53 : vector<1x16xf32> to vector<64x16xf32>
    %55 = arith.mulf %52, %54 : vector<64x16xf32>
    %c0_25 = arith.constant 0 : index
    %c0_26 = arith.constant 0 : index
    %56 = vector.load %arg8[%c0_25, %c0_26] : memref<1x16xf32, #tpu.memory_space<vmem>>, vector<1x16xf32>
    %57 = vector.broadcast %56 : vector<1x16xf32> to vector<64x16xf32>
    %58 = arith.addf %55, %57 : vector<64x16xf32>
    %59 = arith.mulf %58, %34 : vector<64x16xf32>
    %60 = arith.truncf %59 : vector<64x16xf32> to vector<64x16xbf16>
    %c0_27 = arith.constant 0 : index
    %c0_28 = arith.constant 0 : index
    %61 = vector.load %arg9[%c0_27, %c0_28] : memref<16x16xbf16, #tpu.memory_space<vmem>>, vector<16x16xbf16>
    %cst_29 = arith.constant dense<0.000000e+00> : vector<64x16xf32>
    %62 = tpu.matmul %60, %61, %cst_29 {dimension_numbers = #tpu.dot_dimension_numbers<[1], [0], [0], [1], [0, 0, 1, 1], [], []>} : vector<64x16xbf16>, vector<16x16xbf16>, vector<64x16xf32> -> vector<64x16xf32>
    %c0_30 = arith.constant 0 : index
    %c0_31 = arith.constant 0 : index
    %63 = vector.load %arg10[%c0_30, %c0_31] : memref<1x16xf32, #tpu.memory_space<vmem>>, vector<1x16xf32>
    %64 = vector.broadcast %63 : vector<1x16xf32> to vector<64x16xf32>
    %65 = arith.addf %62, %64 : vector<64x16xf32>
    %66 = arith.addf %0, %65 : vector<64x16xf32>
    %c0_32 = arith.constant 0 : index
    %c0_33 = arith.constant 0 : index
    %67 = vector.load %arg11[%c0_32, %c0_33] : memref<64x16xf32, #tpu.memory_space<vmem>>, vector<64x16xf32>
    tpu.vector_store %arg11[%c0_32, %c0_33], %66 {strides = array<i32>} : memref<64x16xf32, #tpu.memory_space<vmem>>, vector<64x16xf32>,
    return
  }
  func.func @transform_0(%arg0: i32) -> (i32, i32) {
    %c0_i32 = arith.constant 0 : i32
    %c0_i32_0 = arith.constant 0 : i32
    return %arg0, %c0_i32 : i32, i32
  }
  func.func @transform_1(%arg0: i32) -> (i32, i32) {
    %c0_i32 = arith.constant 0 : i32
    %c0_i32_0 = arith.constant 0 : i32
    return %arg0, %c0_i32 : i32, i32
  }
  func.func @transform_2(%arg0: i32) -> (i32, i32) {
    %c0_i32 = arith.constant 0 : i32
    %c0_i32_0 = arith.constant 0 : i32
    %c0_i32_1 = arith.constant 0 : i32
    return %c0_i32, %c0_i32_0 : i32, i32
  }
  func.func @transform_3(%arg0: i32) -> (i32, i32) {
    %c0_i32 = arith.constant 0 : i32
    %c0_i32_0 = arith.constant 0 : i32
    %c0_i32_1 = arith.constant 0 : i32
    return %c0_i32, %c0_i32_0 : i32, i32
  }
  func.func @transform_4(%arg0: i32) -> (i32, i32) {
    %c0_i32 = arith.constant 0 : i32
    %c0_i32_0 = arith.constant 0 : i32
    %c0_i32_1 = arith.constant 0 : i32
    return %c0_i32, %c0_i32_0 : i32, i32
  }
  func.func @transform_5(%arg0: i32) -> (i32, i32) {
    %c0_i32 = arith.constant 0 : i32
    %c0_i32_0 = arith.constant 0 : i32
    %c0_i32_1 = arith.constant 0 : i32
    return %c0_i32, %c0_i32_0 : i32, i32
  }
  func.func @transform_6(%arg0: i32) -> (i32, i32) {
    %c0_i32 = arith.constant 0 : i32
    %c0_i32_0 = arith.constant 0 : i32
    %c0_i32_1 = arith.constant 0 : i32
    return %c0_i32, %c0_i32_0 : i32, i32
  }
  func.func @transform_7(%arg0: i32) -> (i32, i32) {
    %c0_i32 = arith.constant 0 : i32
    %c0_i32_0 = arith.constant 0 : i32
    %c0_i32_1 = arith.constant 0 : i32
    return %c0_i32, %c0_i32_0 : i32, i32
  }
  func.func @transform_8(%arg0: i32) -> (i32, i32) {
    %c0_i32 = arith.constant 0 : i32
    %c0_i32_0 = arith.constant 0 : i32
    %c0_i32_1 = arith.constant 0 : i32
    return %c0_i32, %c0_i32_0 : i32, i32
  }
  func.func @transform_9(%arg0: i32) -> (i32, i32) {
    %c0_i32 = arith.constant 0 : i32
    %c0_i32_0 = arith.constant 0 : i32
    %c0_i32_1 = arith.constant 0 : i32
    return %c0_i32, %c0_i32_0 : i32, i32
  }
  func.func @transform_10(%arg0: i32) -> (i32, i32) {
    %c0_i32 = arith.constant 0 : i32
    %c0_i32_0 = arith.constant 0 : i32
    return %arg0, %c0_i32 : i32, i32
  }
}

module attributes {stable_mosaic.version = 11 : i64} {
  func.func @_pair_transition_kernel(%arg0: i32, %arg1: memref<64x16xf32, #tpu.memory_space<vmem>>, %arg2: memref<1x16xf32, #tpu.memory_space<vmem>>, %arg3: memref<1x16xf32, #tpu.memory_space<vmem>>, %arg4: memref<16x64xbf16, #tpu.memory_space<vmem>>, %arg5: memref<1x64xf32, #tpu.memory_space<vmem>>, %arg6: memref<64x16xbf16, #tpu.memory_space<vmem>>, %arg7: memref<1x16xf32, #tpu.memory_space<vmem>>, %arg8: memref<64x16xf32, #tpu.memory_space<vmem>>) attributes {dimension_semantics = [#tpu.dimension_semantics<parallel>], iteration_bounds = array<i64: 2>, scalar_prefetch = 0 : i64, scratch_operands = 0 : i64, tpu.core_type = #tpu.core_type<tc>, window_params = [{transform_indices = @transform_0, window_bounds = array<i64: 64, 16>}, {pipeline_mode = #tpu.pipeline_mode<synchronous>, transform_indices = @transform_1, window_bounds = array<i64: 1, 16>}, {pipeline_mode = #tpu.pipeline_mode<synchronous>, transform_indices = @transform_2, window_bounds = array<i64: 1, 16>}, {pipeline_mode = #tpu.pipeline_mode<synchronous>, transform_indices = @transform_3, window_bounds = array<i64: 16, 64>}, {pipeline_mode = #tpu.pipeline_mode<synchronous>, transform_indices = @transform_4, window_bounds = array<i64: 1, 64>}, {pipeline_mode = #tpu.pipeline_mode<synchronous>, transform_indices = @transform_5, window_bounds = array<i64: 64, 16>}, {pipeline_mode = #tpu.pipeline_mode<synchronous>, transform_indices = @transform_6, window_bounds = array<i64: 1, 16>}, {transform_indices = @transform_7, window_bounds = array<i64: 64, 16>}]} {
    %c0 = arith.constant 0 : index
    %c0_0 = arith.constant 0 : index
    %0 = vector.load %arg1[%c0, %c0_0] : memref<64x16xf32, #tpu.memory_space<vmem>>, vector<64x16xf32>
    %cst = arith.constant dense<0.000000e+00> : vector<64xf32>
    %1 = vector.multi_reduction <add>, %0, %cst [1] : vector<64x16xf32> to vector<64xf32>
    %2 = vector.shape_cast %1 : vector<64xf32> to vector<64x1xf32>
    %cst_1 = arith.constant 1.600000e+01 : f32
    %3 = vector.broadcast %cst_1 : f32 to vector<64x1xf32>
    %4 = arith.divf %2, %3 : vector<64x1xf32>
    %5 = vector.broadcast %4 : vector<64x1xf32> to vector<64x16xf32>
    %6 = arith.subf %0, %5 : vector<64x16xf32>
    %7 = arith.mulf %6, %6 : vector<64x16xf32>
    %cst_2 = arith.constant dense<0.000000e+00> : vector<64xf32>
    %8 = vector.multi_reduction <add>, %7, %cst_2 [1] : vector<64x16xf32> to vector<64xf32>
    %9 = vector.shape_cast %8 : vector<64xf32> to vector<64x1xf32>
    %cst_3 = arith.constant 1.600000e+01 : f32
    %10 = vector.broadcast %cst_3 : f32 to vector<64x1xf32>
    %11 = arith.divf %9, %10 : vector<64x1xf32>
    %cst_4 = arith.constant 9.99999974E-6 : f32
    %12 = vector.broadcast %cst_4 : f32 to vector<64x1xf32>
    %13 = arith.addf %11, %12 : vector<64x1xf32>
    %14 = math.rsqrt %13 : vector<64x1xf32>
    %15 = vector.broadcast %14 : vector<64x1xf32> to vector<64x16xf32>
    %16 = arith.mulf %6, %15 : vector<64x16xf32>
    %c0_5 = arith.constant 0 : index
    %c0_6 = arith.constant 0 : index
    %17 = vector.load %arg2[%c0_5, %c0_6] : memref<1x16xf32, #tpu.memory_space<vmem>>, vector<1x16xf32>
    %18 = vector.broadcast %17 : vector<1x16xf32> to vector<64x16xf32>
    %19 = arith.mulf %16, %18 : vector<64x16xf32>
    %c0_7 = arith.constant 0 : index
    %c0_8 = arith.constant 0 : index
    %20 = vector.load %arg3[%c0_7, %c0_8] : memref<1x16xf32, #tpu.memory_space<vmem>>, vector<1x16xf32>
    %21 = vector.broadcast %20 : vector<1x16xf32> to vector<64x16xf32>
    %22 = arith.addf %19, %21 : vector<64x16xf32>
    %23 = arith.truncf %22 : vector<64x16xf32> to vector<64x16xbf16>
    %c0_9 = arith.constant 0 : index
    %c0_10 = arith.constant 0 : index
    %24 = vector.load %arg4[%c0_9, %c0_10] : memref<16x64xbf16, #tpu.memory_space<vmem>>, vector<16x64xbf16>
    %cst_11 = arith.constant dense<0.000000e+00> : vector<64x64xf32>
    %25 = tpu.matmul %23, %24, %cst_11 {dimension_numbers = #tpu.dot_dimension_numbers<[1], [0], [0], [1], [0, 0, 1, 1], [], []>} : vector<64x16xbf16>, vector<16x64xbf16>, vector<64x64xf32> -> vector<64x64xf32>
    %c0_12 = arith.constant 0 : index
    %c0_13 = arith.constant 0 : index
    %26 = vector.load %arg5[%c0_12, %c0_13] : memref<1x64xf32, #tpu.memory_space<vmem>>, vector<1x64xf32>
    %27 = vector.broadcast %26 : vector<1x64xf32> to vector<64x64xf32>
    %28 = arith.addf %25, %27 : vector<64x64xf32>
    %cst_14 = arith.constant 0.000000e+00 : f32
    %29 = vector.broadcast %cst_14 : f32 to vector<64x64xf32>
    %30 = arith.maximumf %28, %29 : vector<64x64xf32>
    %31 = arith.truncf %30 : vector<64x64xf32> to vector<64x64xbf16>
    %c0_15 = arith.constant 0 : index
    %c0_16 = arith.constant 0 : index
    %32 = vector.load %arg6[%c0_15, %c0_16] : memref<64x16xbf16, #tpu.memory_space<vmem>>, vector<64x16xbf16>
    %cst_17 = arith.constant dense<0.000000e+00> : vector<64x16xf32>
    %33 = tpu.matmul %31, %32, %cst_17 {dimension_numbers = #tpu.dot_dimension_numbers<[1], [0], [0], [1], [0, 0, 1, 1], [], []>} : vector<64x64xbf16>, vector<64x16xbf16>, vector<64x16xf32> -> vector<64x16xf32>
    %c0_18 = arith.constant 0 : index
    %c0_19 = arith.constant 0 : index
    %34 = vector.load %arg7[%c0_18, %c0_19] : memref<1x16xf32, #tpu.memory_space<vmem>>, vector<1x16xf32>
    %35 = vector.broadcast %34 : vector<1x16xf32> to vector<64x16xf32>
    %36 = arith.addf %33, %35 : vector<64x16xf32>
    %37 = arith.addf %0, %36 : vector<64x16xf32>
    %c0_20 = arith.constant 0 : index
    %c0_21 = arith.constant 0 : index
    %38 = vector.load %arg8[%c0_20, %c0_21] : memref<64x16xf32, #tpu.memory_space<vmem>>, vector<64x16xf32>
    tpu.vector_store %arg8[%c0_20, %c0_21], %37 {strides = array<i32>} : memref<64x16xf32, #tpu.memory_space<vmem>>, vector<64x16xf32>,
    return
  }
  func.func @transform_0(%arg0: i32) -> (i32, i32) {
    %c0_i32 = arith.constant 0 : i32
    %c0_i32_0 = arith.constant 0 : i32
    return %arg0, %c0_i32 : i32, i32
  }
  func.func @transform_1(%arg0: i32) -> (i32, i32) {
    %c0_i32 = arith.constant 0 : i32
    %c0_i32_0 = arith.constant 0 : i32
    %c0_i32_1 = arith.constant 0 : i32
    return %c0_i32, %c0_i32_0 : i32, i32
  }
  func.func @transform_2(%arg0: i32) -> (i32, i32) {
    %c0_i32 = arith.constant 0 : i32
    %c0_i32_0 = arith.constant 0 : i32
    %c0_i32_1 = arith.constant 0 : i32
    return %c0_i32, %c0_i32_0 : i32, i32
  }
  func.func @transform_3(%arg0: i32) -> (i32, i32) {
    %c0_i32 = arith.constant 0 : i32
    %c0_i32_0 = arith.constant 0 : i32
    %c0_i32_1 = arith.constant 0 : i32
    return %c0_i32, %c0_i32_0 : i32, i32
  }
  func.func @transform_4(%arg0: i32) -> (i32, i32) {
    %c0_i32 = arith.constant 0 : i32
    %c0_i32_0 = arith.constant 0 : i32
    %c0_i32_1 = arith.constant 0 : i32
    return %c0_i32, %c0_i32_0 : i32, i32
  }
  func.func @transform_5(%arg0: i32) -> (i32, i32) {
    %c0_i32 = arith.constant 0 : i32
    %c0_i32_0 = arith.constant 0 : i32
    %c0_i32_1 = arith.constant 0 : i32
    return %c0_i32, %c0_i32_0 : i32, i32
  }
  func.func @transform_6(%arg0: i32) -> (i32, i32) {
    %c0_i32 = arith.constant 0 : i32
    %c0_i32_0 = arith.constant 0 : i32
    %c0_i32_1 = arith.constant 0 : i32
    return %c0_i32, %c0_i32_0 : i32, i32
  }
  func.func @transform_7(%arg0: i32) -> (i32, i32) {
    %c0_i32 = arith.constant 0 : i32
    %c0_i32_0 = arith.constant 0 : i32
    return %arg0, %c0_i32 : i32, i32
  }
}

module attributes {stable_mosaic.version = 11 : i64} {
  func.func @_conv_res_ln_kernel(%arg0: i32, %arg1: memref<1x8x32xf32, #tpu.memory_space<vmem>>, %arg2: memref<1x32x32xbf16, #tpu.memory_space<vmem>>, %arg3: memref<1x32xf32, #tpu.memory_space<vmem>>, %arg4: memref<1x32xf32, #tpu.memory_space<vmem>>, %arg5: memref<1x32xf32, #tpu.memory_space<vmem>>, %arg6: memref<1x8x32xf32, #tpu.memory_space<vmem>>) attributes {dimension_semantics = [#tpu.dimension_semantics<parallel>], iteration_bounds = array<i64: 2>, scalar_prefetch = 0 : i64, scratch_operands = 0 : i64, tpu.core_type = #tpu.core_type<tc>, window_params = [{transform_indices = @transform_0, window_bounds = array<i64: 1, 8, 32>}, {pipeline_mode = #tpu.pipeline_mode<synchronous>, transform_indices = @transform_1, window_bounds = array<i64: 1, 32, 32>}, {pipeline_mode = #tpu.pipeline_mode<synchronous>, transform_indices = @transform_2, window_bounds = array<i64: 1, 32>}, {pipeline_mode = #tpu.pipeline_mode<synchronous>, transform_indices = @transform_3, window_bounds = array<i64: 1, 32>}, {pipeline_mode = #tpu.pipeline_mode<synchronous>, transform_indices = @transform_4, window_bounds = array<i64: 1, 32>}, {transform_indices = @transform_5, window_bounds = array<i64: 1, 8, 32>}]} {
    %c0 = arith.constant 0 : index
    %c0_0 = arith.constant 0 : index
    %c0_1 = arith.constant 0 : index
    %0 = vector.load %arg1[%c0, %c0_0, %c0_1] : memref<1x8x32xf32, #tpu.memory_space<vmem>>, vector<1x8x32xf32>
    %1 = vector.shape_cast %0 : vector<1x8x32xf32> to vector<8x32xf32>
    %2 = arith.truncf %1 : vector<8x32xf32> to vector<8x32xbf16>
    %c0_2 = arith.constant 0 : index
    %c0_3 = arith.constant 0 : index
    %c0_4 = arith.constant 0 : index
    %3 = vector.load %arg2[%c0_2, %c0_3, %c0_4] : memref<1x32x32xbf16, #tpu.memory_space<vmem>>, vector<1x32x32xbf16>
    %4 = vector.shape_cast %3 : vector<1x32x32xbf16> to vector<32x32xbf16>
    %cst = arith.constant dense<0.000000e+00> : vector<8x32xf32>
    %5 = tpu.matmul %2, %4, %cst {dimension_numbers = #tpu.dot_dimension_numbers<[1], [0], [0], [1], [0, 0, 1, 1], [], []>} : vector<8x32xbf16>, vector<32x32xbf16>, vector<8x32xf32> -> vector<8x32xf32>
    %c0_5 = arith.constant 0 : index
    %c0_6 = arith.constant 0 : index
    %6 = vector.load %arg3[%c0_5, %c0_6] : memref<1x32xf32, #tpu.memory_space<vmem>>, vector<1x32xf32>
    %7 = vector.broadcast %6 : vector<1x32xf32> to vector<8x32xf32>
    %8 = arith.addf %5, %7 : vector<8x32xf32>
    %c0_7 = arith.constant 0 : index
    %c0_8 = arith.constant 0 : index
    %c0_9 = arith.constant 0 : index
    %9 = vector.load %arg1[%c0_7, %c0_8, %c0_9] : memref<1x8x32xf32, #tpu.memory_space<vmem>>, vector<1x8x32xf32>
    %10 = vector.shape_cast %9 : vector<1x8x32xf32> to vector<8x32xf32>
    %11 = arith.addf %10, %8 : vector<8x32xf32>
    %cst_10 = arith.constant dense<0.000000e+00> : vector<8xf32>
    %12 = vector.multi_reduction <add>, %11, %cst_10 [1] : vector<8x32xf32> to vector<8xf32>
    %13 = vector.shape_cast %12 : vector<8xf32> to vector<8x1xf32>
    %cst_11 = arith.constant 3.200000e+01 : f32
    %14 = vector.broadcast %cst_11 : f32 to vector<8x1xf32>
    %15 = arith.divf %13, %14 : vector<8x1xf32>
    %16 = vector.broadcast %15 : vector<8x1xf32> to vector<8x32xf32>
    %17 = arith.subf %11, %16 : vector<8x32xf32>
    %18 = arith.mulf %17, %17 : vector<8x32xf32>
    %cst_12 = arith.constant dense<0.000000e+00> : vector<8xf32>
    %19 = vector.multi_reduction <add>, %18, %cst_12 [1] : vector<8x32xf32> to vector<8xf32>
    %20 = vector.shape_cast %19 : vector<8xf32> to vector<8x1xf32>
    %cst_13 = arith.constant 3.200000e+01 : f32
    %21 = vector.broadcast %cst_13 : f32 to vector<8x1xf32>
    %22 = arith.divf %20, %21 : vector<8x1xf32>
    %cst_14 = arith.constant 9.99999974E-6 : f32
    %23 = vector.broadcast %cst_14 : f32 to vector<8x1xf32>
    %24 = arith.addf %22, %23 : vector<8x1xf32>
    %25 = math.rsqrt %24 : vector<8x1xf32>
    %26 = vector.broadcast %25 : vector<8x1xf32> to vector<8x32xf32>
    %27 = arith.mulf %17, %26 : vector<8x32xf32>
    %c0_15 = arith.constant 0 : index
    %c0_16 = arith.constant 0 : index
    %28 = vector.load %arg4[%c0_15, %c0_16] : memref<1x32xf32, #tpu.memory_space<vmem>>, vector<1x32xf32>
    %29 = vector.broadcast %28 : vector<1x32xf32> to vector<8x32xf32>
    %30 = arith.mulf %27, %29 : vector<8x32xf32>
    %c0_17 = arith.constant 0 : index
    %c0_18 = arith.constant 0 : index
    %31 = vector.load %arg5[%c0_17, %c0_18] : memref<1x32xf32, #tpu.memory_space<vmem>>, vector<1x32xf32>
    %32 = vector.broadcast %31 : vector<1x32xf32> to vector<8x32xf32>
    %33 = arith.addf %30, %32 : vector<8x32xf32>
    %c0_19 = arith.constant 0 : index
    %c0_20 = arith.constant 0 : index
    %c0_21 = arith.constant 0 : index
    %34 = vector.load %arg6[%c0_19, %c0_20, %c0_21] : memref<1x8x32xf32, #tpu.memory_space<vmem>>, vector<1x8x32xf32>
    %35 = vector.shape_cast %34 : vector<1x8x32xf32> to vector<8x32xf32>
    %36 = vector.shape_cast %33 : vector<8x32xf32> to vector<1x8x32xf32>
    tpu.vector_store %arg6[%c0_19, %c0_20, %c0_21], %36 {strides = array<i32>} : memref<1x8x32xf32, #tpu.memory_space<vmem>>, vector<1x8x32xf32>,
    return
  }
  func.func @transform_0(%arg0: i32) -> (i32, i32, i32) {
    %c0_i32 = arith.constant 0 : i32
    %c0_i32_0 = arith.constant 0 : i32
    %c0_i32_1 = arith.constant 0 : i32
    return %arg0, %c0_i32, %c0_i32_0 : i32, i32, i32
  }
  func.func @transform_1(%arg0: i32) -> (i32, i32, i32) {
    %c0_i32 = arith.constant 0 : i32
    %c0_i32_0 = arith.constant 0 : i32
    %c0_i32_1 = arith.constant 0 : i32
    %c0_i32_2 = arith.constant 0 : i32
    return %c0_i32, %c0_i32_0, %c0_i32_1 : i32, i32, i32
  }
  func.func @transform_2(%arg0: i32) -> (i32, i32) {
    %c0_i32 = arith.constant 0 : i32
    %c0_i32_0 = arith.constant 0 : i32
    %c0_i32_1 = arith.constant 0 : i32
    return %c0_i32, %c0_i32_0 : i32, i32
  }
  func.func @transform_3(%arg0: i32) -> (i32, i32) {
    %c0_i32 = arith.constant 0 : i32
    %c0_i32_0 = arith.constant 0 : i32
    %c0_i32_1 = arith.constant 0 : i32
    return %c0_i32, %c0_i32_0 : i32, i32
  }
  func.func @transform_4(%arg0: i32) -> (i32, i32) {
    %c0_i32 = arith.constant 0 : i32
    %c0_i32_0 = arith.constant 0 : i32
    %c0_i32_1 = arith.constant 0 : i32
    return %c0_i32, %c0_i32_0 : i32, i32
  }
  func.func @transform_5(%arg0: i32) -> (i32, i32, i32) {
    %c0_i32 = arith.constant 0 : i32
    %c0_i32_0 = arith.constant 0 : i32
    %c0_i32_1 = arith.constant 0 : i32
    return %arg0, %c0_i32, %c0_i32_0 : i32, i32, i32
  }
}

module attributes {stable_mosaic.version = 11 : i64} {
  func.func @_linear_kernel_direct(%arg0: i32, %arg1: memref<8x32xf32, #tpu.memory_space<vmem>>, %arg2: memref<32x2xbf16, #tpu.memory_space<vmem>>, %arg3: memref<1x2xf32, #tpu.memory_space<vmem>>, %arg4: memref<8x2xf32, #tpu.memory_space<vmem>>) attributes {dimension_semantics = [#tpu.dimension_semantics<parallel>], iteration_bounds = array<i64: 2>, scalar_prefetch = 0 : i64, scratch_operands = 0 : i64, tpu.core_type = #tpu.core_type<tc>, window_params = [{transform_indices = @transform_0, window_bounds = array<i64: 8, 32>}, {pipeline_mode = #tpu.pipeline_mode<synchronous>, transform_indices = @transform_1, window_bounds = array<i64: 32, 2>}, {pipeline_mode = #tpu.pipeline_mode<synchronous>, transform_indices = @transform_2, window_bounds = array<i64: 1, 2>}, {transform_indices = @transform_3, window_bounds = array<i64: 8, 2>}]} {
    %c0 = arith.constant 0 : index
    %c0_0 = arith.constant 0 : index
    %0 = vector.load %arg1[%c0, %c0_0] : memref<8x32xf32, #tpu.memory_space<vmem>>, vector<8x32xf32>
    %1 = arith.truncf %0 : vector<8x32xf32> to vector<8x32xbf16>
    %c0_1 = arith.constant 0 : index
    %c0_2 = arith.constant 0 : index
    %2 = vector.load %arg2[%c0_1, %c0_2] : memref<32x2xbf16, #tpu.memory_space<vmem>>, vector<32x2xbf16>
    %cst = arith.constant dense<0.000000e+00> : vector<8x2xf32>
    %3 = tpu.matmul %1, %2, %cst {dimension_numbers = #tpu.dot_dimension_numbers<[1], [0], [0], [1], [0, 0, 1, 1], [], []>} : vector<8x32xbf16>, vector<32x2xbf16>, vector<8x2xf32> -> vector<8x2xf32>
    %c0_3 = arith.constant 0 : index
    %c0_4 = arith.constant 0 : index
    %4 = vector.load %arg3[%c0_3, %c0_4] : memref<1x2xf32, #tpu.memory_space<vmem>>, vector<1x2xf32>
    %5 = vector.broadcast %4 : vector<1x2xf32> to vector<8x2xf32>
    %6 = arith.addf %3, %5 : vector<8x2xf32>
    %c0_5 = arith.constant 0 : index
    %c0_6 = arith.constant 0 : index
    %7 = vector.load %arg4[%c0_5, %c0_6] : memref<8x2xf32, #tpu.memory_space<vmem>>, vector<8x2xf32>
    tpu.vector_store %arg4[%c0_5, %c0_6], %6 {strides = array<i32>} : memref<8x2xf32, #tpu.memory_space<vmem>>, vector<8x2xf32>,
    return
  }
  func.func @transform_0(%arg0: i32) -> (i32, i32) {
    %c0_i32 = arith.constant 0 : i32
    %c0_i32_0 = arith.constant 0 : i32
    return %arg0, %c0_i32 : i32, i32
  }
  func.func @transform_1(%arg0: i32) -> (i32, i32) {
    %c0_i32 = arith.constant 0 : i32
    %c0_i32_0 = arith.constant 0 : i32
    %c0_i32_1 = arith.constant 0 : i32
    return %c0_i32, %c0_i32_0 : i32, i32
  }
  func.func @transform_2(%arg0: i32) -> (i32, i32) {
    %c0_i32 = arith.constant 0 : i32
    %c0_i32_0 = arith.constant 0 : i32
    %c0_i32_1 = arith.constant 0 : i32
    return %c0_i32, %c0_i32_0 : i32, i32
  }
  func.func @transform_3(%arg0: i32) -> (i32, i32) {
    %c0_i32 = arith.constant 0 : i32
    %c0_i32_0 = arith.constant 0 : i32
    return %arg0, %c0_i32 : i32, i32
  }
}

</mosaic_0001>

<llo_original>
// kernel: ribonanzanet_forward.37
$region0: #{ribonanzanet_forward.37}
  #allocation0 [shape = 'u32[]', space=smem, size = 0x4, offset = 0x4, fixed_abs, tag = 'smem constant byte address 0x4 - core index']
  #allocation1 [shape = 'u32[72,128]{1,0:T(1,128)}', space=vmem, size = 0x9000, scoped, tag = 'internal scratch']
  %s0 = inlined_call_operand.vmem [shape: bf16[16,32], index: 0, kind: input, shape index: {}]
  %s1 = inlined_call_operand.vmem [shape: bf16[32,512], index: 1, kind: input, shape index: {}]
  %s2 = inlined_call_operand.vmem [shape: f32[1,512], index: 2, kind: input, shape index: {}]
  %s3 = inlined_call_operand.vmem [shape: bf16[16,512], index: 3, kind: output, shape index: {}]
  %s4 = sld [smem:[#allocation0]]
  $region45: #{ribonanzanet_forward.37} parent=0
    _
  %s6 = ssub.s32 1, %s4
  %s7 = scalar_select 0, %s6, %s4
  loop: start=0, step=1, limit=4
  $region2: #{ribonanzanet_forward.37} parent=0 // loop_pre_header
    _
  $region3: #{ribonanzanet_forward.37} parent=0 // loop_header
    %s9 = sphi 0, %s13
    %p10 = scmp.ge.s32.totalorder %s9, 4
    %s19 = sphi 0, %s21
    %s22 = sphi 0, %s19
    %s23 = sphi 0, %s22
    %s39 = sphi 0, %s23
    %s43 = sphi 0, %s43
    %s45 = sphi 0, %s43
    %s46 = sphi 0, %s45
    %s60 = sphi 0, %s46
    %s64 = sphi 0, %s64
    %s66 = sphi 0, %s64
    %s67 = sphi 0, %s66
    %s81 = sphi 0, %s67
    %s87 = sphi 0, %s89
    %s90 = sphi 0, %s87
    %s91 = sphi 0, %s90
    %s107 = sphi 0, %s91
  $region4: #{ribonanzanet_forward.37} parent=0 // loop_header_branch
    %12 = sbr.rel (%p10) target = $region8
  $region5: #{ribonanzanet_forward.37} parent=0 // loop_body
    %s14 = ssub.s32 %s9, 1
    %s15 = ssub.s32 %s9, 2
    %s16 = sadd.s32 %s9, 1
    %s17 = ssub.s32 %s9, %s16
    %p18 = scmp.eq.s32.totalorder %s17, 0
    %s20 = sadd.s32 %s19, 1
    %s21 = scalar_select %p18, %s19, %s20
    %p24 = pneg %p18
    %p25 = scmp.eq.s32.totalorder %s9, 1
    %p26 = por %p24, %p25
    %p27 = scmp.ne.s32.totalorder %s19, %s22
    %p28 = scmp.eq.s32.totalorder %s9, 0
    %p29 = por %p27, %p28
    %p30 = scmp.ne.s32.totalorder %s19, %s22
    %p31 = scmp.eq.s32.totalorder %s14, 1
    %p32 = por %p30, %p31
    %p33 = scmp.ne.s32.totalorder %s22, %s23
    %p34 = scmp.eq.s32.totalorder %s14, 0
    %p35 = por %p33, %p34
    %p36 = scmp.ne.s32.totalorder %s22, %s23
    %p37 = scmp.eq.s32.totalorder %s15, 1
    %p38 = por %p36, %p37
    %p40 = scmp.ne.s32.totalorder %s23, %s39
    %p41 = scmp.eq.s32.totalorder %s15, 0
    %p42 = por %p40, %p41
    %s44 = sadd.s32 %s43, 1
    %p47 = scmp.eq.s32.totalorder %s9, 1
    %p48 = scmp.ne.s32.totalorder %s43, %s45
    %p49 = scmp.eq.s32.totalorder %s9, 0
    %p50 = por %p48, %p49
    %p51 = scmp.ne.s32.totalorder %s43, %s45
    %p52 = scmp.eq.s32.totalorder %s14, 1
    %p53 = por %p51, %p52
    %p54 = scmp.ne.s32.totalorder %s45, %s46
    %p55 = scmp.eq.s32.totalorder %s14, 0
    %p56 = por %p54, %p55
    %p57 = scmp.ne.s32.totalorder %s45, %s46
    %p58 = scmp.eq.s32.totalorder %s15, 1
    %p59 = por %p57, %p58
    %p61 = scmp.ne.s32.totalorder %s46, %s60
    %p62 = scmp.eq.s32.totalorder %s15, 0
    %p63 = por %p61, %p62
    %s65 = sadd.s32 %s64, 1
    %p68 = scmp.eq.s32.totalorder %s9, 1
    %p69 = scmp.ne.s32.totalorder %s64, %s66
    %p70 = scmp.eq.s32.totalorder %s9, 0
    %p71 = por %p69, %p70
    %p72 = scmp.ne.s32.totalorder %s64, %s66
    %p73 = scmp.eq.s32.totalorder %s14, 1
    %p74 = por %p72, %p73
    %p75 = scmp.ne.s32.totalorder %s66, %s67
    %p76 = scmp.eq.s32.totalorder %s14, 0
    %p77 = por %p75, %p76
    %p78 = scmp.ne.s32.totalorder %s66, %s67
    %p79 = scmp.eq.s32.totalorder %s15, 1
    %p80 = por %p78, %p79
    %p82 = scmp.ne.s32.totalorder %s67, %s81
    %p83 = scmp.eq.s32.totalorder %s15, 0
    %p84 = por %p82, %p83
    %s85 = ssub.s32 %s9, %s16
    %p86 = scmp.eq.s32.totalorder %s85, 0
    %s88 = sadd.s32 %s87, 1
    %s89 = scalar_select %p86, %s87, %s88
    %p92 = pneg %p86
    %p93 = scmp.eq.s32.totalorder %s9, 1
    %p94 = por %p92, %p93
    %p95 = scmp.ne.s32.totalorder %s87, %s90
    %p96 = scmp.eq.s32.totalorder %s9, 0
    %p97 = por %p95, %p96
    %p98 = scmp.ne.s32.totalorder %s87, %s90
    %p99 = scmp.eq.s32.totalorder %s14, 1
    %p100 = por %p98, %p99
    %p101 = scmp.ne.s32.totalorder %s90, %s91
    %p102 = scmp.eq.s32.totalorder %s14, 0
    %p103 = por %p101, %p102
    %p104 = scmp.ne.s32.totalorder %s90, %s91
    %p105 = scmp.eq.s32.totalorder %s15, 1
    %p106 = por %p104, %p105
    %p108 = scmp.ne.s32.totalorder %s91, %s107
    %p109 = scmp.eq.s32.totalorder %s15, 0
    %p110 = por %p108, %p109
    %p111 = scmp.le.s32.totalorder 1, %s9
    %p112 = scmp.lt.s32.totalorder %s9, 3
    %p113 = pnand %p111, %p112
    %p114 = pneg %p113
    // Predicated region
    $region9: #{ribonanzanet_forward.37} parent=5 // pred_check
      _
    $region10: #{ribonanzanet_forward.37} parent=5 // pred_check_branch
      %116 = sbr.rel (%p113) target = $region12
    $region11: #{ribonanzanet_forward.37} parent=5 // pred_region
      %s117 = ssub.s32 %s9, 1
      // Predicated region
      $region13: #{ribonanzanet_forward.37} parent=11 // pred_check
        %p118 = pneg %p56
      $region14: #{ribonanzanet_forward.37} parent=11 // pred_check_branch
        %120 = sbr.rel (%p118) target = $region16
      $region15: #{ribonanzanet_forward.37} parent=11 // pred_region
        _
      $region16: #{ribonanzanet_forward.37} parent=11 // pred_fallthru
        _
      // Predicated region
      $region17: #{ribonanzanet_forward.37} parent=11 // pred_check
        %p121 = pneg %p77
      $region18: #{ribonanzanet_forward.37} parent=11 // pred_check_branch
        %123 = sbr.rel (%p121) target = $region20
      $region19: #{ribonanzanet_forward.37} parent=11 // pred_region
        _
      $region20: #{ribonanzanet_forward.37} parent=11 // pred_fallthru
        _
    $region12: #{ribonanzanet_forward.37} parent=5 // pred_fallthru
      _
    %p124 = scmp.lt.s32.totalorder %s9, 2
    // Predicated region
    $region21: #{ribonanzanet_forward.37} parent=5 // pred_check
      %p125 = pneg %p124
    $region22: #{ribonanzanet_forward.37} parent=5 // pred_check_branch
      %127 = sbr.rel (%p125) target = $region24
    $region23: #{ribonanzanet_forward.37} parent=5 // pred_region
      // Predicated region
      $region25: #{ribonanzanet_forward.37} parent=23 // pred_check
        %p128 = pneg %p29
      $region26: #{ribonanzanet_forward.37} parent=23 // pred_check_branch
        %130 = sbr.rel (%p128) target = $region28
      $region27: #{ribonanzanet_forward.37} parent=23 // pred_region
        %p131 = scmp.lt.s32.totalorder %s9, 1
        %s132 = scalar_select %p131, %s9, 1
        %s133 = smul.addr %s132, 4
        %s134 = scalar_lea.vmem %s0, %s133
      $region28: #{ribonanzanet_forward.37} parent=23 // pred_fallthru
        _
    $region24: #{ribonanzanet_forward.37} parent=5 // pred_fallthru
      _
    %p135 = scmp.le.s32.totalorder 1, %s9
    %p136 = scmp.lt.s32.totalorder %s9, 3
    %p137 = pnand %p135, %p136
    %p138 = pneg %p137
    // Predicated region
    $region29: #{ribonanzanet_forward.37} parent=5 // pred_check
      _
    $region30: #{ribonanzanet_forward.37} parent=5 // pred_check_branch
      %140 = sbr.rel (%p137) target = $region32
    $region31: #{ribonanzanet_forward.37} parent=5 // pred_region
      %s141 = ssub.s32 %s9, 1
      %p142 = scmp.lt.s32.totalorder %s14, 1
      %s143 = scalar_select %p142, %s14, 1
      %s144 = smul.addr %s143, 4
      %s145 = scalar_lea.vmem %s0, %s144
      %p146 = pneg %p35
      %p147 = pneg %p32
      %p148 = pneg %p56
      %p149 = pneg %p53
      %p150 = pneg %p77
      %p151 = pneg %p74
      %p152 = pneg %p103
      %p153 = pneg %p100
      %p154 = scmp.lt.s32.totalorder %s14, 1
      %s155 = scalar_select %p154, %s14, 1
      %s156 = smul.addr %s155, 4
      %s157 = smul.addr %s156, 4
      %s158 = scalar_lea.vmem %s3, %s157
      %p159 = scmp.lt.s32.totalorder %s14, 1
      %s160 = scalar_select %p159, %s14, 1
      %s161 = smul.addr %s160, 4
      %s162 = scalar_lea.vmem %s0, %s161
      %p163 = scmp.lt.s32.totalorder %s14, 1
      %s164 = scalar_select %p163, %s14, 1
      %s165 = smul.addr %s164, 4
      %s166 = smul.addr %s165, 4
      %s167 = scalar_lea.vmem %s3, %s166
      %v169 = vld [vmem:[%s162] sm:$0xf]
      %v170 = vld [vmem:[%s1] sm:$0xff]
      %v171 = vld [vmem:[%s1 + $0x8] sm:$0xff]
      %v172 = vld [vmem:[%s1 + $0x10] sm:$0xff]
      %v173 = vld [vmem:[%s1 + $0x18] sm:$0xff]
      %v174 = vld [vmem:[%s1 + $0x20] sm:$0xff]
      %v175 = vld [vmem:[%s1 + $0x28] sm:$0xff]
      %v176 = vld [vmem:[%s1 + $0x30] sm:$0xff]
      %v177 = vld [vmem:[%s1 + $0x38] sm:$0xff]
      %v178 = vld [vmem:[%s2] sm:$0xf]
      %v180 = vperm.slane %v178, 0
      %v181 = vperm.slane %v178, 1
      %v182 = vperm.slane %v178, 2
      %v183 = vperm.slane %v178, 3
      %v196 = vunpack.c.l.b16 %v170
      %v197 = vunpack.c.h.b16 %v170
      %v198 = vunpack.c.l.b16 %v171
      %v199 = vunpack.c.h.b16 %v171
      %v200 = vunpack.c.l.b16 %v172
      %v201 = vunpack.c.h.b16 %v172
      %v202 = vunpack.c.l.b16 %v173
      %v203 = vunpack.c.h.b16 %v173
      %v204 = vunpack.c.l.b16 %v174
      %v205 = vunpack.c.h.b16 %v174
      %v206 = vunpack.c.l.b16 %v175
      %v207 = vunpack.c.h.b16 %v175
      %v208 = vunpack.c.l.b16 %v176
      %v209 = vunpack.c.h.b16 %v176
      %v210 = vunpack.c.l.b16 %v177
      %v211 = vunpack.c.h.b16 %v177
      %v212 = vpack.c.b16 %v200, %v196
      %v213 = vpack.c.b16 %v201, %v197
      %v214 = vpack.c.b16 %v202, %v198
      %v215 = vpack.c.b16 %v203, %v199
      %v216 = vpack.c.b16 %v208, %v204
      %v217 = vpack.c.b16 %v209, %v205
      %v218 = vpack.c.b16 %v210, %v206
      %v219 = vpack.c.b16 %v211, %v207
      %vm228 = vcmask 261120
      %v230 = vsel %vm228, %v169, 0
      %232 = vmatpush.bf16.msra.mxu0 0
      %233 = vmatpush.bf16.msra.mxu0 0
      %234 = vmatpush.bf16.msra.mxu0 0
      %235 = vmatpush.bf16.msra.mxu0 0
      %236 = vmatpush.bf16.msra.mxu0 0
      %237 = vmatpush.bf16.msra.mxu0 0
      %238 = vmatpush.bf16.msra.mxu0 %v216
      %239 = vmatpush.bf16.msra.mxu0 %v212
      %240 = vmatmul.bf16.gmra.mxu0 %v230
      %v241 = vpop.f32.mrf.mxu0
      %v242 = vadd.f32 %v180, %v241
      %v243 = vpop.f32.mrf.mxu0
      %244 = vdwg.mxu0
      %245 = vmatpush.bf16.msra.mxu0 0
      %246 = vmatpush.bf16.msra.mxu0 0
      %247 = vmatpush.bf16.msra.mxu0 0
      %248 = vmatpush.bf16.msra.mxu0 0
      %249 = vmatpush.bf16.msra.mxu0 0
      %250 = vmatpush.bf16.msra.mxu0 0
      %251 = vmatpush.bf16.msra.mxu0 %v217
      %252 = vmatpush.bf16.msra.mxu0 %v213
      %253 = vmatmul.bf16.gmra.mxu0 %v230
      %v254 = vpop.f32.mrf.mxu0
      %v255 = vadd.f32 %v181, %v254
      %v256 = vpop.f32.mrf.mxu0
      %257 = vdwg.mxu0
      %258 = vmatpush.bf16.msra.mxu0 0
      %259 = vmatpush.bf16.msra.mxu0 0
      %260 = vmatpush.bf16.msra.mxu0 0
      %261 = vmatpush.bf16.msra.mxu0 0
      %262 = vmatpush.bf16.msra.mxu0 0
      %263 = vmatpush.bf16.msra.mxu0 0
      %264 = vmatpush.bf16.msra.mxu0 %v218
      %265 = vmatpush.bf16.msra.mxu0 %v214
      %266 = vmatmul.bf16.gmra.mxu0 %v230
      %v267 = vpop.f32.mrf.mxu0
      %v268 = vadd.f32 %v182, %v267
      %v269 = vpop.f32.mrf.mxu0
      %270 = vdwg.mxu0
      %271 = vmatpush.bf16.msra.mxu0 0
      %272 = vmatpush.bf16.msra.mxu0 0
      %273 = vmatpush.bf16.msra.mxu0 0
      %274 = vmatpush.bf16.msra.mxu0 0
      %275 = vmatpush.bf16.msra.mxu0 0
      %276 = vmatpush.bf16.msra.mxu0 0
      %277 = vmatpush.bf16.msra.mxu0 %v219
      %278 = vmatpush.bf16.msra.mxu0 %v215
      %279 = vmatmul.bf16.gmra.mxu0 %v230
      %v280 = vpop.f32.mrf.mxu0
      %v281 = vadd.f32 %v183, %v280
      %v282 = vpop.f32.mrf.mxu0
      %283 = vdwg.mxu0
      %v284 = vpack.c.bf16 %v255, %v242
      %v285 = vpack.c.bf16 %v281, %v268
      %286 = vst [vmem:[%s167] sm:$0xff] %v284
      %287 = vst [vmem:[%s167 + $0x8] sm:$0xff] %v285
      %p288 = scmp.lt.s32.totalorder %s14, 1
      %s289 = scalar_select %p288, %s14, 1
      %s290 = smul.addr %s289, 4
      %s291 = smul.addr %s290, 4
      %s292 = scalar_lea.vmem %s3, %s291
      // Predicated region
      $region33: #{ribonanzanet_forward.37} parent=31 // pred_check
        %p293 = pneg %p100
      $region34: #{ribonanzanet_forward.37} parent=31 // pred_check_branch
        %295 = sbr.rel (%p293) target = $region36
      $region35: #{ribonanzanet_forward.37} parent=31 // pred_region
        _
      $region36: #{ribonanzanet_forward.37} parent=31 // pred_fallthru
        _
    $region32: #{ribonanzanet_forward.37} parent=5 // pred_fallthru
      _
    %p296 = scmp.le.s32.totalorder 2, %s9
    // Predicated region
    $region37: #{ribonanzanet_forward.37} parent=5 // pred_check
      %p297 = pneg %p296
    $region38: #{ribonanzanet_forward.37} parent=5 // pred_check_branch
      %299 = sbr.rel (%p297) target = $region40
    $region39: #{ribonanzanet_forward.37} parent=5 // pred_region
      %s300 = ssub.s32 %s9, 2
      // Predicated region
      $region41: #{ribonanzanet_forward.37} parent=39 // pred_check
        %p301 = pneg %p106
      $region42: #{ribonanzanet_forward.37} parent=39 // pred_check_branch
        %303 = sbr.rel (%p301) target = $region44
      $region43: #{ribonanzanet_forward.37} parent=39 // pred_region
        %p304 = scmp.lt.s32.totalorder %s15, 1
        %s305 = scalar_select %p304, %s15, 1
        %s306 = smul.addr %s305, 4
        %s307 = smul.addr %s306, 4
        %s308 = scalar_lea.vmem %s3, %s307
      $region44: #{ribonanzanet_forward.37} parent=39 // pred_fallthru
        _
    $region40: #{ribonanzanet_forward.37} parent=5 // pred_fallthru
      _
  $region6: #{ribonanzanet_forward.37} parent=0 // loop_footer
    %s13 = sadd.s32 1, %s9
  $region7: #{ribonanzanet_forward.37} parent=0 // loop_footer_branch
    %8 = sbr.rel target = $region3
  $region8: #{ribonanzanet_forward.37} parent=0 // loop_exit
    _

// kernel: ribonanzanet_forward.36
$region0: #{ribonanzanet_forward.36}
  #allocation0 [shape = 'u32[]', space=smem, size = 0x4, offset = 0x4, fixed_abs, tag = 'smem constant byte address 0x4 - core index']
  #allocation1 [shape = 'u32[72,128]{1,0:T(1,128)}', space=vmem, size = 0x9000, scoped, tag = 'internal scratch']
  %s0 = inlined_call_operand.vmem [shape: f32[16,32], index: 0, kind: input, shape index: {}]
  %s1 = inlined_call_operand.vmem [shape: bf16[32,32], index: 1, kind: input, shape index: {}]
  %s2 = inlined_call_operand.vmem [shape: f32[1,32], index: 2, kind: input, shape index: {}]
  %s3 = inlined_call_operand.vmem [shape: bf16[16,32], index: 3, kind: output, shape index: {}]
  %s4 = sld [smem:[#allocation0]]
  $region45: #{ribonanzanet_forward.36} parent=0
    _
  %s6 = ssub.s32 1, %s4
  %s7 = scalar_select 0, %s6, %s4
  loop: start=0, step=1, limit=4
  $region2: #{ribonanzanet_forward.36} parent=0 // loop_pre_header
    _
  $region3: #{ribonanzanet_forward.36} parent=0 // loop_header
    %s9 = sphi 0, %s13
    %p10 = scmp.ge.s32.totalorder %s9, 4
    %s19 = sphi 0, %s21
    %s22 = sphi 0, %s19
    %s23 = sphi 0, %s22
    %s39 = sphi 0, %s23
    %s43 = sphi 0, %s43
    %s45 = sphi 0, %s43
    %s46 = sphi 0, %s45
    %s60 = sphi 0, %s46
    %s64 = sphi 0, %s64
    %s66 = sphi 0, %s64
    %s67 = sphi 0, %s66
    %s81 = sphi 0, %s67
    %s87 = sphi 0, %s89
    %s90 = sphi 0, %s87
    %s91 = sphi 0, %s90
    %s107 = sphi 0, %s91
  $region4: #{ribonanzanet_forward.36} parent=0 // loop_header_branch
    %12 = sbr.rel (%p10) target = $region8
  $region5: #{ribonanzanet_forward.36} parent=0 // loop_body
    %s14 = ssub.s32 %s9, 1
    %s15 = ssub.s32 %s9, 2
    %s16 = sadd.s32 %s9, 1
    %s17 = ssub.s32 %s9, %s16
    %p18 = scmp.eq.s32.totalorder %s17, 0
    %s20 = sadd.s32 %s19, 1
    %s21 = scalar_select %p18, %s19, %s20
    %p24 = pneg %p18
    %p25 = scmp.eq.s32.totalorder %s9, 1
    %p26 = por %p24, %p25
    %p27 = scmp.ne.s32.totalorder %s19, %s22
    %p28 = scmp.eq.s32.totalorder %s9, 0
    %p29 = por %p27, %p28
    %p30 = scmp.ne.s32.totalorder %s19, %s22
    %p31 = scmp.eq.s32.totalorder %s14, 1
    %p32 = por %p30, %p31
    %p33 = scmp.ne.s32.totalorder %s22, %s23
    %p34 = scmp.eq.s32.totalorder %s14, 0
    %p35 = por %p33, %p34
    %p36 = scmp.ne.s32.totalorder %s22, %s23
    %p37 = scmp.eq.s32.totalorder %s15, 1
    %p38 = por %p36, %p37
    %p40 = scmp.ne.s32.totalorder %s23, %s39
    %p41 = scmp.eq.s32.totalorder %s15, 0
    %p42 = por %p40, %p41
    %s44 = sadd.s32 %s43, 1
    %p47 = scmp.eq.s32.totalorder %s9, 1
    %p48 = scmp.ne.s32.totalorder %s43, %s45
    %p49 = scmp.eq.s32.totalorder %s9, 0
    %p50 = por %p48, %p49
    %p51 = scmp.ne.s32.totalorder %s43, %s45
    %p52 = scmp.eq.s32.totalorder %s14, 1
    %p53 = por %p51, %p52
    %p54 = scmp.ne.s32.totalorder %s45, %s46
    %p55 = scmp.eq.s32.totalorder %s14, 0
    %p56 = por %p54, %p55
    %p57 = scmp.ne.s32.totalorder %s45, %s46
    %p58 = scmp.eq.s32.totalorder %s15, 1
    %p59 = por %p57, %p58
    %p61 = scmp.ne.s32.totalorder %s46, %s60
    %p62 = scmp.eq.s32.totalorder %s15, 0
    %p63 = por %p61, %p62
    %s65 = sadd.s32 %s64, 1
    %p68 = scmp.eq.s32.totalorder %s9, 1
    %p69 = scmp.ne.s32.totalorder %s64, %s66
    %p70 = scmp.eq.s32.totalorder %s9, 0
    %p71 = por %p69, %p70
    %p72 = scmp.ne.s32.totalorder %s64, %s66
    %p73 = scmp.eq.s32.totalorder %s14, 1
    %p74 = por %p72, %p73
    %p75 = scmp.ne.s32.totalorder %s66, %s67
    %p76 = scmp.eq.s32.totalorder %s14, 0
    %p77 = por %p75, %p76
    %p78 = scmp.ne.s32.totalorder %s66, %s67
    %p79 = scmp.eq.s32.totalorder %s15, 1
    %p80 = por %p78, %p79
    %p82 = scmp.ne.s32.totalorder %s67, %s81
    %p83 = scmp.eq.s32.totalorder %s15, 0
    %p84 = por %p82, %p83
    %s85 = ssub.s32 %s9, %s16
    %p86 = scmp.eq.s32.totalorder %s85, 0
    %s88 = sadd.s32 %s87, 1
    %s89 = scalar_select %p86, %s87, %s88
    %p92 = pneg %p86
    %p93 = scmp.eq.s32.totalorder %s9, 1
    %p94 = por %p92, %p93
    %p95 = scmp.ne.s32.totalorder %s87, %s90
    %p96 = scmp.eq.s32.totalorder %s9, 0
    %p97 = por %p95, %p96
    %p98 = scmp.ne.s32.totalorder %s87, %s90
    %p99 = scmp.eq.s32.totalorder %s14, 1
    %p100 = por %p98, %p99
    %p101 = scmp.ne.s32.totalorder %s90, %s91
    %p102 = scmp.eq.s32.totalorder %s14, 0
    %p103 = por %p101, %p102
    %p104 = scmp.ne.s32.totalorder %s90, %s91
    %p105 = scmp.eq.s32.totalorder %s15, 1
    %p106 = por %p104, %p105
    %p108 = scmp.ne.s32.totalorder %s91, %s107
    %p109 = scmp.eq.s32.totalorder %s15, 0
    %p110 = por %p108, %p109
    %p111 = scmp.le.s32.totalorder 1, %s9
    %p112 = scmp.lt.s32.totalorder %s9, 3
    %p113 = pnand %p111, %p112
    %p114 = pneg %p113
    // Predicated region
    $region9: #{ribonanzanet_forward.36} parent=5 // pred_check
      _
    $region10: #{ribonanzanet_forward.36} parent=5 // pred_check_branch
      %116 = sbr.rel (%p113) target = $region12
    $region11: #{ribonanzanet_forward.36} parent=5 // pred_region
      %s117 = ssub.s32 %s9, 1
      // Predicated region
      $region13: #{ribonanzanet_forward.36} parent=11 // pred_check
        %p118 = pneg %p56
      $region14: #{ribonanzanet_forward.36} parent=11 // pred_check_branch
        %120 = sbr.rel (%p118) target = $region16
      $region15: #{ribonanzanet_forward.36} parent=11 // pred_region
        _
      $region16: #{ribonanzanet_forward.36} parent=11 // pred_fallthru
        _
      // Predicated region
      $region17: #{ribonanzanet_forward.36} parent=11 // pred_check
        %p121 = pneg %p77
      $region18: #{ribonanzanet_forward.36} parent=11 // pred_check_branch
        %123 = sbr.rel (%p121) target = $region20
      $region19: #{ribonanzanet_forward.36} parent=11 // pred_region
        _
      $region20: #{ribonanzanet_forward.36} parent=11 // pred_fallthru
        _
    $region12: #{ribonanzanet_forward.36} parent=5 // pred_fallthru
      _
    %p124 = scmp.lt.s32.totalorder %s9, 2
    // Predicated region
    $region21: #{ribonanzanet_forward.36} parent=5 // pred_check
      %p125 = pneg %p124
    $region22: #{ribonanzanet_forward.36} parent=5 // pred_check_branch
      %127 = sbr.rel (%p125) target = $region24
    $region23: #{ribonanzanet_forward.36} parent=5 // pred_region
      // Predicated region
      $region25: #{ribonanzanet_forward.36} parent=23 // pred_check
        %p128 = pneg %p29
      $region26: #{ribonanzanet_forward.36} parent=23 // pred_check_branch
        %130 = sbr.rel (%p128) target = $region28
      $region27: #{ribonanzanet_forward.36} parent=23 // pred_region
        %p131 = scmp.lt.s32.totalorder %s9, 1
        %s132 = scalar_select %p131, %s9, 1
        %s133 = smul.addr %s132, 8
        %s134 = scalar_lea.vmem %s0, %s133
      $region28: #{ribonanzanet_forward.36} parent=23 // pred_fallthru
        _
    $region24: #{ribonanzanet_forward.36} parent=5 // pred_fallthru
      _
    %p135 = scmp.le.s32.totalorder 1, %s9
    %p136 = scmp.lt.s32.totalorder %s9, 3
    %p137 = pnand %p135, %p136
    %p138 = pneg %p137
    // Predicated region
    $region29: #{ribonanzanet_forward.36} parent=5 // pred_check
      _
    $region30: #{ribonanzanet_forward.36} parent=5 // pred_check_branch
      %140 = sbr.rel (%p137) target = $region32
    $region31: #{ribonanzanet_forward.36} parent=5 // pred_region
      %s141 = ssub.s32 %s9, 1
      %p142 = scmp.lt.s32.totalorder %s14, 1
      %s143 = scalar_select %p142, %s14, 1
      %s144 = smul.addr %s143, 8
      %s145 = scalar_lea.vmem %s0, %s144
      %p146 = pneg %p35
      %p147 = pneg %p32
      %p148 = pneg %p56
      %p149 = pneg %p53
      %p150 = pneg %p77
      %p151 = pneg %p74
      %p152 = pneg %p103
      %p153 = pneg %p100
      %p154 = scmp.lt.s32.totalorder %s14, 1
      %s155 = scalar_select %p154, %s14, 1
      %s156 = smul.addr %s155, 4
      %s157 = scalar_lea.vmem %s3, %s156
      %p158 = scmp.lt.s32.totalorder %s14, 1
      %s159 = scalar_select %p158, %s14, 1
      %s160 = smul.addr %s159, 8
      %s161 = scalar_lea.vmem %s0, %s160
      %p162 = scmp.lt.s32.totalorder %s14, 1
      %s163 = scalar_select %p162, %s14, 1
      %s164 = smul.addr %s163, 4
      %s165 = scalar_lea.vmem %s3, %s164
      %v167 = vld [vmem:[%s161] sm:$0xff]
      %v168 = vpack.c.bf16 %v167, %v167
      %v169 = vld [vmem:[%s1] sm:$0xf]
      %v170 = vld [vmem:[%s1 + $0x4] sm:$0xf]
      %v171 = vld [vmem:[%s1 + $0x8] sm:$0xf]
      %v172 = vld [vmem:[%s1 + $0xc] sm:$0xf]
      %v173 = vld [vmem:[%s2] sm:$0x1]
      %v175 = vperm.slane %v173, 0
      %v181 = vunpack.c.l.b16 %v169
      %v182 = vunpack.c.l.b16 %v170
      %v183 = vunpack.c.l.b16 %v171
      %v184 = vunpack.c.l.b16 %v172
      %v185 = vpack.c.b16 %v182, %v181
      %v186 = vpack.c.b16 %v184, %v183
      %vm189 = vcmask 261120
      %v191 = vsel %vm189, %v168, 0
      %193 = vmatpush.bf16.msra.mxu0 0
      %194 = vmatpush.bf16.msra.mxu0 0
      %195 = vmatpush.bf16.msra.mxu0 0
      %196 = vmatpush.bf16.msra.mxu0 0
      %197 = vmatpush.bf16.msra.mxu0 0
      %198 = vmatpush.bf16.msra.mxu0 0
      %199 = vmatpush.bf16.msra.mxu0 %v186
      %200 = vmatpush.bf16.msra.mxu0 %v185
      %201 = vmatmul.bf16.gmra.mxu0 %v191
      %v202 = vpop.f32.mrf.mxu0
      %v203 = vadd.f32 %v175, %v202
      %v204 = vpop.f32.mrf.mxu0
      %205 = vdwg.mxu0
      %v206 = vpack.c.bf16 %v203, %v203
      %vm207 = vcmask 257024
      %208 = vst.msk [vmem:[%s165] sm:$0xf] %vm207, %v206
      %p209 = scmp.lt.s32.totalorder %s14, 1
      %s210 = scalar_select %p209, %s14, 1
      %s211 = smul.addr %s210, 4
      %s212 = scalar_lea.vmem %s3, %s211
      // Predicated region
      $region33: #{ribonanzanet_forward.36} parent=31 // pred_check
        %p213 = pneg %p100
      $region34: #{ribonanzanet_forward.36} parent=31 // pred_check_branch
        %215 = sbr.rel (%p213) target = $region36
      $region35: #{ribonanzanet_forward.36} parent=31 // pred_region
        _
      $region36: #{ribonanzanet_forward.36} parent=31 // pred_fallthru
        _
    $region32: #{ribonanzanet_forward.36} parent=5 // pred_fallthru
      _
    %p216 = scmp.le.s32.totalorder 2, %s9
    // Predicated region
    $region37: #{ribonanzanet_forward.36} parent=5 // pred_check
      %p217 = pneg %p216
    $region38: #{ribonanzanet_forward.36} parent=5 // pred_check_branch
      %219 = sbr.rel (%p217) target = $region40
    $region39: #{ribonanzanet_forward.36} parent=5 // pred_region
      %s220 = ssub.s32 %s9, 2
      // Predicated region
      $region41: #{ribonanzanet_forward.36} parent=39 // pred_check
        %p221 = pneg %p106
      $region42: #{ribonanzanet_forward.36} parent=39 // pred_check_branch
        %223 = sbr.rel (%p221) target = $region44
      $region43: #{ribonanzanet_forward.36} parent=39 // pred_region
        %p224 = scmp.lt.s32.totalorder %s15, 1
        %s225 = scalar_select %p224, %s15, 1
        %s226 = smul.addr %s225, 4
        %s227 = scalar_lea.vmem %s3, %s226
      $region44: #{ribonanzanet_forward.36} parent=39 // pred_fallthru
        _
    $region40: #{ribonanzanet_forward.36} parent=5 // pred_fallthru
      _
  $region6: #{ribonanzanet_forward.36} parent=0 // loop_footer
    %s13 = sadd.s32 1, %s9
  $region7: #{ribonanzanet_forward.36} parent=0 // loop_footer_branch
    %8 = sbr.rel target = $region3
  $region8: #{ribonanzanet_forward.36} parent=0 // loop_exit
    _

// kernel: tile.13
$region0: #{tile.13}
  #allocation0 [shape = 's32[1]{0}', space=sflag, size = 0x4, scoped, tag = 'scoped memory for tile.13']
  %s0 = inlined_call_operand.vmem [shape: f32[16], index: 0, kind: input, shape index: {}]
  %s1 = inlined_call_operand.vmem [shape: f32[8,16], index: 1, kind: output, shape index: {}]
  // Predicated region
  $region2: #{tile.13} parent=0 // pred_check
    _
  $region3: #{tile.13} parent=0 // pred_check_branch
    %3 = sbr.rel (0) target = $region5
  $region4: #{tile.13} parent=0 // pred_region
    _
  $region5: #{tile.13} parent=0 // pred_fallthru
    _
  %v4 = vld [vmem:[%s0] ss:$0 sm:$0xff]
  %5 = vst [vmem:[%s1] sm:$0xff] %v4

// kernel: tile.14
$region0: #{tile.14}
  %s0 = inlined_call_operand.vmem [shape: f32[8,16], index: 0, kind: input, shape index: {}]
  %s1 = inlined_call_operand.vmem [shape: f32[1,128], index: 1, kind: output, shape index: {}]
  $region1: #{tile.14} parent=0
    #allocation0 [shape = 'u8[4096]{0}', space=vmem, size = 0x1000, scoped, tag = 'scoped mem for output reshape']
    %v2 = vld [vmem:[%s0] sm:$0x1]
    %vm3 = vcmask 130048
    %4 = vst.msk [vmem:[#allocation0] sm:$0x1] %vm3, %v2
    %s5 = scalar_lea.vmem %s0, 7
    %v6 = vld [vmem:[%s5] sm:$0x1]
    %7 = vrot.lane.b32.xlu0 %v6, 112
    %v8 = vpop.permute.xlu0 %7
    %vm9 = vcmask 1048448
    %10 = vst.msk [vmem:[#allocation0] sm:$0x1] %vm9, %v8
    %s11 = scalar_lea.vmem %s0, 6
    %v12 = vld [vmem:[%s11] sm:$0x1]
    %13 = vrot.lane.b32.xlu0 %v12, 96
    %v14 = vpop.permute.xlu0 %13
    %vm15 = vcmask 917248
    %16 = vst.msk [vmem:[#allocation0] sm:$0x1] %vm15, %v14
    %s17 = scalar_lea.vmem %s0, 5
    %v18 = vld [vmem:[%s17] sm:$0x1]
    %19 = vrot.lane.b32.xlu0 %v18, 80
    %v20 = vpop.permute.xlu0 %19
    %vm21 = vcmask 786048
    %22 = vst.msk [vmem:[#allocation0] sm:$0x1] %vm21, %v20
    %s23 = scalar_lea.vmem %s0, 4
    %v24 = vld [vmem:[%s23] sm:$0x1]
    %25 = vrot.lane.b32.xlu0 %v24, 64
    %v26 = vpop.permute.xlu0 %25
    %vm27 = vcmask 654848
    %28 = vst.msk [vmem:[#allocation0] sm:$0x1] %vm27, %v26
    %s29 = scalar_lea.vmem %s0, 3
    %v30 = vld [vmem:[%s29] sm:$0x1]
    %31 = vrot.lane.b32.xlu0 %v30, 48
    %v32 = vpop.permute.xlu0 %31
    %vm33 = vcmask 523648
    %34 = vst.msk [vmem:[#allocation0] sm:$0x1] %vm33, %v32
    %s35 = scalar_lea.vmem %s0, 2
    %v36 = vld [vmem:[%s35] sm:$0x1]
    %37 = vrot.lane.b32.xlu0 %v36, 32
    %v38 = vpop.permute.xlu0 %37
    %vm39 = vcmask 392448
    %40 = vst.msk [vmem:[#allocation0] sm:$0x1] %vm39, %v38
    %s41 = scalar_lea.vmem %s0, 1
    %v42 = vld [vmem:[%s41] sm:$0x1]
    %43 = vrot.lane.b32.xlu0 %v42, 16
    %v44 = vpop.permute.xlu0 %43
    %vm45 = vcmask 261248
    %46 = vst.msk [vmem:[#allocation0] sm:$0x1] %vm45, %v44
    %s48 = ssub.s32 2, 1
    %v49 = vld [vmem:[#allocation0] sm:%s48]
    %s51 = ssub.s32 2, 1
    %52 = vst [vmem:[%s1] sm:%s51] %v49

// kernel: ribonanzanet_forward.38
$region0: #{ribonanzanet_forward.38}
  #allocation0 [shape = 'u32[]', space=smem, size = 0x4, offset = 0x4, fixed_abs, tag = 'smem constant byte address 0x4 - core index']
  #allocation1 [shape = 'u32[72,128]{1,0:T(1,128)}', space=vmem, size = 0x9000, scoped, tag = 'internal scratch']
  %s0 = inlined_call_operand.vmem [shape: bf16[2,8,32], index: 0, kind: input, shape index: {}]
  %s1 = inlined_call_operand.vmem [shape: bf16[2,32,128], index: 1, kind: input, shape index: {}]
  %s2 = inlined_call_operand.vmem [shape: f32[1,128], index: 2, kind: input, shape index: {}]
  %s3 = inlined_call_operand.vmem [shape: f32[2,8,128], index: 3, kind: input, shape index: {}]
  %s4 = inlined_call_operand.vmem [shape: f32[2,8,128], index: 4, kind: output, shape index: {}]
  %s5 = sld [smem:[#allocation0]]
  $region49: #{ribonanzanet_forward.38} parent=0
    _
  %s7 = ssub.s32 1, %s5
  %s8 = scalar_select 0, %s7, %s5
  loop: start=0, step=1, limit=4
  $region2: #{ribonanzanet_forward.38} parent=0 // loop_pre_header
    _
  $region3: #{ribonanzanet_forward.38} parent=0 // loop_header
    %s10 = sphi 0, %s14
    %p11 = scmp.ge.s32.totalorder %s10, 4
    %s17 = sphi 0, %s36
    %s18 = sphi 0, %s32
    %s19 = sphi 0, %s28
    %s20 = sphi 0, %s17
    %s21 = sphi 0, %s18
    %s22 = sphi 0, %s19
    %s23 = sphi 0, %s20
    %s24 = sphi 0, %s21
    %s25 = sphi 0, %s22
    %s41 = sphi 0, %s43
    %s44 = sphi 0, %s41
    %s45 = sphi 0, %s44
    %s61 = sphi 0, %s45
    %s69 = sphi 0, %s71
    %s72 = sphi 0, %s69
    %s73 = sphi 0, %s72
    %s89 = sphi 0, %s73
    %s95 = sphi 0, %s97
    %s98 = sphi 0, %s95
    %s99 = sphi 0, %s98
    %s115 = sphi 0, %s99
    %s125 = sphi 0, %s127
    %s128 = sphi 0, %s125
    %s129 = sphi 0, %s128
    %s145 = sphi 0, %s129
    %s155 = sphi 0, %s157
    %s158 = sphi 0, %s155
    %s159 = sphi 0, %s158
    %s175 = sphi 0, %s159
  $region4: #{ribonanzanet_forward.38} parent=0 // loop_header_branch
    %13 = sbr.rel (%p11) target = $region8
  $region5: #{ribonanzanet_forward.38} parent=0 // loop_body
    %s15 = ssub.s32 %s10, 1
    %s16 = ssub.s32 %s10, 2
    %s26 = sadd.s32 1, %s19
    %p27 = scmp.ge.s32.totalorder %s26, 1
    %s28 = scalar_select %p27, 0, %s26
    %s29 = sadd.s32 1, %s18
    %s30 = scalar_select %p27, %s29, %s18
    %p31 = scmp.ge.s32.totalorder %s30, 1
    %s32 = scalar_select %p31, 0, %s30
    %s33 = sadd.s32 1, %s17
    %s34 = scalar_select %p31, %s33, %s17
    %p35 = scmp.ge.s32.totalorder %s34, 2
    %s36 = scalar_select %p35, 0, %s34
    %s37 = ssub.s32 %s17, %s36
    %s38 = ssub.s32 %s18, %s32
    %s39 = sor.u32 %s37, %s38
    %p40 = scmp.eq.s32.totalorder %s39, 0
    %s42 = sadd.s32 %s41, 1
    %s43 = scalar_select %p40, %s41, %s42
    %p46 = pneg %p40
    %p47 = scmp.eq.s32.totalorder %s10, 1
    %p48 = por %p46, %p47
    %p49 = scmp.ne.s32.totalorder %s41, %s44
    %p50 = scmp.eq.s32.totalorder %s10, 0
    %p51 = por %p49, %p50
    %p52 = scmp.ne.s32.totalorder %s41, %s44
    %p53 = scmp.eq.s32.totalorder %s15, 1
    %p54 = por %p52, %p53
    %p55 = scmp.ne.s32.totalorder %s44, %s45
    %p56 = scmp.eq.s32.totalorder %s15, 0
    %p57 = por %p55, %p56
    %p58 = scmp.ne.s32.totalorder %s44, %s45
    %p59 = scmp.eq.s32.totalorder %s16, 1
    %p60 = por %p58, %p59
    %p62 = scmp.ne.s32.totalorder %s45, %s61
    %p63 = scmp.eq.s32.totalorder %s16, 0
    %p64 = por %p62, %p63
    %s65 = ssub.s32 %s17, %s36
    %s66 = ssub.s32 %s19, %s28
    %s67 = sor.u32 %s65, %s66
    %p68 = scmp.eq.s32.totalorder %s67, 0
    %s70 = sadd.s32 %s69, 1
    %s71 = scalar_select %p68, %s69, %s70
    %p74 = pneg %p68
    %p75 = scmp.eq.s32.totalorder %s10, 1
    %p76 = por %p74, %p75
    %p77 = scmp.ne.s32.totalorder %s69, %s72
    %p78 = scmp.eq.s32.totalorder %s10, 0
    %p79 = por %p77, %p78
    %p80 = scmp.ne.s32.totalorder %s69, %s72
    %p81 = scmp.eq.s32.totalorder %s15, 1
    %p82 = por %p80, %p81
    %p83 = scmp.ne.s32.totalorder %s72, %s73
    %p84 = scmp.eq.s32.totalorder %s15, 0
    %p85 = por %p83, %p84
    %p86 = scmp.ne.s32.totalorder %s72, %s73
    %p87 = scmp.eq.s32.totalorder %s16, 1
    %p88 = por %p86, %p87
    %p90 = scmp.ne.s32.totalorder %s73, %s89
    %p91 = scmp.eq.s32.totalorder %s16, 0
    %p92 = por %p90, %p91
    %s93 = ssub.s32 %s19, %s28
    %p94 = scmp.eq.s32.totalorder %s93, 0
    %s96 = sadd.s32 %s95, 1
    %s97 = scalar_select %p94, %s95, %s96
    %p100 = pneg %p94
    %p101 = scmp.eq.s32.totalorder %s10, 1
    %p102 = por %p100, %p101
    %p103 = scmp.ne.s32.totalorder %s95, %s98
    %p104 = scmp.eq.s32.totalorder %s10, 0
    %p105 = por %p103, %p104
    %p106 = scmp.ne.s32.totalorder %s95, %s98
    %p107 = scmp.eq.s32.totalorder %s15, 1
    %p108 = por %p106, %p107
    %p109 = scmp.ne.s32.totalorder %s98, %s99
    %p110 = scmp.eq.s32.totalorder %s15, 0
    %p111 = por %p109, %p110
    %p112 = scmp.ne.s32.totalorder %s98, %s99
    %p113 = scmp.eq.s32.totalorder %s16, 1
    %p114 = por %p112, %p113
    %p116 = scmp.ne.s32.totalorder %s99, %s115
    %p117 = scmp.eq.s32.totalorder %s16, 0
    %p118 = por %p116, %p117
    %s119 = ssub.s32 %s17, %s36
    %s120 = ssub.s32 %s18, %s32
    %s121 = sor.u32 %s119, %s120
    %s122 = ssub.s32 %s19, %s28
    %s123 = sor.u32 %s121, %s122
    %p124 = scmp.eq.s32.totalorder %s123, 0
    %s126 = sadd.s32 %s125, 1
    %s127 = scalar_select %p124, %s125, %s126
    %p130 = pneg %p124
    %p131 = scmp.eq.s32.totalorder %s10, 1
    %p132 = por %p130, %p131
    %p133 = scmp.ne.s32.totalorder %s125, %s128
    %p134 = scmp.eq.s32.totalorder %s10, 0
    %p135 = por %p133, %p134
    %p136 = scmp.ne.s32.totalorder %s125, %s128
    %p137 = scmp.eq.s32.totalorder %s15, 1
    %p138 = por %p136, %p137
    %p139 = scmp.ne.s32.totalorder %s128, %s129
    %p140 = scmp.eq.s32.totalorder %s15, 0
    %p141 = por %p139, %p140
    %p142 = scmp.ne.s32.totalorder %s128, %s129
    %p143 = scmp.eq.s32.totalorder %s16, 1
    %p144 = por %p142, %p143
    %p146 = scmp.ne.s32.totalorder %s129, %s145
    %p147 = scmp.eq.s32.totalorder %s16, 0
    %p148 = por %p146, %p147
    %s149 = ssub.s32 %s17, %s36
    %s150 = ssub.s32 %s18, %s32
    %s151 = sor.u32 %s149, %s150
    %s152 = ssub.s32 %s19, %s28
    %s153 = sor.u32 %s151, %s152
    %p154 = scmp.eq.s32.totalorder %s153, 0
    %s156 = sadd.s32 %s155, 1
    %s157 = scalar_select %p154, %s155, %s156
    %p160 = pneg %p154
    %p161 = scmp.eq.s32.totalorder %s10, 1
    %p162 = por %p160, %p161
    %p163 = scmp.ne.s32.totalorder %s155, %s158
    %p164 = scmp.eq.s32.totalorder %s10, 0
    %p165 = por %p163, %p164
    %p166 = scmp.ne.s32.totalorder %s155, %s158
    %p167 = scmp.eq.s32.totalorder %s15, 1
    %p168 = por %p166, %p167
    %p169 = scmp.ne.s32.totalorder %s158, %s159
    %p170 = scmp.eq.s32.totalorder %s15, 0
    %p171 = por %p169, %p170
    %p172 = scmp.ne.s32.totalorder %s158, %s159
    %p173 = scmp.eq.s32.totalorder %s16, 1
    %p174 = por %p172, %p173
    %p176 = scmp.ne.s32.totalorder %s159, %s175
    %p177 = scmp.eq.s32.totalorder %s16, 0
    %p178 = por %p176, %p177
    %p179 = scmp.le.s32.totalorder 1, %s10
    %p180 = scmp.lt.s32.totalorder %s10, 3
    %p181 = pnand %p179, %p180
    %p182 = pneg %p181
    // Predicated region
    $region9: #{ribonanzanet_forward.38} parent=5 // pred_check
      _
    $region10: #{ribonanzanet_forward.38} parent=5 // pred_check_branch
      %184 = sbr.rel (%p181) target = $region12
    $region11: #{ribonanzanet_forward.38} parent=5 // pred_region
      %s185 = ssub.s32 %s10, 1
      // Predicated region
      $region13: #{ribonanzanet_forward.38} parent=11 // pred_check
        %p186 = pneg %p111
      $region14: #{ribonanzanet_forward.38} parent=11 // pred_check_branch
        %188 = sbr.rel (%p186) target = $region16
      $region15: #{ribonanzanet_forward.38} parent=11 // pred_region
        %p189 = scmp.lt.s32.totalorder %s22, 0
        %s190 = scalar_select %p189, %s22, 0
        %s191 = scalar_lea.vmem %s2, %s190
      $region16: #{ribonanzanet_forward.38} parent=11 // pred_fallthru
        _
    $region12: #{ribonanzanet_forward.38} parent=5 // pred_fallthru
      _
    %p192 = scmp.lt.s32.totalorder %s10, 2
    // Predicated region
    $region17: #{ribonanzanet_forward.38} parent=5 // pred_check
      %p193 = pneg %p192
    $region18: #{ribonanzanet_forward.38} parent=5 // pred_check_branch
      %195 = sbr.rel (%p193) target = $region20
    $region19: #{ribonanzanet_forward.38} parent=5 // pred_region
      // Predicated region
      $region21: #{ribonanzanet_forward.38} parent=19 // pred_check
        %p196 = pneg %p51
      $region22: #{ribonanzanet_forward.38} parent=19 // pred_check_branch
        %198 = sbr.rel (%p196) target = $region24
      $region23: #{ribonanzanet_forward.38} parent=19 // pred_region
        %p199 = scmp.lt.s32.totalorder %s17, 1
        %s200 = scalar_select %p199, %s17, 1
        %p201 = scmp.lt.s32.totalorder %s18, 0
        %s202 = scalar_select %p201, %s18, 0
        %s203 = sadd.s32 %s202, %s200
        %s204 = smul.addr %s203, 4
        %s205 = scalar_lea.vmem %s0, %s204
      $region24: #{ribonanzanet_forward.38} parent=19 // pred_fallthru
        _
      // Predicated region
      $region25: #{ribonanzanet_forward.38} parent=19 // pred_check
        %p206 = pneg %p79
      $region26: #{ribonanzanet_forward.38} parent=19 // pred_check_branch
        %208 = sbr.rel (%p206) target = $region28
      $region27: #{ribonanzanet_forward.38} parent=19 // pred_region
        %p209 = scmp.lt.s32.totalorder %s17, 1
        %s210 = scalar_select %p209, %s17, 1
        %p211 = scmp.lt.s32.totalorder %s19, 0
        %s212 = scalar_select %p211, %s19, 0
        %s213 = smul.addr %s210, 4
        %s214 = sadd.s32 %s212, %s213
        %s215 = smul.addr %s214, 4
        %s216 = scalar_lea.vmem %s1, %s215
      $region28: #{ribonanzanet_forward.38} parent=19 // pred_fallthru
        _
      // Predicated region
      $region29: #{ribonanzanet_forward.38} parent=19 // pred_check
        %p217 = pneg %p135
      $region30: #{ribonanzanet_forward.38} parent=19 // pred_check_branch
        %219 = sbr.rel (%p217) target = $region32
      $region31: #{ribonanzanet_forward.38} parent=19 // pred_region
        %p220 = scmp.lt.s32.totalorder %s17, 1
        %s221 = scalar_select %p220, %s17, 1
        %p222 = scmp.lt.s32.totalorder %s18, 0
        %s223 = scalar_select %p222, %s18, 0
        %p224 = scmp.lt.s32.totalorder %s19, 0
        %s225 = scalar_select %p224, %s19, 0
        %s226 = sadd.s32 %s225, %s223
        %s227 = sadd.s32 %s226, %s221
        %s228 = smul.addr %s227, 8
        %s229 = scalar_lea.vmem %s3, %s228
      $region32: #{ribonanzanet_forward.38} parent=19 // pred_fallthru
        _
    $region20: #{ribonanzanet_forward.38} parent=5 // pred_fallthru
      _
    %p230 = scmp.le.s32.totalorder 1, %s10
    %p231 = scmp.lt.s32.totalorder %s10, 3
    %p232 = pnand %p230, %p231
    %p233 = pneg %p232
    // Predicated region
    $region33: #{ribonanzanet_forward.38} parent=5 // pred_check
      _
    $region34: #{ribonanzanet_forward.38} parent=5 // pred_check_branch
      %235 = sbr.rel (%p232) target = $region36
    $region35: #{ribonanzanet_forward.38} parent=5 // pred_region
      %s236 = ssub.s32 %s10, 1
      %p237 = scmp.lt.s32.totalorder %s20, 1
      %s238 = scalar_select %p237, %s20, 1
      %p239 = scmp.lt.s32.totalorder %s21, 0
      %s240 = scalar_select %p239, %s21, 0
      %s241 = sadd.s32 %s240, %s238
      %s242 = smul.addr %s241, 4
      %s243 = scalar_lea.vmem %s0, %s242
      %p244 = pneg %p57
      %p245 = pneg %p54
      %p246 = scmp.lt.s32.totalorder %s20, 1
      %s247 = scalar_select %p246, %s20, 1
      %p248 = scmp.lt.s32.totalorder %s22, 0
      %s249 = scalar_select %p248, %s22, 0
      %s250 = smul.addr %s247, 4
      %s251 = sadd.s32 %s249, %s250
      %s252 = smul.addr %s251, 4
      %s253 = scalar_lea.vmem %s1, %s252
      %p254 = pneg %p85
      %p255 = pneg %p82
      %p256 = scmp.lt.s32.totalorder %s22, 0
      %s257 = scalar_select %p256, %s22, 0
      %s258 = scalar_lea.vmem %s2, %s257
      %p259 = pneg %p111
      %p260 = pneg %p108
      %p261 = scmp.lt.s32.totalorder %s20, 1
      %s262 = scalar_select %p261, %s20, 1
      %p263 = scmp.lt.s32.totalorder %s21, 0
      %s264 = scalar_select %p263, %s21, 0
      %p265 = scmp.lt.s32.totalorder %s22, 0
      %s266 = scalar_select %p265, %s22, 0
      %s267 = sadd.s32 %s266, %s264
      %s268 = sadd.s32 %s267, %s262
      %s269 = smul.addr %s268, 8
      %s270 = scalar_lea.vmem %s3, %s269
      %p271 = pneg %p141
      %p272 = pneg %p138
      %p273 = pneg %p171
      %p274 = pneg %p168
      %p275 = scmp.lt.s32.totalorder %s20, 1
      %s276 = scalar_select %p275, %s20, 1
      %p277 = scmp.lt.s32.totalorder %s21, 0
      %s278 = scalar_select %p277, %s21, 0
      %p279 = scmp.lt.s32.totalorder %s22, 0
      %s280 = scalar_select %p279, %s22, 0
      %s281 = sadd.s32 %s280, %s278
      %s282 = sadd.s32 %s281, %s276
      %s283 = smul.addr %s282, 8
      %s284 = scalar_lea.vmem %s4, %s283
      %p285 = scmp.lt.s32.totalorder %s20, 1
      %s286 = scalar_select %p285, %s20, 1
      %p287 = scmp.lt.s32.totalorder %s21, 0
      %s288 = scalar_select %p287, %s21, 0
      %s289 = sadd.s32 %s288, %s286
      %s290 = smul.addr %s289, 4
      %s291 = scalar_lea.vmem %s0, %s290
      %p292 = scmp.lt.s32.totalorder %s20, 1
      %s293 = scalar_select %p292, %s20, 1
      %p294 = scmp.lt.s32.totalorder %s22, 0
      %s295 = scalar_select %p294, %s22, 0
      %s296 = smul.addr %s293, 4
      %s297 = sadd.s32 %s295, %s296
      %s298 = smul.addr %s297, 4
      %s299 = scalar_lea.vmem %s1, %s298
      %p300 = scmp.lt.s32.totalorder %s22, 0
      %s301 = scalar_select %p300, %s22, 0
      %s302 = scalar_lea.vmem %s2, %s301
      %p303 = scmp.lt.s32.totalorder %s20, 1
      %s304 = scalar_select %p303, %s20, 1
      %p305 = scmp.lt.s32.totalorder %s21, 0
      %s306 = scalar_select %p305, %s21, 0
      %p307 = scmp.lt.s32.totalorder %s22, 0
      %s308 = scalar_select %p307, %s22, 0
      %s309 = sadd.s32 %s308, %s306
      %s310 = sadd.s32 %s309, %s304
      %s311 = smul.addr %s310, 8
      %s312 = scalar_lea.vmem %s3, %s311
      %p313 = scmp.lt.s32.totalorder %s20, 1
      %s314 = scalar_select %p313, %s20, 1
      %p315 = scmp.lt.s32.totalorder %s21, 0
      %s316 = scalar_select %p315, %s21, 0
      %p317 = scmp.lt.s32.totalorder %s22, 0
      %s318 = scalar_select %p317, %s22, 0
      %s319 = sadd.s32 %s318, %s316
      %s320 = sadd.s32 %s319, %s314
      %s321 = smul.addr %s320, 8
      %s322 = scalar_lea.vmem %s4, %s321
      %v324 = vld [vmem:[%s291] sm:$0xf]
      %v325 = vld [vmem:[%s299] sm:$0xf]
      %v326 = vld [vmem:[%s299 + $0x4] sm:$0xf]
      %v327 = vld [vmem:[%s299 + $0x8] sm:$0xf]
      %v328 = vld [vmem:[%s299 + $0xc] sm:$0xf]
      %v329 = vld [vmem:[%s302] sm:$0x1]
      %v331 = vperm.slane %v329, 0
      %v337 = vunpack.c.l.b16 %v325
      %v338 = vunpack.c.l.b16 %v326
      %v339 = vunpack.c.l.b16 %v327
      %v340 = vunpack.c.l.b16 %v328
      %v341 = vpack.c.b16 %v338, %v337
      %v342 = vpack.c.b16 %v340, %v339
      %vm345 = vcmask 261120
      %v347 = vsel %vm345, %v324, 0
      %349 = vmatpush.bf16.msra.mxu0 0
      %350 = vmatpush.bf16.msra.mxu0 0
      %351 = vmatpush.bf16.msra.mxu0 0
      %352 = vmatpush.bf16.msra.mxu0 0
      %353 = vmatpush.bf16.msra.mxu0 0
      %354 = vmatpush.bf16.msra.mxu0 0
      %355 = vmatpush.bf16.msra.mxu0 %v342
      %356 = vmatpush.bf16.msra.mxu0 %v341
      %357 = vmatmul.bf16.gmra.mxu0 %v347
      %v358 = vpop.f32.mrf.mxu0
      %v359 = vadd.f32 %v331, %v358
      %v360 = vpop.f32.mrf.mxu0
      %361 = vdwg.mxu0
      %v362 = vld [vmem:[%s312] sm:$0xff]
      %v363 = vadd.f32 %v359, %v362
      %364 = vst [vmem:[%s322] sm:$0xff] %v363
      %p365 = scmp.lt.s32.totalorder %s20, 1
      %s366 = scalar_select %p365, %s20, 1
      %p367 = scmp.lt.s32.totalorder %s21, 0
      %s368 = scalar_select %p367, %s21, 0
      %p369 = scmp.lt.s32.totalorder %s22, 0
      %s370 = scalar_select %p369, %s22, 0
      %s371 = sadd.s32 %s370, %s368
      %s372 = sadd.s32 %s371, %s366
      %s373 = smul.addr %s372, 8
      %s374 = scalar_lea.vmem %s4, %s373
      // Predicated region
      $region37: #{ribonanzanet_forward.38} parent=35 // pred_check
        %p375 = pneg %p168
      $region38: #{ribonanzanet_forward.38} parent=35 // pred_check_branch
        %377 = sbr.rel (%p375) target = $region40
      $region39: #{ribonanzanet_forward.38} parent=35 // pred_region
        _
      $region40: #{ribonanzanet_forward.38} parent=35 // pred_fallthru
        _
    $region36: #{ribonanzanet_forward.38} parent=5 // pred_fallthru
      _
    %p378 = scmp.le.s32.totalorder 2, %s10
    // Predicated region
    $region41: #{ribonanzanet_forward.38} parent=5 // pred_check
      %p379 = pneg %p378
    $region42: #{ribonanzanet_forward.38} parent=5 // pred_check_branch
      %381 = sbr.rel (%p379) target = $region44
    $region43: #{ribonanzanet_forward.38} parent=5 // pred_region
      %s382 = ssub.s32 %s10, 2
      // Predicated region
      $region45: #{ribonanzanet_forward.38} parent=43 // pred_check
        %p383 = pneg %p174
      $region46: #{ribonanzanet_forward.38} parent=43 // pred_check_branch
        %385 = sbr.rel (%p383) target = $region48
      $region47: #{ribonanzanet_forward.38} parent=43 // pred_region
        %p386 = scmp.lt.s32.totalorder %s23, 1
        %s387 = scalar_select %p386, %s23, 1
        %p388 = scmp.lt.s32.totalorder %s24, 0
        %s389 = scalar_select %p388, %s24, 0
        %p390 = scmp.lt.s32.totalorder %s25, 0
        %s391 = scalar_select %p390, %s25, 0
        %s392 = sadd.s32 %s391, %s389
        %s393 = sadd.s32 %s392, %s387
        %s394 = smul.addr %s393, 8
        %s395 = scalar_lea.vmem %s4, %s394
      $region48: #{ribonanzanet_forward.38} parent=43 // pred_fallthru
        _
    $region44: #{ribonanzanet_forward.38} parent=5 // pred_fallthru
      _
  $region6: #{ribonanzanet_forward.38} parent=0 // loop_footer
    %s14 = sadd.s32 1, %s10
  $region7: #{ribonanzanet_forward.38} parent=0 // loop_footer_branch
    %9 = sbr.rel target = $region3
  $region8: #{ribonanzanet_forward.38} parent=0 // loop_exit
    _

// kernel: ribonanzanet_forward.35
$region0: #{ribonanzanet_forward.35}
  #allocation0 [shape = 'u32[]', space=smem, size = 0x4, offset = 0x4, fixed_abs, tag = 'smem constant byte address 0x4 - core index']
  #allocation1 [shape = 'u32[72,128]{1,0:T(1,128)}', space=vmem, size = 0x9000, scoped, tag = 'internal scratch']
  %s0 = inlined_call_operand.vmem [shape: f32[64,17], index: 0, kind: input, shape index: {}]
  %s1 = inlined_call_operand.vmem [shape: bf16[17,16], index: 1, kind: input, shape index: {}]
  %s2 = inlined_call_operand.vmem [shape: f32[1,16], index: 2, kind: input, shape index: {}]
  %s3 = inlined_call_operand.vmem [shape: f32[64,16], index: 3, kind: output, shape index: {}]
  %s4 = sld [smem:[#allocation0]]
  $region45: #{ribonanzanet_forward.35} parent=0
    _
  %s6 = ssub.s32 1, %s4
  %s7 = scalar_select 0, %s6, %s4
  loop: start=0, step=1, limit=4
  $region2: #{ribonanzanet_forward.35} parent=0 // loop_pre_header
    _
  $region3: #{ribonanzanet_forward.35} parent=0 // loop_header
    %s9 = sphi 0, %s13
    %p10 = scmp.ge.s32.totalorder %s9, 4
    %s19 = sphi 0, %s21
    %s22 = sphi 0, %s19
    %s23 = sphi 0, %s22
    %s39 = sphi 0, %s23
    %s43 = sphi 0, %s43
    %s45 = sphi 0, %s43
    %s46 = sphi 0, %s45
    %s60 = sphi 0, %s46
    %s64 = sphi 0, %s64
    %s66 = sphi 0, %s64
    %s67 = sphi 0, %s66
    %s81 = sphi 0, %s67
    %s87 = sphi 0, %s89
    %s90 = sphi 0, %s87
    %s91 = sphi 0, %s90
    %s107 = sphi 0, %s91
  $region4: #{ribonanzanet_forward.35} parent=0 // loop_header_branch
    %12 = sbr.rel (%p10) target = $region8
  $region5: #{ribonanzanet_forward.35} parent=0 // loop_body
    %s14 = ssub.s32 %s9, 1
    %s15 = ssub.s32 %s9, 2
    %s16 = sadd.s32 %s9, 1
    %s17 = ssub.s32 %s9, %s16
    %p18 = scmp.eq.s32.totalorder %s17, 0
    %s20 = sadd.s32 %s19, 1
    %s21 = scalar_select %p18, %s19, %s20
    %p24 = pneg %p18
    %p25 = scmp.eq.s32.totalorder %s9, 1
    %p26 = por %p24, %p25
    %p27 = scmp.ne.s32.totalorder %s19, %s22
    %p28 = scmp.eq.s32.totalorder %s9, 0
    %p29 = por %p27, %p28
    %p30 = scmp.ne.s32.totalorder %s19, %s22
    %p31 = scmp.eq.s32.totalorder %s14, 1
    %p32 = por %p30, %p31
    %p33 = scmp.ne.s32.totalorder %s22, %s23
    %p34 = scmp.eq.s32.totalorder %s14, 0
    %p35 = por %p33, %p34
    %p36 = scmp.ne.s32.totalorder %s22, %s23
    %p37 = scmp.eq.s32.totalorder %s15, 1
    %p38 = por %p36, %p37
    %p40 = scmp.ne.s32.totalorder %s23, %s39
    %p41 = scmp.eq.s32.totalorder %s15, 0
    %p42 = por %p40, %p41
    %s44 = sadd.s32 %s43, 1
    %p47 = scmp.eq.s32.totalorder %s9, 1
    %p48 = scmp.ne.s32.totalorder %s43, %s45
    %p49 = scmp.eq.s32.totalorder %s9, 0
    %p50 = por %p48, %p49
    %p51 = scmp.ne.s32.totalorder %s43, %s45
    %p52 = scmp.eq.s32.totalorder %s14, 1
    %p53 = por %p51, %p52
    %p54 = scmp.ne.s32.totalorder %s45, %s46
    %p55 = scmp.eq.s32.totalorder %s14, 0
    %p56 = por %p54, %p55
    %p57 = scmp.ne.s32.totalorder %s45, %s46
    %p58 = scmp.eq.s32.totalorder %s15, 1
    %p59 = por %p57, %p58
    %p61 = scmp.ne.s32.totalorder %s46, %s60
    %p62 = scmp.eq.s32.totalorder %s15, 0
    %p63 = por %p61, %p62
    %s65 = sadd.s32 %s64, 1
    %p68 = scmp.eq.s32.totalorder %s9, 1
    %p69 = scmp.ne.s32.totalorder %s64, %s66
    %p70 = scmp.eq.s32.totalorder %s9, 0
    %p71 = por %p69, %p70
    %p72 = scmp.ne.s32.totalorder %s64, %s66
    %p73 = scmp.eq.s32.totalorder %s14, 1
    %p74 = por %p72, %p73
    %p75 = scmp.ne.s32.totalorder %s66, %s67
    %p76 = scmp.eq.s32.totalorder %s14, 0
    %p77 = por %p75, %p76
    %p78 = scmp.ne.s32.totalorder %s66, %s67
    %p79 = scmp.eq.s32.totalorder %s15, 1
    %p80 = por %p78, %p79
    %p82 = scmp.ne.s32.totalorder %s67, %s81
    %p83 = scmp.eq.s32.totalorder %s15, 0
    %p84 = por %p82, %p83
    %s85 = ssub.s32 %s9, %s16
    %p86 = scmp.eq.s32.totalorder %s85, 0
    %s88 = sadd.s32 %s87, 1
    %s89 = scalar_select %p86, %s87, %s88
    %p92 = pneg %p86
    %p93 = scmp.eq.s32.totalorder %s9, 1
    %p94 = por %p92, %p93
    %p95 = scmp.ne.s32.totalorder %s87, %s90
    %p96 = scmp.eq.s32.totalorder %s9, 0
    %p97 = por %p95, %p96
    %p98 = scmp.ne.s32.totalorder %s87, %s90
    %p99 = scmp.eq.s32.totalorder %s14, 1
    %p100 = por %p98, %p99
    %p101 = scmp.ne.s32.totalorder %s90, %s91
    %p102 = scmp.eq.s32.totalorder %s14, 0
    %p103 = por %p101, %p102
    %p104 = scmp.ne.s32.totalorder %s90, %s91
    %p105 = scmp.eq.s32.totalorder %s15, 1
    %p106 = por %p104, %p105
    %p108 = scmp.ne.s32.totalorder %s91, %s107
    %p109 = scmp.eq.s32.totalorder %s15, 0
    %p110 = por %p108, %p109
    %p111 = scmp.le.s32.totalorder 1, %s9
    %p112 = scmp.lt.s32.totalorder %s9, 3
    %p113 = pnand %p111, %p112
    %p114 = pneg %p113
    // Predicated region
    $region9: #{ribonanzanet_forward.35} parent=5 // pred_check
      _
    $region10: #{ribonanzanet_forward.35} parent=5 // pred_check_branch
      %116 = sbr.rel (%p113) target = $region12
    $region11: #{ribonanzanet_forward.35} parent=5 // pred_region
      %s117 = ssub.s32 %s9, 1
      // Predicated region
      $region13: #{ribonanzanet_forward.35} parent=11 // pred_check
        %p118 = pneg %p56
      $region14: #{ribonanzanet_forward.35} parent=11 // pred_check_branch
        %120 = sbr.rel (%p118) target = $region16
      $region15: #{ribonanzanet_forward.35} parent=11 // pred_region
        _
      $region16: #{ribonanzanet_forward.35} parent=11 // pred_fallthru
        _
      // Predicated region
      $region17: #{ribonanzanet_forward.35} parent=11 // pred_check
        %p121 = pneg %p77
      $region18: #{ribonanzanet_forward.35} parent=11 // pred_check_branch
        %123 = sbr.rel (%p121) target = $region20
      $region19: #{ribonanzanet_forward.35} parent=11 // pred_region
        _
      $region20: #{ribonanzanet_forward.35} parent=11 // pred_fallthru
        _
    $region12: #{ribonanzanet_forward.35} parent=5 // pred_fallthru
      _
    %p124 = scmp.lt.s32.totalorder %s9, 2
    // Predicated region
    $region21: #{ribonanzanet_forward.35} parent=5 // pred_check
      %p125 = pneg %p124
    $region22: #{ribonanzanet_forward.35} parent=5 // pred_check_branch
      %127 = sbr.rel (%p125) target = $region24
    $region23: #{ribonanzanet_forward.35} parent=5 // pred_region
      // Predicated region
      $region25: #{ribonanzanet_forward.35} parent=23 // pred_check
        %p128 = pneg %p29
      $region26: #{ribonanzanet_forward.35} parent=23 // pred_check_branch
        %130 = sbr.rel (%p128) target = $region28
      $region27: #{ribonanzanet_forward.35} parent=23 // pred_region
        %s131 = smul.u32 4, %s9
        %p132 = scmp.lt.s32.totalorder %s131, 7
        %s133 = scalar_select %p132, %s131, 7
        %s134 = smul.addr %s133, 8
        %s135 = scalar_lea.vmem %s0, %s134
        %s136 = smul.u32 4, %s9
      $region28: #{ribonanzanet_forward.35} parent=23 // pred_fallthru
        _
    $region24: #{ribonanzanet_forward.35} parent=5 // pred_fallthru
      _
    %p137 = scmp.le.s32.totalorder 1, %s9
    %p138 = scmp.lt.s32.totalorder %s9, 3
    %p139 = pnand %p137, %p138
    %p140 = pneg %p139
    // Predicated region
    $region29: #{ribonanzanet_forward.35} parent=5 // pred_check
      _
    $region30: #{ribonanzanet_forward.35} parent=5 // pred_check_branch
      %142 = sbr.rel (%p139) target = $region32
    $region31: #{ribonanzanet_forward.35} parent=5 // pred_region
      %s143 = ssub.s32 %s9, 1
      %s144 = smul.u32 4, %s14
      %p145 = scmp.lt.s32.totalorder %s144, 7
      %s146 = scalar_select %p145, %s144, 7
      %s147 = smul.addr %s146, 8
      %s148 = scalar_lea.vmem %s0, %s147
      %p149 = pneg %p35
      %p150 = pneg %p32
      %p151 = pneg %p56
      %p152 = pneg %p53
      %p153 = pneg %p77
      %p154 = pneg %p74
      %p155 = pneg %p103
      %p156 = pneg %p100
      %s157 = smul.u32 4, %s14
      %p158 = scmp.lt.s32.totalorder %s157, 7
      %s159 = scalar_select %p158, %s157, 7
      %s160 = smul.addr %s159, 8
      %s161 = scalar_lea.vmem %s3, %s160
      %s162 = smul.u32 4, %s14
      %p163 = scmp.lt.s32.totalorder %s162, 7
      %s164 = scalar_select %p163, %s162, 7
      %s165 = smul.addr %s164, 8
      %s166 = scalar_lea.vmem %s0, %s165
      %s167 = smul.u32 4, %s14
      %s168 = smul.u32 4, %s14
      %p169 = scmp.lt.s32.totalorder %s168, 7
      %s170 = scalar_select %p169, %s168, 7
      %s171 = smul.addr %s170, 8
      %s172 = scalar_lea.vmem %s3, %s171
      %s173 = smul.u32 4, %s14
      %v175 = vld [vmem:[%s166] sm:$0xff]
      %v176 = vld [vmem:[%s166 + $0x8] sm:$0xff]
      %v177 = vld [vmem:[%s166 + $0x10] sm:$0xff]
      %v178 = vld [vmem:[%s166 + $0x18] sm:$0xff]
      %v179 = vpack.c.bf16 %v176, %v175
      %v180 = vpack.c.bf16 %v178, %v177
      %v181 = vld [vmem:[%s1] sm:$0xf]
      %v182 = vld [vmem:[%s1 + $0x4] sm:$0xf]
      %v183 = vld [vmem:[%s1 + $0x8] sm:$0x1]
      %v184 = vld [vmem:[%s2] sm:$0x1]
      %v186 = vperm.slane %v184, 0
      %v191 = vunpack.c.l.b16 %v181
      %v192 = vunpack.c.l.b16 %v182
      %v193 = vunpack.c.l.b16 %v183
      %v194 = vpack.c.b16 %v192, %v191
      %v195 = vpack.c.b16 %v193, %v193
      %vm197 = vcmask 138240
      %v199 = vsel %vm197, %v179, 0
      %v202 = vsel %vm197, %v180, 0
      %vm204 = vcmask 1040384
      %v205 = vsel 0, 4294967295, 65535
      %v206 = vsel %vm204, %v205, 0
      %v208 = vand.u32 %v195, %v206
      %210 = vmatpush.bf16.msra.mxu0 0
      %211 = vmatpush.bf16.msra.mxu0 0
      %212 = vmatpush.bf16.msra.mxu0 0
      %213 = vmatpush.bf16.msra.mxu0 0
      %214 = vmatpush.bf16.msra.mxu0 0
      %215 = vmatpush.bf16.msra.mxu0 0
      %216 = vmatpush.bf16.msra.mxu0 %v208
      %217 = vmatpush.bf16.msra.mxu0 %v194
      %218 = vmatmul.bf16.gmra.mxu0 %v199
      %v219 = vpop.f32.mrf.mxu0
      %v220 = vadd.f32 %v186, %v219
      %v221 = vpop.f32.mrf.mxu0
      %v222 = vadd.f32 %v186, %v221
      %223 = vmatmul.bf16.gmra.mxu0 %v202
      %v224 = vpop.f32.mrf.mxu0
      %v225 = vadd.f32 %v186, %v224
      %v226 = vpop.f32.mrf.mxu0
      %v227 = vadd.f32 %v186, %v226
      %228 = vdwg.mxu0
      %vm229 = vcmask 130048
      %230 = vst.msk [vmem:[%s172] sm:$0xff] %vm229, %v220
      %231 = vst.msk [vmem:[%s172 + $0x8] sm:$0xff] %vm229, %v222
      %232 = vst.msk [vmem:[%s172 + $0x10] sm:$0xff] %vm229, %v225
      %233 = vst.msk [vmem:[%s172 + $0x18] sm:$0xff] %vm229, %v227
      %s234 = smul.u32 4, %s14
      %p235 = scmp.lt.s32.totalorder %s234, 7
      %s236 = scalar_select %p235, %s234, 7
      %s237 = smul.addr %s236, 8
      %s238 = scalar_lea.vmem %s3, %s237
      // Predicated region
      $region33: #{ribonanzanet_forward.35} parent=31 // pred_check
        %p239 = pneg %p100
      $region34: #{ribonanzanet_forward.35} parent=31 // pred_check_branch
        %241 = sbr.rel (%p239) target = $region36
      $region35: #{ribonanzanet_forward.35} parent=31 // pred_region
        %s242 = smul.u32 4, %s14
      $region36: #{ribonanzanet_forward.35} parent=31 // pred_fallthru
        _
    $region32: #{ribonanzanet_forward.35} parent=5 // pred_fallthru
      _
    %p243 = scmp.le.s32.totalorder 2, %s9
    // Predicated region
    $region37: #{ribonanzanet_forward.35} parent=5 // pred_check
      %p244 = pneg %p243
    $region38: #{ribonanzanet_forward.35} parent=5 // pred_check_branch
      %246 = sbr.rel (%p244) target = $region40
    $region39: #{ribonanzanet_forward.35} parent=5 // pred_region
      %s247 = ssub.s32 %s9, 2
      // Predicated region
      $region41: #{ribonanzanet_forward.35} parent=39 // pred_check
        %p248 = pneg %p106
      $region42: #{ribonanzanet_forward.35} parent=39 // pred_check_branch
        %250 = sbr.rel (%p248) target = $region44
      $region43: #{ribonanzanet_forward.35} parent=39 // pred_region
        %s251 = smul.u32 4, %s15
        %p252 = scmp.lt.s32.totalorder %s251, 7
        %s253 = scalar_select %p252, %s251, 7
        %s254 = smul.addr %s253, 8
        %s255 = scalar_lea.vmem %s3, %s254
      $region44: #{ribonanzanet_forward.35} parent=39 // pred_fallthru
        _
    $region40: #{ribonanzanet_forward.35} parent=5 // pred_fallthru
      _
  $region6: #{ribonanzanet_forward.35} parent=0 // loop_footer
    %s13 = sadd.s32 1, %s9
  $region7: #{ribonanzanet_forward.35} parent=0 // loop_footer_branch
    %8 = sbr.rel target = $region3
  $region8: #{ribonanzanet_forward.35} parent=0 // loop_exit
    _

// kernel: ribonanzanet_forward.40
$region0: #{ribonanzanet_forward.40}
  #allocation0 [shape = 'u32[]', space=smem, size = 0x4, offset = 0x4, fixed_abs, tag = 'smem constant byte address 0x4 - core index']
  #allocation1 [shape = 'u32[72,128]{1,0:T(1,128)}', space=vmem, size = 0x9000, scoped, tag = 'internal scratch']
  %s0 = inlined_call_operand.vmem [shape: f32[128,16], index: 0, kind: input, shape index: {}]
  %s1 = inlined_call_operand.vmem [shape: bf16[16,4], index: 1, kind: input, shape index: {}]
  %s2 = inlined_call_operand.vmem [shape: f32[1,4], index: 2, kind: input, shape index: {}]
  %s3 = inlined_call_operand.vmem [shape: f32[1,16], index: 3, kind: input, shape index: {}]
  %s4 = inlined_call_operand.vmem [shape: f32[1,16], index: 4, kind: input, shape index: {}]
  %s5 = inlined_call_operand.vmem [shape: bf16[128,4], index: 5, kind: output, shape index: {}]
  %s6 = sld [smem:[#allocation0]]
  $region53: #{ribonanzanet_forward.40} parent=0
    _
  %s8 = ssub.s32 1, %s6
  %s9 = scalar_select 0, %s8, %s6
  loop: start=0, step=1, limit=4
  $region2: #{ribonanzanet_forward.40} parent=0 // loop_pre_header
    _
  $region3: #{ribonanzanet_forward.40} parent=0 // loop_header
    %s11 = sphi 0, %s15
    %p12 = scmp.ge.s32.totalorder %s11, 4
    %s21 = sphi 0, %s23
    %s24 = sphi 0, %s21
    %s25 = sphi 0, %s24
    %s41 = sphi 0, %s25
    %s45 = sphi 0, %s45
    %s47 = sphi 0, %s45
    %s48 = sphi 0, %s47
    %s62 = sphi 0, %s48
    %s66 = sphi 0, %s66
    %s68 = sphi 0, %s66
    %s69 = sphi 0, %s68
    %s83 = sphi 0, %s69
    %s87 = sphi 0, %s87
    %s89 = sphi 0, %s87
    %s90 = sphi 0, %s89
    %s104 = sphi 0, %s90
    %s108 = sphi 0, %s108
    %s110 = sphi 0, %s108
    %s111 = sphi 0, %s110
    %s125 = sphi 0, %s111
    %s131 = sphi 0, %s133
    %s134 = sphi 0, %s131
    %s135 = sphi 0, %s134
    %s151 = sphi 0, %s135
  $region4: #{ribonanzanet_forward.40} parent=0 // loop_header_branch
    %14 = sbr.rel (%p12) target = $region8
  $region5: #{ribonanzanet_forward.40} parent=0 // loop_body
    %s16 = ssub.s32 %s11, 1
    %s17 = ssub.s32 %s11, 2
    %s18 = sadd.s32 %s11, 1
    %s19 = ssub.s32 %s11, %s18
    %p20 = scmp.eq.s32.totalorder %s19, 0
    %s22 = sadd.s32 %s21, 1
    %s23 = scalar_select %p20, %s21, %s22
    %p26 = pneg %p20
    %p27 = scmp.eq.s32.totalorder %s11, 1
    %p28 = por %p26, %p27
    %p29 = scmp.ne.s32.totalorder %s21, %s24
    %p30 = scmp.eq.s32.totalorder %s11, 0
    %p31 = por %p29, %p30
    %p32 = scmp.ne.s32.totalorder %s21, %s24
    %p33 = scmp.eq.s32.totalorder %s16, 1
    %p34 = por %p32, %p33
    %p35 = scmp.ne.s32.totalorder %s24, %s25
    %p36 = scmp.eq.s32.totalorder %s16, 0
    %p37 = por %p35, %p36
    %p38 = scmp.ne.s32.totalorder %s24, %s25
    %p39 = scmp.eq.s32.totalorder %s17, 1
    %p40 = por %p38, %p39
    %p42 = scmp.ne.s32.totalorder %s25, %s41
    %p43 = scmp.eq.s32.totalorder %s17, 0
    %p44 = por %p42, %p43
    %s46 = sadd.s32 %s45, 1
    %p49 = scmp.eq.s32.totalorder %s11, 1
    %p50 = scmp.ne.s32.totalorder %s45, %s47
    %p51 = scmp.eq.s32.totalorder %s11, 0
    %p52 = por %p50, %p51
    %p53 = scmp.ne.s32.totalorder %s45, %s47
    %p54 = scmp.eq.s32.totalorder %s16, 1
    %p55 = por %p53, %p54
    %p56 = scmp.ne.s32.totalorder %s47, %s48
    %p57 = scmp.eq.s32.totalorder %s16, 0
    %p58 = por %p56, %p57
    %p59 = scmp.ne.s32.totalorder %s47, %s48
    %p60 = scmp.eq.s32.totalorder %s17, 1
    %p61 = por %p59, %p60
    %p63 = scmp.ne.s32.totalorder %s48, %s62
    %p64 = scmp.eq.s32.totalorder %s17, 0
    %p65 = por %p63, %p64
    %s67 = sadd.s32 %s66, 1
    %p70 = scmp.eq.s32.totalorder %s11, 1
    %p71 = scmp.ne.s32.totalorder %s66, %s68
    %p72 = scmp.eq.s32.totalorder %s11, 0
    %p73 = por %p71, %p72
    %p74 = scmp.ne.s32.totalorder %s66, %s68
    %p75 = scmp.eq.s32.totalorder %s16, 1
    %p76 = por %p74, %p75
    %p77 = scmp.ne.s32.totalorder %s68, %s69
    %p78 = scmp.eq.s32.totalorder %s16, 0
    %p79 = por %p77, %p78
    %p80 = scmp.ne.s32.totalorder %s68, %s69
    %p81 = scmp.eq.s32.totalorder %s17, 1
    %p82 = por %p80, %p81
    %p84 = scmp.ne.s32.totalorder %s69, %s83
    %p85 = scmp.eq.s32.totalorder %s17, 0
    %p86 = por %p84, %p85
    %s88 = sadd.s32 %s87, 1
    %p91 = scmp.eq.s32.totalorder %s11, 1
    %p92 = scmp.ne.s32.totalorder %s87, %s89
    %p93 = scmp.eq.s32.totalorder %s11, 0
    %p94 = por %p92, %p93
    %p95 = scmp.ne.s32.totalorder %s87, %s89
    %p96 = scmp.eq.s32.totalorder %s16, 1
    %p97 = por %p95, %p96
    %p98 = scmp.ne.s32.totalorder %s89, %s90
    %p99 = scmp.eq.s32.totalorder %s16, 0
    %p100 = por %p98, %p99
    %p101 = scmp.ne.s32.totalorder %s89, %s90
    %p102 = scmp.eq.s32.totalorder %s17, 1
    %p103 = por %p101, %p102
    %p105 = scmp.ne.s32.totalorder %s90, %s104
    %p106 = scmp.eq.s32.totalorder %s17, 0
    %p107 = por %p105, %p106
    %s109 = sadd.s32 %s108, 1
    %p112 = scmp.eq.s32.totalorder %s11, 1
    %p113 = scmp.ne.s32.totalorder %s108, %s110
    %p114 = scmp.eq.s32.totalorder %s11, 0
    %p115 = por %p113, %p114
    %p116 = scmp.ne.s32.totalorder %s108, %s110
    %p117 = scmp.eq.s32.totalorder %s16, 1
    %p118 = por %p116, %p117
    %p119 = scmp.ne.s32.totalorder %s110, %s111
    %p120 = scmp.eq.s32.totalorder %s16, 0
    %p121 = por %p119, %p120
    %p122 = scmp.ne.s32.totalorder %s110, %s111
    %p123 = scmp.eq.s32.totalorder %s17, 1
    %p124 = por %p122, %p123
    %p126 = scmp.ne.s32.totalorder %s111, %s125
    %p127 = scmp.eq.s32.totalorder %s17, 0
    %p128 = por %p126, %p127
    %s129 = ssub.s32 %s11, %s18
    %p130 = scmp.eq.s32.totalorder %s129, 0
    %s132 = sadd.s32 %s131, 1
    %s133 = scalar_select %p130, %s131, %s132
    %p136 = pneg %p130
    %p137 = scmp.eq.s32.totalorder %s11, 1
    %p138 = por %p136, %p137
    %p139 = scmp.ne.s32.totalorder %s131, %s134
    %p140 = scmp.eq.s32.totalorder %s11, 0
    %p141 = por %p139, %p140
    %p142 = scmp.ne.s32.totalorder %s131, %s134
    %p143 = scmp.eq.s32.totalorder %s16, 1
    %p144 = por %p142, %p143
    %p145 = scmp.ne.s32.totalorder %s134, %s135
    %p146 = scmp.eq.s32.totalorder %s16, 0
    %p147 = por %p145, %p146
    %p148 = scmp.ne.s32.totalorder %s134, %s135
    %p149 = scmp.eq.s32.totalorder %s17, 1
    %p150 = por %p148, %p149
    %p152 = scmp.ne.s32.totalorder %s135, %s151
    %p153 = scmp.eq.s32.totalorder %s17, 0
    %p154 = por %p152, %p153
    %p155 = scmp.le.s32.totalorder 1, %s11
    %p156 = scmp.lt.s32.totalorder %s11, 3
    %p157 = pnand %p155, %p156
    %p158 = pneg %p157
    // Predicated region
    $region9: #{ribonanzanet_forward.40} parent=5 // pred_check
      _
    $region10: #{ribonanzanet_forward.40} parent=5 // pred_check_branch
      %160 = sbr.rel (%p157) target = $region12
    $region11: #{ribonanzanet_forward.40} parent=5 // pred_region
      %s161 = ssub.s32 %s11, 1
      // Predicated region
      $region13: #{ribonanzanet_forward.40} parent=11 // pred_check
        %p162 = pneg %p58
      $region14: #{ribonanzanet_forward.40} parent=11 // pred_check_branch
        %164 = sbr.rel (%p162) target = $region16
      $region15: #{ribonanzanet_forward.40} parent=11 // pred_region
        _
      $region16: #{ribonanzanet_forward.40} parent=11 // pred_fallthru
        _
      // Predicated region
      $region17: #{ribonanzanet_forward.40} parent=11 // pred_check
        %p165 = pneg %p79
      $region18: #{ribonanzanet_forward.40} parent=11 // pred_check_branch
        %167 = sbr.rel (%p165) target = $region20
      $region19: #{ribonanzanet_forward.40} parent=11 // pred_region
        _
      $region20: #{ribonanzanet_forward.40} parent=11 // pred_fallthru
        _
      // Predicated region
      $region21: #{ribonanzanet_forward.40} parent=11 // pred_check
        %p168 = pneg %p100
      $region22: #{ribonanzanet_forward.40} parent=11 // pred_check_branch
        %170 = sbr.rel (%p168) target = $region24
      $region23: #{ribonanzanet_forward.40} parent=11 // pred_region
        _
      $region24: #{ribonanzanet_forward.40} parent=11 // pred_fallthru
        _
      // Predicated region
      $region25: #{ribonanzanet_forward.40} parent=11 // pred_check
        %p171 = pneg %p121
      $region26: #{ribonanzanet_forward.40} parent=11 // pred_check_branch
        %173 = sbr.rel (%p171) target = $region28
      $region27: #{ribonanzanet_forward.40} parent=11 // pred_region
        _
      $region28: #{ribonanzanet_forward.40} parent=11 // pred_fallthru
        _
    $region12: #{ribonanzanet_forward.40} parent=5 // pred_fallthru
      _
    %p174 = scmp.lt.s32.totalorder %s11, 2
    // Predicated region
    $region29: #{ribonanzanet_forward.40} parent=5 // pred_check
      %p175 = pneg %p174
    $region30: #{ribonanzanet_forward.40} parent=5 // pred_check_branch
      %177 = sbr.rel (%p175) target = $region32
    $region31: #{ribonanzanet_forward.40} parent=5 // pred_region
      // Predicated region
      $region33: #{ribonanzanet_forward.40} parent=31 // pred_check
        %p178 = pneg %p31
      $region34: #{ribonanzanet_forward.40} parent=31 // pred_check_branch
        %180 = sbr.rel (%p178) target = $region36
      $region35: #{ribonanzanet_forward.40} parent=31 // pred_region
        %s181 = smul.u32 8, %s11
        %p182 = scmp.lt.s32.totalorder %s181, 15
        %s183 = scalar_select %p182, %s181, 15
        %s184 = smul.addr %s183, 8
        %s185 = scalar_lea.vmem %s0, %s184
        %s186 = smul.u32 8, %s11
      $region36: #{ribonanzanet_forward.40} parent=31 // pred_fallthru
        _
    $region32: #{ribonanzanet_forward.40} parent=5 // pred_fallthru
      _
    %p187 = scmp.le.s32.totalorder 1, %s11
    %p188 = scmp.lt.s32.totalorder %s11, 3
    %p189 = pnand %p187, %p188
    %p190 = pneg %p189
    // Predicated region
    $region37: #{ribonanzanet_forward.40} parent=5 // pred_check
      _
    $region38: #{ribonanzanet_forward.40} parent=5 // pred_check_branch
      %192 = sbr.rel (%p189) target = $region40
    $region39: #{ribonanzanet_forward.40} parent=5 // pred_region
      %s193 = ssub.s32 %s11, 1
      %s194 = smul.u32 8, %s16
      %p195 = scmp.lt.s32.totalorder %s194, 15
      %s196 = scalar_select %p195, %s194, 15
      %s197 = smul.addr %s196, 8
      %s198 = scalar_lea.vmem %s0, %s197
      %p199 = pneg %p37
      %p200 = pneg %p34
      %p201 = pneg %p58
      %p202 = pneg %p55
      %p203 = pneg %p79
      %p204 = pneg %p76
      %p205 = pneg %p100
      %p206 = pneg %p97
      %p207 = pneg %p121
      %p208 = pneg %p118
      %p209 = pneg %p147
      %p210 = pneg %p144
      %s211 = smul.u32 8, %s16
      %p212 = scmp.lt.s32.totalorder %s211, 15
      %s213 = scalar_select %p212, %s211, 15
      %s214 = smul.addr %s213, 4
      %s215 = scalar_lea.vmem %s5, %s214
      %s216 = smul.u32 8, %s16
      %p217 = scmp.lt.s32.totalorder %s216, 15
      %s218 = scalar_select %p217, %s216, 15
      %s219 = smul.addr %s218, 8
      %s220 = scalar_lea.vmem %s0, %s219
      %s221 = smul.u32 8, %s16
      %s222 = smul.u32 8, %s16
      %p223 = scmp.lt.s32.totalorder %s222, 15
      %s224 = scalar_select %p223, %s222, 15
      %s225 = smul.addr %s224, 4
      %s226 = scalar_lea.vmem %s5, %s225
      %s227 = smul.u32 8, %s16
      %v229 = vld [vmem:[%s220] sm:$0xff]
      %v230 = vld [vmem:[%s220 + $0x8] sm:$0xff]
      %v231 = vld [vmem:[%s220 + $0x10] sm:$0xff]
      %v232 = vld [vmem:[%s220 + $0x18] sm:$0xff]
      %v233 = vld [vmem:[%s220 + $0x20] sm:$0xff]
      %v234 = vld [vmem:[%s220 + $0x28] sm:$0xff]
      %v235 = vld [vmem:[%s220 + $0x30] sm:$0xff]
      %v236 = vld [vmem:[%s220 + $0x38] sm:$0xff]
      %vm237 = vcmask 130048
      %v238 = vsel %vm237, %v229, 0.0
      %239 = vadd.xlane.f32.xlu0 %v238
      %v240 = vpop.xlane.xlu0 %239
      %v241 = vsel %vm237, %v230, 0.0
      %242 = vadd.xlane.f32.xlu0 %v241
      %v243 = vpop.xlane.xlu0 %242
      %v244 = vsel %vm237, %v231, 0.0
      %245 = vadd.xlane.f32.xlu0 %v244
      %v246 = vpop.xlane.xlu0 %245
      %v247 = vsel %vm237, %v232, 0.0
      %248 = vadd.xlane.f32.xlu0 %v247
      %v249 = vpop.xlane.xlu0 %248
      %v250 = vsel %vm237, %v233, 0.0
      %251 = vadd.xlane.f32.xlu0 %v250
      %v252 = vpop.xlane.xlu0 %251
      %v253 = vsel %vm237, %v234, 0.0
      %254 = vadd.xlane.f32.xlu0 %v253
      %v255 = vpop.xlane.xlu0 %254
      %v256 = vsel %vm237, %v235, 0.0
      %257 = vadd.xlane.f32.xlu0 %v256
      %v258 = vpop.xlane.xlu0 %257
      %v259 = vsel %vm237, %v236, 0.0
      %260 = vadd.xlane.f32.xlu0 %v259
      %v261 = vpop.xlane.xlu0 %260
      %v262 = vrcp.pop 16.0
      %v263 = vmul.f32 16.0, %v262
      %v264 = vsub.f32 1.0, %v263
      %v265 = vmul.f32 %v262, %v264
      %v266 = vadd.f32 %v262, %v265
      %vm267 = vweird.f32 %v262
      %v268 = vsel %vm267, %v262, %v266
      %v269 = vmul.f32 %v240, %v268
      %v270 = vmul.f32 %v243, %v268
      %v271 = vmul.f32 %v246, %v268
      %v272 = vmul.f32 %v249, %v268
      %v273 = vmul.f32 %v252, %v268
      %v274 = vmul.f32 %v255, %v268
      %v275 = vmul.f32 %v258, %v268
      %v276 = vmul.f32 %v261, %v268
      %v277 = vsub.f32 %v229, %v269
      %v278 = vsub.f32 %v230, %v270
      %v279 = vsub.f32 %v231, %v271
      %v280 = vsub.f32 %v232, %v272
      %v281 = vsub.f32 %v233, %v273
      %v282 = vsub.f32 %v234, %v274
      %v283 = vsub.f32 %v235, %v275
      %v284 = vsub.f32 %v236, %v276
      %v285 = vmul.f32 %v277, %v277
      %v286 = vmul.f32 %v278, %v278
      %v287 = vmul.f32 %v279, %v279
      %v288 = vmul.f32 %v280, %v280
      %v289 = vmul.f32 %v281, %v281
      %v290 = vmul.f32 %v282, %v282
      %v291 = vmul.f32 %v283, %v283
      %v292 = vmul.f32 %v284, %v284
      %v293 = vsel %vm237, %v285, 0.0
      %294 = vadd.xlane.f32.xlu0 %v293
      %v295 = vpop.xlane.xlu0 %294
      %v296 = vsel %vm237, %v286, 0.0
      %297 = vadd.xlane.f32.xlu0 %v296
      %v298 = vpop.xlane.xlu0 %297
      %v299 = vsel %vm237, %v287, 0.0
      %300 = vadd.xlane.f32.xlu0 %v299
      %v301 = vpop.xlane.xlu0 %300
      %v302 = vsel %vm237, %v288, 0.0
      %303 = vadd.xlane.f32.xlu0 %v302
      %v304 = vpop.xlane.xlu0 %303
      %v305 = vsel %vm237, %v289, 0.0
      %306 = vadd.xlane.f32.xlu0 %v305
      %v307 = vpop.xlane.xlu0 %306
      %v308 = vsel %vm237, %v290, 0.0
      %309 = vadd.xlane.f32.xlu0 %v308
      %v310 = vpop.xlane.xlu0 %309
      %v311 = vsel %vm237, %v291, 0.0
      %312 = vadd.xlane.f32.xlu0 %v311
      %v313 = vpop.xlane.xlu0 %312
      %v314 = vsel %vm237, %v292, 0.0
      %315 = vadd.xlane.f32.xlu0 %v314
      %v316 = vpop.xlane.xlu0 %315
      %v317 = vmul.f32 %v295, %v268
      %v318 = vmul.f32 %v298, %v268
      %v319 = vmul.f32 %v301, %v268
      %v320 = vmul.f32 %v304, %v268
      %v321 = vmul.f32 %v307, %v268
      %v322 = vmul.f32 %v310, %v268
      %v323 = vmul.f32 %v313, %v268
      %v324 = vmul.f32 %v316, %v268
      %v325 = vadd.f32 %v317, 1e-05
      %v326 = vadd.f32 %v318, 1e-05
      %v327 = vadd.f32 %v319, 1e-05
      %v328 = vadd.f32 %v320, 1e-05
      %v329 = vadd.f32 %v321, 1e-05
      %v330 = vadd.f32 %v322, 1e-05
      %v331 = vadd.f32 %v323, 1e-05
      %v332 = vadd.f32 %v324, 1e-05
      %v333 = vrsqrt.pop %v325
      %v334 = vmul.f32 %v333, %v325
      %v335 = vmul.f32 %v334, %v333
      %v336 = vmul.f32 0.5, %v335
      %v337 = vsub.f32 1.5, %v336
      %v338 = vmul.f32 %v333, %v337
      %vm339 = vweird.f32 %v325
      %vm340 = vweird.f32 %v333
      %vm341 = vmor %vm339, %vm340
      %v342 = vsel %vm341, %v333, %v338
      %v343 = vrsqrt.pop %v326
      %v344 = vmul.f32 %v343, %v326
      %v345 = vmul.f32 %v344, %v343
      %v346 = vmul.f32 0.5, %v345
      %v347 = vsub.f32 1.5, %v346
      %v348 = vmul.f32 %v343, %v347
      %vm349 = vweird.f32 %v326
      %vm350 = vweird.f32 %v343
      %vm351 = vmor %vm349, %vm350
      %v352 = vsel %vm351, %v343, %v348
      %v353 = vrsqrt.pop %v327
      %v354 = vmul.f32 %v353, %v327
      %v355 = vmul.f32 %v354, %v353
      %v356 = vmul.f32 0.5, %v355
      %v357 = vsub.f32 1.5, %v356
      %v358 = vmul.f32 %v353, %v357
      %vm359 = vweird.f32 %v327
      %vm360 = vweird.f32 %v353
      %vm361 = vmor %vm359, %vm360
      %v362 = vsel %vm361, %v353, %v358
      %v363 = vrsqrt.pop %v328
      %v364 = vmul.f32 %v363, %v328
      %v365 = vmul.f32 %v364, %v363
      %v366 = vmul.f32 0.5, %v365
      %v367 = vsub.f32 1.5, %v366
      %v368 = vmul.f32 %v363, %v367
      %vm369 = vweird.f32 %v328
      %vm370 = vweird.f32 %v363
      %vm371 = vmor %vm369, %vm370
      %v372 = vsel %vm371, %v363, %v368
      %v373 = vrsqrt.pop %v329
      %v374 = vmul.f32 %v373, %v329
      %v375 = vmul.f32 %v374, %v373
      %v376 = vmul.f32 0.5, %v375
      %v377 = vsub.f32 1.5, %v376
      %v378 = vmul.f32 %v373, %v377
      %vm379 = vweird.f32 %v329
      %vm380 = vweird.f32 %v373
      %vm381 = vmor %vm379, %vm380
      %v382 = vsel %vm381, %v373, %v378
      %v383 = vrsqrt.pop %v330
      %v384 = vmul.f32 %v383, %v330
      %v385 = vmul.f32 %v384, %v383
      %v386 = vmul.f32 0.5, %v385
      %v387 = vsub.f32 1.5, %v386
      %v388 = vmul.f32 %v383, %v387
      %vm389 = vweird.f32 %v330
      %vm390 = vweird.f32 %v383
      %vm391 = vmor %vm389, %vm390
      %v392 = vsel %vm391, %v383, %v388
      %v393 = vrsqrt.pop %v331
      %v394 = vmul.f32 %v393, %v331
      %v395 = vmul.f32 %v394, %v393
      %v396 = vmul.f32 0.5, %v395
      %v397 = vsub.f32 1.5, %v396
      %v398 = vmul.f32 %v393, %v397
      %vm399 = vweird.f32 %v331
      %vm400 = vweird.f32 %v393
      %vm401 = vmor %vm399, %vm400
      %v402 = vsel %vm401, %v393, %v398
      %v403 = vrsqrt.pop %v332
      %v404 = vmul.f32 %v403, %v332
      %v405 = vmul.f32 %v404, %v403
      %v406 = vmul.f32 0.5, %v405
      %v407 = vsub.f32 1.5, %v406
      %v408 = vmul.f32 %v403, %v407
      %vm409 = vweird.f32 %v332
      %vm410 = vweird.f32 %v403
      %vm411 = vmor %vm409, %vm410
      %v412 = vsel %vm411, %v403, %v408
      %v413 = vmul.f32 %v277, %v342
      %v414 = vmul.f32 %v278, %v352
      %v415 = vmul.f32 %v279, %v362
      %v416 = vmul.f32 %v280, %v372
      %v417 = vmul.f32 %v281, %v382
      %v418 = vmul.f32 %v282, %v392
      %v419 = vmul.f32 %v283, %v402
      %v420 = vmul.f32 %v284, %v412
      %v421 = vld [vmem:[%s3] sm:$0x1]
      %v423 = vperm.slane %v421, 0
      %v425 = vmul.f32 %v413, %v423
      %v426 = vmul.f32 %v414, %v423
      %v427 = vmul.f32 %v415, %v423
      %v428 = vmul.f32 %v416, %v423
      %v429 = vmul.f32 %v417, %v423
      %v430 = vmul.f32 %v418, %v423
      %v431 = vmul.f32 %v419, %v423
      %v432 = vmul.f32 %v420, %v423
      %v433 = vld [vmem:[%s4] sm:$0x1]
      %v435 = vperm.slane %v433, 0
      %v437 = vadd.f32 %v425, %v435
      %v438 = vadd.f32 %v426, %v435
      %v439 = vadd.f32 %v427, %v435
      %v440 = vadd.f32 %v428, %v435
      %v441 = vadd.f32 %v429, %v435
      %v442 = vadd.f32 %v430, %v435
      %v443 = vadd.f32 %v431, %v435
      %v444 = vadd.f32 %v432, %v435
      %v445 = vpack.c.bf16 %v438, %v437
      %v446 = vpack.c.bf16 %v440, %v439
      %v447 = vpack.c.bf16 %v442, %v441
      %v448 = vpack.c.bf16 %v444, %v443
      %v449 = vld [vmem:[%s1] sm:$0xf]
      %v450 = vld [vmem:[%s1 + $0x4] sm:$0xf]
      %v451 = vld [vmem:[%s2] sm:$0x1]
      %v453 = vperm.slane %v451, 0
      %v457 = vunpack.c.l.b16 %v449
      %v458 = vunpack.c.l.b16 %v450
      %v459 = vpack.c.b16 %v458, %v457
      %v462 = vsel %vm237, %v445, 0
      %v465 = vsel %vm237, %v446, 0
      %v468 = vsel %vm237, %v447, 0
      %v471 = vsel %vm237, %v448, 0
      %473 = vmatpush.bf16.msra.mxu0 0
      %474 = vmatpush.bf16.msra.mxu0 0
      %475 = vmatpush.bf16.msra.mxu0 0
      %476 = vmatpush.bf16.msra.mxu0 0
      %477 = vmatpush.bf16.msra.mxu0 0
      %478 = vmatpush.bf16.msra.mxu0 0
      %479 = vmatpush.bf16.msra.mxu0 0
      %480 = vmatpush.bf16.msra.mxu0 %v459
      %481 = vmatmul.bf16.gmra.mxu0 %v462
      %v482 = vpop.f32.mrf.mxu0
      %v483 = vadd.f32 %v453, %v482
      %v484 = vpop.f32.mrf.mxu0
      %v485 = vadd.f32 %v453, %v484
      %486 = vmatmul.bf16.gmra.mxu0 %v465
      %v487 = vpop.f32.mrf.mxu0
      %v488 = vadd.f32 %v453, %v487
      %v489 = vpop.f32.mrf.mxu0
      %v490 = vadd.f32 %v453, %v489
      %491 = vmatmul.bf16.gmra.mxu0 %v468
      %v492 = vpop.f32.mrf.mxu0
      %v493 = vadd.f32 %v453, %v492
      %v494 = vpop.f32.mrf.mxu0
      %v495 = vadd.f32 %v453, %v494
      %496 = vmatmul.bf16.gmra.mxu0 %v471
      %v497 = vpop.f32.mrf.mxu0
      %v498 = vadd.f32 %v453, %v497
      %v499 = vpop.f32.mrf.mxu0
      %v500 = vadd.f32 %v453, %v499
      %501 = vdwg.mxu0
      %v502 = vpack.c.bf16 %v483, %v483
      %v503 = vpack.c.bf16 %v485, %v485
      %v504 = vpack.c.bf16 %v488, %v488
      %v505 = vpack.c.bf16 %v490, %v490
      %v506 = vpack.c.bf16 %v493, %v493
      %v507 = vpack.c.bf16 %v495, %v495
      %v508 = vpack.c.bf16 %v498, %v498
      %v509 = vpack.c.bf16 %v500, %v500
      %vm510 = vcmask 27648
      %511 = vst.msk [vmem:[%s226] sm:$0xf] %vm510, %v502
      %512 = vst.msk [vmem:[%s226 + $0x4] sm:$0xf] %vm510, %v503
      %513 = vst.msk [vmem:[%s226 + $0x8] sm:$0xf] %vm510, %v504
      %514 = vst.msk [vmem:[%s226 + $0xc] sm:$0xf] %vm510, %v505
      %515 = vst.msk [vmem:[%s226 + $0x10] sm:$0xf] %vm510, %v506
      %516 = vst.msk [vmem:[%s226 + $0x14] sm:$0xf] %vm510, %v507
      %517 = vst.msk [vmem:[%s226 + $0x18] sm:$0xf] %vm510, %v508
      %518 = vst.msk [vmem:[%s226 + $0x1c] sm:$0xf] %vm510, %v509
      %s519 = smul.u32 8, %s16
      %p520 = scmp.lt.s32.totalorder %s519, 15
      %s521 = scalar_select %p520, %s519, 15
      %s522 = smul.addr %s521, 4
      %s523 = scalar_lea.vmem %s5, %s522
      // Predicated region
      $region41: #{ribonanzanet_forward.40} parent=39 // pred_check
        %p524 = pneg %p144
      $region42: #{ribonanzanet_forward.40} parent=39 // pred_check_branch
        %526 = sbr.rel (%p524) target = $region44
      $region43: #{ribonanzanet_forward.40} parent=39 // pred_region
        %s527 = smul.u32 8, %s16
      $region44: #{ribonanzanet_forward.40} parent=39 // pred_fallthru
        _
    $region40: #{ribonanzanet_forward.40} parent=5 // pred_fallthru
      _
    %p528 = scmp.le.s32.totalorder 2, %s11
    // Predicated region
    $region45: #{ribonanzanet_forward.40} parent=5 // pred_check
      %p529 = pneg %p528
    $region46: #{ribonanzanet_forward.40} parent=5 // pred_check_branch
      %531 = sbr.rel (%p529) target = $region48
    $region47: #{ribonanzanet_forward.40} parent=5 // pred_region
      %s532 = ssub.s32 %s11, 2
      // Predicated region
      $region49: #{ribonanzanet_forward.40} parent=47 // pred_check
        %p533 = pneg %p150
      $region50: #{ribonanzanet_forward.40} parent=47 // pred_check_branch
        %535 = sbr.rel (%p533) target = $region52
      $region51: #{ribonanzanet_forward.40} parent=47 // pred_region
        %s536 = smul.u32 8, %s17
        %p537 = scmp.lt.s32.totalorder %s536, 15
        %s538 = scalar_select %p537, %s536, 15
        %s539 = smul.addr %s538, 4
        %s540 = scalar_lea.vmem %s5, %s539
      $region52: #{ribonanzanet_forward.40} parent=47 // pred_fallthru
        _
    $region48: #{ribonanzanet_forward.40} parent=5 // pred_fallthru
      _
  $region6: #{ribonanzanet_forward.40} parent=0 // loop_footer
    %s15 = sadd.s32 1, %s11
  $region7: #{ribonanzanet_forward.40} parent=0 // loop_footer_branch
    %10 = sbr.rel target = $region3
  $region8: #{ribonanzanet_forward.40} parent=0 // loop_exit
    _

// kernel: ribonanzanet_forward.41
$region0: #{ribonanzanet_forward.41}
  #allocation0 [shape = 'u32[]', space=smem, size = 0x4, offset = 0x4, fixed_abs, tag = 'smem constant byte address 0x4 - core index']
  #allocation1 [shape = 'u32[72,128]{1,0:T(1,128)}', space=vmem, size = 0x9000, scoped, tag = 'internal scratch']
  %s0 = inlined_call_operand.vmem [shape: f32[16,32], index: 0, kind: input, shape index: {}]
  %s1 = inlined_call_operand.vmem [shape: bf16[32,96], index: 1, kind: input, shape index: {}]
  %s2 = inlined_call_operand.vmem [shape: f32[1,96], index: 2, kind: input, shape index: {}]
  %s3 = inlined_call_operand.vmem [shape: bf16[16,96], index: 3, kind: output, shape index: {}]
  %s4 = sld [smem:[#allocation0]]
  $region45: #{ribonanzanet_forward.41} parent=0
    _
  %s6 = ssub.s32 1, %s4
  %s7 = scalar_select 0, %s6, %s4
  loop: start=0, step=1, limit=4
  $region2: #{ribonanzanet_forward.41} parent=0 // loop_pre_header
    _
  $region3: #{ribonanzanet_forward.41} parent=0 // loop_header
    %s9 = sphi 0, %s13
    %p10 = scmp.ge.s32.totalorder %s9, 4
    %s19 = sphi 0, %s21
    %s22 = sphi 0, %s19
    %s23 = sphi 0, %s22
    %s39 = sphi 0, %s23
    %s43 = sphi 0, %s43
    %s45 = sphi 0, %s43
    %s46 = sphi 0, %s45
    %s60 = sphi 0, %s46
    %s64 = sphi 0, %s64
    %s66 = sphi 0, %s64
    %s67 = sphi 0, %s66
    %s81 = sphi 0, %s67
    %s87 = sphi 0, %s89
    %s90 = sphi 0, %s87
    %s91 = sphi 0, %s90
    %s107 = sphi 0, %s91
  $region4: #{ribonanzanet_forward.41} parent=0 // loop_header_branch
    %12 = sbr.rel (%p10) target = $region8
  $region5: #{ribonanzanet_forward.41} parent=0 // loop_body
    %s14 = ssub.s32 %s9, 1
    %s15 = ssub.s32 %s9, 2
    %s16 = sadd.s32 %s9, 1
    %s17 = ssub.s32 %s9, %s16
    %p18 = scmp.eq.s32.totalorder %s17, 0
    %s20 = sadd.s32 %s19, 1
    %s21 = scalar_select %p18, %s19, %s20
    %p24 = pneg %p18
    %p25 = scmp.eq.s32.totalorder %s9, 1
    %p26 = por %p24, %p25
    %p27 = scmp.ne.s32.totalorder %s19, %s22
    %p28 = scmp.eq.s32.totalorder %s9, 0
    %p29 = por %p27, %p28
    %p30 = scmp.ne.s32.totalorder %s19, %s22
    %p31 = scmp.eq.s32.totalorder %s14, 1
    %p32 = por %p30, %p31
    %p33 = scmp.ne.s32.totalorder %s22, %s23
    %p34 = scmp.eq.s32.totalorder %s14, 0
    %p35 = por %p33, %p34
    %p36 = scmp.ne.s32.totalorder %s22, %s23
    %p37 = scmp.eq.s32.totalorder %s15, 1
    %p38 = por %p36, %p37
    %p40 = scmp.ne.s32.totalorder %s23, %s39
    %p41 = scmp.eq.s32.totalorder %s15, 0
    %p42 = por %p40, %p41
    %s44 = sadd.s32 %s43, 1
    %p47 = scmp.eq.s32.totalorder %s9, 1
    %p48 = scmp.ne.s32.totalorder %s43, %s45
    %p49 = scmp.eq.s32.totalorder %s9, 0
    %p50 = por %p48, %p49
    %p51 = scmp.ne.s32.totalorder %s43, %s45
    %p52 = scmp.eq.s32.totalorder %s14, 1
    %p53 = por %p51, %p52
    %p54 = scmp.ne.s32.totalorder %s45, %s46
    %p55 = scmp.eq.s32.totalorder %s14, 0
    %p56 = por %p54, %p55
    %p57 = scmp.ne.s32.totalorder %s45, %s46
    %p58 = scmp.eq.s32.totalorder %s15, 1
    %p59 = por %p57, %p58
    %p61 = scmp.ne.s32.totalorder %s46, %s60
    %p62 = scmp.eq.s32.totalorder %s15, 0
    %p63 = por %p61, %p62
    %s65 = sadd.s32 %s64, 1
    %p68 = scmp.eq.s32.totalorder %s9, 1
    %p69 = scmp.ne.s32.totalorder %s64, %s66
    %p70 = scmp.eq.s32.totalorder %s9, 0
    %p71 = por %p69, %p70
    %p72 = scmp.ne.s32.totalorder %s64, %s66
    %p73 = scmp.eq.s32.totalorder %s14, 1
    %p74 = por %p72, %p73
    %p75 = scmp.ne.s32.totalorder %s66, %s67
    %p76 = scmp.eq.s32.totalorder %s14, 0
    %p77 = por %p75, %p76
    %p78 = scmp.ne.s32.totalorder %s66, %s67
    %p79 = scmp.eq.s32.totalorder %s15, 1
    %p80 = por %p78, %p79
    %p82 = scmp.ne.s32.totalorder %s67, %s81
    %p83 = scmp.eq.s32.totalorder %s15, 0
    %p84 = por %p82, %p83
    %s85 = ssub.s32 %s9, %s16
    %p86 = scmp.eq.s32.totalorder %s85, 0
    %s88 = sadd.s32 %s87, 1
    %s89 = scalar_select %p86, %s87, %s88
    %p92 = pneg %p86
    %p93 = scmp.eq.s32.totalorder %s9, 1
    %p94 = por %p92, %p93
    %p95 = scmp.ne.s32.totalorder %s87, %s90
    %p96 = scmp.eq.s32.totalorder %s9, 0
    %p97 = por %p95, %p96
    %p98 = scmp.ne.s32.totalorder %s87, %s90
    %p99 = scmp.eq.s32.totalorder %s14, 1
    %p100 = por %p98, %p99
    %p101 = scmp.ne.s32.totalorder %s90, %s91
    %p102 = scmp.eq.s32.totalorder %s14, 0
    %p103 = por %p101, %p102
    %p104 = scmp.ne.s32.totalorder %s90, %s91
    %p105 = scmp.eq.s32.totalorder %s15, 1
    %p106 = por %p104, %p105
    %p108 = scmp.ne.s32.totalorder %s91, %s107
    %p109 = scmp.eq.s32.totalorder %s15, 0
    %p110 = por %p108, %p109
    %p111 = scmp.le.s32.totalorder 1, %s9
    %p112 = scmp.lt.s32.totalorder %s9, 3
    %p113 = pnand %p111, %p112
    %p114 = pneg %p113
    // Predicated region
    $region9: #{ribonanzanet_forward.41} parent=5 // pred_check
      _
    $region10: #{ribonanzanet_forward.41} parent=5 // pred_check_branch
      %116 = sbr.rel (%p113) target = $region12
    $region11: #{ribonanzanet_forward.41} parent=5 // pred_region
      %s117 = ssub.s32 %s9, 1
      // Predicated region
      $region13: #{ribonanzanet_forward.41} parent=11 // pred_check
        %p118 = pneg %p56
      $region14: #{ribonanzanet_forward.41} parent=11 // pred_check_branch
        %120 = sbr.rel (%p118) target = $region16
      $region15: #{ribonanzanet_forward.41} parent=11 // pred_region
        _
      $region16: #{ribonanzanet_forward.41} parent=11 // pred_fallthru
        _
      // Predicated region
      $region17: #{ribonanzanet_forward.41} parent=11 // pred_check
        %p121 = pneg %p77
      $region18: #{ribonanzanet_forward.41} parent=11 // pred_check_branch
        %123 = sbr.rel (%p121) target = $region20
      $region19: #{ribonanzanet_forward.41} parent=11 // pred_region
        _
      $region20: #{ribonanzanet_forward.41} parent=11 // pred_fallthru
        _
    $region12: #{ribonanzanet_forward.41} parent=5 // pred_fallthru
      _
    %p124 = scmp.lt.s32.totalorder %s9, 2
    // Predicated region
    $region21: #{ribonanzanet_forward.41} parent=5 // pred_check
      %p125 = pneg %p124
    $region22: #{ribonanzanet_forward.41} parent=5 // pred_check_branch
      %127 = sbr.rel (%p125) target = $region24
    $region23: #{ribonanzanet_forward.41} parent=5 // pred_region
      // Predicated region
      $region25: #{ribonanzanet_forward.41} parent=23 // pred_check
        %p128 = pneg %p29
      $region26: #{ribonanzanet_forward.41} parent=23 // pred_check_branch
        %130 = sbr.rel (%p128) target = $region28
      $region27: #{ribonanzanet_forward.41} parent=23 // pred_region
        %p131 = scmp.lt.s32.totalorder %s9, 1
        %s132 = scalar_select %p131, %s9, 1
        %s133 = smul.addr %s132, 8
        %s134 = scalar_lea.vmem %s0, %s133
      $region28: #{ribonanzanet_forward.41} parent=23 // pred_fallthru
        _
    $region24: #{ribonanzanet_forward.41} parent=5 // pred_fallthru
      _
    %p135 = scmp.le.s32.totalorder 1, %s9
    %p136 = scmp.lt.s32.totalorder %s9, 3
    %p137 = pnand %p135, %p136
    %p138 = pneg %p137
    // Predicated region
    $region29: #{ribonanzanet_forward.41} parent=5 // pred_check
      _
    $region30: #{ribonanzanet_forward.41} parent=5 // pred_check_branch
      %140 = sbr.rel (%p137) target = $region32
    $region31: #{ribonanzanet_forward.41} parent=5 // pred_region
      %s141 = ssub.s32 %s9, 1
      %p142 = scmp.lt.s32.totalorder %s14, 1
      %s143 = scalar_select %p142, %s14, 1
      %s144 = smul.addr %s143, 8
      %s145 = scalar_lea.vmem %s0, %s144
      %p146 = pneg %p35
      %p147 = pneg %p32
      %p148 = pneg %p56
      %p149 = pneg %p53
      %p150 = pneg %p77
      %p151 = pneg %p74
      %p152 = pneg %p103
      %p153 = pneg %p100
      %p154 = scmp.lt.s32.totalorder %s14, 1
      %s155 = scalar_select %p154, %s14, 1
      %s156 = smul.addr %s155, 4
      %s157 = scalar_lea.vmem %s3, %s156
      %p158 = scmp.lt.s32.totalorder %s14, 1
      %s159 = scalar_select %p158, %s14, 1
      %s160 = smul.addr %s159, 8
      %s161 = scalar_lea.vmem %s0, %s160
      %p162 = scmp.lt.s32.totalorder %s14, 1
      %s163 = scalar_select %p162, %s14, 1
      %s164 = smul.addr %s163, 4
      %s165 = scalar_lea.vmem %s3, %s164
      %v167 = vld [vmem:[%s161] sm:$0xff]
      %v168 = vpack.c.bf16 %v167, %v167
      %v169 = vld [vmem:[%s1] sm:$0xf]
      %v170 = vld [vmem:[%s1 + $0x4] sm:$0xf]
      %v171 = vld [vmem:[%s1 + $0x8] sm:$0xf]
      %v172 = vld [vmem:[%s1 + $0xc] sm:$0xf]
      %v173 = vld [vmem:[%s2] sm:$0x1]
      %v175 = vperm.slane %v173, 0
      %v181 = vunpack.c.l.b16 %v169
      %v182 = vunpack.c.l.b16 %v170
      %v183 = vunpack.c.l.b16 %v171
      %v184 = vunpack.c.l.b16 %v172
      %v185 = vpack.c.b16 %v182, %v181
      %v186 = vpack.c.b16 %v184, %v183
      %vm189 = vcmask 261120
      %v191 = vsel %vm189, %v168, 0
      %193 = vmatpush.bf16.msra.mxu0 0
      %194 = vmatpush.bf16.msra.mxu0 0
      %195 = vmatpush.bf16.msra.mxu0 0
      %196 = vmatpush.bf16.msra.mxu0 0
      %197 = vmatpush.bf16.msra.mxu0 0
      %198 = vmatpush.bf16.msra.mxu0 0
      %199 = vmatpush.bf16.msra.mxu0 %v186
      %200 = vmatpush.bf16.msra.mxu0 %v185
      %201 = vmatmul.bf16.gmra.mxu0 %v191
      %v202 = vpop.f32.mrf.mxu0
      %v203 = vadd.f32 %v175, %v202
      %v204 = vpop.f32.mrf.mxu0
      %205 = vdwg.mxu0
      %v206 = vpack.c.bf16 %v203, %v203
      %vm207 = vcmask 781312
      %208 = vst.msk [vmem:[%s165] sm:$0xf] %vm207, %v206
      %p209 = scmp.lt.s32.totalorder %s14, 1
      %s210 = scalar_select %p209, %s14, 1
      %s211 = smul.addr %s210, 4
      %s212 = scalar_lea.vmem %s3, %s211
      // Predicated region
      $region33: #{ribonanzanet_forward.41} parent=31 // pred_check
        %p213 = pneg %p100
      $region34: #{ribonanzanet_forward.41} parent=31 // pred_check_branch
        %215 = sbr.rel (%p213) target = $region36
      $region35: #{ribonanzanet_forward.41} parent=31 // pred_region
        _
      $region36: #{ribonanzanet_forward.41} parent=31 // pred_fallthru
        _
    $region32: #{ribonanzanet_forward.41} parent=5 // pred_fallthru
      _
    %p216 = scmp.le.s32.totalorder 2, %s9
    // Predicated region
    $region37: #{ribonanzanet_forward.41} parent=5 // pred_check
      %p217 = pneg %p216
    $region38: #{ribonanzanet_forward.41} parent=5 // pred_check_branch
      %219 = sbr.rel (%p217) target = $region40
    $region39: #{ribonanzanet_forward.41} parent=5 // pred_region
      %s220 = ssub.s32 %s9, 2
      // Predicated region
      $region41: #{ribonanzanet_forward.41} parent=39 // pred_check
        %p221 = pneg %p106
      $region42: #{ribonanzanet_forward.41} parent=39 // pred_check_branch
        %223 = sbr.rel (%p221) target = $region44
      $region43: #{ribonanzanet_forward.41} parent=39 // pred_region
        %p224 = scmp.lt.s32.totalorder %s15, 1
        %s225 = scalar_select %p224, %s15, 1
        %s226 = smul.addr %s225, 4
        %s227 = scalar_lea.vmem %s3, %s226
      $region44: #{ribonanzanet_forward.41} parent=39 // pred_fallthru
        _
    $region40: #{ribonanzanet_forward.41} parent=5 // pred_fallthru
      _
  $region6: #{ribonanzanet_forward.41} parent=0 // loop_footer
    %s13 = sadd.s32 1, %s9
  $region7: #{ribonanzanet_forward.41} parent=0 // loop_footer_branch
    %8 = sbr.rel target = $region3
  $region8: #{ribonanzanet_forward.41} parent=0 // loop_exit
    _

// kernel: ribonanzanet_forward.39
$region0: #{ribonanzanet_forward.39}
  #allocation0 [shape = 'u32[]', space=smem, size = 0x4, offset = 0x4, fixed_abs, tag = 'smem constant byte address 0x4 - core index']
  #allocation1 [shape = 'u32[72,128]{1,0:T(1,128)}', space=vmem, size = 0x9000, scoped, tag = 'internal scratch']
  %s0 = inlined_call_operand.vmem [shape: f32[2,10,32], index: 0, kind: input, shape index: {}]
  %s1 = inlined_call_operand.vmem [shape: bf16[3,32,32], index: 1, kind: input, shape index: {}]
  %s2 = inlined_call_operand.vmem [shape: f32[1,32], index: 2, kind: input, shape index: {}]
  %s3 = inlined_call_operand.vmem [shape: f32[1,32], index: 3, kind: input, shape index: {}]
  %s4 = inlined_call_operand.vmem [shape: f32[1,32], index: 4, kind: input, shape index: {}]
  %s5 = inlined_call_operand.vmem [shape: f32[2,8,32], index: 5, kind: output, shape index: {}]
  %s6 = sld [smem:[#allocation0]]
  $region53: #{ribonanzanet_forward.39} parent=0
    _
  %s8 = ssub.s32 1, %s6
  %s9 = scalar_select 0, %s8, %s6
  loop: start=0, step=1, limit=4
  $region2: #{ribonanzanet_forward.39} parent=0 // loop_pre_header
    _
  $region3: #{ribonanzanet_forward.39} parent=0 // loop_header
    %s11 = sphi 0, %s15
    %p12 = scmp.ge.s32.totalorder %s11, 4
    %s21 = sphi 0, %s23
    %s24 = sphi 0, %s21
    %s25 = sphi 0, %s24
    %s41 = sphi 0, %s25
    %s45 = sphi 0, %s45
    %s47 = sphi 0, %s45
    %s48 = sphi 0, %s47
    %s62 = sphi 0, %s48
    %s66 = sphi 0, %s66
    %s68 = sphi 0, %s66
    %s69 = sphi 0, %s68
    %s83 = sphi 0, %s69
    %s87 = sphi 0, %s87
    %s89 = sphi 0, %s87
    %s90 = sphi 0, %s89
    %s104 = sphi 0, %s90
    %s108 = sphi 0, %s108
    %s110 = sphi 0, %s108
    %s111 = sphi 0, %s110
    %s125 = sphi 0, %s111
    %s131 = sphi 0, %s133
    %s134 = sphi 0, %s131
    %s135 = sphi 0, %s134
    %s151 = sphi 0, %s135
  $region4: #{ribonanzanet_forward.39} parent=0 // loop_header_branch
    %14 = sbr.rel (%p12) target = $region8
  $region5: #{ribonanzanet_forward.39} parent=0 // loop_body
    %s16 = ssub.s32 %s11, 1
    %s17 = ssub.s32 %s11, 2
    %s18 = sadd.s32 %s11, 1
    %s19 = ssub.s32 %s11, %s18
    %p20 = scmp.eq.s32.totalorder %s19, 0
    %s22 = sadd.s32 %s21, 1
    %s23 = scalar_select %p20, %s21, %s22
    %p26 = pneg %p20
    %p27 = scmp.eq.s32.totalorder %s11, 1
    %p28 = por %p26, %p27
    %p29 = scmp.ne.s32.totalorder %s21, %s24
    %p30 = scmp.eq.s32.totalorder %s11, 0
    %p31 = por %p29, %p30
    %p32 = scmp.ne.s32.totalorder %s21, %s24
    %p33 = scmp.eq.s32.totalorder %s16, 1
    %p34 = por %p32, %p33
    %p35 = scmp.ne.s32.totalorder %s24, %s25
    %p36 = scmp.eq.s32.totalorder %s16, 0
    %p37 = por %p35, %p36
    %p38 = scmp.ne.s32.totalorder %s24, %s25
    %p39 = scmp.eq.s32.totalorder %s17, 1
    %p40 = por %p38, %p39
    %p42 = scmp.ne.s32.totalorder %s25, %s41
    %p43 = scmp.eq.s32.totalorder %s17, 0
    %p44 = por %p42, %p43
    %s46 = sadd.s32 %s45, 1
    %p49 = scmp.eq.s32.totalorder %s11, 1
    %p50 = scmp.ne.s32.totalorder %s45, %s47
    %p51 = scmp.eq.s32.totalorder %s11, 0
    %p52 = por %p50, %p51
    %p53 = scmp.ne.s32.totalorder %s45, %s47
    %p54 = scmp.eq.s32.totalorder %s16, 1
    %p55 = por %p53, %p54
    %p56 = scmp.ne.s32.totalorder %s47, %s48
    %p57 = scmp.eq.s32.totalorder %s16, 0
    %p58 = por %p56, %p57
    %p59 = scmp.ne.s32.totalorder %s47, %s48
    %p60 = scmp.eq.s32.totalorder %s17, 1
    %p61 = por %p59, %p60
    %p63 = scmp.ne.s32.totalorder %s48, %s62
    %p64 = scmp.eq.s32.totalorder %s17, 0
    %p65 = por %p63, %p64
    %s67 = sadd.s32 %s66, 1
    %p70 = scmp.eq.s32.totalorder %s11, 1
    %p71 = scmp.ne.s32.totalorder %s66, %s68
    %p72 = scmp.eq.s32.totalorder %s11, 0
    %p73 = por %p71, %p72
    %p74 = scmp.ne.s32.totalorder %s66, %s68
    %p75 = scmp.eq.s32.totalorder %s16, 1
    %p76 = por %p74, %p75
    %p77 = scmp.ne.s32.totalorder %s68, %s69
    %p78 = scmp.eq.s32.totalorder %s16, 0
    %p79 = por %p77, %p78
    %p80 = scmp.ne.s32.totalorder %s68, %s69
    %p81 = scmp.eq.s32.totalorder %s17, 1
    %p82 = por %p80, %p81
    %p84 = scmp.ne.s32.totalorder %s69, %s83
    %p85 = scmp.eq.s32.totalorder %s17, 0
    %p86 = por %p84, %p85
    %s88 = sadd.s32 %s87, 1
    %p91 = scmp.eq.s32.totalorder %s11, 1
    %p92 = scmp.ne.s32.totalorder %s87, %s89
    %p93 = scmp.eq.s32.totalorder %s11, 0
    %p94 = por %p92, %p93
    %p95 = scmp.ne.s32.totalorder %s87, %s89
    %p96 = scmp.eq.s32.totalorder %s16, 1
    %p97 = por %p95, %p96
    %p98 = scmp.ne.s32.totalorder %s89, %s90
    %p99 = scmp.eq.s32.totalorder %s16, 0
    %p100 = por %p98, %p99
    %p101 = scmp.ne.s32.totalorder %s89, %s90
    %p102 = scmp.eq.s32.totalorder %s17, 1
    %p103 = por %p101, %p102
    %p105 = scmp.ne.s32.totalorder %s90, %s104
    %p106 = scmp.eq.s32.totalorder %s17, 0
    %p107 = por %p105, %p106
    %s109 = sadd.s32 %s108, 1
    %p112 = scmp.eq.s32.totalorder %s11, 1
    %p113 = scmp.ne.s32.totalorder %s108, %s110
    %p114 = scmp.eq.s32.totalorder %s11, 0
    %p115 = por %p113, %p114
    %p116 = scmp.ne.s32.totalorder %s108, %s110
    %p117 = scmp.eq.s32.totalorder %s16, 1
    %p118 = por %p116, %p117
    %p119 = scmp.ne.s32.totalorder %s110, %s111
    %p120 = scmp.eq.s32.totalorder %s16, 0
    %p121 = por %p119, %p120
    %p122 = scmp.ne.s32.totalorder %s110, %s111
    %p123 = scmp.eq.s32.totalorder %s17, 1
    %p124 = por %p122, %p123
    %p126 = scmp.ne.s32.totalorder %s111, %s125
    %p127 = scmp.eq.s32.totalorder %s17, 0
    %p128 = por %p126, %p127
    %s129 = ssub.s32 %s11, %s18
    %p130 = scmp.eq.s32.totalorder %s129, 0
    %s132 = sadd.s32 %s131, 1
    %s133 = scalar_select %p130, %s131, %s132
    %p136 = pneg %p130
    %p137 = scmp.eq.s32.totalorder %s11, 1
    %p138 = por %p136, %p137
    %p139 = scmp.ne.s32.totalorder %s131, %s134
    %p140 = scmp.eq.s32.totalorder %s11, 0
    %p141 = por %p139, %p140
    %p142 = scmp.ne.s32.totalorder %s131, %s134
    %p143 = scmp.eq.s32.totalorder %s16, 1
    %p144 = por %p142, %p143
    %p145 = scmp.ne.s32.totalorder %s134, %s135
    %p146 = scmp.eq.s32.totalorder %s16, 0
    %p147 = por %p145, %p146
    %p148 = scmp.ne.s32.totalorder %s134, %s135
    %p149 = scmp.eq.s32.totalorder %s17, 1
    %p150 = por %p148, %p149
    %p152 = scmp.ne.s32.totalorder %s135, %s151
    %p153 = scmp.eq.s32.totalorder %s17, 0
    %p154 = por %p152, %p153
    %p155 = scmp.le.s32.totalorder 1, %s11
    %p156 = scmp.lt.s32.totalorder %s11, 3
    %p157 = pnand %p155, %p156
    %p158 = pneg %p157
    // Predicated region
    $region9: #{ribonanzanet_forward.39} parent=5 // pred_check
      _
    $region10: #{ribonanzanet_forward.39} parent=5 // pred_check_branch
      %160 = sbr.rel (%p157) target = $region12
    $region11: #{ribonanzanet_forward.39} parent=5 // pred_region
      %s161 = ssub.s32 %s11, 1
      // Predicated region
      $region13: #{ribonanzanet_forward.39} parent=11 // pred_check
        %p162 = pneg %p58
      $region14: #{ribonanzanet_forward.39} parent=11 // pred_check_branch
        %164 = sbr.rel (%p162) target = $region16
      $region15: #{ribonanzanet_forward.39} parent=11 // pred_region
        _
      $region16: #{ribonanzanet_forward.39} parent=11 // pred_fallthru
        _
      // Predicated region
      $region17: #{ribonanzanet_forward.39} parent=11 // pred_check
        %p165 = pneg %p79
      $region18: #{ribonanzanet_forward.39} parent=11 // pred_check_branch
        %167 = sbr.rel (%p165) target = $region20
      $region19: #{ribonanzanet_forward.39} parent=11 // pred_region
        _
      $region20: #{ribonanzanet_forward.39} parent=11 // pred_fallthru
        _
      // Predicated region
      $region21: #{ribonanzanet_forward.39} parent=11 // pred_check
        %p168 = pneg %p100
      $region22: #{ribonanzanet_forward.39} parent=11 // pred_check_branch
        %170 = sbr.rel (%p168) target = $region24
      $region23: #{ribonanzanet_forward.39} parent=11 // pred_region
        _
      $region24: #{ribonanzanet_forward.39} parent=11 // pred_fallthru
        _
      // Predicated region
      $region25: #{ribonanzanet_forward.39} parent=11 // pred_check
        %p171 = pneg %p121
      $region26: #{ribonanzanet_forward.39} parent=11 // pred_check_branch
        %173 = sbr.rel (%p171) target = $region28
      $region27: #{ribonanzanet_forward.39} parent=11 // pred_region
        _
      $region28: #{ribonanzanet_forward.39} parent=11 // pred_fallthru
        _
    $region12: #{ribonanzanet_forward.39} parent=5 // pred_fallthru
      _
    %p174 = scmp.lt.s32.totalorder %s11, 2
    // Predicated region
    $region29: #{ribonanzanet_forward.39} parent=5 // pred_check
      %p175 = pneg %p174
    $region30: #{ribonanzanet_forward.39} parent=5 // pred_check_branch
      %177 = sbr.rel (%p175) target = $region32
    $region31: #{ribonanzanet_forward.39} parent=5 // pred_region
      // Predicated region
      $region33: #{ribonanzanet_forward.39} parent=31 // pred_check
        %p178 = pneg %p31
      $region34: #{ribonanzanet_forward.39} parent=31 // pred_check_branch
        %180 = sbr.rel (%p178) target = $region36
      $region35: #{ribonanzanet_forward.39} parent=31 // pred_region
        %p181 = scmp.lt.s32.totalorder %s11, 1
        %s182 = scalar_select %p181, %s11, 1
        %s183 = smul.addr %s182, 2
        %s184 = smul.addr %s183, 8
        %s185 = scalar_lea.vmem %s0, %s184
      $region36: #{ribonanzanet_forward.39} parent=31 // pred_fallthru
        _
    $region32: #{ribonanzanet_forward.39} parent=5 // pred_fallthru
      _
    %p186 = scmp.le.s32.totalorder 1, %s11
    %p187 = scmp.lt.s32.totalorder %s11, 3
    %p188 = pnand %p186, %p187
    %p189 = pneg %p188
    // Predicated region
    $region37: #{ribonanzanet_forward.39} parent=5 // pred_check
      _
    $region38: #{ribonanzanet_forward.39} parent=5 // pred_check_branch
      %191 = sbr.rel (%p188) target = $region40
    $region39: #{ribonanzanet_forward.39} parent=5 // pred_region
      %s192 = ssub.s32 %s11, 1
      %p193 = scmp.lt.s32.totalorder %s16, 1
      %s194 = scalar_select %p193, %s16, 1
      %s195 = smul.addr %s194, 2
      %s196 = smul.addr %s195, 8
      %s197 = scalar_lea.vmem %s0, %s196
      %p198 = pneg %p37
      %p199 = pneg %p34
      %p200 = pneg %p58
      %p201 = pneg %p55
      %p202 = pneg %p79
      %p203 = pneg %p76
      %p204 = pneg %p100
      %p205 = pneg %p97
      %p206 = pneg %p121
      %p207 = pneg %p118
      %p208 = pneg %p147
      %p209 = pneg %p144
      %p210 = scmp.lt.s32.totalorder %s16, 1
      %s211 = scalar_select %p210, %s16, 1
      %s212 = smul.addr %s211, 8
      %s213 = scalar_lea.vmem %s5, %s212
      %p214 = scmp.lt.s32.totalorder %s16, 1
      %s215 = scalar_select %p214, %s16, 1
      %s216 = smul.addr %s215, 2
      %s217 = smul.addr %s216, 8
      %s218 = scalar_lea.vmem %s0, %s217
      %p219 = scmp.lt.s32.totalorder %s16, 1
      %s220 = scalar_select %p219, %s16, 1
      %s221 = smul.addr %s220, 8
      %s222 = scalar_lea.vmem %s5, %s221
      %v224 = vld [vmem:[%s218] sm:$0xff]
      %v225 = vpack.c.bf16 %v224, %v224
      %v226 = vld [vmem:[%s1] sm:$0xf]
      %v227 = vld [vmem:[%s1 + $0x4] sm:$0xf]
      %v228 = vld [vmem:[%s1 + $0x8] sm:$0xf]
      %v229 = vld [vmem:[%s1 + $0xc] sm:$0xf]
      %v230 = vld [vmem:[%s218 + $0x1] sm:$0xff]
      %v231 = vpack.c.bf16 %v230, %v230
      %s232 = scalar_lea.vmem %s1, 16
      %v233 = vld [vmem:[%s232] sm:$0xf]
      %v234 = vld [vmem:[%s232 + $0x4] sm:$0xf]
      %v235 = vld [vmem:[%s232 + $0x8] sm:$0xf]
      %v236 = vld [vmem:[%s232 + $0xc] sm:$0xf]
      %v241 = vunpack.c.l.b16 %v233
      %v242 = vunpack.c.l.b16 %v234
      %v243 = vunpack.c.l.b16 %v235
      %v244 = vunpack.c.l.b16 %v236
      %v245 = vpack.c.b16 %v242, %v241
      %v246 = vpack.c.b16 %v244, %v243
      %vm249 = vcmask 261120
      %v251 = vsel %vm249, %v231, 0
      %253 = vmatpush.bf16.msra.mxu0 0
      %254 = vmatpush.bf16.msra.mxu0 0
      %255 = vmatpush.bf16.msra.mxu0 0
      %256 = vmatpush.bf16.msra.mxu0 0
      %257 = vmatpush.bf16.msra.mxu0 0
      %258 = vmatpush.bf16.msra.mxu0 0
      %259 = vmatpush.bf16.msra.mxu0 %v246
      %260 = vmatpush.bf16.msra.mxu0 %v245
      %261 = vmatmul.bf16.gmra.mxu0 %v251
      %v262 = vpop.f32.mrf.mxu0
      %v263 = vadd.f32 0.0, %v262
      %v264 = vpop.f32.mrf.mxu0
      %265 = vdwg.mxu0
      %v270 = vunpack.c.l.b16 %v226
      %v271 = vunpack.c.l.b16 %v227
      %v272 = vunpack.c.l.b16 %v228
      %v273 = vunpack.c.l.b16 %v229
      %v274 = vpack.c.b16 %v271, %v270
      %v275 = vpack.c.b16 %v273, %v272
      %v279 = vsel %vm249, %v225, 0
      %281 = vmatpush.bf16.msra.mxu0 0
      %282 = vmatpush.bf16.msra.mxu0 0
      %283 = vmatpush.bf16.msra.mxu0 0
      %284 = vmatpush.bf16.msra.mxu0 0
      %285 = vmatpush.bf16.msra.mxu0 0
      %286 = vmatpush.bf16.msra.mxu0 0
      %287 = vmatpush.bf16.msra.mxu0 %v275
      %288 = vmatpush.bf16.msra.mxu0 %v274
      %289 = vmatmul.bf16.gmra.mxu0 %v279
      %v290 = vpop.f32.mrf.mxu0
      %v291 = vadd.f32 %v263, %v290
      %v292 = vpop.f32.mrf.mxu0
      %293 = vdwg.mxu0
      %v294 = vld [vmem:[%s218 + $0x2] sm:$0xff]
      %v295 = vpack.c.bf16 %v294, %v294
      %s296 = scalar_lea.vmem %s1, 32
      %v297 = vld [vmem:[%s296] sm:$0xf]
      %v298 = vld [vmem:[%s296 + $0x4] sm:$0xf]
      %v299 = vld [vmem:[%s296 + $0x8] sm:$0xf]
      %v300 = vld [vmem:[%s296 + $0xc] sm:$0xf]
      %v305 = vunpack.c.l.b16 %v297
      %v306 = vunpack.c.l.b16 %v298
      %v307 = vunpack.c.l.b16 %v299
      %v308 = vunpack.c.l.b16 %v300
      %v309 = vpack.c.b16 %v306, %v305
      %v310 = vpack.c.b16 %v308, %v307
      %v314 = vsel %vm249, %v295, 0
      %316 = vmatpush.bf16.msra.mxu0 0
      %317 = vmatpush.bf16.msra.mxu0 0
      %318 = vmatpush.bf16.msra.mxu0 0
      %319 = vmatpush.bf16.msra.mxu0 0
      %320 = vmatpush.bf16.msra.mxu0 0
      %321 = vmatpush.bf16.msra.mxu0 0
      %322 = vmatpush.bf16.msra.mxu0 %v310
      %323 = vmatpush.bf16.msra.mxu0 %v309
      %324 = vmatmul.bf16.gmra.mxu0 %v314
      %v325 = vpop.f32.mrf.mxu0
      %v326 = vadd.f32 0.0, %v325
      %v327 = vpop.f32.mrf.mxu0
      %328 = vdwg.mxu0
      %v329 = vadd.f32 %v291, %v326
      %v330 = vld [vmem:[%s2] sm:$0x1]
      %v332 = vperm.slane %v330, 0
      %v334 = vadd.f32 %v329, %v332
      %v335 = vadd.f32 %v230, %v334
      %v336 = vsel %vm249, %v335, 0.0
      %337 = vadd.xlane.f32.xlu0 %v336
      %v338 = vpop.xlane.xlu0 %337
      %v339 = vrcp.pop 32.0
      %v340 = vmul.f32 32.0, %v339
      %v341 = vsub.f32 1.0, %v340
      %v342 = vmul.f32 %v339, %v341
      %v343 = vadd.f32 %v339, %v342
      %vm344 = vweird.f32 %v339
      %v345 = vsel %vm344, %v339, %v343
      %v346 = vmul.f32 %v338, %v345
      %v347 = vsub.f32 %v335, %v346
      %v348 = vmul.f32 %v347, %v347
      %v349 = vsel %vm249, %v348, 0.0
      %350 = vadd.xlane.f32.xlu0 %v349
      %v351 = vpop.xlane.xlu0 %350
      %v352 = vmul.f32 %v351, %v345
      %v353 = vadd.f32 %v352, 1e-05
      %v354 = vrsqrt.pop %v353
      %v355 = vmul.f32 %v354, %v353
      %v356 = vmul.f32 %v355, %v354
      %v357 = vmul.f32 0.5, %v356
      %v358 = vsub.f32 1.5, %v357
      %v359 = vmul.f32 %v354, %v358
      %vm360 = vweird.f32 %v353
      %vm361 = vweird.f32 %v354
      %vm362 = vmor %vm360, %vm361
      %v363 = vsel %vm362, %v354, %v359
      %v364 = vmul.f32 %v347, %v363
      %v365 = vld [vmem:[%s3] sm:$0x1]
      %v367 = vperm.slane %v365, 0
      %v369 = vmul.f32 %v364, %v367
      %v370 = vld [vmem:[%s4] sm:$0x1]
      %v372 = vperm.slane %v370, 0
      %v374 = vadd.f32 %v369, %v372
      %375 = vst.msk [vmem:[%s222] sm:$0xff] %vm249, %v374
      %p376 = scmp.lt.s32.totalorder %s16, 1
      %s377 = scalar_select %p376, %s16, 1
      %s378 = smul.addr %s377, 8
      %s379 = scalar_lea.vmem %s5, %s378
      // Predicated region
      $region41: #{ribonanzanet_forward.39} parent=39 // pred_check
        %p380 = pneg %p144
      $region42: #{ribonanzanet_forward.39} parent=39 // pred_check_branch
        %382 = sbr.rel (%p380) target = $region44
      $region43: #{ribonanzanet_forward.39} parent=39 // pred_region
        _
      $region44: #{ribonanzanet_forward.39} parent=39 // pred_fallthru
        _
    $region40: #{ribonanzanet_forward.39} parent=5 // pred_fallthru
      _
    %p383 = scmp.le.s32.totalorder 2, %s11
    // Predicated region
    $region45: #{ribonanzanet_forward.39} parent=5 // pred_check
      %p384 = pneg %p383
    $region46: #{ribonanzanet_forward.39} parent=5 // pred_check_branch
      %386 = sbr.rel (%p384) target = $region48
    $region47: #{ribonanzanet_forward.39} parent=5 // pred_region
      %s387 = ssub.s32 %s11, 2
      // Predicated region
      $region49: #{ribonanzanet_forward.39} parent=47 // pred_check
        %p388 = pneg %p150
      $region50: #{ribonanzanet_forward.39} parent=47 // pred_check_branch
        %390 = sbr.rel (%p388) target = $region52
      $region51: #{ribonanzanet_forward.39} parent=47 // pred_region
        %p391 = scmp.lt.s32.totalorder %s17, 1
        %s392 = scalar_select %p391, %s17, 1
        %s393 = smul.addr %s392, 8
        %s394 = scalar_lea.vmem %s5, %s393
      $region52: #{ribonanzanet_forward.39} parent=47 // pred_fallthru
        _
    $region48: #{ribonanzanet_forward.39} parent=5 // pred_fallthru
      _
  $region6: #{ribonanzanet_forward.39} parent=0 // loop_footer
    %s15 = sadd.s32 1, %s11
  $region7: #{ribonanzanet_forward.39} parent=0 // loop_footer_branch
    %10 = sbr.rel target = $region3
  $region8: #{ribonanzanet_forward.39} parent=0 // loop_exit
    _

// kernel: ribonanzanet_forward.43
$region0: #{ribonanzanet_forward.43}
  #allocation0 [shape = 'u32[]', space=smem, size = 0x4, offset = 0x4, fixed_abs, tag = 'smem constant byte address 0x4 - core index']
  #allocation1 [shape = 'u32[72,128]{1,0:T(1,128)}', space=vmem, size = 0x9000, scoped, tag = 'internal scratch']
  %s0 = inlined_call_operand.vmem [shape: bf16[16,32], index: 0, kind: input, shape index: {}]
  %s1 = inlined_call_operand.vmem [shape: bf16[32,32], index: 1, kind: input, shape index: {}]
  %s2 = inlined_call_operand.vmem [shape: f32[1,32], index: 2, kind: input, shape index: {}]
  %s3 = inlined_call_operand.vmem [shape: f32[16,32], index: 3, kind: output, shape index: {}]
  %s4 = sld [smem:[#allocation0]]
  $region45: #{ribonanzanet_forward.43} parent=0
    _
  %s6 = ssub.s32 1, %s4
  %s7 = scalar_select 0, %s6, %s4
  loop: start=0, step=1, limit=4
  $region2: #{ribonanzanet_forward.43} parent=0 // loop_pre_header
    _
  $region3: #{ribonanzanet_forward.43} parent=0 // loop_header
    %s9 = sphi 0, %s13
    %p10 = scmp.ge.s32.totalorder %s9, 4
    %s19 = sphi 0, %s21
    %s22 = sphi 0, %s19
    %s23 = sphi 0, %s22
    %s39 = sphi 0, %s23
    %s43 = sphi 0, %s43
    %s45 = sphi 0, %s43
    %s46 = sphi 0, %s45
    %s60 = sphi 0, %s46
    %s64 = sphi 0, %s64
    %s66 = sphi 0, %s64
    %s67 = sphi 0, %s66
    %s81 = sphi 0, %s67
    %s87 = sphi 0, %s89
    %s90 = sphi 0, %s87
    %s91 = sphi 0, %s90
    %s107 = sphi 0, %s91
  $region4: #{ribonanzanet_forward.43} parent=0 // loop_header_branch
    %12 = sbr.rel (%p10) target = $region8
  $region5: #{ribonanzanet_forward.43} parent=0 // loop_body
    %s14 = ssub.s32 %s9, 1
    %s15 = ssub.s32 %s9, 2
    %s16 = sadd.s32 %s9, 1
    %s17 = ssub.s32 %s9, %s16
    %p18 = scmp.eq.s32.totalorder %s17, 0
    %s20 = sadd.s32 %s19, 1
    %s21 = scalar_select %p18, %s19, %s20
    %p24 = pneg %p18
    %p25 = scmp.eq.s32.totalorder %s9, 1
    %p26 = por %p24, %p25
    %p27 = scmp.ne.s32.totalorder %s19, %s22
    %p28 = scmp.eq.s32.totalorder %s9, 0
    %p29 = por %p27, %p28
    %p30 = scmp.ne.s32.totalorder %s19, %s22
    %p31 = scmp.eq.s32.totalorder %s14, 1
    %p32 = por %p30, %p31
    %p33 = scmp.ne.s32.totalorder %s22, %s23
    %p34 = scmp.eq.s32.totalorder %s14, 0
    %p35 = por %p33, %p34
    %p36 = scmp.ne.s32.totalorder %s22, %s23
    %p37 = scmp.eq.s32.totalorder %s15, 1
    %p38 = por %p36, %p37
    %p40 = scmp.ne.s32.totalorder %s23, %s39
    %p41 = scmp.eq.s32.totalorder %s15, 0
    %p42 = por %p40, %p41
    %s44 = sadd.s32 %s43, 1
    %p47 = scmp.eq.s32.totalorder %s9, 1
    %p48 = scmp.ne.s32.totalorder %s43, %s45
    %p49 = scmp.eq.s32.totalorder %s9, 0
    %p50 = por %p48, %p49
    %p51 = scmp.ne.s32.totalorder %s43, %s45
    %p52 = scmp.eq.s32.totalorder %s14, 1
    %p53 = por %p51, %p52
    %p54 = scmp.ne.s32.totalorder %s45, %s46
    %p55 = scmp.eq.s32.totalorder %s14, 0
    %p56 = por %p54, %p55
    %p57 = scmp.ne.s32.totalorder %s45, %s46
    %p58 = scmp.eq.s32.totalorder %s15, 1
    %p59 = por %p57, %p58
    %p61 = scmp.ne.s32.totalorder %s46, %s60
    %p62 = scmp.eq.s32.totalorder %s15, 0
    %p63 = por %p61, %p62
    %s65 = sadd.s32 %s64, 1
    %p68 = scmp.eq.s32.totalorder %s9, 1
    %p69 = scmp.ne.s32.totalorder %s64, %s66
    %p70 = scmp.eq.s32.totalorder %s9, 0
    %p71 = por %p69, %p70
    %p72 = scmp.ne.s32.totalorder %s64, %s66
    %p73 = scmp.eq.s32.totalorder %s14, 1
    %p74 = por %p72, %p73
    %p75 = scmp.ne.s32.totalorder %s66, %s67
    %p76 = scmp.eq.s32.totalorder %s14, 0
    %p77 = por %p75, %p76
    %p78 = scmp.ne.s32.totalorder %s66, %s67
    %p79 = scmp.eq.s32.totalorder %s15, 1
    %p80 = por %p78, %p79
    %p82 = scmp.ne.s32.totalorder %s67, %s81
    %p83 = scmp.eq.s32.totalorder %s15, 0
    %p84 = por %p82, %p83
    %s85 = ssub.s32 %s9, %s16
    %p86 = scmp.eq.s32.totalorder %s85, 0
    %s88 = sadd.s32 %s87, 1
    %s89 = scalar_select %p86, %s87, %s88
    %p92 = pneg %p86
    %p93 = scmp.eq.s32.totalorder %s9, 1
    %p94 = por %p92, %p93
    %p95 = scmp.ne.s32.totalorder %s87, %s90
    %p96 = scmp.eq.s32.totalorder %s9, 0
    %p97 = por %p95, %p96
    %p98 = scmp.ne.s32.totalorder %s87, %s90
    %p99 = scmp.eq.s32.totalorder %s14, 1
    %p100 = por %p98, %p99
    %p101 = scmp.ne.s32.totalorder %s90, %s91
    %p102 = scmp.eq.s32.totalorder %s14, 0
    %p103 = por %p101, %p102
    %p104 = scmp.ne.s32.totalorder %s90, %s91
    %p105 = scmp.eq.s32.totalorder %s15, 1
    %p106 = por %p104, %p105
    %p108 = scmp.ne.s32.totalorder %s91, %s107
    %p109 = scmp.eq.s32.totalorder %s15, 0
    %p110 = por %p108, %p109
    %p111 = scmp.le.s32.totalorder 1, %s9
    %p112 = scmp.lt.s32.totalorder %s9, 3
    %p113 = pnand %p111, %p112
    %p114 = pneg %p113
    // Predicated region
    $region9: #{ribonanzanet_forward.43} parent=5 // pred_check
      _
    $region10: #{ribonanzanet_forward.43} parent=5 // pred_check_branch
      %116 = sbr.rel (%p113) target = $region12
    $region11: #{ribonanzanet_forward.43} parent=5 // pred_region
      %s117 = ssub.s32 %s9, 1
      // Predicated region
      $region13: #{ribonanzanet_forward.43} parent=11 // pred_check
        %p118 = pneg %p56
      $region14: #{ribonanzanet_forward.43} parent=11 // pred_check_branch
        %120 = sbr.rel (%p118) target = $region16
      $region15: #{ribonanzanet_forward.43} parent=11 // pred_region
        _
      $region16: #{ribonanzanet_forward.43} parent=11 // pred_fallthru
        _
      // Predicated region
      $region17: #{ribonanzanet_forward.43} parent=11 // pred_check
        %p121 = pneg %p77
      $region18: #{ribonanzanet_forward.43} parent=11 // pred_check_branch
        %123 = sbr.rel (%p121) target = $region20
      $region19: #{ribonanzanet_forward.43} parent=11 // pred_region
        _
      $region20: #{ribonanzanet_forward.43} parent=11 // pred_fallthru
        _
    $region12: #{ribonanzanet_forward.43} parent=5 // pred_fallthru
      _
    %p124 = scmp.lt.s32.totalorder %s9, 2
    // Predicated region
    $region21: #{ribonanzanet_forward.43} parent=5 // pred_check
      %p125 = pneg %p124
    $region22: #{ribonanzanet_forward.43} parent=5 // pred_check_branch
      %127 = sbr.rel (%p125) target = $region24
    $region23: #{ribonanzanet_forward.43} parent=5 // pred_region
      // Predicated region
      $region25: #{ribonanzanet_forward.43} parent=23 // pred_check
        %p128 = pneg %p29
      $region26: #{ribonanzanet_forward.43} parent=23 // pred_check_branch
        %130 = sbr.rel (%p128) target = $region28
      $region27: #{ribonanzanet_forward.43} parent=23 // pred_region
        %p131 = scmp.lt.s32.totalorder %s9, 1
        %s132 = scalar_select %p131, %s9, 1
        %s133 = smul.addr %s132, 4
        %s134 = scalar_lea.vmem %s0, %s133
      $region28: #{ribonanzanet_forward.43} parent=23 // pred_fallthru
        _
    $region24: #{ribonanzanet_forward.43} parent=5 // pred_fallthru
      _
    %p135 = scmp.le.s32.totalorder 1, %s9
    %p136 = scmp.lt.s32.totalorder %s9, 3
    %p137 = pnand %p135, %p136
    %p138 = pneg %p137
    // Predicated region
    $region29: #{ribonanzanet_forward.43} parent=5 // pred_check
      _
    $region30: #{ribonanzanet_forward.43} parent=5 // pred_check_branch
      %140 = sbr.rel (%p137) target = $region32
    $region31: #{ribonanzanet_forward.43} parent=5 // pred_region
      %s141 = ssub.s32 %s9, 1
      %p142 = scmp.lt.s32.totalorder %s14, 1
      %s143 = scalar_select %p142, %s14, 1
      %s144 = smul.addr %s143, 4
      %s145 = scalar_lea.vmem %s0, %s144
      %p146 = pneg %p35
      %p147 = pneg %p32
      %p148 = pneg %p56
      %p149 = pneg %p53
      %p150 = pneg %p77
      %p151 = pneg %p74
      %p152 = pneg %p103
      %p153 = pneg %p100
      %p154 = scmp.lt.s32.totalorder %s14, 1
      %s155 = scalar_select %p154, %s14, 1
      %s156 = smul.addr %s155, 8
      %s157 = scalar_lea.vmem %s3, %s156
      %p158 = scmp.lt.s32.totalorder %s14, 1
      %s159 = scalar_select %p158, %s14, 1
      %s160 = smul.addr %s159, 4
      %s161 = scalar_lea.vmem %s0, %s160
      %p162 = scmp.lt.s32.totalorder %s14, 1
      %s163 = scalar_select %p162, %s14, 1
      %s164 = smul.addr %s163, 8
      %s165 = scalar_lea.vmem %s3, %s164
      %v167 = vld [vmem:[%s161] sm:$0xf]
      %v168 = vld [vmem:[%s1] sm:$0xf]
      %v169 = vld [vmem:[%s1 + $0x4] sm:$0xf]
      %v170 = vld [vmem:[%s1 + $0x8] sm:$0xf]
      %v171 = vld [vmem:[%s1 + $0xc] sm:$0xf]
      %v172 = vld [vmem:[%s2] sm:$0x1]
      %v174 = vperm.slane %v172, 0
      %v180 = vunpack.c.l.b16 %v168
      %v181 = vunpack.c.l.b16 %v169
      %v182 = vunpack.c.l.b16 %v170
      %v183 = vunpack.c.l.b16 %v171
      %v184 = vpack.c.b16 %v181, %v180
      %v185 = vpack.c.b16 %v183, %v182
      %vm188 = vcmask 261120
      %v190 = vsel %vm188, %v167, 0
      %192 = vmatpush.bf16.msra.mxu0 0
      %193 = vmatpush.bf16.msra.mxu0 0
      %194 = vmatpush.bf16.msra.mxu0 0
      %195 = vmatpush.bf16.msra.mxu0 0
      %196 = vmatpush.bf16.msra.mxu0 0
      %197 = vmatpush.bf16.msra.mxu0 0
      %198 = vmatpush.bf16.msra.mxu0 %v185
      %199 = vmatpush.bf16.msra.mxu0 %v184
      %200 = vmatmul.bf16.gmra.mxu0 %v190
      %v201 = vpop.f32.mrf.mxu0
      %v202 = vadd.f32 %v174, %v201
      %v203 = vpop.f32.mrf.mxu0
      %204 = vdwg.mxu0
      %205 = vst.msk [vmem:[%s165] sm:$0xff] %vm188, %v202
      %p206 = scmp.lt.s32.totalorder %s14, 1
      %s207 = scalar_select %p206, %s14, 1
      %s208 = smul.addr %s207, 8
      %s209 = scalar_lea.vmem %s3, %s208
      // Predicated region
      $region33: #{ribonanzanet_forward.43} parent=31 // pred_check
        %p210 = pneg %p100
      $region34: #{ribonanzanet_forward.43} parent=31 // pred_check_branch
        %212 = sbr.rel (%p210) target = $region36
      $region35: #{ribonanzanet_forward.43} parent=31 // pred_region
        _
      $region36: #{ribonanzanet_forward.43} parent=31 // pred_fallthru
        _
    $region32: #{ribonanzanet_forward.43} parent=5 // pred_fallthru
      _
    %p213 = scmp.le.s32.totalorder 2, %s9
    // Predicated region
    $region37: #{ribonanzanet_forward.43} parent=5 // pred_check
      %p214 = pneg %p213
    $region38: #{ribonanzanet_forward.43} parent=5 // pred_check_branch
      %216 = sbr.rel (%p214) target = $region40
    $region39: #{ribonanzanet_forward.43} parent=5 // pred_region
      %s217 = ssub.s32 %s9, 2
      // Predicated region
      $region41: #{ribonanzanet_forward.43} parent=39 // pred_check
        %p218 = pneg %p106
      $region42: #{ribonanzanet_forward.43} parent=39 // pred_check_branch
        %220 = sbr.rel (%p218) target = $region44
      $region43: #{ribonanzanet_forward.43} parent=39 // pred_region
        %p221 = scmp.lt.s32.totalorder %s15, 1
        %s222 = scalar_select %p221, %s15, 1
        %s223 = smul.addr %s222, 8
        %s224 = scalar_lea.vmem %s3, %s223
      $region44: #{ribonanzanet_forward.43} parent=39 // pred_fallthru
        _
    $region40: #{ribonanzanet_forward.43} parent=5 // pred_fallthru
      _
  $region6: #{ribonanzanet_forward.43} parent=0 // loop_footer
    %s13 = sadd.s32 1, %s9
  $region7: #{ribonanzanet_forward.43} parent=0 // loop_footer_branch
    %8 = sbr.rel target = $region3
  $region8: #{ribonanzanet_forward.43} parent=0 // loop_exit
    _

// kernel: ribonanzanet_forward.44
$region0: #{ribonanzanet_forward.44}
  #allocation0 [shape = 'u32[]', space=smem, size = 0x4, offset = 0x4, fixed_abs, tag = 'smem constant byte address 0x4 - core index']
  #allocation1 [shape = 'u32[72,128]{1,0:T(1,128)}', space=vmem, size = 0x9000, scoped, tag = 'internal scratch']
  %s0 = inlined_call_operand.vmem [shape: f32[16,32], index: 0, kind: input, shape index: {}]
  %s1 = inlined_call_operand.vmem [shape: f32[1,32], index: 1, kind: input, shape index: {}]
  %s2 = inlined_call_operand.vmem [shape: f32[1,32], index: 2, kind: input, shape index: {}]
  %s3 = inlined_call_operand.vmem [shape: f32[16,32], index: 3, kind: output, shape index: {}]
  %s4 = sld [smem:[#allocation0]]
  $region45: #{ribonanzanet_forward.44} parent=0
    _
  %s6 = ssub.s32 1, %s4
  %s7 = scalar_select 0, %s6, %s4
  loop: start=0, step=1, limit=4
  $region2: #{ribonanzanet_forward.44} parent=0 // loop_pre_header
    _
  $region3: #{ribonanzanet_forward.44} parent=0 // loop_header
    %s9 = sphi 0, %s13
    %p10 = scmp.ge.s32.totalorder %s9, 4
    %s19 = sphi 0, %s21
    %s22 = sphi 0, %s19
    %s23 = sphi 0, %s22
    %s39 = sphi 0, %s23
    %s43 = sphi 0, %s43
    %s45 = sphi 0, %s43
    %s46 = sphi 0, %s45
    %s60 = sphi 0, %s46
    %s64 = sphi 0, %s64
    %s66 = sphi 0, %s64
    %s67 = sphi 0, %s66
    %s81 = sphi 0, %s67
    %s87 = sphi 0, %s89
    %s90 = sphi 0, %s87
    %s91 = sphi 0, %s90
    %s107 = sphi 0, %s91
  $region4: #{ribonanzanet_forward.44} parent=0 // loop_header_branch
    %12 = sbr.rel (%p10) target = $region8
  $region5: #{ribonanzanet_forward.44} parent=0 // loop_body
    %s14 = ssub.s32 %s9, 1
    %s15 = ssub.s32 %s9, 2
    %s16 = sadd.s32 %s9, 1
    %s17 = ssub.s32 %s9, %s16
    %p18 = scmp.eq.s32.totalorder %s17, 0
    %s20 = sadd.s32 %s19, 1
    %s21 = scalar_select %p18, %s19, %s20
    %p24 = pneg %p18
    %p25 = scmp.eq.s32.totalorder %s9, 1
    %p26 = por %p24, %p25
    %p27 = scmp.ne.s32.totalorder %s19, %s22
    %p28 = scmp.eq.s32.totalorder %s9, 0
    %p29 = por %p27, %p28
    %p30 = scmp.ne.s32.totalorder %s19, %s22
    %p31 = scmp.eq.s32.totalorder %s14, 1
    %p32 = por %p30, %p31
    %p33 = scmp.ne.s32.totalorder %s22, %s23
    %p34 = scmp.eq.s32.totalorder %s14, 0
    %p35 = por %p33, %p34
    %p36 = scmp.ne.s32.totalorder %s22, %s23
    %p37 = scmp.eq.s32.totalorder %s15, 1
    %p38 = por %p36, %p37
    %p40 = scmp.ne.s32.totalorder %s23, %s39
    %p41 = scmp.eq.s32.totalorder %s15, 0
    %p42 = por %p40, %p41
    %s44 = sadd.s32 %s43, 1
    %p47 = scmp.eq.s32.totalorder %s9, 1
    %p48 = scmp.ne.s32.totalorder %s43, %s45
    %p49 = scmp.eq.s32.totalorder %s9, 0
    %p50 = por %p48, %p49
    %p51 = scmp.ne.s32.totalorder %s43, %s45
    %p52 = scmp.eq.s32.totalorder %s14, 1
    %p53 = por %p51, %p52
    %p54 = scmp.ne.s32.totalorder %s45, %s46
    %p55 = scmp.eq.s32.totalorder %s14, 0
    %p56 = por %p54, %p55
    %p57 = scmp.ne.s32.totalorder %s45, %s46
    %p58 = scmp.eq.s32.totalorder %s15, 1
    %p59 = por %p57, %p58
    %p61 = scmp.ne.s32.totalorder %s46, %s60
    %p62 = scmp.eq.s32.totalorder %s15, 0
    %p63 = por %p61, %p62
    %s65 = sadd.s32 %s64, 1
    %p68 = scmp.eq.s32.totalorder %s9, 1
    %p69 = scmp.ne.s32.totalorder %s64, %s66
    %p70 = scmp.eq.s32.totalorder %s9, 0
    %p71 = por %p69, %p70
    %p72 = scmp.ne.s32.totalorder %s64, %s66
    %p73 = scmp.eq.s32.totalorder %s14, 1
    %p74 = por %p72, %p73
    %p75 = scmp.ne.s32.totalorder %s66, %s67
    %p76 = scmp.eq.s32.totalorder %s14, 0
    %p77 = por %p75, %p76
    %p78 = scmp.ne.s32.totalorder %s66, %s67
    %p79 = scmp.eq.s32.totalorder %s15, 1
    %p80 = por %p78, %p79
    %p82 = scmp.ne.s32.totalorder %s67, %s81
    %p83 = scmp.eq.s32.totalorder %s15, 0
    %p84 = por %p82, %p83
    %s85 = ssub.s32 %s9, %s16
    %p86 = scmp.eq.s32.totalorder %s85, 0
    %s88 = sadd.s32 %s87, 1
    %s89 = scalar_select %p86, %s87, %s88
    %p92 = pneg %p86
    %p93 = scmp.eq.s32.totalorder %s9, 1
    %p94 = por %p92, %p93
    %p95 = scmp.ne.s32.totalorder %s87, %s90
    %p96 = scmp.eq.s32.totalorder %s9, 0
    %p97 = por %p95, %p96
    %p98 = scmp.ne.s32.totalorder %s87, %s90
    %p99 = scmp.eq.s32.totalorder %s14, 1
    %p100 = por %p98, %p99
    %p101 = scmp.ne.s32.totalorder %s90, %s91
    %p102 = scmp.eq.s32.totalorder %s14, 0
    %p103 = por %p101, %p102
    %p104 = scmp.ne.s32.totalorder %s90, %s91
    %p105 = scmp.eq.s32.totalorder %s15, 1
    %p106 = por %p104, %p105
    %p108 = scmp.ne.s32.totalorder %s91, %s107
    %p109 = scmp.eq.s32.totalorder %s15, 0
    %p110 = por %p108, %p109
    %p111 = scmp.le.s32.totalorder 1, %s9
    %p112 = scmp.lt.s32.totalorder %s9, 3
    %p113 = pnand %p111, %p112
    %p114 = pneg %p113
    // Predicated region
    $region9: #{ribonanzanet_forward.44} parent=5 // pred_check
      _
    $region10: #{ribonanzanet_forward.44} parent=5 // pred_check_branch
      %116 = sbr.rel (%p113) target = $region12
    $region11: #{ribonanzanet_forward.44} parent=5 // pred_region
      %s117 = ssub.s32 %s9, 1
      // Predicated region
      $region13: #{ribonanzanet_forward.44} parent=11 // pred_check
        %p118 = pneg %p56
      $region14: #{ribonanzanet_forward.44} parent=11 // pred_check_branch
        %120 = sbr.rel (%p118) target = $region16
      $region15: #{ribonanzanet_forward.44} parent=11 // pred_region
        _
      $region16: #{ribonanzanet_forward.44} parent=11 // pred_fallthru
        _
      // Predicated region
      $region17: #{ribonanzanet_forward.44} parent=11 // pred_check
        %p121 = pneg %p77
      $region18: #{ribonanzanet_forward.44} parent=11 // pred_check_branch
        %123 = sbr.rel (%p121) target = $region20
      $region19: #{ribonanzanet_forward.44} parent=11 // pred_region
        _
      $region20: #{ribonanzanet_forward.44} parent=11 // pred_fallthru
        _
    $region12: #{ribonanzanet_forward.44} parent=5 // pred_fallthru
      _
    %p124 = scmp.lt.s32.totalorder %s9, 2
    // Predicated region
    $region21: #{ribonanzanet_forward.44} parent=5 // pred_check
      %p125 = pneg %p124
    $region22: #{ribonanzanet_forward.44} parent=5 // pred_check_branch
      %127 = sbr.rel (%p125) target = $region24
    $region23: #{ribonanzanet_forward.44} parent=5 // pred_region
      // Predicated region
      $region25: #{ribonanzanet_forward.44} parent=23 // pred_check
        %p128 = pneg %p29
      $region26: #{ribonanzanet_forward.44} parent=23 // pred_check_branch
        %130 = sbr.rel (%p128) target = $region28
      $region27: #{ribonanzanet_forward.44} parent=23 // pred_region
        %p131 = scmp.lt.s32.totalorder %s9, 1
        %s132 = scalar_select %p131, %s9, 1
        %s133 = smul.addr %s132, 8
        %s134 = scalar_lea.vmem %s0, %s133
      $region28: #{ribonanzanet_forward.44} parent=23 // pred_fallthru
        _
    $region24: #{ribonanzanet_forward.44} parent=5 // pred_fallthru
      _
    %p135 = scmp.le.s32.totalorder 1, %s9
    %p136 = scmp.lt.s32.totalorder %s9, 3
    %p137 = pnand %p135, %p136
    %p138 = pneg %p137
    // Predicated region
    $region29: #{ribonanzanet_forward.44} parent=5 // pred_check
      _
    $region30: #{ribonanzanet_forward.44} parent=5 // pred_check_branch
      %140 = sbr.rel (%p137) target = $region32
    $region31: #{ribonanzanet_forward.44} parent=5 // pred_region
      %s141 = ssub.s32 %s9, 1
      %p142 = scmp.lt.s32.totalorder %s14, 1
      %s143 = scalar_select %p142, %s14, 1
      %s144 = smul.addr %s143, 8
      %s145 = scalar_lea.vmem %s0, %s144
      %p146 = pneg %p35
      %p147 = pneg %p32
      %p148 = pneg %p56
      %p149 = pneg %p53
      %p150 = pneg %p77
      %p151 = pneg %p74
      %p152 = pneg %p103
      %p153 = pneg %p100
      %p154 = scmp.lt.s32.totalorder %s14, 1
      %s155 = scalar_select %p154, %s14, 1
      %s156 = smul.addr %s155, 8
      %s157 = scalar_lea.vmem %s3, %s156
      %p158 = scmp.lt.s32.totalorder %s14, 1
      %s159 = scalar_select %p158, %s14, 1
      %s160 = smul.addr %s159, 8
      %s161 = scalar_lea.vmem %s0, %s160
      %p162 = scmp.lt.s32.totalorder %s14, 1
      %s163 = scalar_select %p162, %s14, 1
      %s164 = smul.addr %s163, 8
      %s165 = scalar_lea.vmem %s3, %s164
      %v166 = vld [vmem:[%s161] sm:$0xff]
      %vm167 = vcmask 261120
      %v168 = vsel %vm167, %v166, 0.0
      %169 = vadd.xlane.f32.xlu0 %v168
      %v170 = vpop.xlane.xlu0 %169
      %v171 = vrcp.pop 32.0
      %v172 = vmul.f32 32.0, %v171
      %v173 = vsub.f32 1.0, %v172
      %v174 = vmul.f32 %v171, %v173
      %v175 = vadd.f32 %v171, %v174
      %vm176 = vweird.f32 %v171
      %v177 = vsel %vm176, %v171, %v175
      %v178 = vmul.f32 %v170, %v177
      %v179 = vsub.f32 %v166, %v178
      %v180 = vmul.f32 %v179, %v179
      %v181 = vsel %vm167, %v180, 0.0
      %182 = vadd.xlane.f32.xlu0 %v181
      %v183 = vpop.xlane.xlu0 %182
      %v184 = vmul.f32 %v183, %v177
      %v185 = vadd.f32 %v184, 1e-06
      %v186 = vrsqrt.pop %v185
      %v187 = vmul.f32 %v186, %v185
      %v188 = vmul.f32 %v187, %v186
      %v189 = vmul.f32 0.5, %v188
      %v190 = vsub.f32 1.5, %v189
      %v191 = vmul.f32 %v186, %v190
      %vm192 = vweird.f32 %v185
      %vm193 = vweird.f32 %v186
      %vm194 = vmor %vm192, %vm193
      %v195 = vsel %vm194, %v186, %v191
      %v196 = vmul.f32 %v179, %v195
      %v197 = vld [vmem:[%s1] sm:$0x1]
      %v199 = vperm.slane %v197, 0
      %v201 = vmul.f32 %v196, %v199
      %v202 = vld [vmem:[%s2] sm:$0x1]
      %v204 = vperm.slane %v202, 0
      %v206 = vadd.f32 %v201, %v204
      %207 = vst.msk [vmem:[%s165] sm:$0xff] %vm167, %v206
      %p208 = scmp.lt.s32.totalorder %s14, 1
      %s209 = scalar_select %p208, %s14, 1
      %s210 = smul.addr %s209, 8
      %s211 = scalar_lea.vmem %s3, %s210
      // Predicated region
      $region33: #{ribonanzanet_forward.44} parent=31 // pred_check
        %p212 = pneg %p100
      $region34: #{ribonanzanet_forward.44} parent=31 // pred_check_branch
        %214 = sbr.rel (%p212) target = $region36
      $region35: #{ribonanzanet_forward.44} parent=31 // pred_region
        _
      $region36: #{ribonanzanet_forward.44} parent=31 // pred_fallthru
        _
    $region32: #{ribonanzanet_forward.44} parent=5 // pred_fallthru
      _
    %p215 = scmp.le.s32.totalorder 2, %s9
    // Predicated region
    $region37: #{ribonanzanet_forward.44} parent=5 // pred_check
      %p216 = pneg %p215
    $region38: #{ribonanzanet_forward.44} parent=5 // pred_check_branch
      %218 = sbr.rel (%p216) target = $region40
    $region39: #{ribonanzanet_forward.44} parent=5 // pred_region
      %s219 = ssub.s32 %s9, 2
      // Predicated region
      $region41: #{ribonanzanet_forward.44} parent=39 // pred_check
        %p220 = pneg %p106
      $region42: #{ribonanzanet_forward.44} parent=39 // pred_check_branch
        %222 = sbr.rel (%p220) target = $region44
      $region43: #{ribonanzanet_forward.44} parent=39 // pred_region
        %p223 = scmp.lt.s32.totalorder %s15, 1
        %s224 = scalar_select %p223, %s15, 1
        %s225 = smul.addr %s224, 8
        %s226 = scalar_lea.vmem %s3, %s225
      $region44: #{ribonanzanet_forward.44} parent=39 // pred_fallthru
        _
    $region40: #{ribonanzanet_forward.44} parent=5 // pred_fallthru
      _
  $region6: #{ribonanzanet_forward.44} parent=0 // loop_footer
    %s13 = sadd.s32 1, %s9
  $region7: #{ribonanzanet_forward.44} parent=0 // loop_footer_branch
    %8 = sbr.rel target = $region3
  $region8: #{ribonanzanet_forward.44} parent=0 // loop_exit
    _

// kernel: ribonanzanet_forward.45
$region0: #{ribonanzanet_forward.45}
  #allocation0 [shape = 'u32[]', space=smem, size = 0x4, offset = 0x4, fixed_abs, tag = 'smem constant byte address 0x4 - core index']
  #allocation1 [shape = 'u32[72,128]{1,0:T(1,128)}', space=vmem, size = 0x9000, scoped, tag = 'internal scratch']
  %s0 = inlined_call_operand.vmem [shape: f32[16,32], index: 0, kind: input, shape index: {}]
  %s1 = inlined_call_operand.vmem [shape: f32[1,32], index: 1, kind: input, shape index: {}]
  %s2 = inlined_call_operand.vmem [shape: f32[1,32], index: 2, kind: input, shape index: {}]
  %s3 = inlined_call_operand.vmem [shape: f32[16,32], index: 3, kind: output, shape index: {}]
  %s4 = sld [smem:[#allocation0]]
  $region45: #{ribonanzanet_forward.45} parent=0
    _
  %s6 = ssub.s32 1, %s4
  %s7 = scalar_select 0, %s6, %s4
  loop: start=0, step=1, limit=4
  $region2: #{ribonanzanet_forward.45} parent=0 // loop_pre_header
    _
  $region3: #{ribonanzanet_forward.45} parent=0 // loop_header
    %s9 = sphi 0, %s13
    %p10 = scmp.ge.s32.totalorder %s9, 4
    %s19 = sphi 0, %s21
    %s22 = sphi 0, %s19
    %s23 = sphi 0, %s22
    %s39 = sphi 0, %s23
    %s43 = sphi 0, %s43
    %s45 = sphi 0, %s43
    %s46 = sphi 0, %s45
    %s60 = sphi 0, %s46
    %s64 = sphi 0, %s64
    %s66 = sphi 0, %s64
    %s67 = sphi 0, %s66
    %s81 = sphi 0, %s67
    %s87 = sphi 0, %s89
    %s90 = sphi 0, %s87
    %s91 = sphi 0, %s90
    %s107 = sphi 0, %s91
  $region4: #{ribonanzanet_forward.45} parent=0 // loop_header_branch
    %12 = sbr.rel (%p10) target = $region8
  $region5: #{ribonanzanet_forward.45} parent=0 // loop_body
    %s14 = ssub.s32 %s9, 1
    %s15 = ssub.s32 %s9, 2
    %s16 = sadd.s32 %s9, 1
    %s17 = ssub.s32 %s9, %s16
    %p18 = scmp.eq.s32.totalorder %s17, 0
    %s20 = sadd.s32 %s19, 1
    %s21 = scalar_select %p18, %s19, %s20
    %p24 = pneg %p18
    %p25 = scmp.eq.s32.totalorder %s9, 1
    %p26 = por %p24, %p25
    %p27 = scmp.ne.s32.totalorder %s19, %s22
    %p28 = scmp.eq.s32.totalorder %s9, 0
    %p29 = por %p27, %p28
    %p30 = scmp.ne.s32.totalorder %s19, %s22
    %p31 = scmp.eq.s32.totalorder %s14, 1
    %p32 = por %p30, %p31
    %p33 = scmp.ne.s32.totalorder %s22, %s23
    %p34 = scmp.eq.s32.totalorder %s14, 0
    %p35 = por %p33, %p34
    %p36 = scmp.ne.s32.totalorder %s22, %s23
    %p37 = scmp.eq.s32.totalorder %s15, 1
    %p38 = por %p36, %p37
    %p40 = scmp.ne.s32.totalorder %s23, %s39
    %p41 = scmp.eq.s32.totalorder %s15, 0
    %p42 = por %p40, %p41
    %s44 = sadd.s32 %s43, 1
    %p47 = scmp.eq.s32.totalorder %s9, 1
    %p48 = scmp.ne.s32.totalorder %s43, %s45
    %p49 = scmp.eq.s32.totalorder %s9, 0
    %p50 = por %p48, %p49
    %p51 = scmp.ne.s32.totalorder %s43, %s45
    %p52 = scmp.eq.s32.totalorder %s14, 1
    %p53 = por %p51, %p52
    %p54 = scmp.ne.s32.totalorder %s45, %s46
    %p55 = scmp.eq.s32.totalorder %s14, 0
    %p56 = por %p54, %p55
    %p57 = scmp.ne.s32.totalorder %s45, %s46
    %p58 = scmp.eq.s32.totalorder %s15, 1
    %p59 = por %p57, %p58
    %p61 = scmp.ne.s32.totalorder %s46, %s60
    %p62 = scmp.eq.s32.totalorder %s15, 0
    %p63 = por %p61, %p62
    %s65 = sadd.s32 %s64, 1
    %p68 = scmp.eq.s32.totalorder %s9, 1
    %p69 = scmp.ne.s32.totalorder %s64, %s66
    %p70 = scmp.eq.s32.totalorder %s9, 0
    %p71 = por %p69, %p70
    %p72 = scmp.ne.s32.totalorder %s64, %s66
    %p73 = scmp.eq.s32.totalorder %s14, 1
    %p74 = por %p72, %p73
    %p75 = scmp.ne.s32.totalorder %s66, %s67
    %p76 = scmp.eq.s32.totalorder %s14, 0
    %p77 = por %p75, %p76
    %p78 = scmp.ne.s32.totalorder %s66, %s67
    %p79 = scmp.eq.s32.totalorder %s15, 1
    %p80 = por %p78, %p79
    %p82 = scmp.ne.s32.totalorder %s67, %s81
    %p83 = scmp.eq.s32.totalorder %s15, 0
    %p84 = por %p82, %p83
    %s85 = ssub.s32 %s9, %s16
    %p86 = scmp.eq.s32.totalorder %s85, 0
    %s88 = sadd.s32 %s87, 1
    %s89 = scalar_select %p86, %s87, %s88
    %p92 = pneg %p86
    %p93 = scmp.eq.s32.totalorder %s9, 1
    %p94 = por %p92, %p93
    %p95 = scmp.ne.s32.totalorder %s87, %s90
    %p96 = scmp.eq.s32.totalorder %s9, 0
    %p97 = por %p95, %p96
    %p98 = scmp.ne.s32.totalorder %s87, %s90
    %p99 = scmp.eq.s32.totalorder %s14, 1
    %p100 = por %p98, %p99
    %p101 = scmp.ne.s32.totalorder %s90, %s91
    %p102 = scmp.eq.s32.totalorder %s14, 0
    %p103 = por %p101, %p102
    %p104 = scmp.ne.s32.totalorder %s90, %s91
    %p105 = scmp.eq.s32.totalorder %s15, 1
    %p106 = por %p104, %p105
    %p108 = scmp.ne.s32.totalorder %s91, %s107
    %p109 = scmp.eq.s32.totalorder %s15, 0
    %p110 = por %p108, %p109
    %p111 = scmp.le.s32.totalorder 1, %s9
    %p112 = scmp.lt.s32.totalorder %s9, 3
    %p113 = pnand %p111, %p112
    %p114 = pneg %p113
    // Predicated region
    $region9: #{ribonanzanet_forward.45} parent=5 // pred_check
      _
    $region10: #{ribonanzanet_forward.45} parent=5 // pred_check_branch
      %116 = sbr.rel (%p113) target = $region12
    $region11: #{ribonanzanet_forward.45} parent=5 // pred_region
      %s117 = ssub.s32 %s9, 1
      // Predicated region
      $region13: #{ribonanzanet_forward.45} parent=11 // pred_check
        %p118 = pneg %p56
      $region14: #{ribonanzanet_forward.45} parent=11 // pred_check_branch
        %120 = sbr.rel (%p118) target = $region16
      $region15: #{ribonanzanet_forward.45} parent=11 // pred_region
        _
      $region16: #{ribonanzanet_forward.45} parent=11 // pred_fallthru
        _
      // Predicated region
      $region17: #{ribonanzanet_forward.45} parent=11 // pred_check
        %p121 = pneg %p77
      $region18: #{ribonanzanet_forward.45} parent=11 // pred_check_branch
        %123 = sbr.rel (%p121) target = $region20
      $region19: #{ribonanzanet_forward.45} parent=11 // pred_region
        _
      $region20: #{ribonanzanet_forward.45} parent=11 // pred_fallthru
        _
    $region12: #{ribonanzanet_forward.45} parent=5 // pred_fallthru
      _
    %p124 = scmp.lt.s32.totalorder %s9, 2
    // Predicated region
    $region21: #{ribonanzanet_forward.45} parent=5 // pred_check
      %p125 = pneg %p124
    $region22: #{ribonanzanet_forward.45} parent=5 // pred_check_branch
      %127 = sbr.rel (%p125) target = $region24
    $region23: #{ribonanzanet_forward.45} parent=5 // pred_region
      // Predicated region
      $region25: #{ribonanzanet_forward.45} parent=23 // pred_check
        %p128 = pneg %p29
      $region26: #{ribonanzanet_forward.45} parent=23 // pred_check_branch
        %130 = sbr.rel (%p128) target = $region28
      $region27: #{ribonanzanet_forward.45} parent=23 // pred_region
        %p131 = scmp.lt.s32.totalorder %s9, 1
        %s132 = scalar_select %p131, %s9, 1
        %s133 = smul.addr %s132, 8
        %s134 = scalar_lea.vmem %s0, %s133
      $region28: #{ribonanzanet_forward.45} parent=23 // pred_fallthru
        _
    $region24: #{ribonanzanet_forward.45} parent=5 // pred_fallthru
      _
    %p135 = scmp.le.s32.totalorder 1, %s9
    %p136 = scmp.lt.s32.totalorder %s9, 3
    %p137 = pnand %p135, %p136
    %p138 = pneg %p137
    // Predicated region
    $region29: #{ribonanzanet_forward.45} parent=5 // pred_check
      _
    $region30: #{ribonanzanet_forward.45} parent=5 // pred_check_branch
      %140 = sbr.rel (%p137) target = $region32
    $region31: #{ribonanzanet_forward.45} parent=5 // pred_region
      %s141 = ssub.s32 %s9, 1
      %p142 = scmp.lt.s32.totalorder %s14, 1
      %s143 = scalar_select %p142, %s14, 1
      %s144 = smul.addr %s143, 8
      %s145 = scalar_lea.vmem %s0, %s144
      %p146 = pneg %p35
      %p147 = pneg %p32
      %p148 = pneg %p56
      %p149 = pneg %p53
      %p150 = pneg %p77
      %p151 = pneg %p74
      %p152 = pneg %p103
      %p153 = pneg %p100
      %p154 = scmp.lt.s32.totalorder %s14, 1
      %s155 = scalar_select %p154, %s14, 1
      %s156 = smul.addr %s155, 8
      %s157 = scalar_lea.vmem %s3, %s156
      %p158 = scmp.lt.s32.totalorder %s14, 1
      %s159 = scalar_select %p158, %s14, 1
      %s160 = smul.addr %s159, 8
      %s161 = scalar_lea.vmem %s0, %s160
      %p162 = scmp.lt.s32.totalorder %s14, 1
      %s163 = scalar_select %p162, %s14, 1
      %s164 = smul.addr %s163, 8
      %s165 = scalar_lea.vmem %s3, %s164
      %v166 = vld [vmem:[%s161] sm:$0xff]
      %vm167 = vcmask 261120
      %v168 = vsel %vm167, %v166, 0.0
      %169 = vadd.xlane.f32.xlu0 %v168
      %v170 = vpop.xlane.xlu0 %169
      %v171 = vrcp.pop 32.0
      %v172 = vmul.f32 32.0, %v171
      %v173 = vsub.f32 1.0, %v172
      %v174 = vmul.f32 %v171, %v173
      %v175 = vadd.f32 %v171, %v174
      %vm176 = vweird.f32 %v171
      %v177 = vsel %vm176, %v171, %v175
      %v178 = vmul.f32 %v170, %v177
      %v179 = vsub.f32 %v166, %v178
      %v180 = vmul.f32 %v179, %v179
      %v181 = vsel %vm167, %v180, 0.0
      %182 = vadd.xlane.f32.xlu0 %v181
      %v183 = vpop.xlane.xlu0 %182
      %v184 = vmul.f32 %v183, %v177
      %v185 = vadd.f32 %v184, 1e-05
      %v186 = vrsqrt.pop %v185
      %v187 = vmul.f32 %v186, %v185
      %v188 = vmul.f32 %v187, %v186
      %v189 = vmul.f32 0.5, %v188
      %v190 = vsub.f32 1.5, %v189
      %v191 = vmul.f32 %v186, %v190
      %vm192 = vweird.f32 %v185
      %vm193 = vweird.f32 %v186
      %vm194 = vmor %vm192, %vm193
      %v195 = vsel %vm194, %v186, %v191
      %v196 = vmul.f32 %v179, %v195
      %v197 = vld [vmem:[%s1] sm:$0x1]
      %v199 = vperm.slane %v197, 0
      %v201 = vmul.f32 %v196, %v199
      %v202 = vld [vmem:[%s2] sm:$0x1]
      %v204 = vperm.slane %v202, 0
      %v206 = vadd.f32 %v201, %v204
      %207 = vst.msk [vmem:[%s165] sm:$0xff] %vm167, %v206
      %p208 = scmp.lt.s32.totalorder %s14, 1
      %s209 = scalar_select %p208, %s14, 1
      %s210 = smul.addr %s209, 8
      %s211 = scalar_lea.vmem %s3, %s210
      // Predicated region
      $region33: #{ribonanzanet_forward.45} parent=31 // pred_check
        %p212 = pneg %p100
      $region34: #{ribonanzanet_forward.45} parent=31 // pred_check_branch
        %214 = sbr.rel (%p212) target = $region36
      $region35: #{ribonanzanet_forward.45} parent=31 // pred_region
        _
      $region36: #{ribonanzanet_forward.45} parent=31 // pred_fallthru
        _
    $region32: #{ribonanzanet_forward.45} parent=5 // pred_fallthru
      _
    %p215 = scmp.le.s32.totalorder 2, %s9
    // Predicated region
    $region37: #{ribonanzanet_forward.45} parent=5 // pred_check
      %p216 = pneg %p215
    $region38: #{ribonanzanet_forward.45} parent=5 // pred_check_branch
      %218 = sbr.rel (%p216) target = $region40
    $region39: #{ribonanzanet_forward.45} parent=5 // pred_region
      %s219 = ssub.s32 %s9, 2
      // Predicated region
      $region41: #{ribonanzanet_forward.45} parent=39 // pred_check
        %p220 = pneg %p106
      $region42: #{ribonanzanet_forward.45} parent=39 // pred_check_branch
        %222 = sbr.rel (%p220) target = $region44
      $region43: #{ribonanzanet_forward.45} parent=39 // pred_region
        %p223 = scmp.lt.s32.totalorder %s15, 1
        %s224 = scalar_select %p223, %s15, 1
        %s225 = smul.addr %s224, 8
        %s226 = scalar_lea.vmem %s3, %s225
      $region44: #{ribonanzanet_forward.45} parent=39 // pred_fallthru
        _
    $region40: #{ribonanzanet_forward.45} parent=5 // pred_fallthru
      _
  $region6: #{ribonanzanet_forward.45} parent=0 // loop_footer
    %s13 = sadd.s32 1, %s9
  $region7: #{ribonanzanet_forward.45} parent=0 // loop_footer_branch
    %8 = sbr.rel target = $region3
  $region8: #{ribonanzanet_forward.45} parent=0 // loop_exit
    _

// kernel: ribonanzanet_forward.42
$region0: #{ribonanzanet_forward.42}
  #allocation0 [shape = 'u32[]', space=smem, size = 0x4, offset = 0x4, fixed_abs, tag = 'smem constant byte address 0x4 - core index']
  #allocation1 [shape = 'u32[72,128]{1,0:T(1,128)}', space=vmem, size = 0x9000, scoped, tag = 'internal scratch']
  %s0 = inlined_call_operand.vmem [shape: bf16[2,4,8,8], index: 0, kind: input, shape index: {}]
  %s1 = inlined_call_operand.vmem [shape: bf16[2,4,8,8], index: 1, kind: input, shape index: {}]
  %s2 = inlined_call_operand.vmem [shape: bf16[2,4,8,8], index: 2, kind: input, shape index: {}]
  %s3 = inlined_call_operand.vmem [shape: bf16[2,4,8,8], index: 3, kind: input, shape index: {}]
  %s4 = inlined_call_operand.vmem [shape: f32[2,8,8], index: 4, kind: input, shape index: {}]
  %s5 = inlined_call_operand.vmem [shape: bf16[2,8,32], index: 5, kind: output, shape index: {}]
  %s6 = sld [smem:[#allocation0]]
  $region53: #{ribonanzanet_forward.42} parent=0
    _
  %s8 = ssub.s32 1, %s6
  %s9 = scalar_select 0, %s8, %s6
  loop: start=0, step=1, limit=4
  $region2: #{ribonanzanet_forward.42} parent=0 // loop_pre_header
    _
  $region3: #{ribonanzanet_forward.42} parent=0 // loop_header
    %s11 = sphi 0, %s15
    %p12 = scmp.ge.s32.totalorder %s11, 4
    %s18 = sphi 0, %s30
    %s19 = sphi 0, %s26
    %s20 = sphi 0, %s18
    %s21 = sphi 0, %s19
    %s22 = sphi 0, %s20
    %s23 = sphi 0, %s21
    %s35 = sphi 0, %s37
    %s38 = sphi 0, %s35
    %s39 = sphi 0, %s38
    %s55 = sphi 0, %s39
    %s61 = sphi 0, %s63
    %s64 = sphi 0, %s61
    %s65 = sphi 0, %s64
    %s81 = sphi 0, %s65
    %s87 = sphi 0, %s89
    %s90 = sphi 0, %s87
    %s91 = sphi 0, %s90
    %s107 = sphi 0, %s91
    %s115 = sphi 0, %s117
    %s118 = sphi 0, %s115
    %s119 = sphi 0, %s118
    %s135 = sphi 0, %s119
    %s143 = sphi 0, %s145
    %s146 = sphi 0, %s143
    %s147 = sphi 0, %s146
    %s163 = sphi 0, %s147
    %s171 = sphi 0, %s173
    %s174 = sphi 0, %s171
    %s175 = sphi 0, %s174
    %s191 = sphi 0, %s175
  $region4: #{ribonanzanet_forward.42} parent=0 // loop_header_branch
    %14 = sbr.rel (%p12) target = $region8
  $region5: #{ribonanzanet_forward.42} parent=0 // loop_body
    %s16 = ssub.s32 %s11, 1
    %s17 = ssub.s32 %s11, 2
    %s24 = sadd.s32 1, %s19
    %p25 = scmp.ge.s32.totalorder %s24, 1
    %s26 = scalar_select %p25, 0, %s24
    %s27 = sadd.s32 1, %s18
    %s28 = scalar_select %p25, %s27, %s18
    %p29 = scmp.ge.s32.totalorder %s28, 2
    %s30 = scalar_select %p29, 0, %s28
    %s31 = ssub.s32 %s18, %s30
    %s32 = ssub.s32 %s19, %s26
    %s33 = sor.u32 %s31, %s32
    %p34 = scmp.eq.s32.totalorder %s33, 0
    %s36 = sadd.s32 %s35, 1
    %s37 = scalar_select %p34, %s35, %s36
    %p40 = pneg %p34
    %p41 = scmp.eq.s32.totalorder %s11, 1
    %p42 = por %p40, %p41
    %p43 = scmp.ne.s32.totalorder %s35, %s38
    %p44 = scmp.eq.s32.totalorder %s11, 0
    %p45 = por %p43, %p44
    %p46 = scmp.ne.s32.totalorder %s35, %s38
    %p47 = scmp.eq.s32.totalorder %s16, 1
    %p48 = por %p46, %p47
    %p49 = scmp.ne.s32.totalorder %s38, %s39
    %p50 = scmp.eq.s32.totalorder %s16, 0
    %p51 = por %p49, %p50
    %p52 = scmp.ne.s32.totalorder %s38, %s39
    %p53 = scmp.eq.s32.totalorder %s17, 1
    %p54 = por %p52, %p53
    %p56 = scmp.ne.s32.totalorder %s39, %s55
    %p57 = scmp.eq.s32.totalorder %s17, 0
    %p58 = por %p56, %p57
    %s59 = ssub.s32 %s18, %s30
    %p60 = scmp.eq.s32.totalorder %s59, 0
    %s62 = sadd.s32 %s61, 1
    %s63 = scalar_select %p60, %s61, %s62
    %p66 = pneg %p60
    %p67 = scmp.eq.s32.totalorder %s11, 1
    %p68 = por %p66, %p67
    %p69 = scmp.ne.s32.totalorder %s61, %s64
    %p70 = scmp.eq.s32.totalorder %s11, 0
    %p71 = por %p69, %p70
    %p72 = scmp.ne.s32.totalorder %s61, %s64
    %p73 = scmp.eq.s32.totalorder %s16, 1
    %p74 = por %p72, %p73
    %p75 = scmp.ne.s32.totalorder %s64, %s65
    %p76 = scmp.eq.s32.totalorder %s16, 0
    %p77 = por %p75, %p76
    %p78 = scmp.ne.s32.totalorder %s64, %s65
    %p79 = scmp.eq.s32.totalorder %s17, 1
    %p80 = por %p78, %p79
    %p82 = scmp.ne.s32.totalorder %s65, %s81
    %p83 = scmp.eq.s32.totalorder %s17, 0
    %p84 = por %p82, %p83
    %s85 = ssub.s32 %s18, %s30
    %p86 = scmp.eq.s32.totalorder %s85, 0
    %s88 = sadd.s32 %s87, 1
    %s89 = scalar_select %p86, %s87, %s88
    %p92 = pneg %p86
    %p93 = scmp.eq.s32.totalorder %s11, 1
    %p94 = por %p92, %p93
    %p95 = scmp.ne.s32.totalorder %s87, %s90
    %p96 = scmp.eq.s32.totalorder %s11, 0
    %p97 = por %p95, %p96
    %p98 = scmp.ne.s32.totalorder %s87, %s90
    %p99 = scmp.eq.s32.totalorder %s16, 1
    %p100 = por %p98, %p99
    %p101 = scmp.ne.s32.totalorder %s90, %s91
    %p102 = scmp.eq.s32.totalorder %s16, 0
    %p103 = por %p101, %p102
    %p104 = scmp.ne.s32.totalorder %s90, %s91
    %p105 = scmp.eq.s32.totalorder %s17, 1
    %p106 = por %p104, %p105
    %p108 = scmp.ne.s32.totalorder %s91, %s107
    %p109 = scmp.eq.s32.totalorder %s17, 0
    %p110 = por %p108, %p109
    %s111 = ssub.s32 %s18, %s30
    %s112 = ssub.s32 %s19, %s26
    %s113 = sor.u32 %s111, %s112
    %p114 = scmp.eq.s32.totalorder %s113, 0
    %s116 = sadd.s32 %s115, 1
    %s117 = scalar_select %p114, %s115, %s116
    %p120 = pneg %p114
    %p121 = scmp.eq.s32.totalorder %s11, 1
    %p122 = por %p120, %p121
    %p123 = scmp.ne.s32.totalorder %s115, %s118
    %p124 = scmp.eq.s32.totalorder %s11, 0
    %p125 = por %p123, %p124
    %p126 = scmp.ne.s32.totalorder %s115, %s118
    %p127 = scmp.eq.s32.totalorder %s16, 1
    %p128 = por %p126, %p127
    %p129 = scmp.ne.s32.totalorder %s118, %s119
    %p130 = scmp.eq.s32.totalorder %s16, 0
    %p131 = por %p129, %p130
    %p132 = scmp.ne.s32.totalorder %s118, %s119
    %p133 = scmp.eq.s32.totalorder %s17, 1
    %p134 = por %p132, %p133
    %p136 = scmp.ne.s32.totalorder %s119, %s135
    %p137 = scmp.eq.s32.totalorder %s17, 0
    %p138 = por %p136, %p137
    %s139 = ssub.s32 %s18, %s30
    %s140 = ssub.s32 %s19, %s26
    %s141 = sor.u32 %s139, %s140
    %p142 = scmp.eq.s32.totalorder %s141, 0
    %s144 = sadd.s32 %s143, 1
    %s145 = scalar_select %p142, %s143, %s144
    %p148 = pneg %p142
    %p149 = scmp.eq.s32.totalorder %s11, 1
    %p150 = por %p148, %p149
    %p151 = scmp.ne.s32.totalorder %s143, %s146
    %p152 = scmp.eq.s32.totalorder %s11, 0
    %p153 = por %p151, %p152
    %p154 = scmp.ne.s32.totalorder %s143, %s146
    %p155 = scmp.eq.s32.totalorder %s16, 1
    %p156 = por %p154, %p155
    %p157 = scmp.ne.s32.totalorder %s146, %s147
    %p158 = scmp.eq.s32.totalorder %s16, 0
    %p159 = por %p157, %p158
    %p160 = scmp.ne.s32.totalorder %s146, %s147
    %p161 = scmp.eq.s32.totalorder %s17, 1
    %p162 = por %p160, %p161
    %p164 = scmp.ne.s32.totalorder %s147, %s163
    %p165 = scmp.eq.s32.totalorder %s17, 0
    %p166 = por %p164, %p165
    %s167 = ssub.s32 %s18, %s30
    %s168 = ssub.s32 %s19, %s26
    %s169 = sor.u32 %s167, %s168
    %p170 = scmp.eq.s32.totalorder %s169, 0
    %s172 = sadd.s32 %s171, 1
    %s173 = scalar_select %p170, %s171, %s172
    %p176 = pneg %p170
    %p177 = scmp.eq.s32.totalorder %s11, 1
    %p178 = por %p176, %p177
    %p179 = scmp.ne.s32.totalorder %s171, %s174
    %p180 = scmp.eq.s32.totalorder %s11, 0
    %p181 = por %p179, %p180
    %p182 = scmp.ne.s32.totalorder %s171, %s174
    %p183 = scmp.eq.s32.totalorder %s16, 1
    %p184 = por %p182, %p183
    %p185 = scmp.ne.s32.totalorder %s174, %s175
    %p186 = scmp.eq.s32.totalorder %s16, 0
    %p187 = por %p185, %p186
    %p188 = scmp.ne.s32.totalorder %s174, %s175
    %p189 = scmp.eq.s32.totalorder %s17, 1
    %p190 = por %p188, %p189
    %p192 = scmp.ne.s32.totalorder %s175, %s191
    %p193 = scmp.eq.s32.totalorder %s17, 0
    %p194 = por %p192, %p193
    %p195 = scmp.le.s32.totalorder 1, %s11
    %p196 = scmp.lt.s32.totalorder %s11, 3
    %p197 = pnand %p195, %p196
    %p198 = pneg %p197
    // Predicated region
    $region9: #{ribonanzanet_forward.42} parent=5 // pred_check
      _
    $region10: #{ribonanzanet_forward.42} parent=5 // pred_check_branch
      %200 = sbr.rel (%p197) target = $region12
    $region11: #{ribonanzanet_forward.42} parent=5 // pred_region
      %s201 = ssub.s32 %s11, 1
    $region12: #{ribonanzanet_forward.42} parent=5 // pred_fallthru
      _
    %p202 = scmp.lt.s32.totalorder %s11, 2
    // Predicated region
    $region13: #{ribonanzanet_forward.42} parent=5 // pred_check
      %p203 = pneg %p202
    $region14: #{ribonanzanet_forward.42} parent=5 // pred_check_branch
      %205 = sbr.rel (%p203) target = $region16
    $region15: #{ribonanzanet_forward.42} parent=5 // pred_region
      // Predicated region
      $region17: #{ribonanzanet_forward.42} parent=15 // pred_check
        %p206 = pneg %p45
      $region18: #{ribonanzanet_forward.42} parent=15 // pred_check_branch
        %208 = sbr.rel (%p206) target = $region20
      $region19: #{ribonanzanet_forward.42} parent=15 // pred_region
        %p209 = scmp.lt.s32.totalorder %s18, 1
        %s210 = scalar_select %p209, %s18, 1
        %p211 = scmp.lt.s32.totalorder %s19, 0
        %s212 = scalar_select %p211, %s19, 0
        %s213 = smul.addr %s210, 4
        %s214 = sadd.s32 %s212, %s213
        %s215 = smul.addr %s214, 4
        %s216 = scalar_lea.vmem %s0, %s215
      $region20: #{ribonanzanet_forward.42} parent=15 // pred_fallthru
        _
      // Predicated region
      $region21: #{ribonanzanet_forward.42} parent=15 // pred_check
        %p217 = pneg %p71
      $region22: #{ribonanzanet_forward.42} parent=15 // pred_check_branch
        %219 = sbr.rel (%p217) target = $region24
      $region23: #{ribonanzanet_forward.42} parent=15 // pred_region
        %p220 = scmp.lt.s32.totalorder %s18, 1
        %s221 = scalar_select %p220, %s18, 1
        %s222 = smul.addr %s221, 4
        %s223 = smul.addr %s222, 4
        %s224 = scalar_lea.vmem %s1, %s223
      $region24: #{ribonanzanet_forward.42} parent=15 // pred_fallthru
        _
      // Predicated region
      $region25: #{ribonanzanet_forward.42} parent=15 // pred_check
        %p225 = pneg %p97
      $region26: #{ribonanzanet_forward.42} parent=15 // pred_check_branch
        %227 = sbr.rel (%p225) target = $region28
      $region27: #{ribonanzanet_forward.42} parent=15 // pred_region
        %p228 = scmp.lt.s32.totalorder %s18, 1
        %s229 = scalar_select %p228, %s18, 1
        %s230 = smul.addr %s229, 4
        %s231 = smul.addr %s230, 4
        %s232 = scalar_lea.vmem %s2, %s231
      $region28: #{ribonanzanet_forward.42} parent=15 // pred_fallthru
        _
      // Predicated region
      $region29: #{ribonanzanet_forward.42} parent=15 // pred_check
        %p233 = pneg %p125
      $region30: #{ribonanzanet_forward.42} parent=15 // pred_check_branch
        %235 = sbr.rel (%p233) target = $region32
      $region31: #{ribonanzanet_forward.42} parent=15 // pred_region
        %p236 = scmp.lt.s32.totalorder %s18, 1
        %s237 = scalar_select %p236, %s18, 1
        %p238 = scmp.lt.s32.totalorder %s19, 0
        %s239 = scalar_select %p238, %s19, 0
        %s240 = smul.addr %s237, 4
        %s241 = sadd.s32 %s239, %s240
        %s242 = smul.addr %s241, 4
        %s243 = scalar_lea.vmem %s3, %s242
      $region32: #{ribonanzanet_forward.42} parent=15 // pred_fallthru
        _
      // Predicated region
      $region33: #{ribonanzanet_forward.42} parent=15 // pred_check
        %p244 = pneg %p153
      $region34: #{ribonanzanet_forward.42} parent=15 // pred_check_branch
        %246 = sbr.rel (%p244) target = $region36
      $region35: #{ribonanzanet_forward.42} parent=15 // pred_region
        %p247 = scmp.lt.s32.totalorder %s18, 1
        %s248 = scalar_select %p247, %s18, 1
        %p249 = scmp.lt.s32.totalorder %s19, 0
        %s250 = scalar_select %p249, %s19, 0
        %s251 = sadd.s32 %s250, %s248
        %s252 = smul.addr %s251, 8
        %s253 = scalar_lea.vmem %s4, %s252
      $region36: #{ribonanzanet_forward.42} parent=15 // pred_fallthru
        _
    $region16: #{ribonanzanet_forward.42} parent=5 // pred_fallthru
      _
    %p254 = scmp.le.s32.totalorder 1, %s11
    %p255 = scmp.lt.s32.totalorder %s11, 3
    %p256 = pnand %p254, %p255
    %p257 = pneg %p256
    // Predicated region
    $region37: #{ribonanzanet_forward.42} parent=5 // pred_check
      _
    $region38: #{ribonanzanet_forward.42} parent=5 // pred_check_branch
      %259 = sbr.rel (%p256) target = $region40
    $region39: #{ribonanzanet_forward.42} parent=5 // pred_region
      %s260 = ssub.s32 %s11, 1
      %p261 = scmp.lt.s32.totalorder %s20, 1
      %s262 = scalar_select %p261, %s20, 1
      %p263 = scmp.lt.s32.totalorder %s21, 0
      %s264 = scalar_select %p263, %s21, 0
      %s265 = smul.addr %s262, 4
      %s266 = sadd.s32 %s264, %s265
      %s267 = smul.addr %s266, 4
      %s268 = scalar_lea.vmem %s0, %s267
      %p269 = pneg %p51
      %p270 = pneg %p48
      %p271 = scmp.lt.s32.totalorder %s20, 1
      %s272 = scalar_select %p271, %s20, 1
      %s273 = smul.addr %s272, 4
      %s274 = smul.addr %s273, 4
      %s275 = scalar_lea.vmem %s1, %s274
      %p276 = pneg %p77
      %p277 = pneg %p74
      %p278 = scmp.lt.s32.totalorder %s20, 1
      %s279 = scalar_select %p278, %s20, 1
      %s280 = smul.addr %s279, 4
      %s281 = smul.addr %s280, 4
      %s282 = scalar_lea.vmem %s2, %s281
      %p283 = pneg %p103
      %p284 = pneg %p100
      %p285 = scmp.lt.s32.totalorder %s20, 1
      %s286 = scalar_select %p285, %s20, 1
      %p287 = scmp.lt.s32.totalorder %s21, 0
      %s288 = scalar_select %p287, %s21, 0
      %s289 = smul.addr %s286, 4
      %s290 = sadd.s32 %s288, %s289
      %s291 = smul.addr %s290, 4
      %s292 = scalar_lea.vmem %s3, %s291
      %p293 = pneg %p131
      %p294 = pneg %p128
      %p295 = scmp.lt.s32.totalorder %s20, 1
      %s296 = scalar_select %p295, %s20, 1
      %p297 = scmp.lt.s32.totalorder %s21, 0
      %s298 = scalar_select %p297, %s21, 0
      %s299 = sadd.s32 %s298, %s296
      %s300 = smul.addr %s299, 8
      %s301 = scalar_lea.vmem %s4, %s300
      %p302 = pneg %p159
      %p303 = pneg %p156
      %p304 = pneg %p187
      %p305 = pneg %p184
      %p306 = scmp.lt.s32.totalorder %s20, 1
      %s307 = scalar_select %p306, %s20, 1
      %p308 = scmp.lt.s32.totalorder %s21, 0
      %s309 = scalar_select %p308, %s21, 0
      %s310 = sadd.s32 %s309, %s307
      %s311 = smul.addr %s310, 4
      %s312 = scalar_lea.vmem %s5, %s311
      %p313 = scmp.lt.s32.totalorder %s20, 1
      %s314 = scalar_select %p313, %s20, 1
      %p315 = scmp.lt.s32.totalorder %s21, 0
      %s316 = scalar_select %p315, %s21, 0
      %s317 = smul.addr %s314, 4
      %s318 = sadd.s32 %s316, %s317
      %s319 = smul.addr %s318, 4
      %s320 = scalar_lea.vmem %s0, %s319
      %p321 = scmp.lt.s32.totalorder %s20, 1
      %s322 = scalar_select %p321, %s20, 1
      %s323 = smul.addr %s322, 4
      %s324 = smul.addr %s323, 4
      %s325 = scalar_lea.vmem %s1, %s324
      %p326 = scmp.lt.s32.totalorder %s20, 1
      %s327 = scalar_select %p326, %s20, 1
      %s328 = smul.addr %s327, 4
      %s329 = smul.addr %s328, 4
      %s330 = scalar_lea.vmem %s2, %s329
      %p331 = scmp.lt.s32.totalorder %s20, 1
      %s332 = scalar_select %p331, %s20, 1
      %p333 = scmp.lt.s32.totalorder %s21, 0
      %s334 = scalar_select %p333, %s21, 0
      %s335 = smul.addr %s332, 4
      %s336 = sadd.s32 %s334, %s335
      %s337 = smul.addr %s336, 4
      %s338 = scalar_lea.vmem %s3, %s337
      %p339 = scmp.lt.s32.totalorder %s20, 1
      %s340 = scalar_select %p339, %s20, 1
      %p341 = scmp.lt.s32.totalorder %s21, 0
      %s342 = scalar_select %p341, %s21, 0
      %s343 = sadd.s32 %s342, %s340
      %s344 = smul.addr %s343, 8
      %s345 = scalar_lea.vmem %s4, %s344
      %p346 = scmp.lt.s32.totalorder %s20, 1
      %s347 = scalar_select %p346, %s20, 1
      %p348 = scmp.lt.s32.totalorder %s21, 0
      %s349 = scalar_select %p348, %s21, 0
      %s350 = sadd.s32 %s349, %s347
      %s351 = smul.addr %s350, 4
      %s352 = scalar_lea.vmem %s5, %s351
      %v354 = vld [vmem:[%s345] sm:$0xff]
      %vm355 = vcmp.eq.f32.partialorder %v354, -1.0
      %v356 = vld [vmem:[%s320] sm:$0xf]
      %v357 = vld [vmem:[%s325] sm:$0xf]
      %v358 = vld [vmem:[%s330] sm:$0xf]
      %vm359 = vcmask 64512
      %v361 = vsel %vm359, %v356, 0
      %v364 = vsel %vm359, %v357, 0
      %366 = vmatpush.bf16.xpose.msra.mxu0 0
      %367 = vmatpush.bf16.xpose.msra.mxu0 0
      %368 = vmatpush.bf16.xpose.msra.mxu0 0
      %369 = vmatpush.bf16.xpose.msra.mxu0 0
      %370 = vmatpush.bf16.xpose.msra.mxu0 0
      %371 = vmatpush.bf16.xpose.msra.mxu0 0
      %372 = vmatpush.bf16.xpose.msra.mxu0 0
      %373 = vmatpush.bf16.xpose.msra.mxu0 %v364
      %374 = vmatmul.bf16.gmra.mxu0 %v361
      %v375 = vpop.f32.mrf.mxu0
      %v376 = vadd.f32 0.0, %v375
      %v377 = vpop.f32.mrf.mxu0
      %378 = vdwg.mxu0
      %v379 = vmul.f32 %v376, 0.35355338
      %v380 = vld [vmem:[%s338] sm:$0xf]
      %v381 = vunpack.c.l.bf16 %v380
      %v382 = vadd.f32 %v379, %v381
      %v383 = vsel %vm355, -1e-09, %v382
      %v384 = vsel %vm359, %v383, -inf
      %385 = vmax.xlane.f32.xlu0 %v384
      %v386 = vpop.xlane.xlu0 %385
      %v387 = vsub.f32 %v383, %v386
      %v388 = vmul.f32 %v387, 1.442695
      %v389 = vpow.pop %v388
      %v390 = vsel %vm359, %v389, 0.0
      %391 = vadd.xlane.f32.xlu0 %v390
      %v392 = vpop.xlane.xlu0 %391
      %v393 = vrcp.pop %v392
      %v394 = vmul.f32 %v389, %v393
      %v395 = vpack.c.bf16 %v394, %v394
      %v397 = vsel %vm359, %v395, 0
      %vm399 = vcmask 1043456
      %v401 = vsel %vm399, %v358, 0
      %403 = vmatpush.bf16.msra.mxu0 0
      %404 = vmatpush.bf16.msra.mxu0 0
      %405 = vmatpush.bf16.msra.mxu0 0
      %406 = vmatpush.bf16.msra.mxu0 0
      %407 = vmatpush.bf16.msra.mxu0 0
      %408 = vmatpush.bf16.msra.mxu0 0
      %409 = vmatpush.bf16.msra.mxu0 0
      %410 = vmatpush.bf16.msra.mxu0 %v401
      %411 = vmatmul.bf16.gmra.mxu0 %v397
      %v412 = vpop.f32.mrf.mxu0
      %v413 = vadd.f32 0.0, %v412
      %v414 = vpop.f32.mrf.mxu0
      %415 = vdwg.mxu0
      %v416 = vpack.c.bf16 %v413, %v413
      %vm417 = vcmask 60416
      %418 = vst.msk [vmem:[%s352] sm:$0xf] %vm417, %v416
      %s419 = scalar_lea.vmem %s320, 4
      %v420 = vld [vmem:[%s419] sm:$0xf]
      %s421 = scalar_lea.vmem %s325, 4
      %v422 = vld [vmem:[%s421] sm:$0xf]
      %s423 = scalar_lea.vmem %s330, 4
      %v424 = vld [vmem:[%s423] sm:$0xf]
      %v426 = vsel %vm359, %v420, 0
      %v429 = vsel %vm359, %v422, 0
      %431 = vmatpush.bf16.xpose.msra.mxu0 0
      %432 = vmatpush.bf16.xpose.msra.mxu0 0
      %433 = vmatpush.bf16.xpose.msra.mxu0 0
      %434 = vmatpush.bf16.xpose.msra.mxu0 0
      %435 = vmatpush.bf16.xpose.msra.mxu0 0
      %436 = vmatpush.bf16.xpose.msra.mxu0 0
      %437 = vmatpush.bf16.xpose.msra.mxu0 0
      %438 = vmatpush.bf16.xpose.msra.mxu0 %v429
      %439 = vmatmul.bf16.gmra.mxu0 %v426
      %v440 = vpop.f32.mrf.mxu0
      %v441 = vadd.f32 0.0, %v440
      %v442 = vpop.f32.mrf.mxu0
      %443 = vdwg.mxu0
      %v444 = vmul.f32 %v441, 0.35355338
      %s445 = scalar_lea.vmem %s338, 4
      %v446 = vld [vmem:[%s445] sm:$0xf]
      %v447 = vunpack.c.l.bf16 %v446
      %v448 = vadd.f32 %v444, %v447
      %v449 = vsel %vm355, -1e-09, %v448
      %v450 = vsel %vm359, %v449, -inf
      %451 = vmax.xlane.f32.xlu0 %v450
      %v452 = vpop.xlane.xlu0 %451
      %v453 = vsub.f32 %v449, %v452
      %v454 = vmul.f32 %v453, 1.442695
      %v455 = vpow.pop %v454
      %v456 = vsel %vm359, %v455, 0.0
      %457 = vadd.xlane.f32.xlu0 %v456
      %v458 = vpop.xlane.xlu0 %457
      %v459 = vrcp.pop %v458
      %v460 = vmul.f32 %v455, %v459
      %v461 = vpack.c.bf16 %v460, %v460
      %v463 = vsel %vm359, %v461, 0
      %v466 = vsel %vm399, %v424, 0
      %468 = vmatpush.bf16.msra.mxu0 0
      %469 = vmatpush.bf16.msra.mxu0 0
      %470 = vmatpush.bf16.msra.mxu0 0
      %471 = vmatpush.bf16.msra.mxu0 0
      %472 = vmatpush.bf16.msra.mxu0 0
      %473 = vmatpush.bf16.msra.mxu0 0
      %474 = vmatpush.bf16.msra.mxu0 0
      %475 = vmatpush.bf16.msra.mxu0 %v466
      %476 = vmatmul.bf16.gmra.mxu0 %v463
      %v477 = vpop.f32.mrf.mxu0
      %v478 = vadd.f32 0.0, %v477
      %v479 = vpop.f32.mrf.mxu0
      %480 = vdwg.mxu0
      %v481 = vpack.c.bf16 %v478, %v478
      %483 = vrot.lane.b32.xlu0 %v481, 8
      %v484 = vpop.permute.xlu0 %483
      %vm486 = vcmask 126016
      %487 = vst.msk [vmem:[%s352] sm:$0xf] %vm486, %v484
      %s488 = scalar_lea.vmem %s320, 8
      %v489 = vld [vmem:[%s488] sm:$0xf]
      %s490 = scalar_lea.vmem %s325, 8
      %v491 = vld [vmem:[%s490] sm:$0xf]
      %s492 = scalar_lea.vmem %s330, 8
      %v493 = vld [vmem:[%s492] sm:$0xf]
      %v495 = vsel %vm359, %v489, 0
      %v498 = vsel %vm359, %v491, 0
      %500 = vmatpush.bf16.xpose.msra.mxu0 0
      %501 = vmatpush.bf16.xpose.msra.mxu0 0
      %502 = vmatpush.bf16.xpose.msra.mxu0 0
      %503 = vmatpush.bf16.xpose.msra.mxu0 0
      %504 = vmatpush.bf16.xpose.msra.mxu0 0
      %505 = vmatpush.bf16.xpose.msra.mxu0 0
      %506 = vmatpush.bf16.xpose.msra.mxu0 0
      %507 = vmatpush.bf16.xpose.msra.mxu0 %v498
      %508 = vmatmul.bf16.gmra.mxu0 %v495
      %v509 = vpop.f32.mrf.mxu0
      %v510 = vadd.f32 0.0, %v509
      %v511 = vpop.f32.mrf.mxu0
      %512 = vdwg.mxu0
      %v513 = vmul.f32 %v510, 0.35355338
      %s514 = scalar_lea.vmem %s338, 8
      %v515 = vld [vmem:[%s514] sm:$0xf]
      %v516 = vunpack.c.l.bf16 %v515
      %v517 = vadd.f32 %v513, %v516
      %v518 = vsel %vm355, -1e-09, %v517
      %v519 = vsel %vm359, %v518, -inf
      %520 = vmax.xlane.f32.xlu0 %v519
      %v521 = vpop.xlane.xlu0 %520
      %v522 = vsub.f32 %v518, %v521
      %v523 = vmul.f32 %v522, 1.442695
      %v524 = vpow.pop %v523
      %v525 = vsel %vm359, %v524, 0.0
      %526 = vadd.xlane.f32.xlu0 %v525
      %v527 = vpop.xlane.xlu0 %526
      %v528 = vrcp.pop %v527
      %v529 = vmul.f32 %v524, %v528
      %v530 = vpack.c.bf16 %v529, %v529
      %v532 = vsel %vm359, %v530, 0
      %v535 = vsel %vm399, %v493, 0
      %537 = vmatpush.bf16.msra.mxu0 0
      %538 = vmatpush.bf16.msra.mxu0 0
      %539 = vmatpush.bf16.msra.mxu0 0
      %540 = vmatpush.bf16.msra.mxu0 0
      %541 = vmatpush.bf16.msra.mxu0 0
      %542 = vmatpush.bf16.msra.mxu0 0
      %543 = vmatpush.bf16.msra.mxu0 0
      %544 = vmatpush.bf16.msra.mxu0 %v535
      %545 = vmatmul.bf16.gmra.mxu0 %v532
      %v546 = vpop.f32.mrf.mxu0
      %v547 = vadd.f32 0.0, %v546
      %v548 = vpop.f32.mrf.mxu0
      %549 = vdwg.mxu0
      %v550 = vpack.c.bf16 %v547, %v547
      %552 = vrot.lane.b32.xlu0 %v550, 16
      %v553 = vpop.permute.xlu0 %552
      %vm555 = vcmask 191616
      %556 = vst.msk [vmem:[%s352] sm:$0xf] %vm555, %v553
      %s557 = scalar_lea.vmem %s320, 12
      %v558 = vld [vmem:[%s557] sm:$0xf]
      %s559 = scalar_lea.vmem %s325, 12
      %v560 = vld [vmem:[%s559] sm:$0xf]
      %s561 = scalar_lea.vmem %s330, 12
      %v562 = vld [vmem:[%s561] sm:$0xf]
      %v564 = vsel %vm359, %v558, 0
      %v567 = vsel %vm359, %v560, 0
      %569 = vmatpush.bf16.xpose.msra.mxu0 0
      %570 = vmatpush.bf16.xpose.msra.mxu0 0
      %571 = vmatpush.bf16.xpose.msra.mxu0 0
      %572 = vmatpush.bf16.xpose.msra.mxu0 0
      %573 = vmatpush.bf16.xpose.msra.mxu0 0
      %574 = vmatpush.bf16.xpose.msra.mxu0 0
      %575 = vmatpush.bf16.xpose.msra.mxu0 0
      %576 = vmatpush.bf16.xpose.msra.mxu0 %v567
      %577 = vmatmul.bf16.gmra.mxu0 %v564
      %v578 = vpop.f32.mrf.mxu0
      %v579 = vadd.f32 0.0, %v578
      %v580 = vpop.f32.mrf.mxu0
      %581 = vdwg.mxu0
      %v582 = vmul.f32 %v579, 0.35355338
      %s583 = scalar_lea.vmem %s338, 12
      %v584 = vld [vmem:[%s583] sm:$0xf]
      %v585 = vunpack.c.l.bf16 %v584
      %v586 = vadd.f32 %v582, %v585
      %v587 = vsel %vm355, -1e-09, %v586
      %v588 = vsel %vm359, %v587, -inf
      %589 = vmax.xlane.f32.xlu0 %v588
      %v590 = vpop.xlane.xlu0 %589
      %v591 = vsub.f32 %v587, %v590
      %v592 = vmul.f32 %v591, 1.442695
      %v593 = vpow.pop %v592
      %v594 = vsel %vm359, %v593, 0.0
      %595 = vadd.xlane.f32.xlu0 %v594
      %v596 = vpop.xlane.xlu0 %595
      %v597 = vrcp.pop %v596
      %v598 = vmul.f32 %v593, %v597
      %v599 = vpack.c.bf16 %v598, %v598
      %v601 = vsel %vm359, %v599, 0
      %v604 = vsel %vm399, %v562, 0
      %606 = vmatpush.bf16.msra.mxu0 0
      %607 = vmatpush.bf16.msra.mxu0 0
      %608 = vmatpush.bf16.msra.mxu0 0
      %609 = vmatpush.bf16.msra.mxu0 0
      %610 = vmatpush.bf16.msra.mxu0 0
      %611 = vmatpush.bf16.msra.mxu0 0
      %612 = vmatpush.bf16.msra.mxu0 0
      %613 = vmatpush.bf16.msra.mxu0 %v604
      %614 = vmatmul.bf16.gmra.mxu0 %v601
      %v615 = vpop.f32.mrf.mxu0
      %v616 = vadd.f32 0.0, %v615
      %v617 = vpop.f32.mrf.mxu0
      %618 = vdwg.mxu0
      %v619 = vpack.c.bf16 %v616, %v616
      %621 = vrot.lane.b32.xlu0 %v619, 24
      %v622 = vpop.permute.xlu0 %621
      %vm624 = vcmask 257216
      %625 = vst.msk [vmem:[%s352] sm:$0xf] %vm624, %v622
      %p626 = scmp.lt.s32.totalorder %s20, 1
      %s627 = scalar_select %p626, %s20, 1
      %p628 = scmp.lt.s32.totalorder %s21, 0
      %s629 = scalar_select %p628, %s21, 0
      %s630 = sadd.s32 %s629, %s627
      %s631 = smul.addr %s630, 4
      %s632 = scalar_lea.vmem %s5, %s631
      // Predicated region
      $region41: #{ribonanzanet_forward.42} parent=39 // pred_check
        %p633 = pneg %p184
      $region42: #{ribonanzanet_forward.42} parent=39 // pred_check_branch
        %635 = sbr.rel (%p633) target = $region44
      $region43: #{ribonanzanet_forward.42} parent=39 // pred_region
        _
      $region44: #{ribonanzanet_forward.42} parent=39 // pred_fallthru
        _
    $region40: #{ribonanzanet_forward.42} parent=5 // pred_fallthru
      _
    %p636 = scmp.le.s32.totalorder 2, %s11
    // Predicated region
    $region45: #{ribonanzanet_forward.42} parent=5 // pred_check
      %p637 = pneg %p636
    $region46: #{ribonanzanet_forward.42} parent=5 // pred_check_branch
      %639 = sbr.rel (%p637) target = $region48
    $region47: #{ribonanzanet_forward.42} parent=5 // pred_region
      %s640 = ssub.s32 %s11, 2
      // Predicated region
      $region49: #{ribonanzanet_forward.42} parent=47 // pred_check
        %p641 = pneg %p190
      $region50: #{ribonanzanet_forward.42} parent=47 // pred_check_branch
        %643 = sbr.rel (%p641) target = $region52
      $region51: #{ribonanzanet_forward.42} parent=47 // pred_region
        %p644 = scmp.lt.s32.totalorder %s22, 1
        %s645 = scalar_select %p644, %s22, 1
        %p646 = scmp.lt.s32.totalorder %s23, 0
        %s647 = scalar_select %p646, %s23, 0
        %s648 = sadd.s32 %s647, %s645
        %s649 = smul.addr %s648, 4
        %s650 = scalar_lea.vmem %s5, %s649
      $region52: #{ribonanzanet_forward.42} parent=47 // pred_fallthru
        _
    $region48: #{ribonanzanet_forward.42} parent=5 // pred_fallthru
      _
  $region6: #{ribonanzanet_forward.42} parent=0 // loop_footer
    %s15 = sadd.s32 1, %s11
  $region7: #{ribonanzanet_forward.42} parent=0 // loop_footer_branch
    %10 = sbr.rel target = $region3
  $region8: #{ribonanzanet_forward.42} parent=0 // loop_exit
    _

// kernel: ribonanzanet_forward.46
$region0: #{ribonanzanet_forward.46}
  #allocation0 [shape = 'u32[]', space=smem, size = 0x4, offset = 0x4, fixed_abs, tag = 'smem constant byte address 0x4 - core index']
  #allocation1 [shape = 'u32[72,128]{1,0:T(1,128)}', space=vmem, size = 0x9000, scoped, tag = 'internal scratch']
  %s0 = inlined_call_operand.vmem [shape: f32[16,32], index: 0, kind: input, shape index: {}]
  %s1 = inlined_call_operand.vmem [shape: bf16[32,128], index: 1, kind: input, shape index: {}]
  %s2 = inlined_call_operand.vmem [shape: f32[1,128], index: 2, kind: input, shape index: {}]
  %s3 = inlined_call_operand.vmem [shape: f32[16,128], index: 3, kind: output, shape index: {}]
  %s4 = sld [smem:[#allocation0]]
  $region45: #{ribonanzanet_forward.46} parent=0
    _
  %s6 = ssub.s32 1, %s4
  %s7 = scalar_select 0, %s6, %s4
  loop: start=0, step=1, limit=4
  $region2: #{ribonanzanet_forward.46} parent=0 // loop_pre_header
    _
  $region3: #{ribonanzanet_forward.46} parent=0 // loop_header
    %s9 = sphi 0, %s13
    %p10 = scmp.ge.s32.totalorder %s9, 4
    %s19 = sphi 0, %s21
    %s22 = sphi 0, %s19
    %s23 = sphi 0, %s22
    %s39 = sphi 0, %s23
    %s43 = sphi 0, %s43
    %s45 = sphi 0, %s43
    %s46 = sphi 0, %s45
    %s60 = sphi 0, %s46
    %s64 = sphi 0, %s64
    %s66 = sphi 0, %s64
    %s67 = sphi 0, %s66
    %s81 = sphi 0, %s67
    %s87 = sphi 0, %s89
    %s90 = sphi 0, %s87
    %s91 = sphi 0, %s90
    %s107 = sphi 0, %s91
  $region4: #{ribonanzanet_forward.46} parent=0 // loop_header_branch
    %12 = sbr.rel (%p10) target = $region8
  $region5: #{ribonanzanet_forward.46} parent=0 // loop_body
    %s14 = ssub.s32 %s9, 1
    %s15 = ssub.s32 %s9, 2
    %s16 = sadd.s32 %s9, 1
    %s17 = ssub.s32 %s9, %s16
    %p18 = scmp.eq.s32.totalorder %s17, 0
    %s20 = sadd.s32 %s19, 1
    %s21 = scalar_select %p18, %s19, %s20
    %p24 = pneg %p18
    %p25 = scmp.eq.s32.totalorder %s9, 1
    %p26 = por %p24, %p25
    %p27 = scmp.ne.s32.totalorder %s19, %s22
    %p28 = scmp.eq.s32.totalorder %s9, 0
    %p29 = por %p27, %p28
    %p30 = scmp.ne.s32.totalorder %s19, %s22
    %p31 = scmp.eq.s32.totalorder %s14, 1
    %p32 = por %p30, %p31
    %p33 = scmp.ne.s32.totalorder %s22, %s23
    %p34 = scmp.eq.s32.totalorder %s14, 0
    %p35 = por %p33, %p34
    %p36 = scmp.ne.s32.totalorder %s22, %s23
    %p37 = scmp.eq.s32.totalorder %s15, 1
    %p38 = por %p36, %p37
    %p40 = scmp.ne.s32.totalorder %s23, %s39
    %p41 = scmp.eq.s32.totalorder %s15, 0
    %p42 = por %p40, %p41
    %s44 = sadd.s32 %s43, 1
    %p47 = scmp.eq.s32.totalorder %s9, 1
    %p48 = scmp.ne.s32.totalorder %s43, %s45
    %p49 = scmp.eq.s32.totalorder %s9, 0
    %p50 = por %p48, %p49
    %p51 = scmp.ne.s32.totalorder %s43, %s45
    %p52 = scmp.eq.s32.totalorder %s14, 1
    %p53 = por %p51, %p52
    %p54 = scmp.ne.s32.totalorder %s45, %s46
    %p55 = scmp.eq.s32.totalorder %s14, 0
    %p56 = por %p54, %p55
    %p57 = scmp.ne.s32.totalorder %s45, %s46
    %p58 = scmp.eq.s32.totalorder %s15, 1
    %p59 = por %p57, %p58
    %p61 = scmp.ne.s32.totalorder %s46, %s60
    %p62 = scmp.eq.s32.totalorder %s15, 0
    %p63 = por %p61, %p62
    %s65 = sadd.s32 %s64, 1
    %p68 = scmp.eq.s32.totalorder %s9, 1
    %p69 = scmp.ne.s32.totalorder %s64, %s66
    %p70 = scmp.eq.s32.totalorder %s9, 0
    %p71 = por %p69, %p70
    %p72 = scmp.ne.s32.totalorder %s64, %s66
    %p73 = scmp.eq.s32.totalorder %s14, 1
    %p74 = por %p72, %p73
    %p75 = scmp.ne.s32.totalorder %s66, %s67
    %p76 = scmp.eq.s32.totalorder %s14, 0
    %p77 = por %p75, %p76
    %p78 = scmp.ne.s32.totalorder %s66, %s67
    %p79 = scmp.eq.s32.totalorder %s15, 1
    %p80 = por %p78, %p79
    %p82 = scmp.ne.s32.totalorder %s67, %s81
    %p83 = scmp.eq.s32.totalorder %s15, 0
    %p84 = por %p82, %p83
    %s85 = ssub.s32 %s9, %s16
    %p86 = scmp.eq.s32.totalorder %s85, 0
    %s88 = sadd.s32 %s87, 1
    %s89 = scalar_select %p86, %s87, %s88
    %p92 = pneg %p86
    %p93 = scmp.eq.s32.totalorder %s9, 1
    %p94 = por %p92, %p93
    %p95 = scmp.ne.s32.totalorder %s87, %s90
    %p96 = scmp.eq.s32.totalorder %s9, 0
    %p97 = por %p95, %p96
    %p98 = scmp.ne.s32.totalorder %s87, %s90
    %p99 = scmp.eq.s32.totalorder %s14, 1
    %p100 = por %p98, %p99
    %p101 = scmp.ne.s32.totalorder %s90, %s91
    %p102 = scmp.eq.s32.totalorder %s14, 0
    %p103 = por %p101, %p102
    %p104 = scmp.ne.s32.totalorder %s90, %s91
    %p105 = scmp.eq.s32.totalorder %s15, 1
    %p106 = por %p104, %p105
    %p108 = scmp.ne.s32.totalorder %s91, %s107
    %p109 = scmp.eq.s32.totalorder %s15, 0
    %p110 = por %p108, %p109
    %p111 = scmp.le.s32.totalorder 1, %s9
    %p112 = scmp.lt.s32.totalorder %s9, 3
    %p113 = pnand %p111, %p112
    %p114 = pneg %p113
    // Predicated region
    $region9: #{ribonanzanet_forward.46} parent=5 // pred_check
      _
    $region10: #{ribonanzanet_forward.46} parent=5 // pred_check_branch
      %116 = sbr.rel (%p113) target = $region12
    $region11: #{ribonanzanet_forward.46} parent=5 // pred_region
      %s117 = ssub.s32 %s9, 1
      // Predicated region
      $region13: #{ribonanzanet_forward.46} parent=11 // pred_check
        %p118 = pneg %p56
      $region14: #{ribonanzanet_forward.46} parent=11 // pred_check_branch
        %120 = sbr.rel (%p118) target = $region16
      $region15: #{ribonanzanet_forward.46} parent=11 // pred_region
        _
      $region16: #{ribonanzanet_forward.46} parent=11 // pred_fallthru
        _
      // Predicated region
      $region17: #{ribonanzanet_forward.46} parent=11 // pred_check
        %p121 = pneg %p77
      $region18: #{ribonanzanet_forward.46} parent=11 // pred_check_branch
        %123 = sbr.rel (%p121) target = $region20
      $region19: #{ribonanzanet_forward.46} parent=11 // pred_region
        _
      $region20: #{ribonanzanet_forward.46} parent=11 // pred_fallthru
        _
    $region12: #{ribonanzanet_forward.46} parent=5 // pred_fallthru
      _
    %p124 = scmp.lt.s32.totalorder %s9, 2
    // Predicated region
    $region21: #{ribonanzanet_forward.46} parent=5 // pred_check
      %p125 = pneg %p124
    $region22: #{ribonanzanet_forward.46} parent=5 // pred_check_branch
      %127 = sbr.rel (%p125) target = $region24
    $region23: #{ribonanzanet_forward.46} parent=5 // pred_region
      // Predicated region
      $region25: #{ribonanzanet_forward.46} parent=23 // pred_check
        %p128 = pneg %p29
      $region26: #{ribonanzanet_forward.46} parent=23 // pred_check_branch
        %130 = sbr.rel (%p128) target = $region28
      $region27: #{ribonanzanet_forward.46} parent=23 // pred_region
        %p131 = scmp.lt.s32.totalorder %s9, 1
        %s132 = scalar_select %p131, %s9, 1
        %s133 = smul.addr %s132, 8
        %s134 = scalar_lea.vmem %s0, %s133
      $region28: #{ribonanzanet_forward.46} parent=23 // pred_fallthru
        _
    $region24: #{ribonanzanet_forward.46} parent=5 // pred_fallthru
      _
    %p135 = scmp.le.s32.totalorder 1, %s9
    %p136 = scmp.lt.s32.totalorder %s9, 3
    %p137 = pnand %p135, %p136
    %p138 = pneg %p137
    // Predicated region
    $region29: #{ribonanzanet_forward.46} parent=5 // pred_check
      _
    $region30: #{ribonanzanet_forward.46} parent=5 // pred_check_branch
      %140 = sbr.rel (%p137) target = $region32
    $region31: #{ribonanzanet_forward.46} parent=5 // pred_region
      %s141 = ssub.s32 %s9, 1
      %p142 = scmp.lt.s32.totalorder %s14, 1
      %s143 = scalar_select %p142, %s14, 1
      %s144 = smul.addr %s143, 8
      %s145 = scalar_lea.vmem %s0, %s144
      %p146 = pneg %p35
      %p147 = pneg %p32
      %p148 = pneg %p56
      %p149 = pneg %p53
      %p150 = pneg %p77
      %p151 = pneg %p74
      %p152 = pneg %p103
      %p153 = pneg %p100
      %p154 = scmp.lt.s32.totalorder %s14, 1
      %s155 = scalar_select %p154, %s14, 1
      %s156 = smul.addr %s155, 8
      %s157 = scalar_lea.vmem %s3, %s156
      %p158 = scmp.lt.s32.totalorder %s14, 1
      %s159 = scalar_select %p158, %s14, 1
      %s160 = smul.addr %s159, 8
      %s161 = scalar_lea.vmem %s0, %s160
      %p162 = scmp.lt.s32.totalorder %s14, 1
      %s163 = scalar_select %p162, %s14, 1
      %s164 = smul.addr %s163, 8
      %s165 = scalar_lea.vmem %s3, %s164
      %v167 = vld [vmem:[%s161] sm:$0xff]
      %v168 = vpack.c.bf16 %v167, %v167
      %v169 = vld [vmem:[%s1] sm:$0xf]
      %v170 = vld [vmem:[%s1 + $0x4] sm:$0xf]
      %v171 = vld [vmem:[%s1 + $0x8] sm:$0xf]
      %v172 = vld [vmem:[%s1 + $0xc] sm:$0xf]
      %v173 = vld [vmem:[%s2] sm:$0x1]
      %v175 = vperm.slane %v173, 0
      %v181 = vunpack.c.l.b16 %v169
      %v182 = vunpack.c.l.b16 %v170
      %v183 = vunpack.c.l.b16 %v171
      %v184 = vunpack.c.l.b16 %v172
      %v185 = vpack.c.b16 %v182, %v181
      %v186 = vpack.c.b16 %v184, %v183
      %vm189 = vcmask 261120
      %v191 = vsel %vm189, %v168, 0
      %193 = vmatpush.bf16.msra.mxu0 0
      %194 = vmatpush.bf16.msra.mxu0 0
      %195 = vmatpush.bf16.msra.mxu0 0
      %196 = vmatpush.bf16.msra.mxu0 0
      %197 = vmatpush.bf16.msra.mxu0 0
      %198 = vmatpush.bf16.msra.mxu0 0
      %199 = vmatpush.bf16.msra.mxu0 %v186
      %200 = vmatpush.bf16.msra.mxu0 %v185
      %201 = vmatmul.bf16.gmra.mxu0 %v191
      %v202 = vpop.f32.mrf.mxu0
      %v203 = vadd.f32 %v175, %v202
      %v204 = vpop.f32.mrf.mxu0
      %205 = vdwg.mxu0
      %206 = vst [vmem:[%s165] sm:$0xff] %v203
      %p207 = scmp.lt.s32.totalorder %s14, 1
      %s208 = scalar_select %p207, %s14, 1
      %s209 = smul.addr %s208, 8
      %s210 = scalar_lea.vmem %s3, %s209
      // Predicated region
      $region33: #{ribonanzanet_forward.46} parent=31 // pred_check
        %p211 = pneg %p100
      $region34: #{ribonanzanet_forward.46} parent=31 // pred_check_branch
        %213 = sbr.rel (%p211) target = $region36
      $region35: #{ribonanzanet_forward.46} parent=31 // pred_region
        _
      $region36: #{ribonanzanet_forward.46} parent=31 // pred_fallthru
        _
    $region32: #{ribonanzanet_forward.46} parent=5 // pred_fallthru
      _
    %p214 = scmp.le.s32.totalorder 2, %s9
    // Predicated region
    $region37: #{ribonanzanet_forward.46} parent=5 // pred_check
      %p215 = pneg %p214
    $region38: #{ribonanzanet_forward.46} parent=5 // pred_check_branch
      %217 = sbr.rel (%p215) target = $region40
    $region39: #{ribonanzanet_forward.46} parent=5 // pred_region
      %s218 = ssub.s32 %s9, 2
      // Predicated region
      $region41: #{ribonanzanet_forward.46} parent=39 // pred_check
        %p219 = pneg %p106
      $region42: #{ribonanzanet_forward.46} parent=39 // pred_check_branch
        %221 = sbr.rel (%p219) target = $region44
      $region43: #{ribonanzanet_forward.46} parent=39 // pred_region
        %p222 = scmp.lt.s32.totalorder %s15, 1
        %s223 = scalar_select %p222, %s15, 1
        %s224 = smul.addr %s223, 8
        %s225 = scalar_lea.vmem %s3, %s224
      $region44: #{ribonanzanet_forward.46} parent=39 // pred_fallthru
        _
    $region40: #{ribonanzanet_forward.46} parent=5 // pred_fallthru
      _
  $region6: #{ribonanzanet_forward.46} parent=0 // loop_footer
    %s13 = sadd.s32 1, %s9
  $region7: #{ribonanzanet_forward.46} parent=0 // loop_footer_branch
    %8 = sbr.rel target = $region3
  $region8: #{ribonanzanet_forward.46} parent=0 // loop_exit
    _

// kernel: ribonanzanet_forward.47
$region0: #{ribonanzanet_forward.47}
  #allocation0 [shape = 'u32[]', space=smem, size = 0x4, offset = 0x4, fixed_abs, tag = 'smem constant byte address 0x4 - core index']
  #allocation1 [shape = 'u32[72,128]{1,0:T(1,128)}', space=vmem, size = 0x9000, scoped, tag = 'internal scratch']
  %s0 = inlined_call_operand.vmem [shape: f32[16,128], index: 0, kind: input, shape index: {}]
  %s1 = inlined_call_operand.vmem [shape: bf16[128,32], index: 1, kind: input, shape index: {}]
  %s2 = inlined_call_operand.vmem [shape: f32[1,32], index: 2, kind: input, shape index: {}]
  %s3 = inlined_call_operand.vmem [shape: f32[16,32], index: 3, kind: output, shape index: {}]
  %s4 = sld [smem:[#allocation0]]
  $region45: #{ribonanzanet_forward.47} parent=0
    _
  %s6 = ssub.s32 1, %s4
  %s7 = scalar_select 0, %s6, %s4
  loop: start=0, step=1, limit=4
  $region2: #{ribonanzanet_forward.47} parent=0 // loop_pre_header
    _
  $region3: #{ribonanzanet_forward.47} parent=0 // loop_header
    %s9 = sphi 0, %s13
    %p10 = scmp.ge.s32.totalorder %s9, 4
    %s19 = sphi 0, %s21
    %s22 = sphi 0, %s19
    %s23 = sphi 0, %s22
    %s39 = sphi 0, %s23
    %s43 = sphi 0, %s43
    %s45 = sphi 0, %s43
    %s46 = sphi 0, %s45
    %s60 = sphi 0, %s46
    %s64 = sphi 0, %s64
    %s66 = sphi 0, %s64
    %s67 = sphi 0, %s66
    %s81 = sphi 0, %s67
    %s87 = sphi 0, %s89
    %s90 = sphi 0, %s87
    %s91 = sphi 0, %s90
    %s107 = sphi 0, %s91
  $region4: #{ribonanzanet_forward.47} parent=0 // loop_header_branch
    %12 = sbr.rel (%p10) target = $region8
  $region5: #{ribonanzanet_forward.47} parent=0 // loop_body
    %s14 = ssub.s32 %s9, 1
    %s15 = ssub.s32 %s9, 2
    %s16 = sadd.s32 %s9, 1
    %s17 = ssub.s32 %s9, %s16
    %p18 = scmp.eq.s32.totalorder %s17, 0
    %s20 = sadd.s32 %s19, 1
    %s21 = scalar_select %p18, %s19, %s20
    %p24 = pneg %p18
    %p25 = scmp.eq.s32.totalorder %s9, 1
    %p26 = por %p24, %p25
    %p27 = scmp.ne.s32.totalorder %s19, %s22
    %p28 = scmp.eq.s32.totalorder %s9, 0
    %p29 = por %p27, %p28
    %p30 = scmp.ne.s32.totalorder %s19, %s22
    %p31 = scmp.eq.s32.totalorder %s14, 1
    %p32 = por %p30, %p31
    %p33 = scmp.ne.s32.totalorder %s22, %s23
    %p34 = scmp.eq.s32.totalorder %s14, 0
    %p35 = por %p33, %p34
    %p36 = scmp.ne.s32.totalorder %s22, %s23
    %p37 = scmp.eq.s32.totalorder %s15, 1
    %p38 = por %p36, %p37
    %p40 = scmp.ne.s32.totalorder %s23, %s39
    %p41 = scmp.eq.s32.totalorder %s15, 0
    %p42 = por %p40, %p41
    %s44 = sadd.s32 %s43, 1
    %p47 = scmp.eq.s32.totalorder %s9, 1
    %p48 = scmp.ne.s32.totalorder %s43, %s45
    %p49 = scmp.eq.s32.totalorder %s9, 0
    %p50 = por %p48, %p49
    %p51 = scmp.ne.s32.totalorder %s43, %s45
    %p52 = scmp.eq.s32.totalorder %s14, 1
    %p53 = por %p51, %p52
    %p54 = scmp.ne.s32.totalorder %s45, %s46
    %p55 = scmp.eq.s32.totalorder %s14, 0
    %p56 = por %p54, %p55
    %p57 = scmp.ne.s32.totalorder %s45, %s46
    %p58 = scmp.eq.s32.totalorder %s15, 1
    %p59 = por %p57, %p58
    %p61 = scmp.ne.s32.totalorder %s46, %s60
    %p62 = scmp.eq.s32.totalorder %s15, 0
    %p63 = por %p61, %p62
    %s65 = sadd.s32 %s64, 1
    %p68 = scmp.eq.s32.totalorder %s9, 1
    %p69 = scmp.ne.s32.totalorder %s64, %s66
    %p70 = scmp.eq.s32.totalorder %s9, 0
    %p71 = por %p69, %p70
    %p72 = scmp.ne.s32.totalorder %s64, %s66
    %p73 = scmp.eq.s32.totalorder %s14, 1
    %p74 = por %p72, %p73
    %p75 = scmp.ne.s32.totalorder %s66, %s67
    %p76 = scmp.eq.s32.totalorder %s14, 0
    %p77 = por %p75, %p76
    %p78 = scmp.ne.s32.totalorder %s66, %s67
    %p79 = scmp.eq.s32.totalorder %s15, 1
    %p80 = por %p78, %p79
    %p82 = scmp.ne.s32.totalorder %s67, %s81
    %p83 = scmp.eq.s32.totalorder %s15, 0
    %p84 = por %p82, %p83
    %s85 = ssub.s32 %s9, %s16
    %p86 = scmp.eq.s32.totalorder %s85, 0
    %s88 = sadd.s32 %s87, 1
    %s89 = scalar_select %p86, %s87, %s88
    %p92 = pneg %p86
    %p93 = scmp.eq.s32.totalorder %s9, 1
    %p94 = por %p92, %p93
    %p95 = scmp.ne.s32.totalorder %s87, %s90
    %p96 = scmp.eq.s32.totalorder %s9, 0
    %p97 = por %p95, %p96
    %p98 = scmp.ne.s32.totalorder %s87, %s90
    %p99 = scmp.eq.s32.totalorder %s14, 1
    %p100 = por %p98, %p99
    %p101 = scmp.ne.s32.totalorder %s90, %s91
    %p102 = scmp.eq.s32.totalorder %s14, 0
    %p103 = por %p101, %p102
    %p104 = scmp.ne.s32.totalorder %s90, %s91
    %p105 = scmp.eq.s32.totalorder %s15, 1
    %p106 = por %p104, %p105
    %p108 = scmp.ne.s32.totalorder %s91, %s107
    %p109 = scmp.eq.s32.totalorder %s15, 0
    %p110 = por %p108, %p109
    %p111 = scmp.le.s32.totalorder 1, %s9
    %p112 = scmp.lt.s32.totalorder %s9, 3
    %p113 = pnand %p111, %p112
    %p114 = pneg %p113
    // Predicated region
    $region9: #{ribonanzanet_forward.47} parent=5 // pred_check
      _
    $region10: #{ribonanzanet_forward.47} parent=5 // pred_check_branch
      %116 = sbr.rel (%p113) target = $region12
    $region11: #{ribonanzanet_forward.47} parent=5 // pred_region
      %s117 = ssub.s32 %s9, 1
      // Predicated region
      $region13: #{ribonanzanet_forward.47} parent=11 // pred_check
        %p118 = pneg %p56
      $region14: #{ribonanzanet_forward.47} parent=11 // pred_check_branch
        %120 = sbr.rel (%p118) target = $region16
      $region15: #{ribonanzanet_forward.47} parent=11 // pred_region
        _
      $region16: #{ribonanzanet_forward.47} parent=11 // pred_fallthru
        _
      // Predicated region
      $region17: #{ribonanzanet_forward.47} parent=11 // pred_check
        %p121 = pneg %p77
      $region18: #{ribonanzanet_forward.47} parent=11 // pred_check_branch
        %123 = sbr.rel (%p121) target = $region20
      $region19: #{ribonanzanet_forward.47} parent=11 // pred_region
        _
      $region20: #{ribonanzanet_forward.47} parent=11 // pred_fallthru
        _
    $region12: #{ribonanzanet_forward.47} parent=5 // pred_fallthru
      _
    %p124 = scmp.lt.s32.totalorder %s9, 2
    // Predicated region
    $region21: #{ribonanzanet_forward.47} parent=5 // pred_check
      %p125 = pneg %p124
    $region22: #{ribonanzanet_forward.47} parent=5 // pred_check_branch
      %127 = sbr.rel (%p125) target = $region24
    $region23: #{ribonanzanet_forward.47} parent=5 // pred_region
      // Predicated region
      $region25: #{ribonanzanet_forward.47} parent=23 // pred_check
        %p128 = pneg %p29
      $region26: #{ribonanzanet_forward.47} parent=23 // pred_check_branch
        %130 = sbr.rel (%p128) target = $region28
      $region27: #{ribonanzanet_forward.47} parent=23 // pred_region
        %p131 = scmp.lt.s32.totalorder %s9, 1
        %s132 = scalar_select %p131, %s9, 1
        %s133 = smul.addr %s132, 8
        %s134 = scalar_lea.vmem %s0, %s133
      $region28: #{ribonanzanet_forward.47} parent=23 // pred_fallthru
        _
    $region24: #{ribonanzanet_forward.47} parent=5 // pred_fallthru
      _
    %p135 = scmp.le.s32.totalorder 1, %s9
    %p136 = scmp.lt.s32.totalorder %s9, 3
    %p137 = pnand %p135, %p136
    %p138 = pneg %p137
    // Predicated region
    $region29: #{ribonanzanet_forward.47} parent=5 // pred_check
      _
    $region30: #{ribonanzanet_forward.47} parent=5 // pred_check_branch
      %140 = sbr.rel (%p137) target = $region32
    $region31: #{ribonanzanet_forward.47} parent=5 // pred_region
      %s141 = ssub.s32 %s9, 1
      %p142 = scmp.lt.s32.totalorder %s14, 1
      %s143 = scalar_select %p142, %s14, 1
      %s144 = smul.addr %s143, 8
      %s145 = scalar_lea.vmem %s0, %s144
      %p146 = pneg %p35
      %p147 = pneg %p32
      %p148 = pneg %p56
      %p149 = pneg %p53
      %p150 = pneg %p77
      %p151 = pneg %p74
      %p152 = pneg %p103
      %p153 = pneg %p100
      %p154 = scmp.lt.s32.totalorder %s14, 1
      %s155 = scalar_select %p154, %s14, 1
      %s156 = smul.addr %s155, 8
      %s157 = scalar_lea.vmem %s3, %s156
      %p158 = scmp.lt.s32.totalorder %s14, 1
      %s159 = scalar_select %p158, %s14, 1
      %s160 = smul.addr %s159, 8
      %s161 = scalar_lea.vmem %s0, %s160
      %p162 = scmp.lt.s32.totalorder %s14, 1
      %s163 = scalar_select %p162, %s14, 1
      %s164 = smul.addr %s163, 8
      %s165 = scalar_lea.vmem %s3, %s164
      %v166 = vld [vmem:[%s161] sm:$0xff]
      %v167 = vpack.c.bf16 %v166, %v166
      %v168 = vld [vmem:[%s1] sm:$0xf]
      %v169 = vld [vmem:[%s1 + $0x4] sm:$0xf]
      %v170 = vld [vmem:[%s1 + $0x8] sm:$0xf]
      %v171 = vld [vmem:[%s1 + $0xc] sm:$0xf]
      %v172 = vld [vmem:[%s1 + $0x10] sm:$0xf]
      %v173 = vld [vmem:[%s1 + $0x14] sm:$0xf]
      %v174 = vld [vmem:[%s1 + $0x18] sm:$0xf]
      %v175 = vld [vmem:[%s1 + $0x1c] sm:$0xf]
      %v176 = vld [vmem:[%s1 + $0x20] sm:$0xf]
      %v177 = vld [vmem:[%s1 + $0x24] sm:$0xf]
      %v178 = vld [vmem:[%s1 + $0x28] sm:$0xf]
      %v179 = vld [vmem:[%s1 + $0x2c] sm:$0xf]
      %v180 = vld [vmem:[%s1 + $0x30] sm:$0xf]
      %v181 = vld [vmem:[%s1 + $0x34] sm:$0xf]
      %v182 = vld [vmem:[%s1 + $0x38] sm:$0xf]
      %v183 = vld [vmem:[%s1 + $0x3c] sm:$0xf]
      %v184 = vld [vmem:[%s2] sm:$0x1]
      %v186 = vperm.slane %v184, 0
      %v204 = vunpack.c.l.b16 %v168
      %v205 = vunpack.c.l.b16 %v169
      %v206 = vunpack.c.l.b16 %v170
      %v207 = vunpack.c.l.b16 %v171
      %v208 = vunpack.c.l.b16 %v172
      %v209 = vunpack.c.l.b16 %v173
      %v210 = vunpack.c.l.b16 %v174
      %v211 = vunpack.c.l.b16 %v175
      %v212 = vunpack.c.l.b16 %v176
      %v213 = vunpack.c.l.b16 %v177
      %v214 = vunpack.c.l.b16 %v178
      %v215 = vunpack.c.l.b16 %v179
      %v216 = vunpack.c.l.b16 %v180
      %v217 = vunpack.c.l.b16 %v181
      %v218 = vunpack.c.l.b16 %v182
      %v219 = vunpack.c.l.b16 %v183
      %v220 = vpack.c.b16 %v205, %v204
      %v221 = vpack.c.b16 %v207, %v206
      %v222 = vpack.c.b16 %v209, %v208
      %v223 = vpack.c.b16 %v211, %v210
      %v224 = vpack.c.b16 %v213, %v212
      %v225 = vpack.c.b16 %v215, %v214
      %v226 = vpack.c.b16 %v217, %v216
      %v227 = vpack.c.b16 %v219, %v218
      %236 = vmatpush.bf16.msra.mxu0 %v227
      %237 = vmatpush.bf16.msra.mxu0 %v226
      %238 = vmatpush.bf16.msra.mxu0 %v225
      %239 = vmatpush.bf16.msra.mxu0 %v224
      %240 = vmatpush.bf16.msra.mxu0 %v223
      %241 = vmatpush.bf16.msra.mxu0 %v222
      %242 = vmatpush.bf16.msra.mxu0 %v221
      %243 = vmatpush.bf16.msra.mxu0 %v220
      %244 = vmatmul.bf16.gmra.mxu0 %v167
      %v245 = vpop.f32.mrf.mxu0
      %v246 = vadd.f32 %v186, %v245
      %v247 = vpop.f32.mrf.mxu0
      %248 = vdwg.mxu0
      %vm249 = vcmask 261120
      %250 = vst.msk [vmem:[%s165] sm:$0xff] %vm249, %v246
      %p251 = scmp.lt.s32.totalorder %s14, 1
      %s252 = scalar_select %p251, %s14, 1
      %s253 = smul.addr %s252, 8
      %s254 = scalar_lea.vmem %s3, %s253
      // Predicated region
      $region33: #{ribonanzanet_forward.47} parent=31 // pred_check
        %p255 = pneg %p100
      $region34: #{ribonanzanet_forward.47} parent=31 // pred_check_branch
        %257 = sbr.rel (%p255) target = $region36
      $region35: #{ribonanzanet_forward.47} parent=31 // pred_region
        _
      $region36: #{ribonanzanet_forward.47} parent=31 // pred_fallthru
        _
    $region32: #{ribonanzanet_forward.47} parent=5 // pred_fallthru
      _
    %p258 = scmp.le.s32.totalorder 2, %s9
    // Predicated region
    $region37: #{ribonanzanet_forward.47} parent=5 // pred_check
      %p259 = pneg %p258
    $region38: #{ribonanzanet_forward.47} parent=5 // pred_check_branch
      %261 = sbr.rel (%p259) target = $region40
    $region39: #{ribonanzanet_forward.47} parent=5 // pred_region
      %s262 = ssub.s32 %s9, 2
      // Predicated region
      $region41: #{ribonanzanet_forward.47} parent=39 // pred_check
        %p263 = pneg %p106
      $region42: #{ribonanzanet_forward.47} parent=39 // pred_check_branch
        %265 = sbr.rel (%p263) target = $region44
      $region43: #{ribonanzanet_forward.47} parent=39 // pred_region
        %p266 = scmp.lt.s32.totalorder %s15, 1
        %s267 = scalar_select %p266, %s15, 1
        %s268 = smul.addr %s267, 8
        %s269 = scalar_lea.vmem %s3, %s268
      $region44: #{ribonanzanet_forward.47} parent=39 // pred_fallthru
        _
    $region40: #{ribonanzanet_forward.47} parent=5 // pred_fallthru
      _
  $region6: #{ribonanzanet_forward.47} parent=0 // loop_footer
    %s13 = sadd.s32 1, %s9
  $region7: #{ribonanzanet_forward.47} parent=0 // loop_footer_branch
    %8 = sbr.rel target = $region3
  $region8: #{ribonanzanet_forward.47} parent=0 // loop_exit
    _

// kernel: ribonanzanet_forward.52
$region0: #{ribonanzanet_forward.52}
  #allocation0 [shape = 'u32[]', space=smem, size = 0x4, offset = 0x4, fixed_abs, tag = 'smem constant byte address 0x4 - core index']
  #allocation1 [shape = 'u32[72,128]{1,0:T(1,128)}', space=vmem, size = 0x9000, scoped, tag = 'internal scratch']
  %s0 = inlined_call_operand.vmem [shape: f32[128,16], index: 0, kind: input, shape index: {}]
  %s1 = inlined_call_operand.vmem [shape: f32[128,1], index: 1, kind: input, shape index: {}]
  %s2 = inlined_call_operand.vmem [shape: bf16[16,64], index: 2, kind: input, shape index: {}]
  %s3 = inlined_call_operand.vmem [shape: f32[1,64], index: 3, kind: input, shape index: {}]
  %s4 = inlined_call_operand.vmem [shape: f32[1,16], index: 4, kind: input, shape index: {}]
  %s5 = inlined_call_operand.vmem [shape: f32[1,16], index: 5, kind: input, shape index: {}]
  %s6 = inlined_call_operand.vmem [shape: bf16[128,16], index: 6, kind: output, shape index: {0}]
  %s7 = inlined_call_operand.vmem [shape: bf16[128,16], index: 7, kind: output, shape index: {1}]
  %8 = xla_tuple %s6, %s7
  %s9 = sld [smem:[#allocation0]]
  $region65: #{ribonanzanet_forward.52} parent=0
    _
  %s11 = ssub.s32 1, %s9
  %s12 = scalar_select 0, %s11, %s9
  loop: start=0, step=1, limit=4
  $region2: #{ribonanzanet_forward.52} parent=0 // loop_pre_header
    _
  $region3: #{ribonanzanet_forward.52} parent=0 // loop_header
    %s14 = sphi 0, %s18
    %p15 = scmp.ge.s32.totalorder %s14, 4
    %s24 = sphi 0, %s26
    %s27 = sphi 0, %s24
    %s28 = sphi 0, %s27
    %s44 = sphi 0, %s28
    %s50 = sphi 0, %s52
    %s53 = sphi 0, %s50
    %s54 = sphi 0, %s53
    %s70 = sphi 0, %s54
    %s74 = sphi 0, %s74
    %s76 = sphi 0, %s74
    %s77 = sphi 0, %s76
    %s91 = sphi 0, %s77
    %s95 = sphi 0, %s95
    %s97 = sphi 0, %s95
    %s98 = sphi 0, %s97
    %s112 = sphi 0, %s98
    %s116 = sphi 0, %s116
    %s118 = sphi 0, %s116
    %s119 = sphi 0, %s118
    %s133 = sphi 0, %s119
    %s137 = sphi 0, %s137
    %s139 = sphi 0, %s137
    %s140 = sphi 0, %s139
    %s154 = sphi 0, %s140
    %s160 = sphi 0, %s162
    %s163 = sphi 0, %s160
    %s164 = sphi 0, %s163
    %s180 = sphi 0, %s164
    %s186 = sphi 0, %s188
    %s189 = sphi 0, %s186
    %s190 = sphi 0, %s189
    %s206 = sphi 0, %s190
  $region4: #{ribonanzanet_forward.52} parent=0 // loop_header_branch
    %17 = sbr.rel (%p15) target = $region8
  $region5: #{ribonanzanet_forward.52} parent=0 // loop_body
    %s19 = ssub.s32 %s14, 1
    %s20 = ssub.s32 %s14, 2
    %s21 = sadd.s32 %s14, 1
    %s22 = ssub.s32 %s14, %s21
    %p23 = scmp.eq.s32.totalorder %s22, 0
    %s25 = sadd.s32 %s24, 1
    %s26 = scalar_select %p23, %s24, %s25
    %p29 = pneg %p23
    %p30 = scmp.eq.s32.totalorder %s14, 1
    %p31 = por %p29, %p30
    %p32 = scmp.ne.s32.totalorder %s24, %s27
    %p33 = scmp.eq.s32.totalorder %s14, 0
    %p34 = por %p32, %p33
    %p35 = scmp.ne.s32.totalorder %s24, %s27
    %p36 = scmp.eq.s32.totalorder %s19, 1
    %p37 = por %p35, %p36
    %p38 = scmp.ne.s32.totalorder %s27, %s28
    %p39 = scmp.eq.s32.totalorder %s19, 0
    %p40 = por %p38, %p39
    %p41 = scmp.ne.s32.totalorder %s27, %s28
    %p42 = scmp.eq.s32.totalorder %s20, 1
    %p43 = por %p41, %p42
    %p45 = scmp.ne.s32.totalorder %s28, %s44
    %p46 = scmp.eq.s32.totalorder %s20, 0
    %p47 = por %p45, %p46
    %s48 = ssub.s32 %s14, %s21
    %p49 = scmp.eq.s32.totalorder %s48, 0
    %s51 = sadd.s32 %s50, 1
    %s52 = scalar_select %p49, %s50, %s51
    %p55 = pneg %p49
    %p56 = scmp.eq.s32.totalorder %s14, 1
    %p57 = por %p55, %p56
    %p58 = scmp.ne.s32.totalorder %s50, %s53
    %p59 = scmp.eq.s32.totalorder %s14, 0
    %p60 = por %p58, %p59
    %p61 = scmp.ne.s32.totalorder %s50, %s53
    %p62 = scmp.eq.s32.totalorder %s19, 1
    %p63 = por %p61, %p62
    %p64 = scmp.ne.s32.totalorder %s53, %s54
    %p65 = scmp.eq.s32.totalorder %s19, 0
    %p66 = por %p64, %p65
    %p67 = scmp.ne.s32.totalorder %s53, %s54
    %p68 = scmp.eq.s32.totalorder %s20, 1
    %p69 = por %p67, %p68
    %p71 = scmp.ne.s32.totalorder %s54, %s70
    %p72 = scmp.eq.s32.totalorder %s20, 0
    %p73 = por %p71, %p72
    %s75 = sadd.s32 %s74, 1
    %p78 = scmp.eq.s32.totalorder %s14, 1
    %p79 = scmp.ne.s32.totalorder %s74, %s76
    %p80 = scmp.eq.s32.totalorder %s14, 0
    %p81 = por %p79, %p80
    %p82 = scmp.ne.s32.totalorder %s74, %s76
    %p83 = scmp.eq.s32.totalorder %s19, 1
    %p84 = por %p82, %p83
    %p85 = scmp.ne.s32.totalorder %s76, %s77
    %p86 = scmp.eq.s32.totalorder %s19, 0
    %p87 = por %p85, %p86
    %p88 = scmp.ne.s32.totalorder %s76, %s77
    %p89 = scmp.eq.s32.totalorder %s20, 1
    %p90 = por %p88, %p89
    %p92 = scmp.ne.s32.totalorder %s77, %s91
    %p93 = scmp.eq.s32.totalorder %s20, 0
    %p94 = por %p92, %p93
    %s96 = sadd.s32 %s95, 1
    %p99 = scmp.eq.s32.totalorder %s14, 1
    %p100 = scmp.ne.s32.totalorder %s95, %s97
    %p101 = scmp.eq.s32.totalorder %s14, 0
    %p102 = por %p100, %p101
    %p103 = scmp.ne.s32.totalorder %s95, %s97
    %p104 = scmp.eq.s32.totalorder %s19, 1
    %p105 = por %p103, %p104
    %p106 = scmp.ne.s32.totalorder %s97, %s98
    %p107 = scmp.eq.s32.totalorder %s19, 0
    %p108 = por %p106, %p107
    %p109 = scmp.ne.s32.totalorder %s97, %s98
    %p110 = scmp.eq.s32.totalorder %s20, 1
    %p111 = por %p109, %p110
    %p113 = scmp.ne.s32.totalorder %s98, %s112
    %p114 = scmp.eq.s32.totalorder %s20, 0
    %p115 = por %p113, %p114
    %s117 = sadd.s32 %s116, 1
    %p120 = scmp.eq.s32.totalorder %s14, 1
    %p121 = scmp.ne.s32.totalorder %s116, %s118
    %p122 = scmp.eq.s32.totalorder %s14, 0
    %p123 = por %p121, %p122
    %p124 = scmp.ne.s32.totalorder %s116, %s118
    %p125 = scmp.eq.s32.totalorder %s19, 1
    %p126 = por %p124, %p125
    %p127 = scmp.ne.s32.totalorder %s118, %s119
    %p128 = scmp.eq.s32.totalorder %s19, 0
    %p129 = por %p127, %p128
    %p130 = scmp.ne.s32.totalorder %s118, %s119
    %p131 = scmp.eq.s32.totalorder %s20, 1
    %p132 = por %p130, %p131
    %p134 = scmp.ne.s32.totalorder %s119, %s133
    %p135 = scmp.eq.s32.totalorder %s20, 0
    %p136 = por %p134, %p135
    %s138 = sadd.s32 %s137, 1
    %p141 = scmp.eq.s32.totalorder %s14, 1
    %p142 = scmp.ne.s32.totalorder %s137, %s139
    %p143 = scmp.eq.s32.totalorder %s14, 0
    %p144 = por %p142, %p143
    %p145 = scmp.ne.s32.totalorder %s137, %s139
    %p146 = scmp.eq.s32.totalorder %s19, 1
    %p147 = por %p145, %p146
    %p148 = scmp.ne.s32.totalorder %s139, %s140
    %p149 = scmp.eq.s32.totalorder %s19, 0
    %p150 = por %p148, %p149
    %p151 = scmp.ne.s32.totalorder %s139, %s140
    %p152 = scmp.eq.s32.totalorder %s20, 1
    %p153 = por %p151, %p152
    %p155 = scmp.ne.s32.totalorder %s140, %s154
    %p156 = scmp.eq.s32.totalorder %s20, 0
    %p157 = por %p155, %p156
    %s158 = ssub.s32 %s14, %s21
    %p159 = scmp.eq.s32.totalorder %s158, 0
    %s161 = sadd.s32 %s160, 1
    %s162 = scalar_select %p159, %s160, %s161
    %p165 = pneg %p159
    %p166 = scmp.eq.s32.totalorder %s14, 1
    %p167 = por %p165, %p166
    %p168 = scmp.ne.s32.totalorder %s160, %s163
    %p169 = scmp.eq.s32.totalorder %s14, 0
    %p170 = por %p168, %p169
    %p171 = scmp.ne.s32.totalorder %s160, %s163
    %p172 = scmp.eq.s32.totalorder %s19, 1
    %p173 = por %p171, %p172
    %p174 = scmp.ne.s32.totalorder %s163, %s164
    %p175 = scmp.eq.s32.totalorder %s19, 0
    %p176 = por %p174, %p175
    %p177 = scmp.ne.s32.totalorder %s163, %s164
    %p178 = scmp.eq.s32.totalorder %s20, 1
    %p179 = por %p177, %p178
    %p181 = scmp.ne.s32.totalorder %s164, %s180
    %p182 = scmp.eq.s32.totalorder %s20, 0
    %p183 = por %p181, %p182
    %s184 = ssub.s32 %s14, %s21
    %p185 = scmp.eq.s32.totalorder %s184, 0
    %s187 = sadd.s32 %s186, 1
    %s188 = scalar_select %p185, %s186, %s187
    %p191 = pneg %p185
    %p192 = scmp.eq.s32.totalorder %s14, 1
    %p193 = por %p191, %p192
    %p194 = scmp.ne.s32.totalorder %s186, %s189
    %p195 = scmp.eq.s32.totalorder %s14, 0
    %p196 = por %p194, %p195
    %p197 = scmp.ne.s32.totalorder %s186, %s189
    %p198 = scmp.eq.s32.totalorder %s19, 1
    %p199 = por %p197, %p198
    %p200 = scmp.ne.s32.totalorder %s189, %s190
    %p201 = scmp.eq.s32.totalorder %s19, 0
    %p202 = por %p200, %p201
    %p203 = scmp.ne.s32.totalorder %s189, %s190
    %p204 = scmp.eq.s32.totalorder %s20, 1
    %p205 = por %p203, %p204
    %p207 = scmp.ne.s32.totalorder %s190, %s206
    %p208 = scmp.eq.s32.totalorder %s20, 0
    %p209 = por %p207, %p208
    %p210 = scmp.le.s32.totalorder 1, %s14
    %p211 = scmp.lt.s32.totalorder %s14, 3
    %p212 = pnand %p210, %p211
    %p213 = pneg %p212
    // Predicated region
    $region9: #{ribonanzanet_forward.52} parent=5 // pred_check
      _
    $region10: #{ribonanzanet_forward.52} parent=5 // pred_check_branch
      %215 = sbr.rel (%p212) target = $region12
    $region11: #{ribonanzanet_forward.52} parent=5 // pred_region
      %s216 = ssub.s32 %s14, 1
      // Predicated region
      $region13: #{ribonanzanet_forward.52} parent=11 // pred_check
        %p217 = pneg %p87
      $region14: #{ribonanzanet_forward.52} parent=11 // pred_check_branch
        %219 = sbr.rel (%p217) target = $region16
      $region15: #{ribonanzanet_forward.52} parent=11 // pred_region
        _
      $region16: #{ribonanzanet_forward.52} parent=11 // pred_fallthru
        _
      // Predicated region
      $region17: #{ribonanzanet_forward.52} parent=11 // pred_check
        %p220 = pneg %p108
      $region18: #{ribonanzanet_forward.52} parent=11 // pred_check_branch
        %222 = sbr.rel (%p220) target = $region20
      $region19: #{ribonanzanet_forward.52} parent=11 // pred_region
        _
      $region20: #{ribonanzanet_forward.52} parent=11 // pred_fallthru
        _
      // Predicated region
      $region21: #{ribonanzanet_forward.52} parent=11 // pred_check
        %p223 = pneg %p129
      $region22: #{ribonanzanet_forward.52} parent=11 // pred_check_branch
        %225 = sbr.rel (%p223) target = $region24
      $region23: #{ribonanzanet_forward.52} parent=11 // pred_region
        _
      $region24: #{ribonanzanet_forward.52} parent=11 // pred_fallthru
        _
      // Predicated region
      $region25: #{ribonanzanet_forward.52} parent=11 // pred_check
        %p226 = pneg %p150
      $region26: #{ribonanzanet_forward.52} parent=11 // pred_check_branch
        %228 = sbr.rel (%p226) target = $region28
      $region27: #{ribonanzanet_forward.52} parent=11 // pred_region
        _
      $region28: #{ribonanzanet_forward.52} parent=11 // pred_fallthru
        _
    $region12: #{ribonanzanet_forward.52} parent=5 // pred_fallthru
      _
    %p229 = scmp.lt.s32.totalorder %s14, 2
    // Predicated region
    $region29: #{ribonanzanet_forward.52} parent=5 // pred_check
      %p230 = pneg %p229
    $region30: #{ribonanzanet_forward.52} parent=5 // pred_check_branch
      %232 = sbr.rel (%p230) target = $region32
    $region31: #{ribonanzanet_forward.52} parent=5 // pred_region
      // Predicated region
      $region33: #{ribonanzanet_forward.52} parent=31 // pred_check
        %p233 = pneg %p34
      $region34: #{ribonanzanet_forward.52} parent=31 // pred_check_branch
        %235 = sbr.rel (%p233) target = $region36
      $region35: #{ribonanzanet_forward.52} parent=31 // pred_region
        %s236 = smul.u32 8, %s14
        %p237 = scmp.lt.s32.totalorder %s236, 15
        %s238 = scalar_select %p237, %s236, 15
        %s239 = smul.addr %s238, 8
        %s240 = scalar_lea.vmem %s0, %s239
        %s241 = smul.u32 8, %s14
      $region36: #{ribonanzanet_forward.52} parent=31 // pred_fallthru
        _
      // Predicated region
      $region37: #{ribonanzanet_forward.52} parent=31 // pred_check
        %p242 = pneg %p60
      $region38: #{ribonanzanet_forward.52} parent=31 // pred_check_branch
        %244 = sbr.rel (%p242) target = $region40
      $region39: #{ribonanzanet_forward.52} parent=31 // pred_region
        %s245 = smul.u32 8, %s14
        %p246 = scmp.lt.s32.totalorder %s245, 15
        %s247 = scalar_select %p246, %s245, 15
        %s248 = smul.addr %s247, 8
        %s249 = scalar_lea.vmem %s1, %s248
        %s250 = smul.u32 8, %s14
      $region40: #{ribonanzanet_forward.52} parent=31 // pred_fallthru
        _
    $region32: #{ribonanzanet_forward.52} parent=5 // pred_fallthru
      _
    %p251 = scmp.le.s32.totalorder 1, %s14
    %p252 = scmp.lt.s32.totalorder %s14, 3
    %p253 = pnand %p251, %p252
    %p254 = pneg %p253
    // Predicated region
    $region41: #{ribonanzanet_forward.52} parent=5 // pred_check
      _
    $region42: #{ribonanzanet_forward.52} parent=5 // pred_check_branch
      %256 = sbr.rel (%p253) target = $region44
    $region43: #{ribonanzanet_forward.52} parent=5 // pred_region
      %s257 = ssub.s32 %s14, 1
      %s258 = smul.u32 8, %s19
      %p259 = scmp.lt.s32.totalorder %s258, 15
      %s260 = scalar_select %p259, %s258, 15
      %s261 = smul.addr %s260, 8
      %s262 = scalar_lea.vmem %s0, %s261
      %p263 = pneg %p40
      %p264 = pneg %p37
      %s265 = smul.u32 8, %s19
      %p266 = scmp.lt.s32.totalorder %s265, 15
      %s267 = scalar_select %p266, %s265, 15
      %s268 = smul.addr %s267, 8
      %s269 = scalar_lea.vmem %s1, %s268
      %p270 = pneg %p66
      %p271 = pneg %p63
      %p272 = pneg %p87
      %p273 = pneg %p84
      %p274 = pneg %p108
      %p275 = pneg %p105
      %p276 = pneg %p129
      %p277 = pneg %p126
      %p278 = pneg %p150
      %p279 = pneg %p147
      %p280 = pneg %p176
      %p281 = pneg %p173
      %s282 = smul.u32 8, %s19
      %p283 = scmp.lt.s32.totalorder %s282, 15
      %s284 = scalar_select %p283, %s282, 15
      %s285 = smul.addr %s284, 4
      %s286 = scalar_lea.vmem %s6, %s285
      %p287 = pneg %p202
      %p288 = pneg %p199
      %s289 = smul.u32 8, %s19
      %p290 = scmp.lt.s32.totalorder %s289, 15
      %s291 = scalar_select %p290, %s289, 15
      %s292 = smul.addr %s291, 4
      %s293 = scalar_lea.vmem %s7, %s292
      %s294 = smul.u32 8, %s19
      %p295 = scmp.lt.s32.totalorder %s294, 15
      %s296 = scalar_select %p295, %s294, 15
      %s297 = smul.addr %s296, 8
      %s298 = scalar_lea.vmem %s0, %s297
      %s299 = smul.u32 8, %s19
      %s300 = smul.u32 8, %s19
      %p301 = scmp.lt.s32.totalorder %s300, 15
      %s302 = scalar_select %p301, %s300, 15
      %s303 = smul.addr %s302, 8
      %s304 = scalar_lea.vmem %s1, %s303
      %s305 = smul.u32 8, %s19
      %s306 = smul.u32 8, %s19
      %p307 = scmp.lt.s32.totalorder %s306, 15
      %s308 = scalar_select %p307, %s306, 15
      %s309 = smul.addr %s308, 4
      %s310 = scalar_lea.vmem %s6, %s309
      %s311 = smul.u32 8, %s19
      %s312 = smul.u32 8, %s19
      %p313 = scmp.lt.s32.totalorder %s312, 15
      %s314 = scalar_select %p313, %s312, 15
      %s315 = smul.addr %s314, 4
      %s316 = scalar_lea.vmem %s7, %s315
      %s317 = smul.u32 8, %s19
      %v319 = vld [vmem:[%s298] sm:$0xff]
      %v320 = vld [vmem:[%s298 + $0x8] sm:$0xff]
      %v321 = vld [vmem:[%s298 + $0x10] sm:$0xff]
      %v322 = vld [vmem:[%s298 + $0x18] sm:$0xff]
      %v323 = vld [vmem:[%s298 + $0x20] sm:$0xff]
      %v324 = vld [vmem:[%s298 + $0x28] sm:$0xff]
      %v325 = vld [vmem:[%s298 + $0x30] sm:$0xff]
      %v326 = vld [vmem:[%s298 + $0x38] sm:$0xff]
      %vm327 = vcmask 130048
      %v328 = vsel %vm327, %v319, 0.0
      %329 = vadd.xlane.f32.xlu0 %v328
      %v330 = vpop.xlane.xlu0 %329
      %v331 = vsel %vm327, %v320, 0.0
      %332 = vadd.xlane.f32.xlu0 %v331
      %v333 = vpop.xlane.xlu0 %332
      %v334 = vsel %vm327, %v321, 0.0
      %335 = vadd.xlane.f32.xlu0 %v334
      %v336 = vpop.xlane.xlu0 %335
      %v337 = vsel %vm327, %v322, 0.0
      %338 = vadd.xlane.f32.xlu0 %v337
      %v339 = vpop.xlane.xlu0 %338
      %v340 = vsel %vm327, %v323, 0.0
      %341 = vadd.xlane.f32.xlu0 %v340
      %v342 = vpop.xlane.xlu0 %341
      %v343 = vsel %vm327, %v324, 0.0
      %344 = vadd.xlane.f32.xlu0 %v343
      %v345 = vpop.xlane.xlu0 %344
      %v346 = vsel %vm327, %v325, 0.0
      %347 = vadd.xlane.f32.xlu0 %v346
      %v348 = vpop.xlane.xlu0 %347
      %v349 = vsel %vm327, %v326, 0.0
      %350 = vadd.xlane.f32.xlu0 %v349
      %v351 = vpop.xlane.xlu0 %350
      %v352 = vrcp.pop 16.0
      %v353 = vmul.f32 16.0, %v352
      %v354 = vsub.f32 1.0, %v353
      %v355 = vmul.f32 %v352, %v354
      %v356 = vadd.f32 %v352, %v355
      %vm357 = vweird.f32 %v352
      %v358 = vsel %vm357, %v352, %v356
      %v359 = vmul.f32 %v330, %v358
      %v360 = vmul.f32 %v333, %v358
      %v361 = vmul.f32 %v336, %v358
      %v362 = vmul.f32 %v339, %v358
      %v363 = vmul.f32 %v342, %v358
      %v364 = vmul.f32 %v345, %v358
      %v365 = vmul.f32 %v348, %v358
      %v366 = vmul.f32 %v351, %v358
      %v367 = vsub.f32 %v319, %v359
      %v368 = vsub.f32 %v320, %v360
      %v369 = vsub.f32 %v321, %v361
      %v370 = vsub.f32 %v322, %v362
      %v371 = vsub.f32 %v323, %v363
      %v372 = vsub.f32 %v324, %v364
      %v373 = vsub.f32 %v325, %v365
      %v374 = vsub.f32 %v326, %v366
      %v375 = vmul.f32 %v367, %v367
      %v376 = vmul.f32 %v368, %v368
      %v377 = vmul.f32 %v369, %v369
      %v378 = vmul.f32 %v370, %v370
      %v379 = vmul.f32 %v371, %v371
      %v380 = vmul.f32 %v372, %v372
      %v381 = vmul.f32 %v373, %v373
      %v382 = vmul.f32 %v374, %v374
      %v383 = vsel %vm327, %v375, 0.0
      %384 = vadd.xlane.f32.xlu0 %v383
      %v385 = vpop.xlane.xlu0 %384
      %v386 = vsel %vm327, %v376, 0.0
      %387 = vadd.xlane.f32.xlu0 %v386
      %v388 = vpop.xlane.xlu0 %387
      %v389 = vsel %vm327, %v377, 0.0
      %390 = vadd.xlane.f32.xlu0 %v389
      %v391 = vpop.xlane.xlu0 %390
      %v392 = vsel %vm327, %v378, 0.0
      %393 = vadd.xlane.f32.xlu0 %v392
      %v394 = vpop.xlane.xlu0 %393
      %v395 = vsel %vm327, %v379, 0.0
      %396 = vadd.xlane.f32.xlu0 %v395
      %v397 = vpop.xlane.xlu0 %396
      %v398 = vsel %vm327, %v380, 0.0
      %399 = vadd.xlane.f32.xlu0 %v398
      %v400 = vpop.xlane.xlu0 %399
      %v401 = vsel %vm327, %v381, 0.0
      %402 = vadd.xlane.f32.xlu0 %v401
      %v403 = vpop.xlane.xlu0 %402
      %v404 = vsel %vm327, %v382, 0.0
      %405 = vadd.xlane.f32.xlu0 %v404
      %v406 = vpop.xlane.xlu0 %405
      %v407 = vmul.f32 %v385, %v358
      %v408 = vmul.f32 %v388, %v358
      %v409 = vmul.f32 %v391, %v358
      %v410 = vmul.f32 %v394, %v358
      %v411 = vmul.f32 %v397, %v358
      %v412 = vmul.f32 %v400, %v358
      %v413 = vmul.f32 %v403, %v358
      %v414 = vmul.f32 %v406, %v358
      %v415 = vadd.f32 %v407, 1e-05
      %v416 = vadd.f32 %v408, 1e-05
      %v417 = vadd.f32 %v409, 1e-05
      %v418 = vadd.f32 %v410, 1e-05
      %v419 = vadd.f32 %v411, 1e-05
      %v420 = vadd.f32 %v412, 1e-05
      %v421 = vadd.f32 %v413, 1e-05
      %v422 = vadd.f32 %v414, 1e-05
      %v423 = vrsqrt.pop %v415
      %v424 = vmul.f32 %v423, %v415
      %v425 = vmul.f32 %v424, %v423
      %v426 = vmul.f32 0.5, %v425
      %v427 = vsub.f32 1.5, %v426
      %v428 = vmul.f32 %v423, %v427
      %vm429 = vweird.f32 %v415
      %vm430 = vweird.f32 %v423
      %vm431 = vmor %vm429, %vm430
      %v432 = vsel %vm431, %v423, %v428
      %v433 = vrsqrt.pop %v416
      %v434 = vmul.f32 %v433, %v416
      %v435 = vmul.f32 %v434, %v433
      %v436 = vmul.f32 0.5, %v435
      %v437 = vsub.f32 1.5, %v436
      %v438 = vmul.f32 %v433, %v437
      %vm439 = vweird.f32 %v416
      %vm440 = vweird.f32 %v433
      %vm441 = vmor %vm439, %vm440
      %v442 = vsel %vm441, %v433, %v438
      %v443 = vrsqrt.pop %v417
      %v444 = vmul.f32 %v443, %v417
      %v445 = vmul.f32 %v444, %v443
      %v446 = vmul.f32 0.5, %v445
      %v447 = vsub.f32 1.5, %v446
      %v448 = vmul.f32 %v443, %v447
      %vm449 = vweird.f32 %v417
      %vm450 = vweird.f32 %v443
      %vm451 = vmor %vm449, %vm450
      %v452 = vsel %vm451, %v443, %v448
      %v453 = vrsqrt.pop %v418
      %v454 = vmul.f32 %v453, %v418
      %v455 = vmul.f32 %v454, %v453
      %v456 = vmul.f32 0.5, %v455
      %v457 = vsub.f32 1.5, %v456
      %v458 = vmul.f32 %v453, %v457
      %vm459 = vweird.f32 %v418
      %vm460 = vweird.f32 %v453
      %vm461 = vmor %vm459, %vm460
      %v462 = vsel %vm461, %v453, %v458
      %v463 = vrsqrt.pop %v419
      %v464 = vmul.f32 %v463, %v419
      %v465 = vmul.f32 %v464, %v463
      %v466 = vmul.f32 0.5, %v465
      %v467 = vsub.f32 1.5, %v466
      %v468 = vmul.f32 %v463, %v467
      %vm469 = vweird.f32 %v419
      %vm470 = vweird.f32 %v463
      %vm471 = vmor %vm469, %vm470
      %v472 = vsel %vm471, %v463, %v468
      %v473 = vrsqrt.pop %v420
      %v474 = vmul.f32 %v473, %v420
      %v475 = vmul.f32 %v474, %v473
      %v476 = vmul.f32 0.5, %v475
      %v477 = vsub.f32 1.5, %v476
      %v478 = vmul.f32 %v473, %v477
      %vm479 = vweird.f32 %v420
      %vm480 = vweird.f32 %v473
      %vm481 = vmor %vm479, %vm480
      %v482 = vsel %vm481, %v473, %v478
      %v483 = vrsqrt.pop %v421
      %v484 = vmul.f32 %v483, %v421
      %v485 = vmul.f32 %v484, %v483
      %v486 = vmul.f32 0.5, %v485
      %v487 = vsub.f32 1.5, %v486
      %v488 = vmul.f32 %v483, %v487
      %vm489 = vweird.f32 %v421
      %vm490 = vweird.f32 %v483
      %vm491 = vmor %vm489, %vm490
      %v492 = vsel %vm491, %v483, %v488
      %v493 = vrsqrt.pop %v422
      %v494 = vmul.f32 %v493, %v422
      %v495 = vmul.f32 %v494, %v493
      %v496 = vmul.f32 0.5, %v495
      %v497 = vsub.f32 1.5, %v496
      %v498 = vmul.f32 %v493, %v497
      %vm499 = vweird.f32 %v422
      %vm500 = vweird.f32 %v493
      %vm501 = vmor %vm499, %vm500
      %v502 = vsel %vm501, %v493, %v498
      %v503 = vmul.f32 %v367, %v432
      %v504 = vmul.f32 %v368, %v442
      %v505 = vmul.f32 %v369, %v452
      %v506 = vmul.f32 %v370, %v462
      %v507 = vmul.f32 %v371, %v472
      %v508 = vmul.f32 %v372, %v482
      %v509 = vmul.f32 %v373, %v492
      %v510 = vmul.f32 %v374, %v502
      %v511 = vld [vmem:[%s4] sm:$0x1]
      %v513 = vperm.slane %v511, 0
      %v515 = vmul.f32 %v503, %v513
      %v516 = vmul.f32 %v504, %v513
      %v517 = vmul.f32 %v505, %v513
      %v518 = vmul.f32 %v506, %v513
      %v519 = vmul.f32 %v507, %v513
      %v520 = vmul.f32 %v508, %v513
      %v521 = vmul.f32 %v509, %v513
      %v522 = vmul.f32 %v510, %v513
      %v523 = vld [vmem:[%s5] sm:$0x1]
      %v525 = vperm.slane %v523, 0
      %v527 = vadd.f32 %v515, %v525
      %v528 = vadd.f32 %v516, %v525
      %v529 = vadd.f32 %v517, %v525
      %v530 = vadd.f32 %v518, %v525
      %v531 = vadd.f32 %v519, %v525
      %v532 = vadd.f32 %v520, %v525
      %v533 = vadd.f32 %v521, %v525
      %v534 = vadd.f32 %v522, %v525
      %v535 = vpack.c.bf16 %v528, %v527
      %v536 = vpack.c.bf16 %v530, %v529
      %v537 = vpack.c.bf16 %v532, %v531
      %v538 = vpack.c.bf16 %v534, %v533
      %v539 = vld [vmem:[%s2] sm:$0xf]
      %v540 = vld [vmem:[%s2 + $0x4] sm:$0xf]
      %v541 = vld [vmem:[%s3] sm:$0x1]
      %v543 = vperm.slane %v541, 0
      %v547 = vunpack.c.l.b16 %v539
      %v548 = vunpack.c.l.b16 %v540
      %v549 = vpack.c.b16 %v548, %v547
      %v552 = vsel %vm327, %v535, 0
      %v555 = vsel %vm327, %v536, 0
      %v558 = vsel %vm327, %v537, 0
      %v561 = vsel %vm327, %v538, 0
      %563 = vmatpush.bf16.msra.mxu0 0
      %564 = vmatpush.bf16.msra.mxu0 0
      %565 = vmatpush.bf16.msra.mxu0 0
      %566 = vmatpush.bf16.msra.mxu0 0
      %567 = vmatpush.bf16.msra.mxu0 0
      %568 = vmatpush.bf16.msra.mxu0 0
      %569 = vmatpush.bf16.msra.mxu0 0
      %570 = vmatpush.bf16.msra.mxu0 %v549
      %571 = vmatmul.bf16.gmra.mxu0 %v552
      %v572 = vpop.f32.mrf.mxu0
      %v573 = vadd.f32 %v543, %v572
      %v574 = vpop.f32.mrf.mxu0
      %v575 = vadd.f32 %v543, %v574
      %576 = vmatmul.bf16.gmra.mxu0 %v555
      %v577 = vpop.f32.mrf.mxu0
      %v578 = vadd.f32 %v543, %v577
      %v579 = vpop.f32.mrf.mxu0
      %v580 = vadd.f32 %v543, %v579
      %581 = vmatmul.bf16.gmra.mxu0 %v558
      %v582 = vpop.f32.mrf.mxu0
      %v583 = vadd.f32 %v543, %v582
      %v584 = vpop.f32.mrf.mxu0
      %v585 = vadd.f32 %v543, %v584
      %586 = vmatmul.bf16.gmra.mxu0 %v561
      %v587 = vpop.f32.mrf.mxu0
      %v588 = vadd.f32 %v543, %v587
      %v589 = vpop.f32.mrf.mxu0
      %v590 = vadd.f32 %v543, %v589
      %591 = vdwg.mxu0
      %v592 = vld [vmem:[%s304] sm:$0xff]
      %v593 = vld [vmem:[%s304 + $0x8] sm:$0xff]
      %v594 = vld [vmem:[%s304 + $0x10] sm:$0xff]
      %v595 = vld [vmem:[%s304 + $0x18] sm:$0xff]
      %v596 = vld [vmem:[%s304 + $0x20] sm:$0xff]
      %v597 = vld [vmem:[%s304 + $0x28] sm:$0xff]
      %v598 = vld [vmem:[%s304 + $0x30] sm:$0xff]
      %v599 = vld [vmem:[%s304 + $0x38] sm:$0xff]
      %601 = vset.pattern.permute.xlu0 0
      %602 = vperm.xlu0 %601, %v592
      %v603 = vpop.permute.xlu0 %602
      %606 = vset.pattern.permute.xlu0 0
      %607 = vperm.xlu0 %606, %v593
      %v608 = vpop.permute.xlu0 %607
      %611 = vset.pattern.permute.xlu0 0
      %612 = vperm.xlu0 %611, %v594
      %v613 = vpop.permute.xlu0 %612
      %616 = vset.pattern.permute.xlu0 0
      %617 = vperm.xlu0 %616, %v595
      %v618 = vpop.permute.xlu0 %617
      %621 = vset.pattern.permute.xlu0 0
      %622 = vperm.xlu0 %621, %v596
      %v623 = vpop.permute.xlu0 %622
      %626 = vset.pattern.permute.xlu0 0
      %627 = vperm.xlu0 %626, %v597
      %v628 = vpop.permute.xlu0 %627
      %631 = vset.pattern.permute.xlu0 0
      %632 = vperm.xlu0 %631, %v598
      %v633 = vpop.permute.xlu0 %632
      %636 = vset.pattern.permute.xlu0 0
      %637 = vperm.xlu0 %636, %v599
      %v638 = vpop.permute.xlu0 %637
      %v640 = vmul.f32 %v573, %v603
      %v641 = vmul.f32 %v575, %v608
      %v642 = vmul.f32 %v578, %v613
      %v643 = vmul.f32 %v580, %v618
      %v644 = vmul.f32 %v583, %v623
      %v645 = vmul.f32 %v585, %v628
      %v646 = vmul.f32 %v588, %v633
      %v647 = vmul.f32 %v590, %v638
      %v648 = vsub.f32 0.0, %v573
      %v649 = vsub.f32 0.0, %v575
      %v650 = vsub.f32 0.0, %v578
      %v651 = vsub.f32 0.0, %v580
      %v652 = vsub.f32 0.0, %v583
      %v653 = vsub.f32 0.0, %v585
      %v654 = vsub.f32 0.0, %v588
      %v655 = vsub.f32 0.0, %v590
      %v656 = vmul.f32 %v648, 1.442695
      %v657 = vpow.pop %v656
      %v658 = vmul.f32 %v649, 1.442695
      %v659 = vpow.pop %v658
      %v660 = vmul.f32 %v650, 1.442695
      %v661 = vpow.pop %v660
      %v662 = vmul.f32 %v651, 1.442695
      %v663 = vpow.pop %v662
      %v664 = vmul.f32 %v652, 1.442695
      %v665 = vpow.pop %v664
      %v666 = vmul.f32 %v653, 1.442695
      %v667 = vpow.pop %v666
      %v668 = vmul.f32 %v654, 1.442695
      %v669 = vpow.pop %v668
      %v670 = vmul.f32 %v655, 1.442695
      %v671 = vpow.pop %v670
      %v672 = vadd.f32 %v657, 1.0
      %v673 = vadd.f32 %v659, 1.0
      %v674 = vadd.f32 %v661, 1.0
      %v675 = vadd.f32 %v663, 1.0
      %v676 = vadd.f32 %v665, 1.0
      %v677 = vadd.f32 %v667, 1.0
      %v678 = vadd.f32 %v669, 1.0
      %v679 = vadd.f32 %v671, 1.0
      %v680 = vrcp.pop %v672
      %v681 = vrcp.pop %v673
      %v682 = vrcp.pop %v674
      %v683 = vrcp.pop %v675
      %v684 = vrcp.pop %v676
      %v685 = vrcp.pop %v677
      %v686 = vrcp.pop %v678
      %v687 = vrcp.pop %v679
      %696 = vrot.lane.b32.xlu0 %v680, 96
      %v697 = vpop.permute.xlu0 %696
      %698 = vrot.lane.b32.xlu0 %v681, 96
      %v699 = vpop.permute.xlu0 %698
      %700 = vrot.lane.b32.xlu0 %v682, 96
      %v701 = vpop.permute.xlu0 %700
      %702 = vrot.lane.b32.xlu0 %v683, 96
      %v703 = vpop.permute.xlu0 %702
      %704 = vrot.lane.b32.xlu0 %v684, 96
      %v705 = vpop.permute.xlu0 %704
      %706 = vrot.lane.b32.xlu0 %v685, 96
      %v707 = vpop.permute.xlu0 %706
      %708 = vrot.lane.b32.xlu0 %v686, 96
      %v709 = vpop.permute.xlu0 %708
      %710 = vrot.lane.b32.xlu0 %v687, 96
      %v711 = vpop.permute.xlu0 %710
      %v720 = vmul.f32 %v640, %v697
      %v721 = vmul.f32 %v641, %v699
      %v722 = vmul.f32 %v642, %v701
      %v723 = vmul.f32 %v643, %v703
      %v724 = vmul.f32 %v644, %v705
      %v725 = vmul.f32 %v645, %v707
      %v726 = vmul.f32 %v646, %v709
      %v727 = vmul.f32 %v647, %v711
      %v728 = vpack.c.bf16 %v720, %v720
      %v729 = vpack.c.bf16 %v721, %v721
      %v730 = vpack.c.bf16 %v722, %v722
      %v731 = vpack.c.bf16 %v723, %v723
      %v732 = vpack.c.bf16 %v724, %v724
      %v733 = vpack.c.bf16 %v725, %v725
      %v734 = vpack.c.bf16 %v726, %v726
      %v735 = vpack.c.bf16 %v727, %v727
      %vm736 = vcmask 125952
      %737 = vst.msk [vmem:[%s310] sm:$0xf] %vm736, %v728
      %738 = vst.msk [vmem:[%s310 + $0x4] sm:$0xf] %vm736, %v729
      %739 = vst.msk [vmem:[%s310 + $0x8] sm:$0xf] %vm736, %v730
      %740 = vst.msk [vmem:[%s310 + $0xc] sm:$0xf] %vm736, %v731
      %741 = vst.msk [vmem:[%s310 + $0x10] sm:$0xf] %vm736, %v732
      %742 = vst.msk [vmem:[%s310 + $0x14] sm:$0xf] %vm736, %v733
      %743 = vst.msk [vmem:[%s310 + $0x18] sm:$0xf] %vm736, %v734
      %744 = vst.msk [vmem:[%s310 + $0x1c] sm:$0xf] %vm736, %v735
      %753 = vrot.lane.b32.xlu0 %v728, 112
      %v754 = vpop.permute.xlu0 %753
      %755 = vrot.lane.b32.xlu0 %v729, 112
      %v756 = vpop.permute.xlu0 %755
      %757 = vrot.lane.b32.xlu0 %v730, 112
      %v758 = vpop.permute.xlu0 %757
      %759 = vrot.lane.b32.xlu0 %v731, 112
      %v760 = vpop.permute.xlu0 %759
      %761 = vrot.lane.b32.xlu0 %v732, 112
      %v762 = vpop.permute.xlu0 %761
      %763 = vrot.lane.b32.xlu0 %v733, 112
      %v764 = vpop.permute.xlu0 %763
      %765 = vrot.lane.b32.xlu0 %v734, 112
      %v766 = vpop.permute.xlu0 %765
      %767 = vrot.lane.b32.xlu0 %v735, 112
      %v768 = vpop.permute.xlu0 %767
      %777 = vst.msk [vmem:[%s316] sm:$0xf] %vm736, %v754
      %778 = vst.msk [vmem:[%s316 + $0x4] sm:$0xf] %vm736, %v756
      %779 = vst.msk [vmem:[%s316 + $0x8] sm:$0xf] %vm736, %v758
      %780 = vst.msk [vmem:[%s316 + $0xc] sm:$0xf] %vm736, %v760
      %781 = vst.msk [vmem:[%s316 + $0x10] sm:$0xf] %vm736, %v762
      %782 = vst.msk [vmem:[%s316 + $0x14] sm:$0xf] %vm736, %v764
      %783 = vst.msk [vmem:[%s316 + $0x18] sm:$0xf] %vm736, %v766
      %784 = vst.msk [vmem:[%s316 + $0x1c] sm:$0xf] %vm736, %v768
      %s785 = smul.u32 8, %s19
      %p786 = scmp.lt.s32.totalorder %s785, 15
      %s787 = scalar_select %p786, %s785, 15
      %s788 = smul.addr %s787, 4
      %s789 = scalar_lea.vmem %s6, %s788
      %s790 = smul.u32 8, %s19
      %p791 = scmp.lt.s32.totalorder %s790, 15
      %s792 = scalar_select %p791, %s790, 15
      %s793 = smul.addr %s792, 4
      %s794 = scalar_lea.vmem %s7, %s793
      // Predicated region
      $region45: #{ribonanzanet_forward.52} parent=43 // pred_check
        %p795 = pneg %p173
      $region46: #{ribonanzanet_forward.52} parent=43 // pred_check_branch
        %797 = sbr.rel (%p795) target = $region48
      $region47: #{ribonanzanet_forward.52} parent=43 // pred_region
        %s798 = smul.u32 8, %s19
      $region48: #{ribonanzanet_forward.52} parent=43 // pred_fallthru
        _
      // Predicated region
      $region49: #{ribonanzanet_forward.52} parent=43 // pred_check
        %p799 = pneg %p199
      $region50: #{ribonanzanet_forward.52} parent=43 // pred_check_branch
        %801 = sbr.rel (%p799) target = $region52
      $region51: #{ribonanzanet_forward.52} parent=43 // pred_region
        %s802 = smul.u32 8, %s19
      $region52: #{ribonanzanet_forward.52} parent=43 // pred_fallthru
        _
    $region44: #{ribonanzanet_forward.52} parent=5 // pred_fallthru
      _
    %p803 = scmp.le.s32.totalorder 2, %s14
    // Predicated region
    $region53: #{ribonanzanet_forward.52} parent=5 // pred_check
      %p804 = pneg %p803
    $region54: #{ribonanzanet_forward.52} parent=5 // pred_check_branch
      %806 = sbr.rel (%p804) target = $region56
    $region55: #{ribonanzanet_forward.52} parent=5 // pred_region
      %s807 = ssub.s32 %s14, 2
      // Predicated region
      $region57: #{ribonanzanet_forward.52} parent=55 // pred_check
        %p808 = pneg %p179
      $region58: #{ribonanzanet_forward.52} parent=55 // pred_check_branch
        %810 = sbr.rel (%p808) target = $region60
      $region59: #{ribonanzanet_forward.52} parent=55 // pred_region
        %s811 = smul.u32 8, %s20
        %p812 = scmp.lt.s32.totalorder %s811, 15
        %s813 = scalar_select %p812, %s811, 15
        %s814 = smul.addr %s813, 4
        %s815 = scalar_lea.vmem %s6, %s814
      $region60: #{ribonanzanet_forward.52} parent=55 // pred_fallthru
        _
      // Predicated region
      $region61: #{ribonanzanet_forward.52} parent=55 // pred_check
        %p816 = pneg %p205
      $region62: #{ribonanzanet_forward.52} parent=55 // pred_check_branch
        %818 = sbr.rel (%p816) target = $region64
      $region63: #{ribonanzanet_forward.52} parent=55 // pred_region
        %s819 = smul.u32 8, %s20
        %p820 = scmp.lt.s32.totalorder %s819, 15
        %s821 = scalar_select %p820, %s819, 15
        %s822 = smul.addr %s821, 4
        %s823 = scalar_lea.vmem %s7, %s822
      $region64: #{ribonanzanet_forward.52} parent=55 // pred_fallthru
        _
    $region56: #{ribonanzanet_forward.52} parent=5 // pred_fallthru
      _
  $region6: #{ribonanzanet_forward.52} parent=0 // loop_footer
    %s18 = sadd.s32 1, %s14
  $region7: #{ribonanzanet_forward.52} parent=0 // loop_footer_branch
    %13 = sbr.rel target = $region3
  $region8: #{ribonanzanet_forward.52} parent=0 // loop_exit
    _

// kernel: ribonanzanet_forward.54
$region0: #{ribonanzanet_forward.54}
  #allocation0 [shape = 'u32[]', space=smem, size = 0x4, offset = 0x4, fixed_abs, tag = 'smem constant byte address 0x4 - core index']
  #allocation1 [shape = 'u32[72,128]{1,0:T(1,128)}', space=vmem, size = 0x9000, scoped, tag = 'internal scratch']
  %s0 = inlined_call_operand.vmem [shape: bf16[128,16], index: 0, kind: input, shape index: {}]
  %s1 = inlined_call_operand.vmem [shape: f32[128,16], index: 1, kind: input, shape index: {}]
  %s2 = inlined_call_operand.vmem [shape: f32[1,16], index: 2, kind: input, shape index: {}]
  %s3 = inlined_call_operand.vmem [shape: f32[1,16], index: 3, kind: input, shape index: {}]
  %s4 = inlined_call_operand.vmem [shape: bf16[16,16], index: 4, kind: input, shape index: {}]
  %s5 = inlined_call_operand.vmem [shape: f32[1,16], index: 5, kind: input, shape index: {}]
  %s6 = inlined_call_operand.vmem [shape: f32[1,16], index: 6, kind: input, shape index: {}]
  %s7 = inlined_call_operand.vmem [shape: f32[1,16], index: 7, kind: input, shape index: {}]
  %s8 = inlined_call_operand.vmem [shape: bf16[16,16], index: 8, kind: input, shape index: {}]
  %s9 = inlined_call_operand.vmem [shape: f32[1,16], index: 9, kind: input, shape index: {}]
  %s10 = inlined_call_operand.vmem [shape: f32[128,16], index: 10, kind: output, shape index: {}]
  %s11 = sld [smem:[#allocation0]]
  $region73: #{ribonanzanet_forward.54} parent=0
    _
  %s13 = ssub.s32 1, %s11
  %s14 = scalar_select 0, %s13, %s11
  loop: start=0, step=1, limit=4
  $region2: #{ribonanzanet_forward.54} parent=0 // loop_pre_header
    _
  $region3: #{ribonanzanet_forward.54} parent=0 // loop_header
    %s16 = sphi 0, %s20
    %p17 = scmp.ge.s32.totalorder %s16, 4
    %s26 = sphi 0, %s28
    %s29 = sphi 0, %s26
    %s30 = sphi 0, %s29
    %s46 = sphi 0, %s30
    %s52 = sphi 0, %s54
    %s55 = sphi 0, %s52
    %s56 = sphi 0, %s55
    %s72 = sphi 0, %s56
    %s76 = sphi 0, %s76
    %s78 = sphi 0, %s76
    %s79 = sphi 0, %s78
    %s93 = sphi 0, %s79
    %s97 = sphi 0, %s97
    %s99 = sphi 0, %s97
    %s100 = sphi 0, %s99
    %s114 = sphi 0, %s100
    %s118 = sphi 0, %s118
    %s120 = sphi 0, %s118
    %s121 = sphi 0, %s120
    %s135 = sphi 0, %s121
    %s139 = sphi 0, %s139
    %s141 = sphi 0, %s139
    %s142 = sphi 0, %s141
    %s156 = sphi 0, %s142
    %s160 = sphi 0, %s160
    %s162 = sphi 0, %s160
    %s163 = sphi 0, %s162
    %s177 = sphi 0, %s163
    %s181 = sphi 0, %s181
    %s183 = sphi 0, %s181
    %s184 = sphi 0, %s183
    %s198 = sphi 0, %s184
    %s202 = sphi 0, %s202
    %s204 = sphi 0, %s202
    %s205 = sphi 0, %s204
    %s219 = sphi 0, %s205
    %s223 = sphi 0, %s223
    %s225 = sphi 0, %s223
    %s226 = sphi 0, %s225
    %s240 = sphi 0, %s226
    %s246 = sphi 0, %s248
    %s249 = sphi 0, %s246
    %s250 = sphi 0, %s249
    %s266 = sphi 0, %s250
  $region4: #{ribonanzanet_forward.54} parent=0 // loop_header_branch
    %19 = sbr.rel (%p17) target = $region8
  $region5: #{ribonanzanet_forward.54} parent=0 // loop_body
    %s21 = ssub.s32 %s16, 1
    %s22 = ssub.s32 %s16, 2
    %s23 = sadd.s32 %s16, 1
    %s24 = ssub.s32 %s16, %s23
    %p25 = scmp.eq.s32.totalorder %s24, 0
    %s27 = sadd.s32 %s26, 1
    %s28 = scalar_select %p25, %s26, %s27
    %p31 = pneg %p25
    %p32 = scmp.eq.s32.totalorder %s16, 1
    %p33 = por %p31, %p32
    %p34 = scmp.ne.s32.totalorder %s26, %s29
    %p35 = scmp.eq.s32.totalorder %s16, 0
    %p36 = por %p34, %p35
    %p37 = scmp.ne.s32.totalorder %s26, %s29
    %p38 = scmp.eq.s32.totalorder %s21, 1
    %p39 = por %p37, %p38
    %p40 = scmp.ne.s32.totalorder %s29, %s30
    %p41 = scmp.eq.s32.totalorder %s21, 0
    %p42 = por %p40, %p41
    %p43 = scmp.ne.s32.totalorder %s29, %s30
    %p44 = scmp.eq.s32.totalorder %s22, 1
    %p45 = por %p43, %p44
    %p47 = scmp.ne.s32.totalorder %s30, %s46
    %p48 = scmp.eq.s32.totalorder %s22, 0
    %p49 = por %p47, %p48
    %s50 = ssub.s32 %s16, %s23
    %p51 = scmp.eq.s32.totalorder %s50, 0
    %s53 = sadd.s32 %s52, 1
    %s54 = scalar_select %p51, %s52, %s53
    %p57 = pneg %p51
    %p58 = scmp.eq.s32.totalorder %s16, 1
    %p59 = por %p57, %p58
    %p60 = scmp.ne.s32.totalorder %s52, %s55
    %p61 = scmp.eq.s32.totalorder %s16, 0
    %p62 = por %p60, %p61
    %p63 = scmp.ne.s32.totalorder %s52, %s55
    %p64 = scmp.eq.s32.totalorder %s21, 1
    %p65 = por %p63, %p64
    %p66 = scmp.ne.s32.totalorder %s55, %s56
    %p67 = scmp.eq.s32.totalorder %s21, 0
    %p68 = por %p66, %p67
    %p69 = scmp.ne.s32.totalorder %s55, %s56
    %p70 = scmp.eq.s32.totalorder %s22, 1
    %p71 = por %p69, %p70
    %p73 = scmp.ne.s32.totalorder %s56, %s72
    %p74 = scmp.eq.s32.totalorder %s22, 0
    %p75 = por %p73, %p74
    %s77 = sadd.s32 %s76, 1
    %p80 = scmp.eq.s32.totalorder %s16, 1
    %p81 = scmp.ne.s32.totalorder %s76, %s78
    %p82 = scmp.eq.s32.totalorder %s16, 0
    %p83 = por %p81, %p82
    %p84 = scmp.ne.s32.totalorder %s76, %s78
    %p85 = scmp.eq.s32.totalorder %s21, 1
    %p86 = por %p84, %p85
    %p87 = scmp.ne.s32.totalorder %s78, %s79
    %p88 = scmp.eq.s32.totalorder %s21, 0
    %p89 = por %p87, %p88
    %p90 = scmp.ne.s32.totalorder %s78, %s79
    %p91 = scmp.eq.s32.totalorder %s22, 1
    %p92 = por %p90, %p91
    %p94 = scmp.ne.s32.totalorder %s79, %s93
    %p95 = scmp.eq.s32.totalorder %s22, 0
    %p96 = por %p94, %p95
    %s98 = sadd.s32 %s97, 1
    %p101 = scmp.eq.s32.totalorder %s16, 1
    %p102 = scmp.ne.s32.totalorder %s97, %s99
    %p103 = scmp.eq.s32.totalorder %s16, 0
    %p104 = por %p102, %p103
    %p105 = scmp.ne.s32.totalorder %s97, %s99
    %p106 = scmp.eq.s32.totalorder %s21, 1
    %p107 = por %p105, %p106
    %p108 = scmp.ne.s32.totalorder %s99, %s100
    %p109 = scmp.eq.s32.totalorder %s21, 0
    %p110 = por %p108, %p109
    %p111 = scmp.ne.s32.totalorder %s99, %s100
    %p112 = scmp.eq.s32.totalorder %s22, 1
    %p113 = por %p111, %p112
    %p115 = scmp.ne.s32.totalorder %s100, %s114
    %p116 = scmp.eq.s32.totalorder %s22, 0
    %p117 = por %p115, %p116
    %s119 = sadd.s32 %s118, 1
    %p122 = scmp.eq.s32.totalorder %s16, 1
    %p123 = scmp.ne.s32.totalorder %s118, %s120
    %p124 = scmp.eq.s32.totalorder %s16, 0
    %p125 = por %p123, %p124
    %p126 = scmp.ne.s32.totalorder %s118, %s120
    %p127 = scmp.eq.s32.totalorder %s21, 1
    %p128 = por %p126, %p127
    %p129 = scmp.ne.s32.totalorder %s120, %s121
    %p130 = scmp.eq.s32.totalorder %s21, 0
    %p131 = por %p129, %p130
    %p132 = scmp.ne.s32.totalorder %s120, %s121
    %p133 = scmp.eq.s32.totalorder %s22, 1
    %p134 = por %p132, %p133
    %p136 = scmp.ne.s32.totalorder %s121, %s135
    %p137 = scmp.eq.s32.totalorder %s22, 0
    %p138 = por %p136, %p137
    %s140 = sadd.s32 %s139, 1
    %p143 = scmp.eq.s32.totalorder %s16, 1
    %p144 = scmp.ne.s32.totalorder %s139, %s141
    %p145 = scmp.eq.s32.totalorder %s16, 0
    %p146 = por %p144, %p145
    %p147 = scmp.ne.s32.totalorder %s139, %s141
    %p148 = scmp.eq.s32.totalorder %s21, 1
    %p149 = por %p147, %p148
    %p150 = scmp.ne.s32.totalorder %s141, %s142
    %p151 = scmp.eq.s32.totalorder %s21, 0
    %p152 = por %p150, %p151
    %p153 = scmp.ne.s32.totalorder %s141, %s142
    %p154 = scmp.eq.s32.totalorder %s22, 1
    %p155 = por %p153, %p154
    %p157 = scmp.ne.s32.totalorder %s142, %s156
    %p158 = scmp.eq.s32.totalorder %s22, 0
    %p159 = por %p157, %p158
    %s161 = sadd.s32 %s160, 1
    %p164 = scmp.eq.s32.totalorder %s16, 1
    %p165 = scmp.ne.s32.totalorder %s160, %s162
    %p166 = scmp.eq.s32.totalorder %s16, 0
    %p167 = por %p165, %p166
    %p168 = scmp.ne.s32.totalorder %s160, %s162
    %p169 = scmp.eq.s32.totalorder %s21, 1
    %p170 = por %p168, %p169
    %p171 = scmp.ne.s32.totalorder %s162, %s163
    %p172 = scmp.eq.s32.totalorder %s21, 0
    %p173 = por %p171, %p172
    %p174 = scmp.ne.s32.totalorder %s162, %s163
    %p175 = scmp.eq.s32.totalorder %s22, 1
    %p176 = por %p174, %p175
    %p178 = scmp.ne.s32.totalorder %s163, %s177
    %p179 = scmp.eq.s32.totalorder %s22, 0
    %p180 = por %p178, %p179
    %s182 = sadd.s32 %s181, 1
    %p185 = scmp.eq.s32.totalorder %s16, 1
    %p186 = scmp.ne.s32.totalorder %s181, %s183
    %p187 = scmp.eq.s32.totalorder %s16, 0
    %p188 = por %p186, %p187
    %p189 = scmp.ne.s32.totalorder %s181, %s183
    %p190 = scmp.eq.s32.totalorder %s21, 1
    %p191 = por %p189, %p190
    %p192 = scmp.ne.s32.totalorder %s183, %s184
    %p193 = scmp.eq.s32.totalorder %s21, 0
    %p194 = por %p192, %p193
    %p195 = scmp.ne.s32.totalorder %s183, %s184
    %p196 = scmp.eq.s32.totalorder %s22, 1
    %p197 = por %p195, %p196
    %p199 = scmp.ne.s32.totalorder %s184, %s198
    %p200 = scmp.eq.s32.totalorder %s22, 0
    %p201 = por %p199, %p200
    %s203 = sadd.s32 %s202, 1
    %p206 = scmp.eq.s32.totalorder %s16, 1
    %p207 = scmp.ne.s32.totalorder %s202, %s204
    %p208 = scmp.eq.s32.totalorder %s16, 0
    %p209 = por %p207, %p208
    %p210 = scmp.ne.s32.totalorder %s202, %s204
    %p211 = scmp.eq.s32.totalorder %s21, 1
    %p212 = por %p210, %p211
    %p213 = scmp.ne.s32.totalorder %s204, %s205
    %p214 = scmp.eq.s32.totalorder %s21, 0
    %p215 = por %p213, %p214
    %p216 = scmp.ne.s32.totalorder %s204, %s205
    %p217 = scmp.eq.s32.totalorder %s22, 1
    %p218 = por %p216, %p217
    %p220 = scmp.ne.s32.totalorder %s205, %s219
    %p221 = scmp.eq.s32.totalorder %s22, 0
    %p222 = por %p220, %p221
    %s224 = sadd.s32 %s223, 1
    %p227 = scmp.eq.s32.totalorder %s16, 1
    %p228 = scmp.ne.s32.totalorder %s223, %s225
    %p229 = scmp.eq.s32.totalorder %s16, 0
    %p230 = por %p228, %p229
    %p231 = scmp.ne.s32.totalorder %s223, %s225
    %p232 = scmp.eq.s32.totalorder %s21, 1
    %p233 = por %p231, %p232
    %p234 = scmp.ne.s32.totalorder %s225, %s226
    %p235 = scmp.eq.s32.totalorder %s21, 0
    %p236 = por %p234, %p235
    %p237 = scmp.ne.s32.totalorder %s225, %s226
    %p238 = scmp.eq.s32.totalorder %s22, 1
    %p239 = por %p237, %p238
    %p241 = scmp.ne.s32.totalorder %s226, %s240
    %p242 = scmp.eq.s32.totalorder %s22, 0
    %p243 = por %p241, %p242
    %s244 = ssub.s32 %s16, %s23
    %p245 = scmp.eq.s32.totalorder %s244, 0
    %s247 = sadd.s32 %s246, 1
    %s248 = scalar_select %p245, %s246, %s247
    %p251 = pneg %p245
    %p252 = scmp.eq.s32.totalorder %s16, 1
    %p253 = por %p251, %p252
    %p254 = scmp.ne.s32.totalorder %s246, %s249
    %p255 = scmp.eq.s32.totalorder %s16, 0
    %p256 = por %p254, %p255
    %p257 = scmp.ne.s32.totalorder %s246, %s249
    %p258 = scmp.eq.s32.totalorder %s21, 1
    %p259 = por %p257, %p258
    %p260 = scmp.ne.s32.totalorder %s249, %s250
    %p261 = scmp.eq.s32.totalorder %s21, 0
    %p262 = por %p260, %p261
    %p263 = scmp.ne.s32.totalorder %s249, %s250
    %p264 = scmp.eq.s32.totalorder %s22, 1
    %p265 = por %p263, %p264
    %p267 = scmp.ne.s32.totalorder %s250, %s266
    %p268 = scmp.eq.s32.totalorder %s22, 0
    %p269 = por %p267, %p268
    %p270 = scmp.le.s32.totalorder 1, %s16
    %p271 = scmp.lt.s32.totalorder %s16, 3
    %p272 = pnand %p270, %p271
    %p273 = pneg %p272
    // Predicated region
    $region9: #{ribonanzanet_forward.54} parent=5 // pred_check
      _
    $region10: #{ribonanzanet_forward.54} parent=5 // pred_check_branch
      %275 = sbr.rel (%p272) target = $region12
    $region11: #{ribonanzanet_forward.54} parent=5 // pred_region
      %s276 = ssub.s32 %s16, 1
      // Predicated region
      $region13: #{ribonanzanet_forward.54} parent=11 // pred_check
        %p277 = pneg %p89
      $region14: #{ribonanzanet_forward.54} parent=11 // pred_check_branch
        %279 = sbr.rel (%p277) target = $region16
      $region15: #{ribonanzanet_forward.54} parent=11 // pred_region
        _
      $region16: #{ribonanzanet_forward.54} parent=11 // pred_fallthru
        _
      // Predicated region
      $region17: #{ribonanzanet_forward.54} parent=11 // pred_check
        %p280 = pneg %p110
      $region18: #{ribonanzanet_forward.54} parent=11 // pred_check_branch
        %282 = sbr.rel (%p280) target = $region20
      $region19: #{ribonanzanet_forward.54} parent=11 // pred_region
        _
      $region20: #{ribonanzanet_forward.54} parent=11 // pred_fallthru
        _
      // Predicated region
      $region21: #{ribonanzanet_forward.54} parent=11 // pred_check
        %p283 = pneg %p131
      $region22: #{ribonanzanet_forward.54} parent=11 // pred_check_branch
        %285 = sbr.rel (%p283) target = $region24
      $region23: #{ribonanzanet_forward.54} parent=11 // pred_region
        _
      $region24: #{ribonanzanet_forward.54} parent=11 // pred_fallthru
        _
      // Predicated region
      $region25: #{ribonanzanet_forward.54} parent=11 // pred_check
        %p286 = pneg %p152
      $region26: #{ribonanzanet_forward.54} parent=11 // pred_check_branch
        %288 = sbr.rel (%p286) target = $region28
      $region27: #{ribonanzanet_forward.54} parent=11 // pred_region
        _
      $region28: #{ribonanzanet_forward.54} parent=11 // pred_fallthru
        _
      // Predicated region
      $region29: #{ribonanzanet_forward.54} parent=11 // pred_check
        %p289 = pneg %p173
      $region30: #{ribonanzanet_forward.54} parent=11 // pred_check_branch
        %291 = sbr.rel (%p289) target = $region32
      $region31: #{ribonanzanet_forward.54} parent=11 // pred_region
        _
      $region32: #{ribonanzanet_forward.54} parent=11 // pred_fallthru
        _
      // Predicated region
      $region33: #{ribonanzanet_forward.54} parent=11 // pred_check
        %p292 = pneg %p194
      $region34: #{ribonanzanet_forward.54} parent=11 // pred_check_branch
        %294 = sbr.rel (%p292) target = $region36
      $region35: #{ribonanzanet_forward.54} parent=11 // pred_region
        _
      $region36: #{ribonanzanet_forward.54} parent=11 // pred_fallthru
        _
      // Predicated region
      $region37: #{ribonanzanet_forward.54} parent=11 // pred_check
        %p295 = pneg %p215
      $region38: #{ribonanzanet_forward.54} parent=11 // pred_check_branch
        %297 = sbr.rel (%p295) target = $region40
      $region39: #{ribonanzanet_forward.54} parent=11 // pred_region
        _
      $region40: #{ribonanzanet_forward.54} parent=11 // pred_fallthru
        _
      // Predicated region
      $region41: #{ribonanzanet_forward.54} parent=11 // pred_check
        %p298 = pneg %p236
      $region42: #{ribonanzanet_forward.54} parent=11 // pred_check_branch
        %300 = sbr.rel (%p298) target = $region44
      $region43: #{ribonanzanet_forward.54} parent=11 // pred_region
        _
      $region44: #{ribonanzanet_forward.54} parent=11 // pred_fallthru
        _
    $region12: #{ribonanzanet_forward.54} parent=5 // pred_fallthru
      _
    %p301 = scmp.lt.s32.totalorder %s16, 2
    // Predicated region
    $region45: #{ribonanzanet_forward.54} parent=5 // pred_check
      %p302 = pneg %p301
    $region46: #{ribonanzanet_forward.54} parent=5 // pred_check_branch
      %304 = sbr.rel (%p302) target = $region48
    $region47: #{ribonanzanet_forward.54} parent=5 // pred_region
      // Predicated region
      $region49: #{ribonanzanet_forward.54} parent=47 // pred_check
        %p305 = pneg %p36
      $region50: #{ribonanzanet_forward.54} parent=47 // pred_check_branch
        %307 = sbr.rel (%p305) target = $region52
      $region51: #{ribonanzanet_forward.54} parent=47 // pred_region
        %s308 = smul.u32 8, %s16
        %p309 = scmp.lt.s32.totalorder %s308, 15
        %s310 = scalar_select %p309, %s308, 15
        %s311 = smul.addr %s310, 4
        %s312 = scalar_lea.vmem %s0, %s311
        %s313 = smul.u32 8, %s16
      $region52: #{ribonanzanet_forward.54} parent=47 // pred_fallthru
        _
      // Predicated region
      $region53: #{ribonanzanet_forward.54} parent=47 // pred_check
        %p314 = pneg %p62
      $region54: #{ribonanzanet_forward.54} parent=47 // pred_check_branch
        %316 = sbr.rel (%p314) target = $region56
      $region55: #{ribonanzanet_forward.54} parent=47 // pred_region
        %s317 = smul.u32 8, %s16
        %p318 = scmp.lt.s32.totalorder %s317, 15
        %s319 = scalar_select %p318, %s317, 15
        %s320 = smul.addr %s319, 8
        %s321 = scalar_lea.vmem %s1, %s320
        %s322 = smul.u32 8, %s16
      $region56: #{ribonanzanet_forward.54} parent=47 // pred_fallthru
        _
    $region48: #{ribonanzanet_forward.54} parent=5 // pred_fallthru
      _
    %p323 = scmp.le.s32.totalorder 1, %s16
    %p324 = scmp.lt.s32.totalorder %s16, 3
    %p325 = pnand %p323, %p324
    %p326 = pneg %p325
    // Predicated region
    $region57: #{ribonanzanet_forward.54} parent=5 // pred_check
      _
    $region58: #{ribonanzanet_forward.54} parent=5 // pred_check_branch
      %328 = sbr.rel (%p325) target = $region60
    $region59: #{ribonanzanet_forward.54} parent=5 // pred_region
      %s329 = ssub.s32 %s16, 1
      %s330 = smul.u32 8, %s21
      %p331 = scmp.lt.s32.totalorder %s330, 15
      %s332 = scalar_select %p331, %s330, 15
      %s333 = smul.addr %s332, 4
      %s334 = scalar_lea.vmem %s0, %s333
      %p335 = pneg %p42
      %p336 = pneg %p39
      %s337 = smul.u32 8, %s21
      %p338 = scmp.lt.s32.totalorder %s337, 15
      %s339 = scalar_select %p338, %s337, 15
      %s340 = smul.addr %s339, 8
      %s341 = scalar_lea.vmem %s1, %s340
      %p342 = pneg %p68
      %p343 = pneg %p65
      %p344 = pneg %p89
      %p345 = pneg %p86
      %p346 = pneg %p110
      %p347 = pneg %p107
      %p348 = pneg %p131
      %p349 = pneg %p128
      %p350 = pneg %p152
      %p351 = pneg %p149
      %p352 = pneg %p173
      %p353 = pneg %p170
      %p354 = pneg %p194
      %p355 = pneg %p191
      %p356 = pneg %p215
      %p357 = pneg %p212
      %p358 = pneg %p236
      %p359 = pneg %p233
      %p360 = pneg %p262
      %p361 = pneg %p259
      %s362 = smul.u32 8, %s21
      %p363 = scmp.lt.s32.totalorder %s362, 15
      %s364 = scalar_select %p363, %s362, 15
      %s365 = smul.addr %s364, 8
      %s366 = scalar_lea.vmem %s10, %s365
      %s367 = smul.u32 8, %s21
      %p368 = scmp.lt.s32.totalorder %s367, 15
      %s369 = scalar_select %p368, %s367, 15
      %s370 = smul.addr %s369, 4
      %s371 = scalar_lea.vmem %s0, %s370
      %s372 = smul.u32 8, %s21
      %s373 = smul.u32 8, %s21
      %p374 = scmp.lt.s32.totalorder %s373, 15
      %s375 = scalar_select %p374, %s373, 15
      %s376 = smul.addr %s375, 8
      %s377 = scalar_lea.vmem %s1, %s376
      %s378 = smul.u32 8, %s21
      %s379 = smul.u32 8, %s21
      %p380 = scmp.lt.s32.totalorder %s379, 15
      %s381 = scalar_select %p380, %s379, 15
      %s382 = smul.addr %s381, 8
      %s383 = scalar_lea.vmem %s10, %s382
      %s384 = smul.u32 8, %s21
      %v386 = vld [vmem:[%s377] sm:$0xff]
      %v387 = vld [vmem:[%s377 + $0x8] sm:$0xff]
      %v388 = vld [vmem:[%s377 + $0x10] sm:$0xff]
      %v389 = vld [vmem:[%s377 + $0x18] sm:$0xff]
      %v390 = vld [vmem:[%s377 + $0x20] sm:$0xff]
      %v391 = vld [vmem:[%s377 + $0x28] sm:$0xff]
      %v392 = vld [vmem:[%s377 + $0x30] sm:$0xff]
      %v393 = vld [vmem:[%s377 + $0x38] sm:$0xff]
      %vm394 = vcmask 130048
      %v395 = vsel %vm394, %v386, 0.0
      %396 = vadd.xlane.f32.xlu0 %v395
      %v397 = vpop.xlane.xlu0 %396
      %v398 = vsel %vm394, %v387, 0.0
      %399 = vadd.xlane.f32.xlu0 %v398
      %v400 = vpop.xlane.xlu0 %399
      %v401 = vsel %vm394, %v388, 0.0
      %402 = vadd.xlane.f32.xlu0 %v401
      %v403 = vpop.xlane.xlu0 %402
      %v404 = vsel %vm394, %v389, 0.0
      %405 = vadd.xlane.f32.xlu0 %v404
      %v406 = vpop.xlane.xlu0 %405
      %v407 = vsel %vm394, %v390, 0.0
      %408 = vadd.xlane.f32.xlu0 %v407
      %v409 = vpop.xlane.xlu0 %408
      %v410 = vsel %vm394, %v391, 0.0
      %411 = vadd.xlane.f32.xlu0 %v410
      %v412 = vpop.xlane.xlu0 %411
      %v413 = vsel %vm394, %v392, 0.0
      %414 = vadd.xlane.f32.xlu0 %v413
      %v415 = vpop.xlane.xlu0 %414
      %v416 = vsel %vm394, %v393, 0.0
      %417 = vadd.xlane.f32.xlu0 %v416
      %v418 = vpop.xlane.xlu0 %417
      %v419 = vrcp.pop 16.0
      %v420 = vmul.f32 16.0, %v419
      %v421 = vsub.f32 1.0, %v420
      %v422 = vmul.f32 %v419, %v421
      %v423 = vadd.f32 %v419, %v422
      %vm424 = vweird.f32 %v419
      %v425 = vsel %vm424, %v419, %v423
      %v426 = vmul.f32 %v397, %v425
      %v427 = vmul.f32 %v400, %v425
      %v428 = vmul.f32 %v403, %v425
      %v429 = vmul.f32 %v406, %v425
      %v430 = vmul.f32 %v409, %v425
      %v431 = vmul.f32 %v412, %v425
      %v432 = vmul.f32 %v415, %v425
      %v433 = vmul.f32 %v418, %v425
      %v434 = vsub.f32 %v386, %v426
      %v435 = vsub.f32 %v387, %v427
      %v436 = vsub.f32 %v388, %v428
      %v437 = vsub.f32 %v389, %v429
      %v438 = vsub.f32 %v390, %v430
      %v439 = vsub.f32 %v391, %v431
      %v440 = vsub.f32 %v392, %v432
      %v441 = vsub.f32 %v393, %v433
      %v442 = vmul.f32 %v434, %v434
      %v443 = vmul.f32 %v435, %v435
      %v444 = vmul.f32 %v436, %v436
      %v445 = vmul.f32 %v437, %v437
      %v446 = vmul.f32 %v438, %v438
      %v447 = vmul.f32 %v439, %v439
      %v448 = vmul.f32 %v440, %v440
      %v449 = vmul.f32 %v441, %v441
      %v450 = vsel %vm394, %v442, 0.0
      %451 = vadd.xlane.f32.xlu0 %v450
      %v452 = vpop.xlane.xlu0 %451
      %v453 = vsel %vm394, %v443, 0.0
      %454 = vadd.xlane.f32.xlu0 %v453
      %v455 = vpop.xlane.xlu0 %454
      %v456 = vsel %vm394, %v444, 0.0
      %457 = vadd.xlane.f32.xlu0 %v456
      %v458 = vpop.xlane.xlu0 %457
      %v459 = vsel %vm394, %v445, 0.0
      %460 = vadd.xlane.f32.xlu0 %v459
      %v461 = vpop.xlane.xlu0 %460
      %v462 = vsel %vm394, %v446, 0.0
      %463 = vadd.xlane.f32.xlu0 %v462
      %v464 = vpop.xlane.xlu0 %463
      %v465 = vsel %vm394, %v447, 0.0
      %466 = vadd.xlane.f32.xlu0 %v465
      %v467 = vpop.xlane.xlu0 %466
      %v468 = vsel %vm394, %v448, 0.0
      %469 = vadd.xlane.f32.xlu0 %v468
      %v470 = vpop.xlane.xlu0 %469
      %v471 = vsel %vm394, %v449, 0.0
      %472 = vadd.xlane.f32.xlu0 %v471
      %v473 = vpop.xlane.xlu0 %472
      %v474 = vmul.f32 %v452, %v425
      %v475 = vmul.f32 %v455, %v425
      %v476 = vmul.f32 %v458, %v425
      %v477 = vmul.f32 %v461, %v425
      %v478 = vmul.f32 %v464, %v425
      %v479 = vmul.f32 %v467, %v425
      %v480 = vmul.f32 %v470, %v425
      %v481 = vmul.f32 %v473, %v425
      %v482 = vadd.f32 %v474, 1e-05
      %v483 = vadd.f32 %v475, 1e-05
      %v484 = vadd.f32 %v476, 1e-05
      %v485 = vadd.f32 %v477, 1e-05
      %v486 = vadd.f32 %v478, 1e-05
      %v487 = vadd.f32 %v479, 1e-05
      %v488 = vadd.f32 %v480, 1e-05
      %v489 = vadd.f32 %v481, 1e-05
      %v490 = vrsqrt.pop %v482
      %v491 = vmul.f32 %v490, %v482
      %v492 = vmul.f32 %v491, %v490
      %v493 = vmul.f32 0.5, %v492
      %v494 = vsub.f32 1.5, %v493
      %v495 = vmul.f32 %v490, %v494
      %vm496 = vweird.f32 %v482
      %vm497 = vweird.f32 %v490
      %vm498 = vmor %vm496, %vm497
      %v499 = vsel %vm498, %v490, %v495
      %v500 = vrsqrt.pop %v483
      %v501 = vmul.f32 %v500, %v483
      %v502 = vmul.f32 %v501, %v500
      %v503 = vmul.f32 0.5, %v502
      %v504 = vsub.f32 1.5, %v503
      %v505 = vmul.f32 %v500, %v504
      %vm506 = vweird.f32 %v483
      %vm507 = vweird.f32 %v500
      %vm508 = vmor %vm506, %vm507
      %v509 = vsel %vm508, %v500, %v505
      %v510 = vrsqrt.pop %v484
      %v511 = vmul.f32 %v510, %v484
      %v512 = vmul.f32 %v511, %v510
      %v513 = vmul.f32 0.5, %v512
      %v514 = vsub.f32 1.5, %v513
      %v515 = vmul.f32 %v510, %v514
      %vm516 = vweird.f32 %v484
      %vm517 = vweird.f32 %v510
      %vm518 = vmor %vm516, %vm517
      %v519 = vsel %vm518, %v510, %v515
      %v520 = vrsqrt.pop %v485
      %v521 = vmul.f32 %v520, %v485
      %v522 = vmul.f32 %v521, %v520
      %v523 = vmul.f32 0.5, %v522
      %v524 = vsub.f32 1.5, %v523
      %v525 = vmul.f32 %v520, %v524
      %vm526 = vweird.f32 %v485
      %vm527 = vweird.f32 %v520
      %vm528 = vmor %vm526, %vm527
      %v529 = vsel %vm528, %v520, %v525
      %v530 = vrsqrt.pop %v486
      %v531 = vmul.f32 %v530, %v486
      %v532 = vmul.f32 %v531, %v530
      %v533 = vmul.f32 0.5, %v532
      %v534 = vsub.f32 1.5, %v533
      %v535 = vmul.f32 %v530, %v534
      %vm536 = vweird.f32 %v486
      %vm537 = vweird.f32 %v530
      %vm538 = vmor %vm536, %vm537
      %v539 = vsel %vm538, %v530, %v535
      %v540 = vrsqrt.pop %v487
      %v541 = vmul.f32 %v540, %v487
      %v542 = vmul.f32 %v541, %v540
      %v543 = vmul.f32 0.5, %v542
      %v544 = vsub.f32 1.5, %v543
      %v545 = vmul.f32 %v540, %v544
      %vm546 = vweird.f32 %v487
      %vm547 = vweird.f32 %v540
      %vm548 = vmor %vm546, %vm547
      %v549 = vsel %vm548, %v540, %v545
      %v550 = vrsqrt.pop %v488
      %v551 = vmul.f32 %v550, %v488
      %v552 = vmul.f32 %v551, %v550
      %v553 = vmul.f32 0.5, %v552
      %v554 = vsub.f32 1.5, %v553
      %v555 = vmul.f32 %v550, %v554
      %vm556 = vweird.f32 %v488
      %vm557 = vweird.f32 %v550
      %vm558 = vmor %vm556, %vm557
      %v559 = vsel %vm558, %v550, %v555
      %v560 = vrsqrt.pop %v489
      %v561 = vmul.f32 %v560, %v489
      %v562 = vmul.f32 %v561, %v560
      %v563 = vmul.f32 0.5, %v562
      %v564 = vsub.f32 1.5, %v563
      %v565 = vmul.f32 %v560, %v564
      %vm566 = vweird.f32 %v489
      %vm567 = vweird.f32 %v560
      %vm568 = vmor %vm566, %vm567
      %v569 = vsel %vm568, %v560, %v565
      %v570 = vmul.f32 %v434, %v499
      %v571 = vmul.f32 %v435, %v509
      %v572 = vmul.f32 %v436, %v519
      %v573 = vmul.f32 %v437, %v529
      %v574 = vmul.f32 %v438, %v539
      %v575 = vmul.f32 %v439, %v549
      %v576 = vmul.f32 %v440, %v559
      %v577 = vmul.f32 %v441, %v569
      %v578 = vld [vmem:[%s2] sm:$0x1]
      %v580 = vperm.slane %v578, 0
      %v582 = vmul.f32 %v570, %v580
      %v583 = vmul.f32 %v571, %v580
      %v584 = vmul.f32 %v572, %v580
      %v585 = vmul.f32 %v573, %v580
      %v586 = vmul.f32 %v574, %v580
      %v587 = vmul.f32 %v575, %v580
      %v588 = vmul.f32 %v576, %v580
      %v589 = vmul.f32 %v577, %v580
      %v590 = vld [vmem:[%s3] sm:$0x1]
      %v592 = vperm.slane %v590, 0
      %v594 = vadd.f32 %v582, %v592
      %v595 = vadd.f32 %v583, %v592
      %v596 = vadd.f32 %v584, %v592
      %v597 = vadd.f32 %v585, %v592
      %v598 = vadd.f32 %v586, %v592
      %v599 = vadd.f32 %v587, %v592
      %v600 = vadd.f32 %v588, %v592
      %v601 = vadd.f32 %v589, %v592
      %v602 = vpack.c.bf16 %v595, %v594
      %v603 = vpack.c.bf16 %v597, %v596
      %v604 = vpack.c.bf16 %v599, %v598
      %v605 = vpack.c.bf16 %v601, %v600
      %v606 = vld [vmem:[%s4] sm:$0xf]
      %v607 = vld [vmem:[%s4 + $0x4] sm:$0xf]
      %v608 = vld [vmem:[%s5] sm:$0x1]
      %v610 = vperm.slane %v608, 0
      %v614 = vunpack.c.l.b16 %v606
      %v615 = vunpack.c.l.b16 %v607
      %v616 = vpack.c.b16 %v615, %v614
      %v619 = vsel %vm394, %v602, 0
      %v622 = vsel %vm394, %v603, 0
      %v625 = vsel %vm394, %v604, 0
      %v628 = vsel %vm394, %v605, 0
      %630 = vmatpush.bf16.msra.mxu0 0
      %631 = vmatpush.bf16.msra.mxu0 0
      %632 = vmatpush.bf16.msra.mxu0 0
      %633 = vmatpush.bf16.msra.mxu0 0
      %634 = vmatpush.bf16.msra.mxu0 0
      %635 = vmatpush.bf16.msra.mxu0 0
      %636 = vmatpush.bf16.msra.mxu0 0
      %637 = vmatpush.bf16.msra.mxu0 %v616
      %638 = vmatmul.bf16.gmra.mxu0 %v619
      %v639 = vpop.f32.mrf.mxu0
      %v640 = vadd.f32 %v610, %v639
      %v641 = vpop.f32.mrf.mxu0
      %v642 = vadd.f32 %v610, %v641
      %643 = vmatmul.bf16.gmra.mxu0 %v622
      %v644 = vpop.f32.mrf.mxu0
      %v645 = vadd.f32 %v610, %v644
      %v646 = vpop.f32.mrf.mxu0
      %v647 = vadd.f32 %v610, %v646
      %648 = vmatmul.bf16.gmra.mxu0 %v625
      %v649 = vpop.f32.mrf.mxu0
      %v650 = vadd.f32 %v610, %v649
      %v651 = vpop.f32.mrf.mxu0
      %v652 = vadd.f32 %v610, %v651
      %653 = vmatmul.bf16.gmra.mxu0 %v628
      %v654 = vpop.f32.mrf.mxu0
      %v655 = vadd.f32 %v610, %v654
      %v656 = vpop.f32.mrf.mxu0
      %v657 = vadd.f32 %v610, %v656
      %658 = vdwg.mxu0
      %v659 = vsub.f32 0.0, %v640
      %v660 = vsub.f32 0.0, %v642
      %v661 = vsub.f32 0.0, %v645
      %v662 = vsub.f32 0.0, %v647
      %v663 = vsub.f32 0.0, %v650
      %v664 = vsub.f32 0.0, %v652
      %v665 = vsub.f32 0.0, %v655
      %v666 = vsub.f32 0.0, %v657
      %v667 = vmul.f32 %v659, 1.442695
      %v668 = vpow.pop %v667
      %v669 = vmul.f32 %v660, 1.442695
      %v670 = vpow.pop %v669
      %v671 = vmul.f32 %v661, 1.442695
      %v672 = vpow.pop %v671
      %v673 = vmul.f32 %v662, 1.442695
      %v674 = vpow.pop %v673
      %v675 = vmul.f32 %v663, 1.442695
      %v676 = vpow.pop %v675
      %v677 = vmul.f32 %v664, 1.442695
      %v678 = vpow.pop %v677
      %v679 = vmul.f32 %v665, 1.442695
      %v680 = vpow.pop %v679
      %v681 = vmul.f32 %v666, 1.442695
      %v682 = vpow.pop %v681
      %v683 = vadd.f32 %v668, 1.0
      %v684 = vadd.f32 %v670, 1.0
      %v685 = vadd.f32 %v672, 1.0
      %v686 = vadd.f32 %v674, 1.0
      %v687 = vadd.f32 %v676, 1.0
      %v688 = vadd.f32 %v678, 1.0
      %v689 = vadd.f32 %v680, 1.0
      %v690 = vadd.f32 %v682, 1.0
      %v691 = vrcp.pop %v683
      %v692 = vrcp.pop %v684
      %v693 = vrcp.pop %v685
      %v694 = vrcp.pop %v686
      %v695 = vrcp.pop %v687
      %v696 = vrcp.pop %v688
      %v697 = vrcp.pop %v689
      %v698 = vrcp.pop %v690
      %v699 = vld [vmem:[%s371] sm:$0xf]
      %v700 = vld [vmem:[%s371 + $0x4] sm:$0xf]
      %v701 = vld [vmem:[%s371 + $0x8] sm:$0xf]
      %v702 = vld [vmem:[%s371 + $0xc] sm:$0xf]
      %v703 = vld [vmem:[%s371 + $0x10] sm:$0xf]
      %v704 = vld [vmem:[%s371 + $0x14] sm:$0xf]
      %v705 = vld [vmem:[%s371 + $0x18] sm:$0xf]
      %v706 = vld [vmem:[%s371 + $0x1c] sm:$0xf]
      %v707 = vunpack.c.l.bf16 %v699
      %v708 = vunpack.c.l.bf16 %v700
      %v709 = vunpack.c.l.bf16 %v701
      %v710 = vunpack.c.l.bf16 %v702
      %v711 = vunpack.c.l.bf16 %v703
      %v712 = vunpack.c.l.bf16 %v704
      %v713 = vunpack.c.l.bf16 %v705
      %v714 = vunpack.c.l.bf16 %v706
      %v715 = vsel %vm394, %v707, 0.0
      %716 = vadd.xlane.f32.xlu0 %v715
      %v717 = vpop.xlane.xlu0 %716
      %v718 = vsel %vm394, %v708, 0.0
      %719 = vadd.xlane.f32.xlu0 %v718
      %v720 = vpop.xlane.xlu0 %719
      %v721 = vsel %vm394, %v709, 0.0
      %722 = vadd.xlane.f32.xlu0 %v721
      %v723 = vpop.xlane.xlu0 %722
      %v724 = vsel %vm394, %v710, 0.0
      %725 = vadd.xlane.f32.xlu0 %v724
      %v726 = vpop.xlane.xlu0 %725
      %v727 = vsel %vm394, %v711, 0.0
      %728 = vadd.xlane.f32.xlu0 %v727
      %v729 = vpop.xlane.xlu0 %728
      %v730 = vsel %vm394, %v712, 0.0
      %731 = vadd.xlane.f32.xlu0 %v730
      %v732 = vpop.xlane.xlu0 %731
      %v733 = vsel %vm394, %v713, 0.0
      %734 = vadd.xlane.f32.xlu0 %v733
      %v735 = vpop.xlane.xlu0 %734
      %v736 = vsel %vm394, %v714, 0.0
      %737 = vadd.xlane.f32.xlu0 %v736
      %v738 = vpop.xlane.xlu0 %737
      %v739 = vmul.f32 %v717, %v425
      %v740 = vmul.f32 %v720, %v425
      %v741 = vmul.f32 %v723, %v425
      %v742 = vmul.f32 %v726, %v425
      %v743 = vmul.f32 %v729, %v425
      %v744 = vmul.f32 %v732, %v425
      %v745 = vmul.f32 %v735, %v425
      %v746 = vmul.f32 %v738, %v425
      %v747 = vsub.f32 %v707, %v739
      %v748 = vsub.f32 %v708, %v740
      %v749 = vsub.f32 %v709, %v741
      %v750 = vsub.f32 %v710, %v742
      %v751 = vsub.f32 %v711, %v743
      %v752 = vsub.f32 %v712, %v744
      %v753 = vsub.f32 %v713, %v745
      %v754 = vsub.f32 %v714, %v746
      %v755 = vmul.f32 %v747, %v747
      %v756 = vmul.f32 %v748, %v748
      %v757 = vmul.f32 %v749, %v749
      %v758 = vmul.f32 %v750, %v750
      %v759 = vmul.f32 %v751, %v751
      %v760 = vmul.f32 %v752, %v752
      %v761 = vmul.f32 %v753, %v753
      %v762 = vmul.f32 %v754, %v754
      %v763 = vsel %vm394, %v755, 0.0
      %764 = vadd.xlane.f32.xlu0 %v763
      %v765 = vpop.xlane.xlu0 %764
      %v766 = vsel %vm394, %v756, 0.0
      %767 = vadd.xlane.f32.xlu0 %v766
      %v768 = vpop.xlane.xlu0 %767
      %v769 = vsel %vm394, %v757, 0.0
      %770 = vadd.xlane.f32.xlu0 %v769
      %v771 = vpop.xlane.xlu0 %770
      %v772 = vsel %vm394, %v758, 0.0
      %773 = vadd.xlane.f32.xlu0 %v772
      %v774 = vpop.xlane.xlu0 %773
      %v775 = vsel %vm394, %v759, 0.0
      %776 = vadd.xlane.f32.xlu0 %v775
      %v777 = vpop.xlane.xlu0 %776
      %v778 = vsel %vm394, %v760, 0.0
      %779 = vadd.xlane.f32.xlu0 %v778
      %v780 = vpop.xlane.xlu0 %779
      %v781 = vsel %vm394, %v761, 0.0
      %782 = vadd.xlane.f32.xlu0 %v781
      %v783 = vpop.xlane.xlu0 %782
      %v784 = vsel %vm394, %v762, 0.0
      %785 = vadd.xlane.f32.xlu0 %v784
      %v786 = vpop.xlane.xlu0 %785
      %v787 = vmul.f32 %v765, %v425
      %v788 = vmul.f32 %v768, %v425
      %v789 = vmul.f32 %v771, %v425
      %v790 = vmul.f32 %v774, %v425
      %v791 = vmul.f32 %v777, %v425
      %v792 = vmul.f32 %v780, %v425
      %v793 = vmul.f32 %v783, %v425
      %v794 = vmul.f32 %v786, %v425
      %v795 = vadd.f32 %v787, 1e-05
      %v796 = vadd.f32 %v788, 1e-05
      %v797 = vadd.f32 %v789, 1e-05
      %v798 = vadd.f32 %v790, 1e-05
      %v799 = vadd.f32 %v791, 1e-05
      %v800 = vadd.f32 %v792, 1e-05
      %v801 = vadd.f32 %v793, 1e-05
      %v802 = vadd.f32 %v794, 1e-05
      %v803 = vrsqrt.pop %v795
      %v804 = vmul.f32 %v803, %v795
      %v805 = vmul.f32 %v804, %v803
      %v806 = vmul.f32 0.5, %v805
      %v807 = vsub.f32 1.5, %v806
      %v808 = vmul.f32 %v803, %v807
      %vm809 = vweird.f32 %v795
      %vm810 = vweird.f32 %v803
      %vm811 = vmor %vm809, %vm810
      %v812 = vsel %vm811, %v803, %v808
      %v813 = vrsqrt.pop %v796
      %v814 = vmul.f32 %v813, %v796
      %v815 = vmul.f32 %v814, %v813
      %v816 = vmul.f32 0.5, %v815
      %v817 = vsub.f32 1.5, %v816
      %v818 = vmul.f32 %v813, %v817
      %vm819 = vweird.f32 %v796
      %vm820 = vweird.f32 %v813
      %vm821 = vmor %vm819, %vm820
      %v822 = vsel %vm821, %v813, %v818
      %v823 = vrsqrt.pop %v797
      %v824 = vmul.f32 %v823, %v797
      %v825 = vmul.f32 %v824, %v823
      %v826 = vmul.f32 0.5, %v825
      %v827 = vsub.f32 1.5, %v826
      %v828 = vmul.f32 %v823, %v827
      %vm829 = vweird.f32 %v797
      %vm830 = vweird.f32 %v823
      %vm831 = vmor %vm829, %vm830
      %v832 = vsel %vm831, %v823, %v828
      %v833 = vrsqrt.pop %v798
      %v834 = vmul.f32 %v833, %v798
      %v835 = vmul.f32 %v834, %v833
      %v836 = vmul.f32 0.5, %v835
      %v837 = vsub.f32 1.5, %v836
      %v838 = vmul.f32 %v833, %v837
      %vm839 = vweird.f32 %v798
      %vm840 = vweird.f32 %v833
      %vm841 = vmor %vm839, %vm840
      %v842 = vsel %vm841, %v833, %v838
      %v843 = vrsqrt.pop %v799
      %v844 = vmul.f32 %v843, %v799
      %v845 = vmul.f32 %v844, %v843
      %v846 = vmul.f32 0.5, %v845
      %v847 = vsub.f32 1.5, %v846
      %v848 = vmul.f32 %v843, %v847
      %vm849 = vweird.f32 %v799
      %vm850 = vweird.f32 %v843
      %vm851 = vmor %vm849, %vm850
      %v852 = vsel %vm851, %v843, %v848
      %v853 = vrsqrt.pop %v800
      %v854 = vmul.f32 %v853, %v800
      %v855 = vmul.f32 %v854, %v853
      %v856 = vmul.f32 0.5, %v855
      %v857 = vsub.f32 1.5, %v856
      %v858 = vmul.f32 %v853, %v857
      %vm859 = vweird.f32 %v800
      %vm860 = vweird.f32 %v853
      %vm861 = vmor %vm859, %vm860
      %v862 = vsel %vm861, %v853, %v858
      %v863 = vrsqrt.pop %v801
      %v864 = vmul.f32 %v863, %v801
      %v865 = vmul.f32 %v864, %v863
      %v866 = vmul.f32 0.5, %v865
      %v867 = vsub.f32 1.5, %v866
      %v868 = vmul.f32 %v863, %v867
      %vm869 = vweird.f32 %v801
      %vm870 = vweird.f32 %v863
      %vm871 = vmor %vm869, %vm870
      %v872 = vsel %vm871, %v863, %v868
      %v873 = vrsqrt.pop %v802
      %v874 = vmul.f32 %v873, %v802
      %v875 = vmul.f32 %v874, %v873
      %v876 = vmul.f32 0.5, %v875
      %v877 = vsub.f32 1.5, %v876
      %v878 = vmul.f32 %v873, %v877
      %vm879 = vweird.f32 %v802
      %vm880 = vweird.f32 %v873
      %vm881 = vmor %vm879, %vm880
      %v882 = vsel %vm881, %v873, %v878
      %v883 = vmul.f32 %v747, %v812
      %v884 = vmul.f32 %v748, %v822
      %v885 = vmul.f32 %v749, %v832
      %v886 = vmul.f32 %v750, %v842
      %v887 = vmul.f32 %v751, %v852
      %v888 = vmul.f32 %v752, %v862
      %v889 = vmul.f32 %v753, %v872
      %v890 = vmul.f32 %v754, %v882
      %v891 = vld [vmem:[%s6] sm:$0x1]
      %v893 = vperm.slane %v891, 0
      %v895 = vmul.f32 %v883, %v893
      %v896 = vmul.f32 %v884, %v893
      %v897 = vmul.f32 %v885, %v893
      %v898 = vmul.f32 %v886, %v893
      %v899 = vmul.f32 %v887, %v893
      %v900 = vmul.f32 %v888, %v893
      %v901 = vmul.f32 %v889, %v893
      %v902 = vmul.f32 %v890, %v893
      %v903 = vld [vmem:[%s7] sm:$0x1]
      %v905 = vperm.slane %v903, 0
      %v907 = vadd.f32 %v895, %v905
      %v908 = vadd.f32 %v896, %v905
      %v909 = vadd.f32 %v897, %v905
      %v910 = vadd.f32 %v898, %v905
      %v911 = vadd.f32 %v899, %v905
      %v912 = vadd.f32 %v900, %v905
      %v913 = vadd.f32 %v901, %v905
      %v914 = vadd.f32 %v902, %v905
      %v915 = vmul.f32 %v907, %v691
      %v916 = vmul.f32 %v908, %v692
      %v917 = vmul.f32 %v909, %v693
      %v918 = vmul.f32 %v910, %v694
      %v919 = vmul.f32 %v911, %v695
      %v920 = vmul.f32 %v912, %v696
      %v921 = vmul.f32 %v913, %v697
      %v922 = vmul.f32 %v914, %v698
      %v923 = vpack.c.bf16 %v916, %v915
      %v924 = vpack.c.bf16 %v918, %v917
      %v925 = vpack.c.bf16 %v920, %v919
      %v926 = vpack.c.bf16 %v922, %v921
      %v927 = vld [vmem:[%s8] sm:$0xf]
      %v928 = vld [vmem:[%s8 + $0x4] sm:$0xf]
      %v929 = vld [vmem:[%s9] sm:$0x1]
      %v931 = vperm.slane %v929, 0
      %v935 = vunpack.c.l.b16 %v927
      %v936 = vunpack.c.l.b16 %v928
      %v937 = vpack.c.b16 %v936, %v935
      %v940 = vsel %vm394, %v923, 0
      %v943 = vsel %vm394, %v924, 0
      %v946 = vsel %vm394, %v925, 0
      %v949 = vsel %vm394, %v926, 0
      %951 = vmatpush.bf16.msra.mxu0 0
      %952 = vmatpush.bf16.msra.mxu0 0
      %953 = vmatpush.bf16.msra.mxu0 0
      %954 = vmatpush.bf16.msra.mxu0 0
      %955 = vmatpush.bf16.msra.mxu0 0
      %956 = vmatpush.bf16.msra.mxu0 0
      %957 = vmatpush.bf16.msra.mxu0 0
      %958 = vmatpush.bf16.msra.mxu0 %v937
      %959 = vmatmul.bf16.gmra.mxu0 %v940
      %v960 = vpop.f32.mrf.mxu0
      %v961 = vadd.f32 %v931, %v960
      %v962 = vpop.f32.mrf.mxu0
      %v963 = vadd.f32 %v931, %v962
      %964 = vmatmul.bf16.gmra.mxu0 %v943
      %v965 = vpop.f32.mrf.mxu0
      %v966 = vadd.f32 %v931, %v965
      %v967 = vpop.f32.mrf.mxu0
      %v968 = vadd.f32 %v931, %v967
      %969 = vmatmul.bf16.gmra.mxu0 %v946
      %v970 = vpop.f32.mrf.mxu0
      %v971 = vadd.f32 %v931, %v970
      %v972 = vpop.f32.mrf.mxu0
      %v973 = vadd.f32 %v931, %v972
      %974 = vmatmul.bf16.gmra.mxu0 %v949
      %v975 = vpop.f32.mrf.mxu0
      %v976 = vadd.f32 %v931, %v975
      %v977 = vpop.f32.mrf.mxu0
      %v978 = vadd.f32 %v931, %v977
      %979 = vdwg.mxu0
      %v980 = vadd.f32 %v386, %v961
      %v981 = vadd.f32 %v387, %v963
      %v982 = vadd.f32 %v388, %v966
      %v983 = vadd.f32 %v389, %v968
      %v984 = vadd.f32 %v390, %v971
      %v985 = vadd.f32 %v391, %v973
      %v986 = vadd.f32 %v392, %v976
      %v987 = vadd.f32 %v393, %v978
      %988 = vst.msk [vmem:[%s383] sm:$0xff] %vm394, %v980
      %989 = vst.msk [vmem:[%s383 + $0x8] sm:$0xff] %vm394, %v981
      %990 = vst.msk [vmem:[%s383 + $0x10] sm:$0xff] %vm394, %v982
      %991 = vst.msk [vmem:[%s383 + $0x18] sm:$0xff] %vm394, %v983
      %992 = vst.msk [vmem:[%s383 + $0x20] sm:$0xff] %vm394, %v984
      %993 = vst.msk [vmem:[%s383 + $0x28] sm:$0xff] %vm394, %v985
      %994 = vst.msk [vmem:[%s383 + $0x30] sm:$0xff] %vm394, %v986
      %995 = vst.msk [vmem:[%s383 + $0x38] sm:$0xff] %vm394, %v987
      %s996 = smul.u32 8, %s21
      %p997 = scmp.lt.s32.totalorder %s996, 15
      %s998 = scalar_select %p997, %s996, 15
      %s999 = smul.addr %s998, 8
      %s1000 = scalar_lea.vmem %s10, %s999
      // Predicated region
      $region61: #{ribonanzanet_forward.54} parent=59 // pred_check
        %p1001 = pneg %p259
      $region62: #{ribonanzanet_forward.54} parent=59 // pred_check_branch
        %1003 = sbr.rel (%p1001) target = $region64
      $region63: #{ribonanzanet_forward.54} parent=59 // pred_region
        %s1004 = smul.u32 8, %s21
      $region64: #{ribonanzanet_forward.54} parent=59 // pred_fallthru
        _
    $region60: #{ribonanzanet_forward.54} parent=5 // pred_fallthru
      _
    %p1005 = scmp.le.s32.totalorder 2, %s16
    // Predicated region
    $region65: #{ribonanzanet_forward.54} parent=5 // pred_check
      %p1006 = pneg %p1005
    $region66: #{ribonanzanet_forward.54} parent=5 // pred_check_branch
      %1008 = sbr.rel (%p1006) target = $region68
    $region67: #{ribonanzanet_forward.54} parent=5 // pred_region
      %s1009 = ssub.s32 %s16, 2
      // Predicated region
      $region69: #{ribonanzanet_forward.54} parent=67 // pred_check
        %p1010 = pneg %p265
      $region70: #{ribonanzanet_forward.54} parent=67 // pred_check_branch
        %1012 = sbr.rel (%p1010) target = $region72
      $region71: #{ribonanzanet_forward.54} parent=67 // pred_region
        %s1013 = smul.u32 8, %s22
        %p1014 = scmp.lt.s32.totalorder %s1013, 15
        %s1015 = scalar_select %p1014, %s1013, 15
        %s1016 = smul.addr %s1015, 8
        %s1017 = scalar_lea.vmem %s10, %s1016
      $region72: #{ribonanzanet_forward.54} parent=67 // pred_fallthru
        _
    $region68: #{ribonanzanet_forward.54} parent=5 // pred_fallthru
      _
  $region6: #{ribonanzanet_forward.54} parent=0 // loop_footer
    %s20 = sadd.s32 1, %s16
  $region7: #{ribonanzanet_forward.54} parent=0 // loop_footer_branch
    %15 = sbr.rel target = $region3
  $region8: #{ribonanzanet_forward.54} parent=0 // loop_exit
    _

// kernel: ribonanzanet_forward.53
$region0: #{ribonanzanet_forward.53}
  #allocation0 [shape = 'u32[]', space=smem, size = 0x4, offset = 0x4, fixed_abs, tag = 'smem constant byte address 0x4 - core index']
  #allocation1 [shape = 'u32[72,128]{1,0:T(1,128)}', space=vmem, size = 0x9000, scoped, tag = 'internal scratch']
  %s0 = inlined_call_operand.vmem [shape: bf16[2,16,8,8], index: 0, kind: input, shape index: {}]
  %s1 = inlined_call_operand.vmem [shape: bf16[2,16,8,8], index: 1, kind: input, shape index: {}]
  %s2 = inlined_call_operand.vmem [shape: bf16[2,16,8,8], index: 2, kind: output, shape index: {}]
  %s3 = sld [smem:[#allocation0]]
  $region41: #{ribonanzanet_forward.53} parent=0
    _
  %s5 = ssub.s32 1, %s3
  %s6 = scalar_select 0, %s5, %s3
  loop: start=0, step=1, limit=4
  $region2: #{ribonanzanet_forward.53} parent=0 // loop_pre_header
    _
  $region3: #{ribonanzanet_forward.53} parent=0 // loop_header
    %s8 = sphi 0, %s12
    %p9 = scmp.ge.s32.totalorder %s8, 4
    %s15 = sphi 0, %s27
    %s16 = sphi 0, %s23
    %s17 = sphi 0, %s15
    %s18 = sphi 0, %s16
    %s19 = sphi 0, %s17
    %s20 = sphi 0, %s18
    %s32 = sphi 0, %s34
    %s35 = sphi 0, %s32
    %s36 = sphi 0, %s35
    %s52 = sphi 0, %s36
    %s58 = sphi 0, %s60
    %s61 = sphi 0, %s58
    %s62 = sphi 0, %s61
    %s78 = sphi 0, %s62
    %s86 = sphi 0, %s88
    %s89 = sphi 0, %s86
    %s90 = sphi 0, %s89
    %s106 = sphi 0, %s90
  $region4: #{ribonanzanet_forward.53} parent=0 // loop_header_branch
    %11 = sbr.rel (%p9) target = $region8
  $region5: #{ribonanzanet_forward.53} parent=0 // loop_body
    %s13 = ssub.s32 %s8, 1
    %s14 = ssub.s32 %s8, 2
    %s21 = sadd.s32 1, %s16
    %p22 = scmp.ge.s32.totalorder %s21, 1
    %s23 = scalar_select %p22, 0, %s21
    %s24 = sadd.s32 1, %s15
    %s25 = scalar_select %p22, %s24, %s15
    %p26 = scmp.ge.s32.totalorder %s25, 2
    %s27 = scalar_select %p26, 0, %s25
    %s28 = ssub.s32 %s15, %s27
    %s29 = ssub.s32 %s16, %s23
    %s30 = sor.u32 %s28, %s29
    %p31 = scmp.eq.s32.totalorder %s30, 0
    %s33 = sadd.s32 %s32, 1
    %s34 = scalar_select %p31, %s32, %s33
    %p37 = pneg %p31
    %p38 = scmp.eq.s32.totalorder %s8, 1
    %p39 = por %p37, %p38
    %p40 = scmp.ne.s32.totalorder %s32, %s35
    %p41 = scmp.eq.s32.totalorder %s8, 0
    %p42 = por %p40, %p41
    %p43 = scmp.ne.s32.totalorder %s32, %s35
    %p44 = scmp.eq.s32.totalorder %s13, 1
    %p45 = por %p43, %p44
    %p46 = scmp.ne.s32.totalorder %s35, %s36
    %p47 = scmp.eq.s32.totalorder %s13, 0
    %p48 = por %p46, %p47
    %p49 = scmp.ne.s32.totalorder %s35, %s36
    %p50 = scmp.eq.s32.totalorder %s14, 1
    %p51 = por %p49, %p50
    %p53 = scmp.ne.s32.totalorder %s36, %s52
    %p54 = scmp.eq.s32.totalorder %s14, 0
    %p55 = por %p53, %p54
    %s56 = ssub.s32 %s15, %s27
    %p57 = scmp.eq.s32.totalorder %s56, 0
    %s59 = sadd.s32 %s58, 1
    %s60 = scalar_select %p57, %s58, %s59
    %p63 = pneg %p57
    %p64 = scmp.eq.s32.totalorder %s8, 1
    %p65 = por %p63, %p64
    %p66 = scmp.ne.s32.totalorder %s58, %s61
    %p67 = scmp.eq.s32.totalorder %s8, 0
    %p68 = por %p66, %p67
    %p69 = scmp.ne.s32.totalorder %s58, %s61
    %p70 = scmp.eq.s32.totalorder %s13, 1
    %p71 = por %p69, %p70
    %p72 = scmp.ne.s32.totalorder %s61, %s62
    %p73 = scmp.eq.s32.totalorder %s13, 0
    %p74 = por %p72, %p73
    %p75 = scmp.ne.s32.totalorder %s61, %s62
    %p76 = scmp.eq.s32.totalorder %s14, 1
    %p77 = por %p75, %p76
    %p79 = scmp.ne.s32.totalorder %s62, %s78
    %p80 = scmp.eq.s32.totalorder %s14, 0
    %p81 = por %p79, %p80
    %s82 = ssub.s32 %s15, %s27
    %s83 = ssub.s32 %s16, %s23
    %s84 = sor.u32 %s82, %s83
    %p85 = scmp.eq.s32.totalorder %s84, 0
    %s87 = sadd.s32 %s86, 1
    %s88 = scalar_select %p85, %s86, %s87
    %p91 = pneg %p85
    %p92 = scmp.eq.s32.totalorder %s8, 1
    %p93 = por %p91, %p92
    %p94 = scmp.ne.s32.totalorder %s86, %s89
    %p95 = scmp.eq.s32.totalorder %s8, 0
    %p96 = por %p94, %p95
    %p97 = scmp.ne.s32.totalorder %s86, %s89
    %p98 = scmp.eq.s32.totalorder %s13, 1
    %p99 = por %p97, %p98
    %p100 = scmp.ne.s32.totalorder %s89, %s90
    %p101 = scmp.eq.s32.totalorder %s13, 0
    %p102 = por %p100, %p101
    %p103 = scmp.ne.s32.totalorder %s89, %s90
    %p104 = scmp.eq.s32.totalorder %s14, 1
    %p105 = por %p103, %p104
    %p107 = scmp.ne.s32.totalorder %s90, %s106
    %p108 = scmp.eq.s32.totalorder %s14, 0
    %p109 = por %p107, %p108
    %p110 = scmp.le.s32.totalorder 1, %s8
    %p111 = scmp.lt.s32.totalorder %s8, 3
    %p112 = pnand %p110, %p111
    %p113 = pneg %p112
    // Predicated region
    $region9: #{ribonanzanet_forward.53} parent=5 // pred_check
      _
    $region10: #{ribonanzanet_forward.53} parent=5 // pred_check_branch
      %115 = sbr.rel (%p112) target = $region12
    $region11: #{ribonanzanet_forward.53} parent=5 // pred_region
      %s116 = ssub.s32 %s8, 1
    $region12: #{ribonanzanet_forward.53} parent=5 // pred_fallthru
      _
    %p117 = scmp.lt.s32.totalorder %s8, 2
    // Predicated region
    $region13: #{ribonanzanet_forward.53} parent=5 // pred_check
      %p118 = pneg %p117
    $region14: #{ribonanzanet_forward.53} parent=5 // pred_check_branch
      %120 = sbr.rel (%p118) target = $region16
    $region15: #{ribonanzanet_forward.53} parent=5 // pred_region
      // Predicated region
      $region17: #{ribonanzanet_forward.53} parent=15 // pred_check
        %p121 = pneg %p42
      $region18: #{ribonanzanet_forward.53} parent=15 // pred_check_branch
        %123 = sbr.rel (%p121) target = $region20
      $region19: #{ribonanzanet_forward.53} parent=15 // pred_region
        %p124 = scmp.lt.s32.totalorder %s15, 1
        %s125 = scalar_select %p124, %s15, 1
        %p126 = scmp.lt.s32.totalorder %s16, 0
        %s127 = scalar_select %p126, %s16, 0
        %s128 = smul.addr %s125, 16
        %s129 = sadd.s32 %s127, %s128
        %s130 = smul.addr %s129, 4
        %s131 = scalar_lea.vmem %s0, %s130
      $region20: #{ribonanzanet_forward.53} parent=15 // pred_fallthru
        _
      // Predicated region
      $region21: #{ribonanzanet_forward.53} parent=15 // pred_check
        %p132 = pneg %p68
      $region22: #{ribonanzanet_forward.53} parent=15 // pred_check_branch
        %134 = sbr.rel (%p132) target = $region24
      $region23: #{ribonanzanet_forward.53} parent=15 // pred_region
        %p135 = scmp.lt.s32.totalorder %s15, 1
        %s136 = scalar_select %p135, %s15, 1
        %s137 = smul.addr %s136, 16
        %s138 = smul.addr %s137, 4
        %s139 = scalar_lea.vmem %s1, %s138
      $region24: #{ribonanzanet_forward.53} parent=15 // pred_fallthru
        _
    $region16: #{ribonanzanet_forward.53} parent=5 // pred_fallthru
      _
    %p140 = scmp.le.s32.totalorder 1, %s8
    %p141 = scmp.lt.s32.totalorder %s8, 3
    %p142 = pnand %p140, %p141
    %p143 = pneg %p142
    // Predicated region
    $region25: #{ribonanzanet_forward.53} parent=5 // pred_check
      _
    $region26: #{ribonanzanet_forward.53} parent=5 // pred_check_branch
      %145 = sbr.rel (%p142) target = $region28
    $region27: #{ribonanzanet_forward.53} parent=5 // pred_region
      %s146 = ssub.s32 %s8, 1
      %p147 = scmp.lt.s32.totalorder %s17, 1
      %s148 = scalar_select %p147, %s17, 1
      %p149 = scmp.lt.s32.totalorder %s18, 0
      %s150 = scalar_select %p149, %s18, 0
      %s151 = smul.addr %s148, 16
      %s152 = sadd.s32 %s150, %s151
      %s153 = smul.addr %s152, 4
      %s154 = scalar_lea.vmem %s0, %s153
      %p155 = pneg %p48
      %p156 = pneg %p45
      %p157 = scmp.lt.s32.totalorder %s17, 1
      %s158 = scalar_select %p157, %s17, 1
      %s159 = smul.addr %s158, 16
      %s160 = smul.addr %s159, 4
      %s161 = scalar_lea.vmem %s1, %s160
      %p162 = pneg %p74
      %p163 = pneg %p71
      %p164 = pneg %p102
      %p165 = pneg %p99
      %p166 = scmp.lt.s32.totalorder %s17, 1
      %s167 = scalar_select %p166, %s17, 1
      %p168 = scmp.lt.s32.totalorder %s18, 0
      %s169 = scalar_select %p168, %s18, 0
      %s170 = smul.addr %s167, 16
      %s171 = sadd.s32 %s169, %s170
      %s172 = smul.addr %s171, 4
      %s173 = scalar_lea.vmem %s2, %s172
      %p174 = scmp.lt.s32.totalorder %s17, 1
      %s175 = scalar_select %p174, %s17, 1
      %p176 = scmp.lt.s32.totalorder %s18, 0
      %s177 = scalar_select %p176, %s18, 0
      %s178 = smul.addr %s175, 16
      %s179 = sadd.s32 %s177, %s178
      %s180 = smul.addr %s179, 4
      %s181 = scalar_lea.vmem %s0, %s180
      %p182 = scmp.lt.s32.totalorder %s17, 1
      %s183 = scalar_select %p182, %s17, 1
      %s184 = smul.addr %s183, 16
      %s185 = smul.addr %s184, 4
      %s186 = scalar_lea.vmem %s1, %s185
      %p187 = scmp.lt.s32.totalorder %s17, 1
      %s188 = scalar_select %p187, %s17, 1
      %p189 = scmp.lt.s32.totalorder %s18, 0
      %s190 = scalar_select %p189, %s18, 0
      %s191 = smul.addr %s188, 16
      %s192 = sadd.s32 %s190, %s191
      %s193 = smul.addr %s192, 4
      %s194 = scalar_lea.vmem %s2, %s193
      %v196 = vld [vmem:[%s181] sm:$0xf]
      %v197 = vld [vmem:[%s181 + $0x4] sm:$0xf]
      %v198 = vld [vmem:[%s181 + $0x8] sm:$0xf]
      %v199 = vld [vmem:[%s181 + $0xc] sm:$0xf]
      %v200 = vld [vmem:[%s181 + $0x10] sm:$0xf]
      %v201 = vld [vmem:[%s181 + $0x14] sm:$0xf]
      %v202 = vld [vmem:[%s181 + $0x18] sm:$0xf]
      %v203 = vld [vmem:[%s181 + $0x1c] sm:$0xf]
      %v204 = vld [vmem:[%s181 + $0x20] sm:$0xf]
      %v205 = vld [vmem:[%s181 + $0x24] sm:$0xf]
      %v206 = vld [vmem:[%s181 + $0x28] sm:$0xf]
      %v207 = vld [vmem:[%s181 + $0x2c] sm:$0xf]
      %v208 = vld [vmem:[%s181 + $0x30] sm:$0xf]
      %v209 = vld [vmem:[%s181 + $0x34] sm:$0xf]
      %v210 = vld [vmem:[%s181 + $0x38] sm:$0xf]
      %v211 = vld [vmem:[%s181 + $0x3c] sm:$0xf]
      %v212 = vld [vmem:[%s186] sm:$0xf]
      %v213 = vld [vmem:[%s186 + $0x4] sm:$0xf]
      %v214 = vld [vmem:[%s186 + $0x8] sm:$0xf]
      %v215 = vld [vmem:[%s186 + $0xc] sm:$0xf]
      %v216 = vld [vmem:[%s186 + $0x10] sm:$0xf]
      %v217 = vld [vmem:[%s186 + $0x14] sm:$0xf]
      %v218 = vld [vmem:[%s186 + $0x18] sm:$0xf]
      %v219 = vld [vmem:[%s186 + $0x1c] sm:$0xf]
      %v220 = vld [vmem:[%s186 + $0x20] sm:$0xf]
      %v221 = vld [vmem:[%s186 + $0x24] sm:$0xf]
      %v222 = vld [vmem:[%s186 + $0x28] sm:$0xf]
      %v223 = vld [vmem:[%s186 + $0x2c] sm:$0xf]
      %v224 = vld [vmem:[%s186 + $0x30] sm:$0xf]
      %v225 = vld [vmem:[%s186 + $0x34] sm:$0xf]
      %v226 = vld [vmem:[%s186 + $0x38] sm:$0xf]
      %v227 = vld [vmem:[%s186 + $0x3c] sm:$0xf]
      %vm228 = vcmask 64512
      %v230 = vsel %vm228, %v196, 0
      %v233 = vsel %vm228, %v212, 0
      %235 = vmatpush.bf16.xpose.msra.mxu0 0
      %236 = vmatpush.bf16.xpose.msra.mxu0 0
      %237 = vmatpush.bf16.xpose.msra.mxu0 0
      %238 = vmatpush.bf16.xpose.msra.mxu0 0
      %239 = vmatpush.bf16.xpose.msra.mxu0 0
      %240 = vmatpush.bf16.xpose.msra.mxu0 0
      %241 = vmatpush.bf16.xpose.msra.mxu0 0
      %242 = vmatpush.bf16.xpose.msra.mxu0 %v233
      %243 = vmatmul.bf16.gmra.mxu0 %v230
      %v244 = vpop.f32.mrf.mxu0
      %v245 = vadd.f32 0.0, %v244
      %v246 = vpop.f32.mrf.mxu0
      %247 = vdwg.mxu0
      %v249 = vsel %vm228, %v197, 0
      %v252 = vsel %vm228, %v213, 0
      %254 = vmatpush.bf16.xpose.msra.mxu0 0
      %255 = vmatpush.bf16.xpose.msra.mxu0 0
      %256 = vmatpush.bf16.xpose.msra.mxu0 0
      %257 = vmatpush.bf16.xpose.msra.mxu0 0
      %258 = vmatpush.bf16.xpose.msra.mxu0 0
      %259 = vmatpush.bf16.xpose.msra.mxu0 0
      %260 = vmatpush.bf16.xpose.msra.mxu0 0
      %261 = vmatpush.bf16.xpose.msra.mxu0 %v252
      %262 = vmatmul.bf16.gmra.mxu0 %v249
      %v263 = vpop.f32.mrf.mxu0
      %v264 = vadd.f32 0.0, %v263
      %v265 = vpop.f32.mrf.mxu0
      %266 = vdwg.mxu0
      %v268 = vsel %vm228, %v198, 0
      %v271 = vsel %vm228, %v214, 0
      %273 = vmatpush.bf16.xpose.msra.mxu0 0
      %274 = vmatpush.bf16.xpose.msra.mxu0 0
      %275 = vmatpush.bf16.xpose.msra.mxu0 0
      %276 = vmatpush.bf16.xpose.msra.mxu0 0
      %277 = vmatpush.bf16.xpose.msra.mxu0 0
      %278 = vmatpush.bf16.xpose.msra.mxu0 0
      %279 = vmatpush.bf16.xpose.msra.mxu0 0
      %280 = vmatpush.bf16.xpose.msra.mxu0 %v271
      %281 = vmatmul.bf16.gmra.mxu0 %v268
      %v282 = vpop.f32.mrf.mxu0
      %v283 = vadd.f32 0.0, %v282
      %v284 = vpop.f32.mrf.mxu0
      %285 = vdwg.mxu0
      %v287 = vsel %vm228, %v199, 0
      %v290 = vsel %vm228, %v215, 0
      %292 = vmatpush.bf16.xpose.msra.mxu0 0
      %293 = vmatpush.bf16.xpose.msra.mxu0 0
      %294 = vmatpush.bf16.xpose.msra.mxu0 0
      %295 = vmatpush.bf16.xpose.msra.mxu0 0
      %296 = vmatpush.bf16.xpose.msra.mxu0 0
      %297 = vmatpush.bf16.xpose.msra.mxu0 0
      %298 = vmatpush.bf16.xpose.msra.mxu0 0
      %299 = vmatpush.bf16.xpose.msra.mxu0 %v290
      %300 = vmatmul.bf16.gmra.mxu0 %v287
      %v301 = vpop.f32.mrf.mxu0
      %v302 = vadd.f32 0.0, %v301
      %v303 = vpop.f32.mrf.mxu0
      %304 = vdwg.mxu0
      %v306 = vsel %vm228, %v200, 0
      %v309 = vsel %vm228, %v216, 0
      %311 = vmatpush.bf16.xpose.msra.mxu0 0
      %312 = vmatpush.bf16.xpose.msra.mxu0 0
      %313 = vmatpush.bf16.xpose.msra.mxu0 0
      %314 = vmatpush.bf16.xpose.msra.mxu0 0
      %315 = vmatpush.bf16.xpose.msra.mxu0 0
      %316 = vmatpush.bf16.xpose.msra.mxu0 0
      %317 = vmatpush.bf16.xpose.msra.mxu0 0
      %318 = vmatpush.bf16.xpose.msra.mxu0 %v309
      %319 = vmatmul.bf16.gmra.mxu0 %v306
      %v320 = vpop.f32.mrf.mxu0
      %v321 = vadd.f32 0.0, %v320
      %v322 = vpop.f32.mrf.mxu0
      %323 = vdwg.mxu0
      %v325 = vsel %vm228, %v201, 0
      %v328 = vsel %vm228, %v217, 0
      %330 = vmatpush.bf16.xpose.msra.mxu0 0
      %331 = vmatpush.bf16.xpose.msra.mxu0 0
      %332 = vmatpush.bf16.xpose.msra.mxu0 0
      %333 = vmatpush.bf16.xpose.msra.mxu0 0
      %334 = vmatpush.bf16.xpose.msra.mxu0 0
      %335 = vmatpush.bf16.xpose.msra.mxu0 0
      %336 = vmatpush.bf16.xpose.msra.mxu0 0
      %337 = vmatpush.bf16.xpose.msra.mxu0 %v328
      %338 = vmatmul.bf16.gmra.mxu0 %v325
      %v339 = vpop.f32.mrf.mxu0
      %v340 = vadd.f32 0.0, %v339
      %v341 = vpop.f32.mrf.mxu0
      %342 = vdwg.mxu0
      %v344 = vsel %vm228, %v202, 0
      %v347 = vsel %vm228, %v218, 0
      %349 = vmatpush.bf16.xpose.msra.mxu0 0
      %350 = vmatpush.bf16.xpose.msra.mxu0 0
      %351 = vmatpush.bf16.xpose.msra.mxu0 0
      %352 = vmatpush.bf16.xpose.msra.mxu0 0
      %353 = vmatpush.bf16.xpose.msra.mxu0 0
      %354 = vmatpush.bf16.xpose.msra.mxu0 0
      %355 = vmatpush.bf16.xpose.msra.mxu0 0
      %356 = vmatpush.bf16.xpose.msra.mxu0 %v347
      %357 = vmatmul.bf16.gmra.mxu0 %v344
      %v358 = vpop.f32.mrf.mxu0
      %v359 = vadd.f32 0.0, %v358
      %v360 = vpop.f32.mrf.mxu0
      %361 = vdwg.mxu0
      %v363 = vsel %vm228, %v203, 0
      %v366 = vsel %vm228, %v219, 0
      %368 = vmatpush.bf16.xpose.msra.mxu0 0
      %369 = vmatpush.bf16.xpose.msra.mxu0 0
      %370 = vmatpush.bf16.xpose.msra.mxu0 0
      %371 = vmatpush.bf16.xpose.msra.mxu0 0
      %372 = vmatpush.bf16.xpose.msra.mxu0 0
      %373 = vmatpush.bf16.xpose.msra.mxu0 0
      %374 = vmatpush.bf16.xpose.msra.mxu0 0
      %375 = vmatpush.bf16.xpose.msra.mxu0 %v366
      %376 = vmatmul.bf16.gmra.mxu0 %v363
      %v377 = vpop.f32.mrf.mxu0
      %v378 = vadd.f32 0.0, %v377
      %v379 = vpop.f32.mrf.mxu0
      %380 = vdwg.mxu0
      %v382 = vsel %vm228, %v204, 0
      %v385 = vsel %vm228, %v220, 0
      %387 = vmatpush.bf16.xpose.msra.mxu0 0
      %388 = vmatpush.bf16.xpose.msra.mxu0 0
      %389 = vmatpush.bf16.xpose.msra.mxu0 0
      %390 = vmatpush.bf16.xpose.msra.mxu0 0
      %391 = vmatpush.bf16.xpose.msra.mxu0 0
      %392 = vmatpush.bf16.xpose.msra.mxu0 0
      %393 = vmatpush.bf16.xpose.msra.mxu0 0
      %394 = vmatpush.bf16.xpose.msra.mxu0 %v385
      %395 = vmatmul.bf16.gmra.mxu0 %v382
      %v396 = vpop.f32.mrf.mxu0
      %v397 = vadd.f32 0.0, %v396
      %v398 = vpop.f32.mrf.mxu0
      %399 = vdwg.mxu0
      %v401 = vsel %vm228, %v205, 0
      %v404 = vsel %vm228, %v221, 0
      %406 = vmatpush.bf16.xpose.msra.mxu0 0
      %407 = vmatpush.bf16.xpose.msra.mxu0 0
      %408 = vmatpush.bf16.xpose.msra.mxu0 0
      %409 = vmatpush.bf16.xpose.msra.mxu0 0
      %410 = vmatpush.bf16.xpose.msra.mxu0 0
      %411 = vmatpush.bf16.xpose.msra.mxu0 0
      %412 = vmatpush.bf16.xpose.msra.mxu0 0
      %413 = vmatpush.bf16.xpose.msra.mxu0 %v404
      %414 = vmatmul.bf16.gmra.mxu0 %v401
      %v415 = vpop.f32.mrf.mxu0
      %v416 = vadd.f32 0.0, %v415
      %v417 = vpop.f32.mrf.mxu0
      %418 = vdwg.mxu0
      %v420 = vsel %vm228, %v206, 0
      %v423 = vsel %vm228, %v222, 0
      %425 = vmatpush.bf16.xpose.msra.mxu0 0
      %426 = vmatpush.bf16.xpose.msra.mxu0 0
      %427 = vmatpush.bf16.xpose.msra.mxu0 0
      %428 = vmatpush.bf16.xpose.msra.mxu0 0
      %429 = vmatpush.bf16.xpose.msra.mxu0 0
      %430 = vmatpush.bf16.xpose.msra.mxu0 0
      %431 = vmatpush.bf16.xpose.msra.mxu0 0
      %432 = vmatpush.bf16.xpose.msra.mxu0 %v423
      %433 = vmatmul.bf16.gmra.mxu0 %v420
      %v434 = vpop.f32.mrf.mxu0
      %v435 = vadd.f32 0.0, %v434
      %v436 = vpop.f32.mrf.mxu0
      %437 = vdwg.mxu0
      %v439 = vsel %vm228, %v207, 0
      %v442 = vsel %vm228, %v223, 0
      %444 = vmatpush.bf16.xpose.msra.mxu0 0
      %445 = vmatpush.bf16.xpose.msra.mxu0 0
      %446 = vmatpush.bf16.xpose.msra.mxu0 0
      %447 = vmatpush.bf16.xpose.msra.mxu0 0
      %448 = vmatpush.bf16.xpose.msra.mxu0 0
      %449 = vmatpush.bf16.xpose.msra.mxu0 0
      %450 = vmatpush.bf16.xpose.msra.mxu0 0
      %451 = vmatpush.bf16.xpose.msra.mxu0 %v442
      %452 = vmatmul.bf16.gmra.mxu0 %v439
      %v453 = vpop.f32.mrf.mxu0
      %v454 = vadd.f32 0.0, %v453
      %v455 = vpop.f32.mrf.mxu0
      %456 = vdwg.mxu0
      %v458 = vsel %vm228, %v208, 0
      %v461 = vsel %vm228, %v224, 0
      %463 = vmatpush.bf16.xpose.msra.mxu0 0
      %464 = vmatpush.bf16.xpose.msra.mxu0 0
      %465 = vmatpush.bf16.xpose.msra.mxu0 0
      %466 = vmatpush.bf16.xpose.msra.mxu0 0
      %467 = vmatpush.bf16.xpose.msra.mxu0 0
      %468 = vmatpush.bf16.xpose.msra.mxu0 0
      %469 = vmatpush.bf16.xpose.msra.mxu0 0
      %470 = vmatpush.bf16.xpose.msra.mxu0 %v461
      %471 = vmatmul.bf16.gmra.mxu0 %v458
      %v472 = vpop.f32.mrf.mxu0
      %v473 = vadd.f32 0.0, %v472
      %v474 = vpop.f32.mrf.mxu0
      %475 = vdwg.mxu0
      %v477 = vsel %vm228, %v209, 0
      %v480 = vsel %vm228, %v225, 0
      %482 = vmatpush.bf16.xpose.msra.mxu0 0
      %483 = vmatpush.bf16.xpose.msra.mxu0 0
      %484 = vmatpush.bf16.xpose.msra.mxu0 0
      %485 = vmatpush.bf16.xpose.msra.mxu0 0
      %486 = vmatpush.bf16.xpose.msra.mxu0 0
      %487 = vmatpush.bf16.xpose.msra.mxu0 0
      %488 = vmatpush.bf16.xpose.msra.mxu0 0
      %489 = vmatpush.bf16.xpose.msra.mxu0 %v480
      %490 = vmatmul.bf16.gmra.mxu0 %v477
      %v491 = vpop.f32.mrf.mxu0
      %v492 = vadd.f32 0.0, %v491
      %v493 = vpop.f32.mrf.mxu0
      %494 = vdwg.mxu0
      %v496 = vsel %vm228, %v210, 0
      %v499 = vsel %vm228, %v226, 0
      %501 = vmatpush.bf16.xpose.msra.mxu0 0
      %502 = vmatpush.bf16.xpose.msra.mxu0 0
      %503 = vmatpush.bf16.xpose.msra.mxu0 0
      %504 = vmatpush.bf16.xpose.msra.mxu0 0
      %505 = vmatpush.bf16.xpose.msra.mxu0 0
      %506 = vmatpush.bf16.xpose.msra.mxu0 0
      %507 = vmatpush.bf16.xpose.msra.mxu0 0
      %508 = vmatpush.bf16.xpose.msra.mxu0 %v499
      %509 = vmatmul.bf16.gmra.mxu0 %v496
      %v510 = vpop.f32.mrf.mxu0
      %v511 = vadd.f32 0.0, %v510
      %v512 = vpop.f32.mrf.mxu0
      %513 = vdwg.mxu0
      %v515 = vsel %vm228, %v211, 0
      %v518 = vsel %vm228, %v227, 0
      %520 = vmatpush.bf16.xpose.msra.mxu0 0
      %521 = vmatpush.bf16.xpose.msra.mxu0 0
      %522 = vmatpush.bf16.xpose.msra.mxu0 0
      %523 = vmatpush.bf16.xpose.msra.mxu0 0
      %524 = vmatpush.bf16.xpose.msra.mxu0 0
      %525 = vmatpush.bf16.xpose.msra.mxu0 0
      %526 = vmatpush.bf16.xpose.msra.mxu0 0
      %527 = vmatpush.bf16.xpose.msra.mxu0 %v518
      %528 = vmatmul.bf16.gmra.mxu0 %v515
      %v529 = vpop.f32.mrf.mxu0
      %v530 = vadd.f32 0.0, %v529
      %v531 = vpop.f32.mrf.mxu0
      %532 = vdwg.mxu0
      %v533 = vpack.c.bf16 %v245, %v245
      %v534 = vpack.c.bf16 %v264, %v264
      %v535 = vpack.c.bf16 %v283, %v283
      %v536 = vpack.c.bf16 %v302, %v302
      %v537 = vpack.c.bf16 %v321, %v321
      %v538 = vpack.c.bf16 %v340, %v340
      %v539 = vpack.c.bf16 %v359, %v359
      %v540 = vpack.c.bf16 %v378, %v378
      %v541 = vpack.c.bf16 %v397, %v397
      %v542 = vpack.c.bf16 %v416, %v416
      %v543 = vpack.c.bf16 %v435, %v435
      %v544 = vpack.c.bf16 %v454, %v454
      %v545 = vpack.c.bf16 %v473, %v473
      %v546 = vpack.c.bf16 %v492, %v492
      %v547 = vpack.c.bf16 %v511, %v511
      %v548 = vpack.c.bf16 %v530, %v530
      %vm549 = vcmask 60416
      %550 = vst.msk [vmem:[%s194] sm:$0xf] %vm549, %v533
      %551 = vst.msk [vmem:[%s194 + $0x4] sm:$0xf] %vm549, %v534
      %552 = vst.msk [vmem:[%s194 + $0x8] sm:$0xf] %vm549, %v535
      %553 = vst.msk [vmem:[%s194 + $0xc] sm:$0xf] %vm549, %v536
      %554 = vst.msk [vmem:[%s194 + $0x10] sm:$0xf] %vm549, %v537
      %555 = vst.msk [vmem:[%s194 + $0x14] sm:$0xf] %vm549, %v538
      %556 = vst.msk [vmem:[%s194 + $0x18] sm:$0xf] %vm549, %v539
      %557 = vst.msk [vmem:[%s194 + $0x1c] sm:$0xf] %vm549, %v540
      %558 = vst.msk [vmem:[%s194 + $0x20] sm:$0xf] %vm549, %v541
      %559 = vst.msk [vmem:[%s194 + $0x24] sm:$0xf] %vm549, %v542
      %560 = vst.msk [vmem:[%s194 + $0x28] sm:$0xf] %vm549, %v543
      %561 = vst.msk [vmem:[%s194 + $0x2c] sm:$0xf] %vm549, %v544
      %562 = vst.msk [vmem:[%s194 + $0x30] sm:$0xf] %vm549, %v545
      %563 = vst.msk [vmem:[%s194 + $0x34] sm:$0xf] %vm549, %v546
      %564 = vst.msk [vmem:[%s194 + $0x38] sm:$0xf] %vm549, %v547
      %565 = vst.msk [vmem:[%s194 + $0x3c] sm:$0xf] %vm549, %v548
      %p566 = scmp.lt.s32.totalorder %s17, 1
      %s567 = scalar_select %p566, %s17, 1
      %p568 = scmp.lt.s32.totalorder %s18, 0
      %s569 = scalar_select %p568, %s18, 0
      %s570 = smul.addr %s567, 16
      %s571 = sadd.s32 %s569, %s570
      %s572 = smul.addr %s571, 4
      %s573 = scalar_lea.vmem %s2, %s572
      // Predicated region
      $region29: #{ribonanzanet_forward.53} parent=27 // pred_check
        %p574 = pneg %p99
      $region30: #{ribonanzanet_forward.53} parent=27 // pred_check_branch
        %576 = sbr.rel (%p574) target = $region32
      $region31: #{ribonanzanet_forward.53} parent=27 // pred_region
        _
      $region32: #{ribonanzanet_forward.53} parent=27 // pred_fallthru
        _
    $region28: #{ribonanzanet_forward.53} parent=5 // pred_fallthru
      _
    %p577 = scmp.le.s32.totalorder 2, %s8
    // Predicated region
    $region33: #{ribonanzanet_forward.53} parent=5 // pred_check
      %p578 = pneg %p577
    $region34: #{ribonanzanet_forward.53} parent=5 // pred_check_branch
      %580 = sbr.rel (%p578) target = $region36
    $region35: #{ribonanzanet_forward.53} parent=5 // pred_region
      %s581 = ssub.s32 %s8, 2
      // Predicated region
      $region37: #{ribonanzanet_forward.53} parent=35 // pred_check
        %p582 = pneg %p105
      $region38: #{ribonanzanet_forward.53} parent=35 // pred_check_branch
        %584 = sbr.rel (%p582) target = $region40
      $region39: #{ribonanzanet_forward.53} parent=35 // pred_region
        %p585 = scmp.lt.s32.totalorder %s19, 1
        %s586 = scalar_select %p585, %s19, 1
        %p587 = scmp.lt.s32.totalorder %s20, 0
        %s588 = scalar_select %p587, %s20, 0
        %s589 = smul.addr %s586, 16
        %s590 = sadd.s32 %s588, %s589
        %s591 = smul.addr %s590, 4
        %s592 = scalar_lea.vmem %s2, %s591
      $region40: #{ribonanzanet_forward.53} parent=35 // pred_fallthru
        _
    $region36: #{ribonanzanet_forward.53} parent=5 // pred_fallthru
      _
  $region6: #{ribonanzanet_forward.53} parent=0 // loop_footer
    %s12 = sadd.s32 1, %s8
  $region7: #{ribonanzanet_forward.53} parent=0 // loop_footer_branch
    %7 = sbr.rel target = $region3
  $region8: #{ribonanzanet_forward.53} parent=0 // loop_exit
    _

// kernel: ribonanzanet_forward.58
$region0: #{ribonanzanet_forward.58}
  #allocation0 [shape = 'u32[]', space=smem, size = 0x4, offset = 0x4, fixed_abs, tag = 'smem constant byte address 0x4 - core index']
  #allocation1 [shape = 'u32[72,128]{1,0:T(1,128)}', space=vmem, size = 0x9000, scoped, tag = 'internal scratch']
  %s0 = inlined_call_operand.vmem [shape: f32[128,16], index: 0, kind: input, shape index: {}]
  %s1 = inlined_call_operand.vmem [shape: f32[1,16], index: 1, kind: input, shape index: {}]
  %s2 = inlined_call_operand.vmem [shape: f32[1,16], index: 2, kind: input, shape index: {}]
  %s3 = inlined_call_operand.vmem [shape: bf16[16,64], index: 3, kind: input, shape index: {}]
  %s4 = inlined_call_operand.vmem [shape: f32[1,64], index: 4, kind: input, shape index: {}]
  %s5 = inlined_call_operand.vmem [shape: bf16[64,16], index: 5, kind: input, shape index: {}]
  %s6 = inlined_call_operand.vmem [shape: f32[1,16], index: 6, kind: input, shape index: {}]
  %s7 = inlined_call_operand.vmem [shape: f32[128,16], index: 7, kind: output, shape index: {}]
  %s8 = sld [smem:[#allocation0]]
  $region61: #{ribonanzanet_forward.58} parent=0
    _
  %s10 = ssub.s32 1, %s8
  %s11 = scalar_select 0, %s10, %s8
  loop: start=0, step=1, limit=4
  $region2: #{ribonanzanet_forward.58} parent=0 // loop_pre_header
    _
  $region3: #{ribonanzanet_forward.58} parent=0 // loop_header
    %s13 = sphi 0, %s17
    %p14 = scmp.ge.s32.totalorder %s13, 4
    %s23 = sphi 0, %s25
    %s26 = sphi 0, %s23
    %s27 = sphi 0, %s26
    %s43 = sphi 0, %s27
    %s47 = sphi 0, %s47
    %s49 = sphi 0, %s47
    %s50 = sphi 0, %s49
    %s64 = sphi 0, %s50
    %s68 = sphi 0, %s68
    %s70 = sphi 0, %s68
    %s71 = sphi 0, %s70
    %s85 = sphi 0, %s71
    %s89 = sphi 0, %s89
    %s91 = sphi 0, %s89
    %s92 = sphi 0, %s91
    %s106 = sphi 0, %s92
    %s110 = sphi 0, %s110
    %s112 = sphi 0, %s110
    %s113 = sphi 0, %s112
    %s127 = sphi 0, %s113
    %s131 = sphi 0, %s131
    %s133 = sphi 0, %s131
    %s134 = sphi 0, %s133
    %s148 = sphi 0, %s134
    %s152 = sphi 0, %s152
    %s154 = sphi 0, %s152
    %s155 = sphi 0, %s154
    %s169 = sphi 0, %s155
    %s175 = sphi 0, %s177
    %s178 = sphi 0, %s175
    %s179 = sphi 0, %s178
    %s195 = sphi 0, %s179
  $region4: #{ribonanzanet_forward.58} parent=0 // loop_header_branch
    %16 = sbr.rel (%p14) target = $region8
  $region5: #{ribonanzanet_forward.58} parent=0 // loop_body
    %s18 = ssub.s32 %s13, 1
    %s19 = ssub.s32 %s13, 2
    %s20 = sadd.s32 %s13, 1
    %s21 = ssub.s32 %s13, %s20
    %p22 = scmp.eq.s32.totalorder %s21, 0
    %s24 = sadd.s32 %s23, 1
    %s25 = scalar_select %p22, %s23, %s24
    %p28 = pneg %p22
    %p29 = scmp.eq.s32.totalorder %s13, 1
    %p30 = por %p28, %p29
    %p31 = scmp.ne.s32.totalorder %s23, %s26
    %p32 = scmp.eq.s32.totalorder %s13, 0
    %p33 = por %p31, %p32
    %p34 = scmp.ne.s32.totalorder %s23, %s26
    %p35 = scmp.eq.s32.totalorder %s18, 1
    %p36 = por %p34, %p35
    %p37 = scmp.ne.s32.totalorder %s26, %s27
    %p38 = scmp.eq.s32.totalorder %s18, 0
    %p39 = por %p37, %p38
    %p40 = scmp.ne.s32.totalorder %s26, %s27
    %p41 = scmp.eq.s32.totalorder %s19, 1
    %p42 = por %p40, %p41
    %p44 = scmp.ne.s32.totalorder %s27, %s43
    %p45 = scmp.eq.s32.totalorder %s19, 0
    %p46 = por %p44, %p45
    %s48 = sadd.s32 %s47, 1
    %p51 = scmp.eq.s32.totalorder %s13, 1
    %p52 = scmp.ne.s32.totalorder %s47, %s49
    %p53 = scmp.eq.s32.totalorder %s13, 0
    %p54 = por %p52, %p53
    %p55 = scmp.ne.s32.totalorder %s47, %s49
    %p56 = scmp.eq.s32.totalorder %s18, 1
    %p57 = por %p55, %p56
    %p58 = scmp.ne.s32.totalorder %s49, %s50
    %p59 = scmp.eq.s32.totalorder %s18, 0
    %p60 = por %p58, %p59
    %p61 = scmp.ne.s32.totalorder %s49, %s50
    %p62 = scmp.eq.s32.totalorder %s19, 1
    %p63 = por %p61, %p62
    %p65 = scmp.ne.s32.totalorder %s50, %s64
    %p66 = scmp.eq.s32.totalorder %s19, 0
    %p67 = por %p65, %p66
    %s69 = sadd.s32 %s68, 1
    %p72 = scmp.eq.s32.totalorder %s13, 1
    %p73 = scmp.ne.s32.totalorder %s68, %s70
    %p74 = scmp.eq.s32.totalorder %s13, 0
    %p75 = por %p73, %p74
    %p76 = scmp.ne.s32.totalorder %s68, %s70
    %p77 = scmp.eq.s32.totalorder %s18, 1
    %p78 = por %p76, %p77
    %p79 = scmp.ne.s32.totalorder %s70, %s71
    %p80 = scmp.eq.s32.totalorder %s18, 0
    %p81 = por %p79, %p80
    %p82 = scmp.ne.s32.totalorder %s70, %s71
    %p83 = scmp.eq.s32.totalorder %s19, 1
    %p84 = por %p82, %p83
    %p86 = scmp.ne.s32.totalorder %s71, %s85
    %p87 = scmp.eq.s32.totalorder %s19, 0
    %p88 = por %p86, %p87
    %s90 = sadd.s32 %s89, 1
    %p93 = scmp.eq.s32.totalorder %s13, 1
    %p94 = scmp.ne.s32.totalorder %s89, %s91
    %p95 = scmp.eq.s32.totalorder %s13, 0
    %p96 = por %p94, %p95
    %p97 = scmp.ne.s32.totalorder %s89, %s91
    %p98 = scmp.eq.s32.totalorder %s18, 1
    %p99 = por %p97, %p98
    %p100 = scmp.ne.s32.totalorder %s91, %s92
    %p101 = scmp.eq.s32.totalorder %s18, 0
    %p102 = por %p100, %p101
    %p103 = scmp.ne.s32.totalorder %s91, %s92
    %p104 = scmp.eq.s32.totalorder %s19, 1
    %p105 = por %p103, %p104
    %p107 = scmp.ne.s32.totalorder %s92, %s106
    %p108 = scmp.eq.s32.totalorder %s19, 0
    %p109 = por %p107, %p108
    %s111 = sadd.s32 %s110, 1
    %p114 = scmp.eq.s32.totalorder %s13, 1
    %p115 = scmp.ne.s32.totalorder %s110, %s112
    %p116 = scmp.eq.s32.totalorder %s13, 0
    %p117 = por %p115, %p116
    %p118 = scmp.ne.s32.totalorder %s110, %s112
    %p119 = scmp.eq.s32.totalorder %s18, 1
    %p120 = por %p118, %p119
    %p121 = scmp.ne.s32.totalorder %s112, %s113
    %p122 = scmp.eq.s32.totalorder %s18, 0
    %p123 = por %p121, %p122
    %p124 = scmp.ne.s32.totalorder %s112, %s113
    %p125 = scmp.eq.s32.totalorder %s19, 1
    %p126 = por %p124, %p125
    %p128 = scmp.ne.s32.totalorder %s113, %s127
    %p129 = scmp.eq.s32.totalorder %s19, 0
    %p130 = por %p128, %p129
    %s132 = sadd.s32 %s131, 1
    %p135 = scmp.eq.s32.totalorder %s13, 1
    %p136 = scmp.ne.s32.totalorder %s131, %s133
    %p137 = scmp.eq.s32.totalorder %s13, 0
    %p138 = por %p136, %p137
    %p139 = scmp.ne.s32.totalorder %s131, %s133
    %p140 = scmp.eq.s32.totalorder %s18, 1
    %p141 = por %p139, %p140
    %p142 = scmp.ne.s32.totalorder %s133, %s134
    %p143 = scmp.eq.s32.totalorder %s18, 0
    %p144 = por %p142, %p143
    %p145 = scmp.ne.s32.totalorder %s133, %s134
    %p146 = scmp.eq.s32.totalorder %s19, 1
    %p147 = por %p145, %p146
    %p149 = scmp.ne.s32.totalorder %s134, %s148
    %p150 = scmp.eq.s32.totalorder %s19, 0
    %p151 = por %p149, %p150
    %s153 = sadd.s32 %s152, 1
    %p156 = scmp.eq.s32.totalorder %s13, 1
    %p157 = scmp.ne.s32.totalorder %s152, %s154
    %p158 = scmp.eq.s32.totalorder %s13, 0
    %p159 = por %p157, %p158
    %p160 = scmp.ne.s32.totalorder %s152, %s154
    %p161 = scmp.eq.s32.totalorder %s18, 1
    %p162 = por %p160, %p161
    %p163 = scmp.ne.s32.totalorder %s154, %s155
    %p164 = scmp.eq.s32.totalorder %s18, 0
    %p165 = por %p163, %p164
    %p166 = scmp.ne.s32.totalorder %s154, %s155
    %p167 = scmp.eq.s32.totalorder %s19, 1
    %p168 = por %p166, %p167
    %p170 = scmp.ne.s32.totalorder %s155, %s169
    %p171 = scmp.eq.s32.totalorder %s19, 0
    %p172 = por %p170, %p171
    %s173 = ssub.s32 %s13, %s20
    %p174 = scmp.eq.s32.totalorder %s173, 0
    %s176 = sadd.s32 %s175, 1
    %s177 = scalar_select %p174, %s175, %s176
    %p180 = pneg %p174
    %p181 = scmp.eq.s32.totalorder %s13, 1
    %p182 = por %p180, %p181
    %p183 = scmp.ne.s32.totalorder %s175, %s178
    %p184 = scmp.eq.s32.totalorder %s13, 0
    %p185 = por %p183, %p184
    %p186 = scmp.ne.s32.totalorder %s175, %s178
    %p187 = scmp.eq.s32.totalorder %s18, 1
    %p188 = por %p186, %p187
    %p189 = scmp.ne.s32.totalorder %s178, %s179
    %p190 = scmp.eq.s32.totalorder %s18, 0
    %p191 = por %p189, %p190
    %p192 = scmp.ne.s32.totalorder %s178, %s179
    %p193 = scmp.eq.s32.totalorder %s19, 1
    %p194 = por %p192, %p193
    %p196 = scmp.ne.s32.totalorder %s179, %s195
    %p197 = scmp.eq.s32.totalorder %s19, 0
    %p198 = por %p196, %p197
    %p199 = scmp.le.s32.totalorder 1, %s13
    %p200 = scmp.lt.s32.totalorder %s13, 3
    %p201 = pnand %p199, %p200
    %p202 = pneg %p201
    // Predicated region
    $region9: #{ribonanzanet_forward.58} parent=5 // pred_check
      _
    $region10: #{ribonanzanet_forward.58} parent=5 // pred_check_branch
      %204 = sbr.rel (%p201) target = $region12
    $region11: #{ribonanzanet_forward.58} parent=5 // pred_region
      %s205 = ssub.s32 %s13, 1
      // Predicated region
      $region13: #{ribonanzanet_forward.58} parent=11 // pred_check
        %p206 = pneg %p60
      $region14: #{ribonanzanet_forward.58} parent=11 // pred_check_branch
        %208 = sbr.rel (%p206) target = $region16
      $region15: #{ribonanzanet_forward.58} parent=11 // pred_region
        _
      $region16: #{ribonanzanet_forward.58} parent=11 // pred_fallthru
        _
      // Predicated region
      $region17: #{ribonanzanet_forward.58} parent=11 // pred_check
        %p209 = pneg %p81
      $region18: #{ribonanzanet_forward.58} parent=11 // pred_check_branch
        %211 = sbr.rel (%p209) target = $region20
      $region19: #{ribonanzanet_forward.58} parent=11 // pred_region
        _
      $region20: #{ribonanzanet_forward.58} parent=11 // pred_fallthru
        _
      // Predicated region
      $region21: #{ribonanzanet_forward.58} parent=11 // pred_check
        %p212 = pneg %p102
      $region22: #{ribonanzanet_forward.58} parent=11 // pred_check_branch
        %214 = sbr.rel (%p212) target = $region24
      $region23: #{ribonanzanet_forward.58} parent=11 // pred_region
        _
      $region24: #{ribonanzanet_forward.58} parent=11 // pred_fallthru
        _
      // Predicated region
      $region25: #{ribonanzanet_forward.58} parent=11 // pred_check
        %p215 = pneg %p123
      $region26: #{ribonanzanet_forward.58} parent=11 // pred_check_branch
        %217 = sbr.rel (%p215) target = $region28
      $region27: #{ribonanzanet_forward.58} parent=11 // pred_region
        _
      $region28: #{ribonanzanet_forward.58} parent=11 // pred_fallthru
        _
      // Predicated region
      $region29: #{ribonanzanet_forward.58} parent=11 // pred_check
        %p218 = pneg %p144
      $region30: #{ribonanzanet_forward.58} parent=11 // pred_check_branch
        %220 = sbr.rel (%p218) target = $region32
      $region31: #{ribonanzanet_forward.58} parent=11 // pred_region
        _
      $region32: #{ribonanzanet_forward.58} parent=11 // pred_fallthru
        _
      // Predicated region
      $region33: #{ribonanzanet_forward.58} parent=11 // pred_check
        %p221 = pneg %p165
      $region34: #{ribonanzanet_forward.58} parent=11 // pred_check_branch
        %223 = sbr.rel (%p221) target = $region36
      $region35: #{ribonanzanet_forward.58} parent=11 // pred_region
        _
      $region36: #{ribonanzanet_forward.58} parent=11 // pred_fallthru
        _
    $region12: #{ribonanzanet_forward.58} parent=5 // pred_fallthru
      _
    %p224 = scmp.lt.s32.totalorder %s13, 2
    // Predicated region
    $region37: #{ribonanzanet_forward.58} parent=5 // pred_check
      %p225 = pneg %p224
    $region38: #{ribonanzanet_forward.58} parent=5 // pred_check_branch
      %227 = sbr.rel (%p225) target = $region40
    $region39: #{ribonanzanet_forward.58} parent=5 // pred_region
      // Predicated region
      $region41: #{ribonanzanet_forward.58} parent=39 // pred_check
        %p228 = pneg %p33
      $region42: #{ribonanzanet_forward.58} parent=39 // pred_check_branch
        %230 = sbr.rel (%p228) target = $region44
      $region43: #{ribonanzanet_forward.58} parent=39 // pred_region
        %s231 = smul.u32 8, %s13
        %p232 = scmp.lt.s32.totalorder %s231, 15
        %s233 = scalar_select %p232, %s231, 15
        %s234 = smul.addr %s233, 8
        %s235 = scalar_lea.vmem %s0, %s234
        %s236 = smul.u32 8, %s13
      $region44: #{ribonanzanet_forward.58} parent=39 // pred_fallthru
        _
    $region40: #{ribonanzanet_forward.58} parent=5 // pred_fallthru
      _
    %p237 = scmp.le.s32.totalorder 1, %s13
    %p238 = scmp.lt.s32.totalorder %s13, 3
    %p239 = pnand %p237, %p238
    %p240 = pneg %p239
    // Predicated region
    $region45: #{ribonanzanet_forward.58} parent=5 // pred_check
      _
    $region46: #{ribonanzanet_forward.58} parent=5 // pred_check_branch
      %242 = sbr.rel (%p239) target = $region48
    $region47: #{ribonanzanet_forward.58} parent=5 // pred_region
      %s243 = ssub.s32 %s13, 1
      %s244 = smul.u32 8, %s18
      %p245 = scmp.lt.s32.totalorder %s244, 15
      %s246 = scalar_select %p245, %s244, 15
      %s247 = smul.addr %s246, 8
      %s248 = scalar_lea.vmem %s0, %s247
      %p249 = pneg %p39
      %p250 = pneg %p36
      %p251 = pneg %p60
      %p252 = pneg %p57
      %p253 = pneg %p81
      %p254 = pneg %p78
      %p255 = pneg %p102
      %p256 = pneg %p99
      %p257 = pneg %p123
      %p258 = pneg %p120
      %p259 = pneg %p144
      %p260 = pneg %p141
      %p261 = pneg %p165
      %p262 = pneg %p162
      %p263 = pneg %p191
      %p264 = pneg %p188
      %s265 = smul.u32 8, %s18
      %p266 = scmp.lt.s32.totalorder %s265, 15
      %s267 = scalar_select %p266, %s265, 15
      %s268 = smul.addr %s267, 8
      %s269 = scalar_lea.vmem %s7, %s268
      %s270 = smul.u32 8, %s18
      %p271 = scmp.lt.s32.totalorder %s270, 15
      %s272 = scalar_select %p271, %s270, 15
      %s273 = smul.addr %s272, 8
      %s274 = scalar_lea.vmem %s0, %s273
      %s275 = smul.u32 8, %s18
      %s276 = smul.u32 8, %s18
      %p277 = scmp.lt.s32.totalorder %s276, 15
      %s278 = scalar_select %p277, %s276, 15
      %s279 = smul.addr %s278, 8
      %s280 = scalar_lea.vmem %s7, %s279
      %s281 = smul.u32 8, %s18
      %v283 = vld [vmem:[%s274] sm:$0xff]
      %v284 = vld [vmem:[%s274 + $0x8] sm:$0xff]
      %v285 = vld [vmem:[%s274 + $0x10] sm:$0xff]
      %v286 = vld [vmem:[%s274 + $0x18] sm:$0xff]
      %v287 = vld [vmem:[%s274 + $0x20] sm:$0xff]
      %v288 = vld [vmem:[%s274 + $0x28] sm:$0xff]
      %v289 = vld [vmem:[%s274 + $0x30] sm:$0xff]
      %v290 = vld [vmem:[%s274 + $0x38] sm:$0xff]
      %vm291 = vcmask 130048
      %v292 = vsel %vm291, %v283, 0.0
      %293 = vadd.xlane.f32.xlu0 %v292
      %v294 = vpop.xlane.xlu0 %293
      %v295 = vsel %vm291, %v284, 0.0
      %296 = vadd.xlane.f32.xlu0 %v295
      %v297 = vpop.xlane.xlu0 %296
      %v298 = vsel %vm291, %v285, 0.0
      %299 = vadd.xlane.f32.xlu0 %v298
      %v300 = vpop.xlane.xlu0 %299
      %v301 = vsel %vm291, %v286, 0.0
      %302 = vadd.xlane.f32.xlu0 %v301
      %v303 = vpop.xlane.xlu0 %302
      %v304 = vsel %vm291, %v287, 0.0
      %305 = vadd.xlane.f32.xlu0 %v304
      %v306 = vpop.xlane.xlu0 %305
      %v307 = vsel %vm291, %v288, 0.0
      %308 = vadd.xlane.f32.xlu0 %v307
      %v309 = vpop.xlane.xlu0 %308
      %v310 = vsel %vm291, %v289, 0.0
      %311 = vadd.xlane.f32.xlu0 %v310
      %v312 = vpop.xlane.xlu0 %311
      %v313 = vsel %vm291, %v290, 0.0
      %314 = vadd.xlane.f32.xlu0 %v313
      %v315 = vpop.xlane.xlu0 %314
      %v316 = vrcp.pop 16.0
      %v317 = vmul.f32 16.0, %v316
      %v318 = vsub.f32 1.0, %v317
      %v319 = vmul.f32 %v316, %v318
      %v320 = vadd.f32 %v316, %v319
      %vm321 = vweird.f32 %v316
      %v322 = vsel %vm321, %v316, %v320
      %v323 = vmul.f32 %v294, %v322
      %v324 = vmul.f32 %v297, %v322
      %v325 = vmul.f32 %v300, %v322
      %v326 = vmul.f32 %v303, %v322
      %v327 = vmul.f32 %v306, %v322
      %v328 = vmul.f32 %v309, %v322
      %v329 = vmul.f32 %v312, %v322
      %v330 = vmul.f32 %v315, %v322
      %v331 = vsub.f32 %v283, %v323
      %v332 = vsub.f32 %v284, %v324
      %v333 = vsub.f32 %v285, %v325
      %v334 = vsub.f32 %v286, %v326
      %v335 = vsub.f32 %v287, %v327
      %v336 = vsub.f32 %v288, %v328
      %v337 = vsub.f32 %v289, %v329
      %v338 = vsub.f32 %v290, %v330
      %v339 = vmul.f32 %v331, %v331
      %v340 = vmul.f32 %v332, %v332
      %v341 = vmul.f32 %v333, %v333
      %v342 = vmul.f32 %v334, %v334
      %v343 = vmul.f32 %v335, %v335
      %v344 = vmul.f32 %v336, %v336
      %v345 = vmul.f32 %v337, %v337
      %v346 = vmul.f32 %v338, %v338
      %v347 = vsel %vm291, %v339, 0.0
      %348 = vadd.xlane.f32.xlu0 %v347
      %v349 = vpop.xlane.xlu0 %348
      %v350 = vsel %vm291, %v340, 0.0
      %351 = vadd.xlane.f32.xlu0 %v350
      %v352 = vpop.xlane.xlu0 %351
      %v353 = vsel %vm291, %v341, 0.0
      %354 = vadd.xlane.f32.xlu0 %v353
      %v355 = vpop.xlane.xlu0 %354
      %v356 = vsel %vm291, %v342, 0.0
      %357 = vadd.xlane.f32.xlu0 %v356
      %v358 = vpop.xlane.xlu0 %357
      %v359 = vsel %vm291, %v343, 0.0
      %360 = vadd.xlane.f32.xlu0 %v359
      %v361 = vpop.xlane.xlu0 %360
      %v362 = vsel %vm291, %v344, 0.0
      %363 = vadd.xlane.f32.xlu0 %v362
      %v364 = vpop.xlane.xlu0 %363
      %v365 = vsel %vm291, %v345, 0.0
      %366 = vadd.xlane.f32.xlu0 %v365
      %v367 = vpop.xlane.xlu0 %366
      %v368 = vsel %vm291, %v346, 0.0
      %369 = vadd.xlane.f32.xlu0 %v368
      %v370 = vpop.xlane.xlu0 %369
      %v371 = vmul.f32 %v349, %v322
      %v372 = vmul.f32 %v352, %v322
      %v373 = vmul.f32 %v355, %v322
      %v374 = vmul.f32 %v358, %v322
      %v375 = vmul.f32 %v361, %v322
      %v376 = vmul.f32 %v364, %v322
      %v377 = vmul.f32 %v367, %v322
      %v378 = vmul.f32 %v370, %v322
      %v379 = vadd.f32 %v371, 1e-05
      %v380 = vadd.f32 %v372, 1e-05
      %v381 = vadd.f32 %v373, 1e-05
      %v382 = vadd.f32 %v374, 1e-05
      %v383 = vadd.f32 %v375, 1e-05
      %v384 = vadd.f32 %v376, 1e-05
      %v385 = vadd.f32 %v377, 1e-05
      %v386 = vadd.f32 %v378, 1e-05
      %v387 = vrsqrt.pop %v379
      %v388 = vmul.f32 %v387, %v379
      %v389 = vmul.f32 %v388, %v387
      %v390 = vmul.f32 0.5, %v389
      %v391 = vsub.f32 1.5, %v390
      %v392 = vmul.f32 %v387, %v391
      %vm393 = vweird.f32 %v379
      %vm394 = vweird.f32 %v387
      %vm395 = vmor %vm393, %vm394
      %v396 = vsel %vm395, %v387, %v392
      %v397 = vrsqrt.pop %v380
      %v398 = vmul.f32 %v397, %v380
      %v399 = vmul.f32 %v398, %v397
      %v400 = vmul.f32 0.5, %v399
      %v401 = vsub.f32 1.5, %v400
      %v402 = vmul.f32 %v397, %v401
      %vm403 = vweird.f32 %v380
      %vm404 = vweird.f32 %v397
      %vm405 = vmor %vm403, %vm404
      %v406 = vsel %vm405, %v397, %v402
      %v407 = vrsqrt.pop %v381
      %v408 = vmul.f32 %v407, %v381
      %v409 = vmul.f32 %v408, %v407
      %v410 = vmul.f32 0.5, %v409
      %v411 = vsub.f32 1.5, %v410
      %v412 = vmul.f32 %v407, %v411
      %vm413 = vweird.f32 %v381
      %vm414 = vweird.f32 %v407
      %vm415 = vmor %vm413, %vm414
      %v416 = vsel %vm415, %v407, %v412
      %v417 = vrsqrt.pop %v382
      %v418 = vmul.f32 %v417, %v382
      %v419 = vmul.f32 %v418, %v417
      %v420 = vmul.f32 0.5, %v419
      %v421 = vsub.f32 1.5, %v420
      %v422 = vmul.f32 %v417, %v421
      %vm423 = vweird.f32 %v382
      %vm424 = vweird.f32 %v417
      %vm425 = vmor %vm423, %vm424
      %v426 = vsel %vm425, %v417, %v422
      %v427 = vrsqrt.pop %v383
      %v428 = vmul.f32 %v427, %v383
      %v429 = vmul.f32 %v428, %v427
      %v430 = vmul.f32 0.5, %v429
      %v431 = vsub.f32 1.5, %v430
      %v432 = vmul.f32 %v427, %v431
      %vm433 = vweird.f32 %v383
      %vm434 = vweird.f32 %v427
      %vm435 = vmor %vm433, %vm434
      %v436 = vsel %vm435, %v427, %v432
      %v437 = vrsqrt.pop %v384
      %v438 = vmul.f32 %v437, %v384
      %v439 = vmul.f32 %v438, %v437
      %v440 = vmul.f32 0.5, %v439
      %v441 = vsub.f32 1.5, %v440
      %v442 = vmul.f32 %v437, %v441
      %vm443 = vweird.f32 %v384
      %vm444 = vweird.f32 %v437
      %vm445 = vmor %vm443, %vm444
      %v446 = vsel %vm445, %v437, %v442
      %v447 = vrsqrt.pop %v385
      %v448 = vmul.f32 %v447, %v385
      %v449 = vmul.f32 %v448, %v447
      %v450 = vmul.f32 0.5, %v449
      %v451 = vsub.f32 1.5, %v450
      %v452 = vmul.f32 %v447, %v451
      %vm453 = vweird.f32 %v385
      %vm454 = vweird.f32 %v447
      %vm455 = vmor %vm453, %vm454
      %v456 = vsel %vm455, %v447, %v452
      %v457 = vrsqrt.pop %v386
      %v458 = vmul.f32 %v457, %v386
      %v459 = vmul.f32 %v458, %v457
      %v460 = vmul.f32 0.5, %v459
      %v461 = vsub.f32 1.5, %v460
      %v462 = vmul.f32 %v457, %v461
      %vm463 = vweird.f32 %v386
      %vm464 = vweird.f32 %v457
      %vm465 = vmor %vm463, %vm464
      %v466 = vsel %vm465, %v457, %v462
      %v467 = vmul.f32 %v331, %v396
      %v468 = vmul.f32 %v332, %v406
      %v469 = vmul.f32 %v333, %v416
      %v470 = vmul.f32 %v334, %v426
      %v471 = vmul.f32 %v335, %v436
      %v472 = vmul.f32 %v336, %v446
      %v473 = vmul.f32 %v337, %v456
      %v474 = vmul.f32 %v338, %v466
      %v475 = vld [vmem:[%s1] sm:$0x1]
      %v477 = vperm.slane %v475, 0
      %v479 = vmul.f32 %v467, %v477
      %v480 = vmul.f32 %v468, %v477
      %v481 = vmul.f32 %v469, %v477
      %v482 = vmul.f32 %v470, %v477
      %v483 = vmul.f32 %v471, %v477
      %v484 = vmul.f32 %v472, %v477
      %v485 = vmul.f32 %v473, %v477
      %v486 = vmul.f32 %v474, %v477
      %v487 = vld [vmem:[%s2] sm:$0x1]
      %v489 = vperm.slane %v487, 0
      %v491 = vadd.f32 %v479, %v489
      %v492 = vadd.f32 %v480, %v489
      %v493 = vadd.f32 %v481, %v489
      %v494 = vadd.f32 %v482, %v489
      %v495 = vadd.f32 %v483, %v489
      %v496 = vadd.f32 %v484, %v489
      %v497 = vadd.f32 %v485, %v489
      %v498 = vadd.f32 %v486, %v489
      %v499 = vpack.c.bf16 %v492, %v491
      %v500 = vpack.c.bf16 %v494, %v493
      %v501 = vpack.c.bf16 %v496, %v495
      %v502 = vpack.c.bf16 %v498, %v497
      %v503 = vld [vmem:[%s3] sm:$0xf]
      %v504 = vld [vmem:[%s3 + $0x4] sm:$0xf]
      %v505 = vld [vmem:[%s4] sm:$0x1]
      %v507 = vperm.slane %v505, 0
      %v511 = vunpack.c.l.b16 %v503
      %v512 = vunpack.c.l.b16 %v504
      %v513 = vpack.c.b16 %v512, %v511
      %v516 = vsel %vm291, %v499, 0
      %v519 = vsel %vm291, %v500, 0
      %v522 = vsel %vm291, %v501, 0
      %v525 = vsel %vm291, %v502, 0
      %527 = vmatpush.bf16.msra.mxu0 0
      %528 = vmatpush.bf16.msra.mxu0 0
      %529 = vmatpush.bf16.msra.mxu0 0
      %530 = vmatpush.bf16.msra.mxu0 0
      %531 = vmatpush.bf16.msra.mxu0 0
      %532 = vmatpush.bf16.msra.mxu0 0
      %533 = vmatpush.bf16.msra.mxu0 0
      %534 = vmatpush.bf16.msra.mxu0 %v513
      %535 = vmatmul.bf16.gmra.mxu0 %v516
      %v536 = vpop.f32.mrf.mxu0
      %v537 = vadd.f32 %v507, %v536
      %v538 = vpop.f32.mrf.mxu0
      %v539 = vadd.f32 %v507, %v538
      %540 = vmatmul.bf16.gmra.mxu0 %v519
      %v541 = vpop.f32.mrf.mxu0
      %v542 = vadd.f32 %v507, %v541
      %v543 = vpop.f32.mrf.mxu0
      %v544 = vadd.f32 %v507, %v543
      %545 = vmatmul.bf16.gmra.mxu0 %v522
      %v546 = vpop.f32.mrf.mxu0
      %v547 = vadd.f32 %v507, %v546
      %v548 = vpop.f32.mrf.mxu0
      %v549 = vadd.f32 %v507, %v548
      %550 = vmatmul.bf16.gmra.mxu0 %v525
      %v551 = vpop.f32.mrf.mxu0
      %v552 = vadd.f32 %v507, %v551
      %v553 = vpop.f32.mrf.mxu0
      %v554 = vadd.f32 %v507, %v553
      %555 = vdwg.mxu0
      %v556 = vmax.f32 %v537, 0.0
      %v557 = vmax.f32 %v539, 0.0
      %v558 = vmax.f32 %v542, 0.0
      %v559 = vmax.f32 %v544, 0.0
      %v560 = vmax.f32 %v547, 0.0
      %v561 = vmax.f32 %v549, 0.0
      %v562 = vmax.f32 %v552, 0.0
      %v563 = vmax.f32 %v554, 0.0
      %v564 = vpack.c.bf16 %v557, %v556
      %v565 = vpack.c.bf16 %v559, %v558
      %v566 = vpack.c.bf16 %v561, %v560
      %v567 = vpack.c.bf16 %v563, %v562
      %v568 = vld [vmem:[%s5] sm:$0xf]
      %v569 = vld [vmem:[%s5 + $0x4] sm:$0xf]
      %v570 = vld [vmem:[%s5 + $0x8] sm:$0xf]
      %v571 = vld [vmem:[%s5 + $0xc] sm:$0xf]
      %v572 = vld [vmem:[%s5 + $0x10] sm:$0xf]
      %v573 = vld [vmem:[%s5 + $0x14] sm:$0xf]
      %v574 = vld [vmem:[%s5 + $0x18] sm:$0xf]
      %v575 = vld [vmem:[%s5 + $0x1c] sm:$0xf]
      %v576 = vld [vmem:[%s6] sm:$0x1]
      %v578 = vperm.slane %v576, 0
      %v588 = vunpack.c.l.b16 %v568
      %v589 = vunpack.c.l.b16 %v569
      %v590 = vunpack.c.l.b16 %v570
      %v591 = vunpack.c.l.b16 %v571
      %v592 = vunpack.c.l.b16 %v572
      %v593 = vunpack.c.l.b16 %v573
      %v594 = vunpack.c.l.b16 %v574
      %v595 = vunpack.c.l.b16 %v575
      %v596 = vpack.c.b16 %v589, %v588
      %v597 = vpack.c.b16 %v591, %v590
      %v598 = vpack.c.b16 %v593, %v592
      %v599 = vpack.c.b16 %v595, %v594
      %vm604 = vcmask 523264
      %v606 = vsel %vm604, %v564, 0
      %v609 = vsel %vm604, %v565, 0
      %v612 = vsel %vm604, %v566, 0
      %v615 = vsel %vm604, %v567, 0
      %617 = vmatpush.bf16.msra.mxu0 0
      %618 = vmatpush.bf16.msra.mxu0 0
      %619 = vmatpush.bf16.msra.mxu0 0
      %620 = vmatpush.bf16.msra.mxu0 0
      %621 = vmatpush.bf16.msra.mxu0 %v599
      %622 = vmatpush.bf16.msra.mxu0 %v598
      %623 = vmatpush.bf16.msra.mxu0 %v597
      %624 = vmatpush.bf16.msra.mxu0 %v596
      %625 = vmatmul.bf16.gmra.mxu0 %v606
      %v626 = vpop.f32.mrf.mxu0
      %v627 = vadd.f32 %v578, %v626
      %v628 = vpop.f32.mrf.mxu0
      %v629 = vadd.f32 %v578, %v628
      %630 = vmatmul.bf16.gmra.mxu0 %v609
      %v631 = vpop.f32.mrf.mxu0
      %v632 = vadd.f32 %v578, %v631
      %v633 = vpop.f32.mrf.mxu0
      %v634 = vadd.f32 %v578, %v633
      %635 = vmatmul.bf16.gmra.mxu0 %v612
      %v636 = vpop.f32.mrf.mxu0
      %v637 = vadd.f32 %v578, %v636
      %v638 = vpop.f32.mrf.mxu0
      %v639 = vadd.f32 %v578, %v638
      %640 = vmatmul.bf16.gmra.mxu0 %v615
      %v641 = vpop.f32.mrf.mxu0
      %v642 = vadd.f32 %v578, %v641
      %v643 = vpop.f32.mrf.mxu0
      %v644 = vadd.f32 %v578, %v643
      %645 = vdwg.mxu0
      %v646 = vadd.f32 %v283, %v627
      %v647 = vadd.f32 %v284, %v629
      %v648 = vadd.f32 %v285, %v632
      %v649 = vadd.f32 %v286, %v634
      %v650 = vadd.f32 %v287, %v637
      %v651 = vadd.f32 %v288, %v639
      %v652 = vadd.f32 %v289, %v642
      %v653 = vadd.f32 %v290, %v644
      %654 = vst.msk [vmem:[%s280] sm:$0xff] %vm291, %v646
      %655 = vst.msk [vmem:[%s280 + $0x8] sm:$0xff] %vm291, %v647
      %656 = vst.msk [vmem:[%s280 + $0x10] sm:$0xff] %vm291, %v648
      %657 = vst.msk [vmem:[%s280 + $0x18] sm:$0xff] %vm291, %v649
      %658 = vst.msk [vmem:[%s280 + $0x20] sm:$0xff] %vm291, %v650
      %659 = vst.msk [vmem:[%s280 + $0x28] sm:$0xff] %vm291, %v651
      %660 = vst.msk [vmem:[%s280 + $0x30] sm:$0xff] %vm291, %v652
      %661 = vst.msk [vmem:[%s280 + $0x38] sm:$0xff] %vm291, %v653
      %s662 = smul.u32 8, %s18
      %p663 = scmp.lt.s32.totalorder %s662, 15
      %s664 = scalar_select %p663, %s662, 15
      %s665 = smul.addr %s664, 8
      %s666 = scalar_lea.vmem %s7, %s665
      // Predicated region
      $region49: #{ribonanzanet_forward.58} parent=47 // pred_check
        %p667 = pneg %p188
      $region50: #{ribonanzanet_forward.58} parent=47 // pred_check_branch
        %669 = sbr.rel (%p667) target = $region52
      $region51: #{ribonanzanet_forward.58} parent=47 // pred_region
        %s670 = smul.u32 8, %s18
      $region52: #{ribonanzanet_forward.58} parent=47 // pred_fallthru
        _
    $region48: #{ribonanzanet_forward.58} parent=5 // pred_fallthru
      _
    %p671 = scmp.le.s32.totalorder 2, %s13
    // Predicated region
    $region53: #{ribonanzanet_forward.58} parent=5 // pred_check
      %p672 = pneg %p671
    $region54: #{ribonanzanet_forward.58} parent=5 // pred_check_branch
      %674 = sbr.rel (%p672) target = $region56
    $region55: #{ribonanzanet_forward.58} parent=5 // pred_region
      %s675 = ssub.s32 %s13, 2
      // Predicated region
      $region57: #{ribonanzanet_forward.58} parent=55 // pred_check
        %p676 = pneg %p194
      $region58: #{ribonanzanet_forward.58} parent=55 // pred_check_branch
        %678 = sbr.rel (%p676) target = $region60
      $region59: #{ribonanzanet_forward.58} parent=55 // pred_region
        %s679 = smul.u32 8, %s19
        %p680 = scmp.lt.s32.totalorder %s679, 15
        %s681 = scalar_select %p680, %s679, 15
        %s682 = smul.addr %s681, 8
        %s683 = scalar_lea.vmem %s7, %s682
      $region60: #{ribonanzanet_forward.58} parent=55 // pred_fallthru
        _
    $region56: #{ribonanzanet_forward.58} parent=5 // pred_fallthru
      _
  $region6: #{ribonanzanet_forward.58} parent=0 // loop_footer
    %s17 = sadd.s32 1, %s13
  $region7: #{ribonanzanet_forward.58} parent=0 // loop_footer_branch
    %12 = sbr.rel target = $region3
  $region8: #{ribonanzanet_forward.58} parent=0 // loop_exit
    _

// kernel: ribonanzanet_forward.59
$region0: #{ribonanzanet_forward.59}
  #allocation0 [shape = 'u32[]', space=smem, size = 0x4, offset = 0x4, fixed_abs, tag = 'smem constant byte address 0x4 - core index']
  #allocation1 [shape = 'u32[72,128]{1,0:T(1,128)}', space=vmem, size = 0x9000, scoped, tag = 'internal scratch']
  %s0 = inlined_call_operand.vmem [shape: f32[2,8,32], index: 0, kind: input, shape index: {}]
  %s1 = inlined_call_operand.vmem [shape: bf16[1,32,32], index: 1, kind: input, shape index: {}]
  %s2 = inlined_call_operand.vmem [shape: f32[1,32], index: 2, kind: input, shape index: {}]
  %s3 = inlined_call_operand.vmem [shape: f32[1,32], index: 3, kind: input, shape index: {}]
  %s4 = inlined_call_operand.vmem [shape: f32[1,32], index: 4, kind: input, shape index: {}]
  %s5 = inlined_call_operand.vmem [shape: f32[2,8,32], index: 5, kind: output, shape index: {}]
  %s6 = sld [smem:[#allocation0]]
  $region53: #{ribonanzanet_forward.59} parent=0
    _
  %s8 = ssub.s32 1, %s6
  %s9 = scalar_select 0, %s8, %s6
  loop: start=0, step=1, limit=4
  $region2: #{ribonanzanet_forward.59} parent=0 // loop_pre_header
    _
  $region3: #{ribonanzanet_forward.59} parent=0 // loop_header
    %s11 = sphi 0, %s15
    %p12 = scmp.ge.s32.totalorder %s11, 4
    %s21 = sphi 0, %s23
    %s24 = sphi 0, %s21
    %s25 = sphi 0, %s24
    %s41 = sphi 0, %s25
    %s45 = sphi 0, %s45
    %s47 = sphi 0, %s45
    %s48 = sphi 0, %s47
    %s62 = sphi 0, %s48
    %s66 = sphi 0, %s66
    %s68 = sphi 0, %s66
    %s69 = sphi 0, %s68
    %s83 = sphi 0, %s69
    %s87 = sphi 0, %s87
    %s89 = sphi 0, %s87
    %s90 = sphi 0, %s89
    %s104 = sphi 0, %s90
    %s108 = sphi 0, %s108
    %s110 = sphi 0, %s108
    %s111 = sphi 0, %s110
    %s125 = sphi 0, %s111
    %s131 = sphi 0, %s133
    %s134 = sphi 0, %s131
    %s135 = sphi 0, %s134
    %s151 = sphi 0, %s135
  $region4: #{ribonanzanet_forward.59} parent=0 // loop_header_branch
    %14 = sbr.rel (%p12) target = $region8
  $region5: #{ribonanzanet_forward.59} parent=0 // loop_body
    %s16 = ssub.s32 %s11, 1
    %s17 = ssub.s32 %s11, 2
    %s18 = sadd.s32 %s11, 1
    %s19 = ssub.s32 %s11, %s18
    %p20 = scmp.eq.s32.totalorder %s19, 0
    %s22 = sadd.s32 %s21, 1
    %s23 = scalar_select %p20, %s21, %s22
    %p26 = pneg %p20
    %p27 = scmp.eq.s32.totalorder %s11, 1
    %p28 = por %p26, %p27
    %p29 = scmp.ne.s32.totalorder %s21, %s24
    %p30 = scmp.eq.s32.totalorder %s11, 0
    %p31 = por %p29, %p30
    %p32 = scmp.ne.s32.totalorder %s21, %s24
    %p33 = scmp.eq.s32.totalorder %s16, 1
    %p34 = por %p32, %p33
    %p35 = scmp.ne.s32.totalorder %s24, %s25
    %p36 = scmp.eq.s32.totalorder %s16, 0
    %p37 = por %p35, %p36
    %p38 = scmp.ne.s32.totalorder %s24, %s25
    %p39 = scmp.eq.s32.totalorder %s17, 1
    %p40 = por %p38, %p39
    %p42 = scmp.ne.s32.totalorder %s25, %s41
    %p43 = scmp.eq.s32.totalorder %s17, 0
    %p44 = por %p42, %p43
    %s46 = sadd.s32 %s45, 1
    %p49 = scmp.eq.s32.totalorder %s11, 1
    %p50 = scmp.ne.s32.totalorder %s45, %s47
    %p51 = scmp.eq.s32.totalorder %s11, 0
    %p52 = por %p50, %p51
    %p53 = scmp.ne.s32.totalorder %s45, %s47
    %p54 = scmp.eq.s32.totalorder %s16, 1
    %p55 = por %p53, %p54
    %p56 = scmp.ne.s32.totalorder %s47, %s48
    %p57 = scmp.eq.s32.totalorder %s16, 0
    %p58 = por %p56, %p57
    %p59 = scmp.ne.s32.totalorder %s47, %s48
    %p60 = scmp.eq.s32.totalorder %s17, 1
    %p61 = por %p59, %p60
    %p63 = scmp.ne.s32.totalorder %s48, %s62
    %p64 = scmp.eq.s32.totalorder %s17, 0
    %p65 = por %p63, %p64
    %s67 = sadd.s32 %s66, 1
    %p70 = scmp.eq.s32.totalorder %s11, 1
    %p71 = scmp.ne.s32.totalorder %s66, %s68
    %p72 = scmp.eq.s32.totalorder %s11, 0
    %p73 = por %p71, %p72
    %p74 = scmp.ne.s32.totalorder %s66, %s68
    %p75 = scmp.eq.s32.totalorder %s16, 1
    %p76 = por %p74, %p75
    %p77 = scmp.ne.s32.totalorder %s68, %s69
    %p78 = scmp.eq.s32.totalorder %s16, 0
    %p79 = por %p77, %p78
    %p80 = scmp.ne.s32.totalorder %s68, %s69
    %p81 = scmp.eq.s32.totalorder %s17, 1
    %p82 = por %p80, %p81
    %p84 = scmp.ne.s32.totalorder %s69, %s83
    %p85 = scmp.eq.s32.totalorder %s17, 0
    %p86 = por %p84, %p85
    %s88 = sadd.s32 %s87, 1
    %p91 = scmp.eq.s32.totalorder %s11, 1
    %p92 = scmp.ne.s32.totalorder %s87, %s89
    %p93 = scmp.eq.s32.totalorder %s11, 0
    %p94 = por %p92, %p93
    %p95 = scmp.ne.s32.totalorder %s87, %s89
    %p96 = scmp.eq.s32.totalorder %s16, 1
    %p97 = por %p95, %p96
    %p98 = scmp.ne.s32.totalorder %s89, %s90
    %p99 = scmp.eq.s32.totalorder %s16, 0
    %p100 = por %p98, %p99
    %p101 = scmp.ne.s32.totalorder %s89, %s90
    %p102 = scmp.eq.s32.totalorder %s17, 1
    %p103 = por %p101, %p102
    %p105 = scmp.ne.s32.totalorder %s90, %s104
    %p106 = scmp.eq.s32.totalorder %s17, 0
    %p107 = por %p105, %p106
    %s109 = sadd.s32 %s108, 1
    %p112 = scmp.eq.s32.totalorder %s11, 1
    %p113 = scmp.ne.s32.totalorder %s108, %s110
    %p114 = scmp.eq.s32.totalorder %s11, 0
    %p115 = por %p113, %p114
    %p116 = scmp.ne.s32.totalorder %s108, %s110
    %p117 = scmp.eq.s32.totalorder %s16, 1
    %p118 = por %p116, %p117
    %p119 = scmp.ne.s32.totalorder %s110, %s111
    %p120 = scmp.eq.s32.totalorder %s16, 0
    %p121 = por %p119, %p120
    %p122 = scmp.ne.s32.totalorder %s110, %s111
    %p123 = scmp.eq.s32.totalorder %s17, 1
    %p124 = por %p122, %p123
    %p126 = scmp.ne.s32.totalorder %s111, %s125
    %p127 = scmp.eq.s32.totalorder %s17, 0
    %p128 = por %p126, %p127
    %s129 = ssub.s32 %s11, %s18
    %p130 = scmp.eq.s32.totalorder %s129, 0
    %s132 = sadd.s32 %s131, 1
    %s133 = scalar_select %p130, %s131, %s132
    %p136 = pneg %p130
    %p137 = scmp.eq.s32.totalorder %s11, 1
    %p138 = por %p136, %p137
    %p139 = scmp.ne.s32.totalorder %s131, %s134
    %p140 = scmp.eq.s32.totalorder %s11, 0
    %p141 = por %p139, %p140
    %p142 = scmp.ne.s32.totalorder %s131, %s134
    %p143 = scmp.eq.s32.totalorder %s16, 1
    %p144 = por %p142, %p143
    %p145 = scmp.ne.s32.totalorder %s134, %s135
    %p146 = scmp.eq.s32.totalorder %s16, 0
    %p147 = por %p145, %p146
    %p148 = scmp.ne.s32.totalorder %s134, %s135
    %p149 = scmp.eq.s32.totalorder %s17, 1
    %p150 = por %p148, %p149
    %p152 = scmp.ne.s32.totalorder %s135, %s151
    %p153 = scmp.eq.s32.totalorder %s17, 0
    %p154 = por %p152, %p153
    %p155 = scmp.le.s32.totalorder 1, %s11
    %p156 = scmp.lt.s32.totalorder %s11, 3
    %p157 = pnand %p155, %p156
    %p158 = pneg %p157
    // Predicated region
    $region9: #{ribonanzanet_forward.59} parent=5 // pred_check
      _
    $region10: #{ribonanzanet_forward.59} parent=5 // pred_check_branch
      %160 = sbr.rel (%p157) target = $region12
    $region11: #{ribonanzanet_forward.59} parent=5 // pred_region
      %s161 = ssub.s32 %s11, 1
      // Predicated region
      $region13: #{ribonanzanet_forward.59} parent=11 // pred_check
        %p162 = pneg %p58
      $region14: #{ribonanzanet_forward.59} parent=11 // pred_check_branch
        %164 = sbr.rel (%p162) target = $region16
      $region15: #{ribonanzanet_forward.59} parent=11 // pred_region
        _
      $region16: #{ribonanzanet_forward.59} parent=11 // pred_fallthru
        _
      // Predicated region
      $region17: #{ribonanzanet_forward.59} parent=11 // pred_check
        %p165 = pneg %p79
      $region18: #{ribonanzanet_forward.59} parent=11 // pred_check_branch
        %167 = sbr.rel (%p165) target = $region20
      $region19: #{ribonanzanet_forward.59} parent=11 // pred_region
        _
      $region20: #{ribonanzanet_forward.59} parent=11 // pred_fallthru
        _
      // Predicated region
      $region21: #{ribonanzanet_forward.59} parent=11 // pred_check
        %p168 = pneg %p100
      $region22: #{ribonanzanet_forward.59} parent=11 // pred_check_branch
        %170 = sbr.rel (%p168) target = $region24
      $region23: #{ribonanzanet_forward.59} parent=11 // pred_region
        _
      $region24: #{ribonanzanet_forward.59} parent=11 // pred_fallthru
        _
      // Predicated region
      $region25: #{ribonanzanet_forward.59} parent=11 // pred_check
        %p171 = pneg %p121
      $region26: #{ribonanzanet_forward.59} parent=11 // pred_check_branch
        %173 = sbr.rel (%p171) target = $region28
      $region27: #{ribonanzanet_forward.59} parent=11 // pred_region
        _
      $region28: #{ribonanzanet_forward.59} parent=11 // pred_fallthru
        _
    $region12: #{ribonanzanet_forward.59} parent=5 // pred_fallthru
      _
    %p174 = scmp.lt.s32.totalorder %s11, 2
    // Predicated region
    $region29: #{ribonanzanet_forward.59} parent=5 // pred_check
      %p175 = pneg %p174
    $region30: #{ribonanzanet_forward.59} parent=5 // pred_check_branch
      %177 = sbr.rel (%p175) target = $region32
    $region31: #{ribonanzanet_forward.59} parent=5 // pred_region
      // Predicated region
      $region33: #{ribonanzanet_forward.59} parent=31 // pred_check
        %p178 = pneg %p31
      $region34: #{ribonanzanet_forward.59} parent=31 // pred_check_branch
        %180 = sbr.rel (%p178) target = $region36
      $region35: #{ribonanzanet_forward.59} parent=31 // pred_region
        %p181 = scmp.lt.s32.totalorder %s11, 1
        %s182 = scalar_select %p181, %s11, 1
        %s183 = smul.addr %s182, 8
        %s184 = scalar_lea.vmem %s0, %s183
      $region36: #{ribonanzanet_forward.59} parent=31 // pred_fallthru
        _
    $region32: #{ribonanzanet_forward.59} parent=5 // pred_fallthru
      _
    %p185 = scmp.le.s32.totalorder 1, %s11
    %p186 = scmp.lt.s32.totalorder %s11, 3
    %p187 = pnand %p185, %p186
    %p188 = pneg %p187
    // Predicated region
    $region37: #{ribonanzanet_forward.59} parent=5 // pred_check
      _
    $region38: #{ribonanzanet_forward.59} parent=5 // pred_check_branch
      %190 = sbr.rel (%p187) target = $region40
    $region39: #{ribonanzanet_forward.59} parent=5 // pred_region
      %s191 = ssub.s32 %s11, 1
      %p192 = scmp.lt.s32.totalorder %s16, 1
      %s193 = scalar_select %p192, %s16, 1
      %s194 = smul.addr %s193, 8
      %s195 = scalar_lea.vmem %s0, %s194
      %p196 = pneg %p37
      %p197 = pneg %p34
      %p198 = pneg %p58
      %p199 = pneg %p55
      %p200 = pneg %p79
      %p201 = pneg %p76
      %p202 = pneg %p100
      %p203 = pneg %p97
      %p204 = pneg %p121
      %p205 = pneg %p118
      %p206 = pneg %p147
      %p207 = pneg %p144
      %p208 = scmp.lt.s32.totalorder %s16, 1
      %s209 = scalar_select %p208, %s16, 1
      %s210 = smul.addr %s209, 8
      %s211 = scalar_lea.vmem %s5, %s210
      %p212 = scmp.lt.s32.totalorder %s16, 1
      %s213 = scalar_select %p212, %s16, 1
      %s214 = smul.addr %s213, 8
      %s215 = scalar_lea.vmem %s0, %s214
      %p216 = scmp.lt.s32.totalorder %s16, 1
      %s217 = scalar_select %p216, %s16, 1
      %s218 = smul.addr %s217, 8
      %s219 = scalar_lea.vmem %s5, %s218
      %v221 = vld [vmem:[%s215] sm:$0xff]
      %v222 = vpack.c.bf16 %v221, %v221
      %v223 = vld [vmem:[%s1] sm:$0xf]
      %v224 = vld [vmem:[%s1 + $0x4] sm:$0xf]
      %v225 = vld [vmem:[%s1 + $0x8] sm:$0xf]
      %v226 = vld [vmem:[%s1 + $0xc] sm:$0xf]
      %v227 = vld [vmem:[%s2] sm:$0x1]
      %v229 = vperm.slane %v227, 0
      %v235 = vunpack.c.l.b16 %v223
      %v236 = vunpack.c.l.b16 %v224
      %v237 = vunpack.c.l.b16 %v225
      %v238 = vunpack.c.l.b16 %v226
      %v239 = vpack.c.b16 %v236, %v235
      %v240 = vpack.c.b16 %v238, %v237
      %vm243 = vcmask 261120
      %v245 = vsel %vm243, %v222, 0
      %247 = vmatpush.bf16.msra.mxu0 0
      %248 = vmatpush.bf16.msra.mxu0 0
      %249 = vmatpush.bf16.msra.mxu0 0
      %250 = vmatpush.bf16.msra.mxu0 0
      %251 = vmatpush.bf16.msra.mxu0 0
      %252 = vmatpush.bf16.msra.mxu0 0
      %253 = vmatpush.bf16.msra.mxu0 %v240
      %254 = vmatpush.bf16.msra.mxu0 %v239
      %255 = vmatmul.bf16.gmra.mxu0 %v245
      %v256 = vpop.f32.mrf.mxu0
      %v257 = vadd.f32 %v229, %v256
      %v258 = vpop.f32.mrf.mxu0
      %259 = vdwg.mxu0
      %v260 = vadd.f32 %v221, %v257
      %v261 = vsel %vm243, %v260, 0.0
      %262 = vadd.xlane.f32.xlu0 %v261
      %v263 = vpop.xlane.xlu0 %262
      %v264 = vrcp.pop 32.0
      %v265 = vmul.f32 32.0, %v264
      %v266 = vsub.f32 1.0, %v265
      %v267 = vmul.f32 %v264, %v266
      %v268 = vadd.f32 %v264, %v267
      %vm269 = vweird.f32 %v264
      %v270 = vsel %vm269, %v264, %v268
      %v271 = vmul.f32 %v263, %v270
      %v272 = vsub.f32 %v260, %v271
      %v273 = vmul.f32 %v272, %v272
      %v274 = vsel %vm243, %v273, 0.0
      %275 = vadd.xlane.f32.xlu0 %v274
      %v276 = vpop.xlane.xlu0 %275
      %v277 = vmul.f32 %v276, %v270
      %v278 = vadd.f32 %v277, 1e-05
      %v279 = vrsqrt.pop %v278
      %v280 = vmul.f32 %v279, %v278
      %v281 = vmul.f32 %v280, %v279
      %v282 = vmul.f32 0.5, %v281
      %v283 = vsub.f32 1.5, %v282
      %v284 = vmul.f32 %v279, %v283
      %vm285 = vweird.f32 %v278
      %vm286 = vweird.f32 %v279
      %vm287 = vmor %vm285, %vm286
      %v288 = vsel %vm287, %v279, %v284
      %v289 = vmul.f32 %v272, %v288
      %v290 = vld [vmem:[%s3] sm:$0x1]
      %v292 = vperm.slane %v290, 0
      %v294 = vmul.f32 %v289, %v292
      %v295 = vld [vmem:[%s4] sm:$0x1]
      %v297 = vperm.slane %v295, 0
      %v299 = vadd.f32 %v294, %v297
      %300 = vst.msk [vmem:[%s219] sm:$0xff] %vm243, %v299
      %p301 = scmp.lt.s32.totalorder %s16, 1
      %s302 = scalar_select %p301, %s16, 1
      %s303 = smul.addr %s302, 8
      %s304 = scalar_lea.vmem %s5, %s303
      // Predicated region
      $region41: #{ribonanzanet_forward.59} parent=39 // pred_check
        %p305 = pneg %p144
      $region42: #{ribonanzanet_forward.59} parent=39 // pred_check_branch
        %307 = sbr.rel (%p305) target = $region44
      $region43: #{ribonanzanet_forward.59} parent=39 // pred_region
        _
      $region44: #{ribonanzanet_forward.59} parent=39 // pred_fallthru
        _
    $region40: #{ribonanzanet_forward.59} parent=5 // pred_fallthru
      _
    %p308 = scmp.le.s32.totalorder 2, %s11
    // Predicated region
    $region45: #{ribonanzanet_forward.59} parent=5 // pred_check
      %p309 = pneg %p308
    $region46: #{ribonanzanet_forward.59} parent=5 // pred_check_branch
      %311 = sbr.rel (%p309) target = $region48
    $region47: #{ribonanzanet_forward.59} parent=5 // pred_region
      %s312 = ssub.s32 %s11, 2
      // Predicated region
      $region49: #{ribonanzanet_forward.59} parent=47 // pred_check
        %p313 = pneg %p150
      $region50: #{ribonanzanet_forward.59} parent=47 // pred_check_branch
        %315 = sbr.rel (%p313) target = $region52
      $region51: #{ribonanzanet_forward.59} parent=47 // pred_region
        %p316 = scmp.lt.s32.totalorder %s17, 1
        %s317 = scalar_select %p316, %s17, 1
        %s318 = smul.addr %s317, 8
        %s319 = scalar_lea.vmem %s5, %s318
      $region52: #{ribonanzanet_forward.59} parent=47 // pred_fallthru
        _
    $region48: #{ribonanzanet_forward.59} parent=5 // pred_fallthru
      _
  $region6: #{ribonanzanet_forward.59} parent=0 // loop_footer
    %s15 = sadd.s32 1, %s11
  $region7: #{ribonanzanet_forward.59} parent=0 // loop_footer_branch
    %10 = sbr.rel target = $region3
  $region8: #{ribonanzanet_forward.59} parent=0 // loop_exit
    _

// kernel: ribonanzanet_forward.69
$region0: #{ribonanzanet_forward.69}
  #allocation0 [shape = 'u32[]', space=smem, size = 0x4, offset = 0x4, fixed_abs, tag = 'smem constant byte address 0x4 - core index']
  #allocation1 [shape = 'u32[72,128]{1,0:T(1,128)}', space=vmem, size = 0x9000, scoped, tag = 'internal scratch']
  %s0 = inlined_call_operand.vmem [shape: f32[16,32], index: 0, kind: input, shape index: {}]
  %s1 = inlined_call_operand.vmem [shape: bf16[32,2], index: 1, kind: input, shape index: {}]
  %s2 = inlined_call_operand.vmem [shape: f32[1,2], index: 2, kind: input, shape index: {}]
  %s3 = inlined_call_operand.vmem [shape: f32[16,2], index: 3, kind: output, shape index: {}]
  %s4 = sld [smem:[#allocation0]]
  $region45: #{ribonanzanet_forward.69} parent=0
    _
  %s6 = ssub.s32 1, %s4
  %s7 = scalar_select 0, %s6, %s4
  loop: start=0, step=1, limit=4
  $region2: #{ribonanzanet_forward.69} parent=0 // loop_pre_header
    _
  $region3: #{ribonanzanet_forward.69} parent=0 // loop_header
    %s9 = sphi 0, %s13
    %p10 = scmp.ge.s32.totalorder %s9, 4
    %s19 = sphi 0, %s21
    %s22 = sphi 0, %s19
    %s23 = sphi 0, %s22
    %s39 = sphi 0, %s23
    %s43 = sphi 0, %s43
    %s45 = sphi 0, %s43
    %s46 = sphi 0, %s45
    %s60 = sphi 0, %s46
    %s64 = sphi 0, %s64
    %s66 = sphi 0, %s64
    %s67 = sphi 0, %s66
    %s81 = sphi 0, %s67
    %s87 = sphi 0, %s89
    %s90 = sphi 0, %s87
    %s91 = sphi 0, %s90
    %s107 = sphi 0, %s91
  $region4: #{ribonanzanet_forward.69} parent=0 // loop_header_branch
    %12 = sbr.rel (%p10) target = $region8
  $region5: #{ribonanzanet_forward.69} parent=0 // loop_body
    %s14 = ssub.s32 %s9, 1
    %s15 = ssub.s32 %s9, 2
    %s16 = sadd.s32 %s9, 1
    %s17 = ssub.s32 %s9, %s16
    %p18 = scmp.eq.s32.totalorder %s17, 0
    %s20 = sadd.s32 %s19, 1
    %s21 = scalar_select %p18, %s19, %s20
    %p24 = pneg %p18
    %p25 = scmp.eq.s32.totalorder %s9, 1
    %p26 = por %p24, %p25
    %p27 = scmp.ne.s32.totalorder %s19, %s22
    %p28 = scmp.eq.s32.totalorder %s9, 0
    %p29 = por %p27, %p28
    %p30 = scmp.ne.s32.totalorder %s19, %s22
    %p31 = scmp.eq.s32.totalorder %s14, 1
    %p32 = por %p30, %p31
    %p33 = scmp.ne.s32.totalorder %s22, %s23
    %p34 = scmp.eq.s32.totalorder %s14, 0
    %p35 = por %p33, %p34
    %p36 = scmp.ne.s32.totalorder %s22, %s23
    %p37 = scmp.eq.s32.totalorder %s15, 1
    %p38 = por %p36, %p37
    %p40 = scmp.ne.s32.totalorder %s23, %s39
    %p41 = scmp.eq.s32.totalorder %s15, 0
    %p42 = por %p40, %p41
    %s44 = sadd.s32 %s43, 1
    %p47 = scmp.eq.s32.totalorder %s9, 1
    %p48 = scmp.ne.s32.totalorder %s43, %s45
    %p49 = scmp.eq.s32.totalorder %s9, 0
    %p50 = por %p48, %p49
    %p51 = scmp.ne.s32.totalorder %s43, %s45
    %p52 = scmp.eq.s32.totalorder %s14, 1
    %p53 = por %p51, %p52
    %p54 = scmp.ne.s32.totalorder %s45, %s46
    %p55 = scmp.eq.s32.totalorder %s14, 0
    %p56 = por %p54, %p55
    %p57 = scmp.ne.s32.totalorder %s45, %s46
    %p58 = scmp.eq.s32.totalorder %s15, 1
    %p59 = por %p57, %p58
    %p61 = scmp.ne.s32.totalorder %s46, %s60
    %p62 = scmp.eq.s32.totalorder %s15, 0
    %p63 = por %p61, %p62
    %s65 = sadd.s32 %s64, 1
    %p68 = scmp.eq.s32.totalorder %s9, 1
    %p69 = scmp.ne.s32.totalorder %s64, %s66
    %p70 = scmp.eq.s32.totalorder %s9, 0
    %p71 = por %p69, %p70
    %p72 = scmp.ne.s32.totalorder %s64, %s66
    %p73 = scmp.eq.s32.totalorder %s14, 1
    %p74 = por %p72, %p73
    %p75 = scmp.ne.s32.totalorder %s66, %s67
    %p76 = scmp.eq.s32.totalorder %s14, 0
    %p77 = por %p75, %p76
    %p78 = scmp.ne.s32.totalorder %s66, %s67
    %p79 = scmp.eq.s32.totalorder %s15, 1
    %p80 = por %p78, %p79
    %p82 = scmp.ne.s32.totalorder %s67, %s81
    %p83 = scmp.eq.s32.totalorder %s15, 0
    %p84 = por %p82, %p83
    %s85 = ssub.s32 %s9, %s16
    %p86 = scmp.eq.s32.totalorder %s85, 0
    %s88 = sadd.s32 %s87, 1
    %s89 = scalar_select %p86, %s87, %s88
    %p92 = pneg %p86
    %p93 = scmp.eq.s32.totalorder %s9, 1
    %p94 = por %p92, %p93
    %p95 = scmp.ne.s32.totalorder %s87, %s90
    %p96 = scmp.eq.s32.totalorder %s9, 0
    %p97 = por %p95, %p96
    %p98 = scmp.ne.s32.totalorder %s87, %s90
    %p99 = scmp.eq.s32.totalorder %s14, 1
    %p100 = por %p98, %p99
    %p101 = scmp.ne.s32.totalorder %s90, %s91
    %p102 = scmp.eq.s32.totalorder %s14, 0
    %p103 = por %p101, %p102
    %p104 = scmp.ne.s32.totalorder %s90, %s91
    %p105 = scmp.eq.s32.totalorder %s15, 1
    %p106 = por %p104, %p105
    %p108 = scmp.ne.s32.totalorder %s91, %s107
    %p109 = scmp.eq.s32.totalorder %s15, 0
    %p110 = por %p108, %p109
    %p111 = scmp.le.s32.totalorder 1, %s9
    %p112 = scmp.lt.s32.totalorder %s9, 3
    %p113 = pnand %p111, %p112
    %p114 = pneg %p113
    // Predicated region
    $region9: #{ribonanzanet_forward.69} parent=5 // pred_check
      _
    $region10: #{ribonanzanet_forward.69} parent=5 // pred_check_branch
      %116 = sbr.rel (%p113) target = $region12
    $region11: #{ribonanzanet_forward.69} parent=5 // pred_region
      %s117 = ssub.s32 %s9, 1
      // Predicated region
      $region13: #{ribonanzanet_forward.69} parent=11 // pred_check
        %p118 = pneg %p56
      $region14: #{ribonanzanet_forward.69} parent=11 // pred_check_branch
        %120 = sbr.rel (%p118) target = $region16
      $region15: #{ribonanzanet_forward.69} parent=11 // pred_region
        _
      $region16: #{ribonanzanet_forward.69} parent=11 // pred_fallthru
        _
      // Predicated region
      $region17: #{ribonanzanet_forward.69} parent=11 // pred_check
        %p121 = pneg %p77
      $region18: #{ribonanzanet_forward.69} parent=11 // pred_check_branch
        %123 = sbr.rel (%p121) target = $region20
      $region19: #{ribonanzanet_forward.69} parent=11 // pred_region
        _
      $region20: #{ribonanzanet_forward.69} parent=11 // pred_fallthru
        _
    $region12: #{ribonanzanet_forward.69} parent=5 // pred_fallthru
      _
    %p124 = scmp.lt.s32.totalorder %s9, 2
    // Predicated region
    $region21: #{ribonanzanet_forward.69} parent=5 // pred_check
      %p125 = pneg %p124
    $region22: #{ribonanzanet_forward.69} parent=5 // pred_check_branch
      %127 = sbr.rel (%p125) target = $region24
    $region23: #{ribonanzanet_forward.69} parent=5 // pred_region
      // Predicated region
      $region25: #{ribonanzanet_forward.69} parent=23 // pred_check
        %p128 = pneg %p29
      $region26: #{ribonanzanet_forward.69} parent=23 // pred_check_branch
        %130 = sbr.rel (%p128) target = $region28
      $region27: #{ribonanzanet_forward.69} parent=23 // pred_region
        %p131 = scmp.lt.s32.totalorder %s9, 1
        %s132 = scalar_select %p131, %s9, 1
        %s133 = smul.addr %s132, 8
        %s134 = scalar_lea.vmem %s0, %s133
      $region28: #{ribonanzanet_forward.69} parent=23 // pred_fallthru
        _
    $region24: #{ribonanzanet_forward.69} parent=5 // pred_fallthru
      _
    %p135 = scmp.le.s32.totalorder 1, %s9
    %p136 = scmp.lt.s32.totalorder %s9, 3
    %p137 = pnand %p135, %p136
    %p138 = pneg %p137
    // Predicated region
    $region29: #{ribonanzanet_forward.69} parent=5 // pred_check
      _
    $region30: #{ribonanzanet_forward.69} parent=5 // pred_check_branch
      %140 = sbr.rel (%p137) target = $region32
    $region31: #{ribonanzanet_forward.69} parent=5 // pred_region
      %s141 = ssub.s32 %s9, 1
      %p142 = scmp.lt.s32.totalorder %s14, 1
      %s143 = scalar_select %p142, %s14, 1
      %s144 = smul.addr %s143, 8
      %s145 = scalar_lea.vmem %s0, %s144
      %p146 = pneg %p35
      %p147 = pneg %p32
      %p148 = pneg %p56
      %p149 = pneg %p53
      %p150 = pneg %p77
      %p151 = pneg %p74
      %p152 = pneg %p103
      %p153 = pneg %p100
      %p154 = scmp.lt.s32.totalorder %s14, 1
      %s155 = scalar_select %p154, %s14, 1
      %s156 = smul.addr %s155, 8
      %s157 = scalar_lea.vmem %s3, %s156
      %p158 = scmp.lt.s32.totalorder %s14, 1
      %s159 = scalar_select %p158, %s14, 1
      %s160 = smul.addr %s159, 8
      %s161 = scalar_lea.vmem %s0, %s160
      %p162 = scmp.lt.s32.totalorder %s14, 1
      %s163 = scalar_select %p162, %s14, 1
      %s164 = smul.addr %s163, 8
      %s165 = scalar_lea.vmem %s3, %s164
      %v167 = vld [vmem:[%s161] sm:$0xff]
      %v168 = vpack.c.bf16 %v167, %v167
      %v169 = vld [vmem:[%s1] sm:$0xf]
      %v170 = vld [vmem:[%s1 + $0x4] sm:$0xf]
      %v171 = vld [vmem:[%s1 + $0x8] sm:$0xf]
      %v172 = vld [vmem:[%s1 + $0xc] sm:$0xf]
      %v173 = vld [vmem:[%s2] sm:$0x1]
      %v175 = vperm.slane %v173, 0
      %v181 = vunpack.c.l.b16 %v169
      %v182 = vunpack.c.l.b16 %v170
      %v183 = vunpack.c.l.b16 %v171
      %v184 = vunpack.c.l.b16 %v172
      %v185 = vpack.c.b16 %v182, %v181
      %v186 = vpack.c.b16 %v184, %v183
      %vm189 = vcmask 261120
      %v191 = vsel %vm189, %v168, 0
      %193 = vmatpush.bf16.msra.mxu0 0
      %194 = vmatpush.bf16.msra.mxu0 0
      %195 = vmatpush.bf16.msra.mxu0 0
      %196 = vmatpush.bf16.msra.mxu0 0
      %197 = vmatpush.bf16.msra.mxu0 0
      %198 = vmatpush.bf16.msra.mxu0 0
      %199 = vmatpush.bf16.msra.mxu0 %v186
      %200 = vmatpush.bf16.msra.mxu0 %v185
      %201 = vmatmul.bf16.gmra.mxu0 %v191
      %v202 = vpop.f32.mrf.mxu0
      %v203 = vadd.f32 %v175, %v202
      %v204 = vpop.f32.mrf.mxu0
      %205 = vdwg.mxu0
      %vm206 = vcmask 15360
      %207 = vst.msk [vmem:[%s165] sm:$0xff] %vm206, %v203
      %p208 = scmp.lt.s32.totalorder %s14, 1
      %s209 = scalar_select %p208, %s14, 1
      %s210 = smul.addr %s209, 8
      %s211 = scalar_lea.vmem %s3, %s210
      // Predicated region
      $region33: #{ribonanzanet_forward.69} parent=31 // pred_check
        %p212 = pneg %p100
      $region34: #{ribonanzanet_forward.69} parent=31 // pred_check_branch
        %214 = sbr.rel (%p212) target = $region36
      $region35: #{ribonanzanet_forward.69} parent=31 // pred_region
        _
      $region36: #{ribonanzanet_forward.69} parent=31 // pred_fallthru
        _
    $region32: #{ribonanzanet_forward.69} parent=5 // pred_fallthru
      _
    %p215 = scmp.le.s32.totalorder 2, %s9
    // Predicated region
    $region37: #{ribonanzanet_forward.69} parent=5 // pred_check
      %p216 = pneg %p215
    $region38: #{ribonanzanet_forward.69} parent=5 // pred_check_branch
      %218 = sbr.rel (%p216) target = $region40
    $region39: #{ribonanzanet_forward.69} parent=5 // pred_region
      %s219 = ssub.s32 %s9, 2
      // Predicated region
      $region41: #{ribonanzanet_forward.69} parent=39 // pred_check
        %p220 = pneg %p106
      $region42: #{ribonanzanet_forward.69} parent=39 // pred_check_branch
        %222 = sbr.rel (%p220) target = $region44
      $region43: #{ribonanzanet_forward.69} parent=39 // pred_region
        %p223 = scmp.lt.s32.totalorder %s15, 1
        %s224 = scalar_select %p223, %s15, 1
        %s225 = smul.addr %s224, 8
        %s226 = scalar_lea.vmem %s3, %s225
      $region44: #{ribonanzanet_forward.69} parent=39 // pred_fallthru
        _
    $region40: #{ribonanzanet_forward.69} parent=5 // pred_fallthru
      _
  $region6: #{ribonanzanet_forward.69} parent=0 // loop_footer
    %s13 = sadd.s32 1, %s9
  $region7: #{ribonanzanet_forward.69} parent=0 // loop_footer_branch
    %8 = sbr.rel target = $region3
  $region8: #{ribonanzanet_forward.69} parent=0 // loop_exit
    _

</llo_original>
